<compile_context>
chip_gen: v7x
topology: tpu7x:2x2x1
jax: 0.10.0
libtpu: 0.0.40
codegen_flags: <defaults>
</compile_context>

<pallas_src>
import functools

import jax
import jax.numpy as jnp
from jax import lax
from jax.experimental import pallas as pl
from jax.experimental.pallas import tpu as pltpu


def _round_up(x, m):
    return (x + m - 1) // m * m


# ---------------------------------------------------------------------------
# Fused bottleneck kernel (one sample per grid step)
# ---------------------------------------------------------------------------

def _bottleneck_kernel(xp_ref, msk_ref, w1_ref, b1_ref, w2_ref, b2_ref,
                       w3_ref, b3_ref, w4_ref, b4_ref, *rest, ST, expand):
    if expand:
        wds_ref, bds_ref, o_ref = rest
    else:
        (o_ref,) = rest

    D, Hp, Wp, Cin = xp_ref.shape       # Hp = H + 2, Wp = W + 2 : (1,3,3) halo from wrapper
    H, W = Hp - 2, Wp - 2
    Pp = w1_ref.shape[1]                # bottleneck width padded to the sublane unit (8)
    outc = o_ref.shape[-1]
    HW = H * W
    M = D * HW                          # valid voxels
    Mp = D * Hp * Wp                    # voxels incl. the spatial halo

    xp = xp_ref[...]                                              # (D, Hp, Wp, Cin)

    # ---- conv1 (1x1x1, stride already applied) + bn1 + relu, computed on the haloed grid.
    #      The halo ring is then zeroed via a precomputed mask so that the (1,3,3) conv
    #      below sees proper zero padding (conv1's bias would otherwise leak into it).
    h1 = jnp.dot(xp.reshape(Mp, Cin), w1_ref[...],
                 preferred_element_type=jnp.float32) + b1_ref[...]
    h1 = jnp.maximum(h1, 0.0).reshape(D, Hp, Wp, Pp)
    h1 = h1 * msk_ref[...]                                        # (1, Hp, Wp, 1) broadcast

    w2 = w2_ref[...]                                              # (9, Pp, Pp)  (kh*3+kw, ci, co)
    w3 = w3_ref[...]                                              # (3, Pp, Pp)  (kt, ci, co)

    def spatial(vg):
        # (1,3,3) conv, padding (0,1,1): 9 accumulating dots with K = Pp.
        # vg: (D, Hp, Wp, Pp) with a zeroed halo ring  ->  (M, Pp)
        acc = jnp.zeros((M, Pp), jnp.float32)
        for t in range(9):
            kh, kw = t // 3, t % 3
            tap = vg[:, kh:kh + H, kw:kw + W, :].reshape(M, Pp)
            acc = acc + jnp.dot(tap, w2[t], preferred_element_type=jnp.float32)
        return jnp.maximum(acc + b2_ref[...], 0.0)

    def temporal(v):
        # (3,1,1) conv, padding (1,0,0): zero-pad D in VMEM (major-dim concat), 3 dots.
        # v: (M, Pp) on the valid grid  ->  (M, Pp)
        vd = v.reshape(D, HW, Pp)
        z = jnp.zeros((1, HW, Pp), jnp.float32)
        vpad = jnp.concatenate([z, vd, z], axis=0)                # (D + 2, HW, Pp)
        acc = jnp.zeros((M, Pp), jnp.float32)
        for t in range(3):
            tap = vpad[t:t + D].reshape(M, Pp)
            acc = acc + jnp.dot(tap, w3[t], preferred_element_type=jnp.float32)
        return jnp.maximum(acc + b3_ref[...], 0.0)

    h1v = h1[:, 1:H + 1, 1:W + 1, :].reshape(M, Pp)               # valid-grid h1

    if ST == 'A':
        h3 = temporal(spatial(h1))
    elif ST == 'B':
        h3 = temporal(h1v) + spatial(h1)
    else:  # 'C'
        h2 = spatial(h1)
        h3 = h2 + temporal(h2)

    # ---- conv4 (1x1x1) + bn4, fused residual add + final ReLU
    y = jnp.dot(h3, w4_ref[...], preferred_element_type=jnp.float32) + b4_ref[...]
    xv = xp[:, 1:H + 1, 1:W + 1, :].reshape(M, Cin)               # valid-grid input
    if expand:
        r = jnp.dot(xv, wds_ref[...], preferred_element_type=jnp.float32) + bds_ref[...]
    else:
        r = xv                                                    # outc == Cin, stride == 1
    out = jnp.maximum(y + r, 0.0)
    o_ref[...] = out.reshape(D, H, W, outc)


# ---------------------------------------------------------------------------
# Wrapper: weight/BN folding + single fused pallas_call
# ---------------------------------------------------------------------------

def bottleneck_forward_pallas(x, params, *, block, expand, stride):
    ST = ('A', 'B', 'C')[(block - 1) % 3]
    N, Cin, D, H, W = x.shape
    planes = params['conv1_w'].shape[0]
    outc = params['conv4_w'].shape[0]

    # Only shape-consistent configurations of the PyTorch module are supported
    # (downsample is hard-coded to stride 2; identity residual requires stride 1).
    if expand:
        if stride != 2:
            raise NotImplementedError("expand=True is only shape-consistent with stride=2")
    else:
        if stride != 1 or outc != Cin:
            raise NotImplementedError("expand=False requires stride=1 and conv4 out == inplanes")

    f32 = jnp.float32

    # One fused XLA copy on the smallest activation in the chain:
    # NCDHW -> NDHWC, apply the conv1/downsample stride, add the (1,3,3) spatial halo.
    x_cl = jnp.transpose(x, (0, 2, 3, 4, 1))
    if stride > 1:
        x_cl = x_cl[:, ::stride, ::stride, ::stride, :]
    _, D2, H2, W2, _ = x_cl.shape
    xp = jnp.pad(x_cl, ((0, 0), (0, 0), (1, 1), (1, 1), (0, 0)))

    Pp = _round_up(planes, 8)   # pad the bottleneck width to the sublane unit only
                                # (weights / VMEM intermediates -- HBM keeps true channels)

    def fold(bn, conv_b, eps=1e-5):
        g, b, m, v = bn
        s = g / jnp.sqrt(v + eps)
        return s, b + (conv_b - m) * s

    s1, t1 = fold(params['bn1'], params['conv1_b'])
    w1 = (params['conv1_w'][:, :, 0, 0, 0] * s1[:, None]).T.astype(f32)        # (Cin, planes)
    w1 = jnp.pad(w1, ((0, 0), (0, Pp - planes)))
    b1 = jnp.pad(t1, (0, Pp - planes)).reshape(1, Pp).astype(f32)

    s2, t2 = fold(params['bn2'], params['conv2_b'])
    w2 = params['conv2_w'][:, :, 0] * s2[:, None, None, None]                   # (co, ci, 3, 3)
    w2 = jnp.transpose(w2, (2, 3, 1, 0))                                        # (kh, kw, ci, co)
    w2 = jnp.pad(w2, ((0, 0), (0, 0), (0, Pp - planes), (0, Pp - planes)))
    w2 = w2.reshape(9, Pp, Pp).astype(f32)
    b2 = jnp.pad(t2, (0, Pp - planes)).reshape(1, Pp).astype(f32)

    s3, t3 = fold(params['bn3'], params['conv3_b'])
    w3 = params['conv3_w'][:, :, :, 0, 0] * s3[:, None, None]                   # (co, ci, 3)
    w3 = jnp.transpose(w3, (2, 1, 0))                                           # (kt, ci, co)
    w3 = jnp.pad(w3, ((0, 0), (0, Pp - planes), (0, Pp - planes))).astype(f32)
    b3 = jnp.pad(t3, (0, Pp - planes)).reshape(1, Pp).astype(f32)

    s4, t4 = fold(params['bn4'], params['conv4_b'])
    w4 = (params['conv4_w'][:, :, 0, 0, 0] * s4[:, None]).T                     # (planes, outc)
    w4 = jnp.pad(w4, ((0, Pp - planes), (0, 0))).astype(f32)
    b4 = t4.reshape(1, outc).astype(f32)

    # 0/1 mask that zeroes the (1,3,3) halo ring of h1 inside the kernel.
    msk = jnp.pad(jnp.ones((1, H2, W2, 1), f32), ((0, 0), (1, 1), (1, 1), (0, 0)))

    args = [xp, msk, w1, b1, w2, b2, w3, b3, w4, b4]
    in_specs = [
        pl.BlockSpec((None, D2, H2 + 2, W2 + 2, Cin), lambda n: (n, 0, 0, 0, 0)),
        pl.BlockSpec((1, H2 + 2, W2 + 2, 1), lambda n: (0, 0, 0, 0)),
        pl.BlockSpec((Cin, Pp), lambda n: (0, 0)),
        pl.BlockSpec((1, Pp), lambda n: (0, 0)),
        pl.BlockSpec((9, Pp, Pp), lambda n: (0, 0, 0)),
        pl.BlockSpec((1, Pp), lambda n: (0, 0)),
        pl.BlockSpec((3, Pp, Pp), lambda n: (0, 0, 0)),
        pl.BlockSpec((1, Pp), lambda n: (0, 0)),
        pl.BlockSpec((Pp, outc), lambda n: (0, 0)),
        pl.BlockSpec((1, outc), lambda n: (0, 0)),
    ]
    if expand:
        sd, td = fold(params['ds_bn'], params['ds_b'])
        wds = (params['ds_w'][:, :, 0, 0, 0] * sd[:, None]).T.astype(f32)       # (Cin, outc)
        bds = td.reshape(1, outc).astype(f32)
        args += [wds, bds]
        in_specs += [pl.BlockSpec((Cin, outc), lambda n: (0, 0)),
                     pl.BlockSpec((1, outc), lambda n: (0, 0))]

    # TODO(synk): for large D*H*W the per-sample block should be tiled over D (with a +-1
    # temporal halo); at these sizes one sample per grid step fits VMEM with large headroom.
    per_sample_bytes = 4 * (D2 * (H2 + 2) * (W2 + 2) * (Cin + 4 * Pp) + D2 * H2 * W2 * 2 * outc)
    if per_sample_bytes > 24 * 1024 * 1024:
        raise NotImplementedError("per-sample block too large for one VMEM step; tile over D")

    out = pl.pallas_call(
        functools.partial(_bottleneck_kernel, ST=ST, expand=expand),
        grid=(N,),
        in_specs=in_specs,
        out_specs=pl.BlockSpec((None, D2, H2, W2, outc), lambda n: (n, 0, 0, 0, 0)),
        out_shape=jax.ShapeDtypeStruct((N, D2, H2, W2, outc), f32),
        compiler_params=pltpu.CompilerParams(dimension_semantics=("parallel",)),
    )(*args)

    return jnp.transpose(out, (0, 4, 1, 2, 3))                    # back to NCDHW


# ---------------------------------------------------------------------------
# Pure-JAX reference (mirrors the PyTorch module, eval-mode BN)
# ---------------------------------------------------------------------------

def _ref_conv(x, w, b, stride, padding):
    out = lax.conv_general_dilated(
        x, w, window_strides=(stride,) * 3,
        padding=[(pp, pp) for pp in padding],
        dimension_numbers=('NCDHW', 'OIDHW', 'NCDHW'))
    return out + b[None, :, None, None, None]


def _ref_bn(x, bn, eps=1e-5):
    g, beta, m, v = bn
    sh = (1, -1, 1, 1, 1)
    return (x - m.reshape(sh)) / jnp.sqrt(v.reshape(sh) + eps) * g.reshape(sh) + beta.reshape(sh)


def bottleneck_forward_ref(x, p, *, block, expand, stride):
    relu = lambda t: jnp.maximum(t, 0.0)
    ST = ('A', 'B', 'C')[(block - 1) % 3]
    out = relu(_ref_bn(_ref_conv(x, p['conv1_w'], p['conv1_b'], stride, (0, 0, 0)), p['bn1']))
    sconv = lambda t: relu(_ref_bn(_ref_conv(t, p['conv2_w'], p['conv2_b'], 1, (0, 1, 1)), p['bn2']))
    tconv = lambda t: relu(_ref_bn(_ref_conv(t, p['conv3_w'], p['conv3_b'], 1, (1, 0, 0)), p['bn3']))
    if ST == 'A':
        out = tconv(sconv(out))
    elif ST == 'B':
        out = tconv(out) + sconv(out)
    else:
        out = sconv(out)
        out = out + tconv(out)
    out = _ref_bn(_ref_conv(out, p['conv4_w'], p['conv4_b'], 1, (0, 0, 0)), p['bn4'])
    if expand:
        residual = _ref_bn(_ref_conv(x, p['ds_w'], p['ds_b'], 2, (0, 0, 0)), p['ds_bn'])
    else:
        residual = x
    return relu(out + residual)


# ---------------------------------------------------------------------------
# Deterministic parameter init
# ---------------------------------------------------------------------------

def _init_conv(key, cout, cin, kd, kh, kw):
    kw_, kb_ = jax.random.split(key)
    w = 0.1 * jax.random.normal(kw_, (cout, cin, kd, kh, kw), jnp.float32)
    b = 0.1 * jax.random.normal(kb_, (cout,), jnp.float32)
    return w, b


def _init_bn(key, c):
    k1, k2, k3, k4 = jax.random.split(key, 4)
    gamma = 1.0 + 0.1 * jax.random.normal(k1, (c,), jnp.float32)
    beta = 0.1 * jax.random.normal(k2, (c,), jnp.float32)
    mean = 0.1 * jax.random.normal(k3, (c,), jnp.float32)
    var = 0.5 + jnp.abs(jax.random.normal(k4, (c,), jnp.float32)) * 0.5
    return (gamma, beta, mean, var)


def make_params(key, inplanes, planes, expand):
    ks = jax.random.split(key, 10)
    outc = planes * 4 if expand else inplanes
    p = {}
    p['conv1_w'], p['conv1_b'] = _init_conv(ks[0], planes, inplanes, 1, 1, 1)
    p['bn1'] = _init_bn(ks[1], planes)
    p['conv2_w'], p['conv2_b'] = _init_conv(ks[2], planes, planes, 1, 3, 3)
    p['bn2'] = _init_bn(ks[3], planes)
    p['conv3_w'], p['conv3_b'] = _init_conv(ks[4], planes, planes, 3, 1, 1)
    p['bn3'] = _init_bn(ks[5], planes)
    p['conv4_w'], p['conv4_b'] = _init_conv(ks[6], outc, planes, 1, 1, 1)
    p['bn4'] = _init_bn(ks[7], outc)
    if expand:
        p['ds_w'], p['ds_b'] = _init_conv(ks[8], planes * 4, inplanes, 1, 1, 1)
        p['ds_bn'] = _init_bn(ks[9], planes * 4)
    return p


# ---------------------------------------------------------------------------
# Main
# ---------------------------------------------------------------------------

if __name__ == "__main__":
    key = jax.random.PRNGKey(0)
    N, D, H, W = 2, 8, 16, 16

    configs = [
        # (inplanes, planes, block, expand, stride)
        (8, 4, 1, True, 2),     # ST='A', expanding block with downsample
        (8, 4, 2, True, 2),     # ST='B'
        (8, 4, 3, True, 2),     # ST='C'
        (16, 4, 1, False, 1),   # ST='A', identity residual (no expand)
    ]

    for idx, (inplanes, planes, block, expand, stride) in enumerate(configs):
        kx, kp = jax.random.split(jax.random.fold_in(key, idx))
        x = jax.random.normal(kx, (N, inplanes, D, H, W), jnp.float32)
        params = make_params(kp, inplanes, planes, expand)

        fwd = jax.jit(functools.partial(bottleneck_forward_pallas,
                                        block=block, expand=expand, stride=stride))
        out = jax.block_until_ready(fwd(x, params))
        ref = jax.block_until_ready(
            bottleneck_forward_ref(x, params, block=block, expand=expand, stride=stride))

        assert out.shape == ref.shape, (out.shape, ref.shape)
        if not jnp.allclose(out, ref, rtol=2e-4, atol=2e-4):
            raise AssertionError(
                f"config {idx}: mismatch, max abs err = {float(jnp.max(jnp.abs(out - ref)))}")

    print("KERNEL_OK")
</pallas_src>

<mosaic_0001>
module attributes {stable_mosaic.version = 11 : i64} {
  func.func @_bottleneck_kernel(%arg0: i32, %arg1: memref<1x4x10x10x8xf32, #tpu.memory_space<vmem>>, %arg2: memref<1x10x10x1xf32, #tpu.memory_space<vmem>>, %arg3: memref<8x8xf32, #tpu.memory_space<vmem>>, %arg4: memref<1x8xf32, #tpu.memory_space<vmem>>, %arg5: memref<9x8x8xf32, #tpu.memory_space<vmem>>, %arg6: memref<1x8xf32, #tpu.memory_space<vmem>>, %arg7: memref<3x8x8xf32, #tpu.memory_space<vmem>>, %arg8: memref<1x8xf32, #tpu.memory_space<vmem>>, %arg9: memref<8x16xf32, #tpu.memory_space<vmem>>, %arg10: memref<1x16xf32, #tpu.memory_space<vmem>>, %arg11: memref<8x16xf32, #tpu.memory_space<vmem>>, %arg12: memref<1x16xf32, #tpu.memory_space<vmem>>, %arg13: memref<1x4x8x8x16xf32, #tpu.memory_space<vmem>>) attributes {dimension_semantics = [#tpu.dimension_semantics<parallel>], iteration_bounds = array<i64: 2>, scalar_prefetch = 0 : i64, scratch_operands = 0 : i64, tpu.core_type = #tpu.core_type<tc>, window_params = [{transform_indices = @transform_0, window_bounds = array<i64: 1, 4, 10, 10, 8>}, {pipeline_mode = #tpu.pipeline_mode<synchronous>, transform_indices = @transform_1, window_bounds = array<i64: 1, 10, 10, 1>}, {pipeline_mode = #tpu.pipeline_mode<synchronous>, transform_indices = @transform_2, window_bounds = array<i64: 8, 8>}, {pipeline_mode = #tpu.pipeline_mode<synchronous>, transform_indices = @transform_3, window_bounds = array<i64: 1, 8>}, {pipeline_mode = #tpu.pipeline_mode<synchronous>, transform_indices = @transform_4, window_bounds = array<i64: 9, 8, 8>}, {pipeline_mode = #tpu.pipeline_mode<synchronous>, transform_indices = @transform_5, window_bounds = array<i64: 1, 8>}, {pipeline_mode = #tpu.pipeline_mode<synchronous>, transform_indices = @transform_6, window_bounds = array<i64: 3, 8, 8>}, {pipeline_mode = #tpu.pipeline_mode<synchronous>, transform_indices = @transform_7, window_bounds = array<i64: 1, 8>}, {pipeline_mode = #tpu.pipeline_mode<synchronous>, transform_indices = @transform_8, window_bounds = array<i64: 8, 16>}, {pipeline_mode = #tpu.pipeline_mode<synchronous>, transform_indices = @transform_9, window_bounds = array<i64: 1, 16>}, {pipeline_mode = #tpu.pipeline_mode<synchronous>, transform_indices = @transform_10, window_bounds = array<i64: 8, 16>}, {pipeline_mode = #tpu.pipeline_mode<synchronous>, transform_indices = @transform_11, window_bounds = array<i64: 1, 16>}, {transform_indices = @transform_12, window_bounds = array<i64: 1, 4, 8, 8, 16>}]} {
    %c0 = arith.constant 0 : index
    %c0_0 = arith.constant 0 : index
    %c0_1 = arith.constant 0 : index
    %c0_2 = arith.constant 0 : index
    %c0_3 = arith.constant 0 : index
    %0 = vector.load %arg1[%c0, %c0_0, %c0_1, %c0_2, %c0_3] : memref<1x4x10x10x8xf32, #tpu.memory_space<vmem>>, vector<1x4x10x10x8xf32>
    %1 = vector.shape_cast %0 : vector<1x4x10x10x8xf32> to vector<4x10x10x8xf32>
    %2 = vector.shape_cast %1 : vector<4x10x10x8xf32> to vector<400x8xf32>
    %c0_4 = arith.constant 0 : index
    %c0_5 = arith.constant 0 : index
    %3 = vector.load %arg3[%c0_4, %c0_5] : memref<8x8xf32, #tpu.memory_space<vmem>>, vector<8x8xf32>
    %cst = arith.constant dense<0.000000e+00> : vector<400x8xf32>
    %4 = tpu.matmul %2, %3, %cst {dimension_numbers = #tpu.dot_dimension_numbers<[1], [0], [0], [1], [0, 0, 1, 1], [], []>} : vector<400x8xf32>, vector<8x8xf32>, vector<400x8xf32> -> vector<400x8xf32>
    %c0_6 = arith.constant 0 : index
    %c0_7 = arith.constant 0 : index
    %5 = vector.load %arg4[%c0_6, %c0_7] : memref<1x8xf32, #tpu.memory_space<vmem>>, vector<1x8xf32>
    %6 = vector.broadcast %5 : vector<1x8xf32> to vector<400x8xf32>
    %7 = arith.addf %4, %6 : vector<400x8xf32>
    %cst_8 = arith.constant 0.000000e+00 : f32
    %8 = vector.broadcast %cst_8 : f32 to vector<400x8xf32>
    %9 = arith.maximumf %7, %8 : vector<400x8xf32>
    %10 = vector.shape_cast %9 : vector<400x8xf32> to vector<4x10x10x8xf32>
    %c0_9 = arith.constant 0 : index
    %c0_10 = arith.constant 0 : index
    %c0_11 = arith.constant 0 : index
    %c0_12 = arith.constant 0 : index
    %11 = vector.load %arg2[%c0_9, %c0_10, %c0_11, %c0_12] : memref<1x10x10x1xf32, #tpu.memory_space<vmem>>, vector<1x10x10x1xf32>
    %12 = vector.broadcast %11 : vector<1x10x10x1xf32> to vector<4x10x10x8xf32>
    %13 = arith.mulf %10, %12 : vector<4x10x10x8xf32>
    %c0_13 = arith.constant 0 : index
    %c0_14 = arith.constant 0 : index
    %c0_15 = arith.constant 0 : index
    %14 = vector.load %arg5[%c0_13, %c0_14, %c0_15] : memref<9x8x8xf32, #tpu.memory_space<vmem>>, vector<9x8x8xf32>
    %c0_16 = arith.constant 0 : index
    %c0_17 = arith.constant 0 : index
    %c0_18 = arith.constant 0 : index
    %15 = vector.load %arg7[%c0_16, %c0_17, %c0_18] : memref<3x8x8xf32, #tpu.memory_space<vmem>>, vector<3x8x8xf32>
    %cst_19 = arith.constant 0.000000e+00 : f32
    %16 = vector.broadcast %cst_19 : f32 to vector<256x8xf32>
    %17 = vector.extract_strided_slice %13 {offsets = [0, 0, 0, 0], sizes = [4, 8, 8, 8], strides = [1, 1, 1, 1]} : vector<4x10x10x8xf32> to vector<4x8x8x8xf32>
    %18 = vector.shape_cast %17 : vector<4x8x8x8xf32> to vector<256x8xf32>
    %19 = vector.extract_strided_slice %14 {offsets = [0, 0, 0], sizes = [1, 8, 8], strides = [1, 1, 1]} : vector<9x8x8xf32> to vector<1x8x8xf32>
    %20 = vector.shape_cast %19 : vector<1x8x8xf32> to vector<8x8xf32>
    %cst_20 = arith.constant dense<0.000000e+00> : vector<256x8xf32>
    %21 = tpu.matmul %18, %20, %cst_20 {dimension_numbers = #tpu.dot_dimension_numbers<[1], [0], [0], [1], [0, 0, 1, 1], [], []>} : vector<256x8xf32>, vector<8x8xf32>, vector<256x8xf32> -> vector<256x8xf32>
    %22 = arith.addf %16, %21 : vector<256x8xf32>
    %23 = vector.extract_strided_slice %13 {offsets = [0, 0, 1, 0], sizes = [4, 8, 8, 8], strides = [1, 1, 1, 1]} : vector<4x10x10x8xf32> to vector<4x8x8x8xf32>
    %24 = vector.shape_cast %23 : vector<4x8x8x8xf32> to vector<256x8xf32>
    %25 = vector.extract_strided_slice %14 {offsets = [1, 0, 0], sizes = [1, 8, 8], strides = [1, 1, 1]} : vector<9x8x8xf32> to vector<1x8x8xf32>
    %26 = vector.shape_cast %25 : vector<1x8x8xf32> to vector<8x8xf32>
    %cst_21 = arith.constant dense<0.000000e+00> : vector<256x8xf32>
    %27 = tpu.matmul %24, %26, %cst_21 {dimension_numbers = #tpu.dot_dimension_numbers<[1], [0], [0], [1], [0, 0, 1, 1], [], []>} : vector<256x8xf32>, vector<8x8xf32>, vector<256x8xf32> -> vector<256x8xf32>
    %28 = arith.addf %22, %27 : vector<256x8xf32>
    %29 = vector.extract_strided_slice %13 {offsets = [0, 0, 2, 0], sizes = [4, 8, 8, 8], strides = [1, 1, 1, 1]} : vector<4x10x10x8xf32> to vector<4x8x8x8xf32>
    %30 = vector.shape_cast %29 : vector<4x8x8x8xf32> to vector<256x8xf32>
    %31 = vector.extract_strided_slice %14 {offsets = [2, 0, 0], sizes = [1, 8, 8], strides = [1, 1, 1]} : vector<9x8x8xf32> to vector<1x8x8xf32>
    %32 = vector.shape_cast %31 : vector<1x8x8xf32> to vector<8x8xf32>
    %cst_22 = arith.constant dense<0.000000e+00> : vector<256x8xf32>
    %33 = tpu.matmul %30, %32, %cst_22 {dimension_numbers = #tpu.dot_dimension_numbers<[1], [0], [0], [1], [0, 0, 1, 1], [], []>} : vector<256x8xf32>, vector<8x8xf32>, vector<256x8xf32> -> vector<256x8xf32>
    %34 = arith.addf %28, %33 : vector<256x8xf32>
    %35 = vector.extract_strided_slice %13 {offsets = [0, 1, 0, 0], sizes = [4, 8, 8, 8], strides = [1, 1, 1, 1]} : vector<4x10x10x8xf32> to vector<4x8x8x8xf32>
    %36 = vector.shape_cast %35 : vector<4x8x8x8xf32> to vector<256x8xf32>
    %37 = vector.extract_strided_slice %14 {offsets = [3, 0, 0], sizes = [1, 8, 8], strides = [1, 1, 1]} : vector<9x8x8xf32> to vector<1x8x8xf32>
    %38 = vector.shape_cast %37 : vector<1x8x8xf32> to vector<8x8xf32>
    %cst_23 = arith.constant dense<0.000000e+00> : vector<256x8xf32>
    %39 = tpu.matmul %36, %38, %cst_23 {dimension_numbers = #tpu.dot_dimension_numbers<[1], [0], [0], [1], [0, 0, 1, 1], [], []>} : vector<256x8xf32>, vector<8x8xf32>, vector<256x8xf32> -> vector<256x8xf32>
    %40 = arith.addf %34, %39 : vector<256x8xf32>
    %41 = vector.extract_strided_slice %13 {offsets = [0, 1, 1, 0], sizes = [4, 8, 8, 8], strides = [1, 1, 1, 1]} : vector<4x10x10x8xf32> to vector<4x8x8x8xf32>
    %42 = vector.shape_cast %41 : vector<4x8x8x8xf32> to vector<256x8xf32>
    %43 = vector.extract_strided_slice %14 {offsets = [4, 0, 0], sizes = [1, 8, 8], strides = [1, 1, 1]} : vector<9x8x8xf32> to vector<1x8x8xf32>
    %44 = vector.shape_cast %43 : vector<1x8x8xf32> to vector<8x8xf32>
    %cst_24 = arith.constant dense<0.000000e+00> : vector<256x8xf32>
    %45 = tpu.matmul %42, %44, %cst_24 {dimension_numbers = #tpu.dot_dimension_numbers<[1], [0], [0], [1], [0, 0, 1, 1], [], []>} : vector<256x8xf32>, vector<8x8xf32>, vector<256x8xf32> -> vector<256x8xf32>
    %46 = arith.addf %40, %45 : vector<256x8xf32>
    %47 = vector.extract_strided_slice %13 {offsets = [0, 1, 2, 0], sizes = [4, 8, 8, 8], strides = [1, 1, 1, 1]} : vector<4x10x10x8xf32> to vector<4x8x8x8xf32>
    %48 = vector.shape_cast %47 : vector<4x8x8x8xf32> to vector<256x8xf32>
    %49 = vector.extract_strided_slice %14 {offsets = [5, 0, 0], sizes = [1, 8, 8], strides = [1, 1, 1]} : vector<9x8x8xf32> to vector<1x8x8xf32>
    %50 = vector.shape_cast %49 : vector<1x8x8xf32> to vector<8x8xf32>
    %cst_25 = arith.constant dense<0.000000e+00> : vector<256x8xf32>
    %51 = tpu.matmul %48, %50, %cst_25 {dimension_numbers = #tpu.dot_dimension_numbers<[1], [0], [0], [1], [0, 0, 1, 1], [], []>} : vector<256x8xf32>, vector<8x8xf32>, vector<256x8xf32> -> vector<256x8xf32>
    %52 = arith.addf %46, %51 : vector<256x8xf32>
    %53 = vector.extract_strided_slice %13 {offsets = [0, 2, 0, 0], sizes = [4, 8, 8, 8], strides = [1, 1, 1, 1]} : vector<4x10x10x8xf32> to vector<4x8x8x8xf32>
    %54 = vector.shape_cast %53 : vector<4x8x8x8xf32> to vector<256x8xf32>
    %55 = vector.extract_strided_slice %14 {offsets = [6, 0, 0], sizes = [1, 8, 8], strides = [1, 1, 1]} : vector<9x8x8xf32> to vector<1x8x8xf32>
    %56 = vector.shape_cast %55 : vector<1x8x8xf32> to vector<8x8xf32>
    %cst_26 = arith.constant dense<0.000000e+00> : vector<256x8xf32>
    %57 = tpu.matmul %54, %56, %cst_26 {dimension_numbers = #tpu.dot_dimension_numbers<[1], [0], [0], [1], [0, 0, 1, 1], [], []>} : vector<256x8xf32>, vector<8x8xf32>, vector<256x8xf32> -> vector<256x8xf32>
    %58 = arith.addf %52, %57 : vector<256x8xf32>
    %59 = vector.extract_strided_slice %13 {offsets = [0, 2, 1, 0], sizes = [4, 8, 8, 8], strides = [1, 1, 1, 1]} : vector<4x10x10x8xf32> to vector<4x8x8x8xf32>
    %60 = vector.shape_cast %59 : vector<4x8x8x8xf32> to vector<256x8xf32>
    %61 = vector.extract_strided_slice %14 {offsets = [7, 0, 0], sizes = [1, 8, 8], strides = [1, 1, 1]} : vector<9x8x8xf32> to vector<1x8x8xf32>
    %62 = vector.shape_cast %61 : vector<1x8x8xf32> to vector<8x8xf32>
    %cst_27 = arith.constant dense<0.000000e+00> : vector<256x8xf32>
    %63 = tpu.matmul %60, %62, %cst_27 {dimension_numbers = #tpu.dot_dimension_numbers<[1], [0], [0], [1], [0, 0, 1, 1], [], []>} : vector<256x8xf32>, vector<8x8xf32>, vector<256x8xf32> -> vector<256x8xf32>
    %64 = arith.addf %58, %63 : vector<256x8xf32>
    %65 = vector.extract_strided_slice %13 {offsets = [0, 2, 2, 0], sizes = [4, 8, 8, 8], strides = [1, 1, 1, 1]} : vector<4x10x10x8xf32> to vector<4x8x8x8xf32>
    %66 = vector.shape_cast %65 : vector<4x8x8x8xf32> to vector<256x8xf32>
    %67 = vector.extract_strided_slice %14 {offsets = [8, 0, 0], sizes = [1, 8, 8], strides = [1, 1, 1]} : vector<9x8x8xf32> to vector<1x8x8xf32>
    %68 = vector.shape_cast %67 : vector<1x8x8xf32> to vector<8x8xf32>
    %cst_28 = arith.constant dense<0.000000e+00> : vector<256x8xf32>
    %69 = tpu.matmul %66, %68, %cst_28 {dimension_numbers = #tpu.dot_dimension_numbers<[1], [0], [0], [1], [0, 0, 1, 1], [], []>} : vector<256x8xf32>, vector<8x8xf32>, vector<256x8xf32> -> vector<256x8xf32>
    %70 = arith.addf %64, %69 : vector<256x8xf32>
    %c0_29 = arith.constant 0 : index
    %c0_30 = arith.constant 0 : index
    %71 = vector.load %arg6[%c0_29, %c0_30] : memref<1x8xf32, #tpu.memory_space<vmem>>, vector<1x8xf32>
    %72 = vector.broadcast %71 : vector<1x8xf32> to vector<256x8xf32>
    %73 = arith.addf %70, %72 : vector<256x8xf32>
    %cst_31 = arith.constant 0.000000e+00 : f32
    %74 = vector.broadcast %cst_31 : f32 to vector<256x8xf32>
    %75 = arith.maximumf %73, %74 : vector<256x8xf32>
    %76 = vector.shape_cast %75 : vector<256x8xf32> to vector<4x64x8xf32>
    %cst_32 = arith.constant 0.000000e+00 : f32
    %77 = vector.broadcast %cst_32 : f32 to vector<1x64x8xf32>
    %78 = tpu.concatenate %77, %76, %77 in 0 : vector<1x64x8xf32>, vector<4x64x8xf32>, vector<1x64x8xf32> -> vector<6x64x8xf32>
    %cst_33 = arith.constant 0.000000e+00 : f32
    %79 = vector.broadcast %cst_33 : f32 to vector<256x8xf32>
    %80 = vector.extract_strided_slice %78 {offsets = [0, 0, 0], sizes = [4, 64, 8], strides = [1, 1, 1]} : vector<6x64x8xf32> to vector<4x64x8xf32>
    %81 = vector.shape_cast %80 : vector<4x64x8xf32> to vector<256x8xf32>
    %82 = vector.extract_strided_slice %15 {offsets = [0, 0, 0], sizes = [1, 8, 8], strides = [1, 1, 1]} : vector<3x8x8xf32> to vector<1x8x8xf32>
    %83 = vector.shape_cast %82 : vector<1x8x8xf32> to vector<8x8xf32>
    %cst_34 = arith.constant dense<0.000000e+00> : vector<256x8xf32>
    %84 = tpu.matmul %81, %83, %cst_34 {dimension_numbers = #tpu.dot_dimension_numbers<[1], [0], [0], [1], [0, 0, 1, 1], [], []>} : vector<256x8xf32>, vector<8x8xf32>, vector<256x8xf32> -> vector<256x8xf32>
    %85 = arith.addf %79, %84 : vector<256x8xf32>
    %86 = vector.extract_strided_slice %78 {offsets = [1, 0, 0], sizes = [4, 64, 8], strides = [1, 1, 1]} : vector<6x64x8xf32> to vector<4x64x8xf32>
    %87 = vector.shape_cast %86 : vector<4x64x8xf32> to vector<256x8xf32>
    %88 = vector.extract_strided_slice %15 {offsets = [1, 0, 0], sizes = [1, 8, 8], strides = [1, 1, 1]} : vector<3x8x8xf32> to vector<1x8x8xf32>
    %89 = vector.shape_cast %88 : vector<1x8x8xf32> to vector<8x8xf32>
    %cst_35 = arith.constant dense<0.000000e+00> : vector<256x8xf32>
    %90 = tpu.matmul %87, %89, %cst_35 {dimension_numbers = #tpu.dot_dimension_numbers<[1], [0], [0], [1], [0, 0, 1, 1], [], []>} : vector<256x8xf32>, vector<8x8xf32>, vector<256x8xf32> -> vector<256x8xf32>
    %91 = arith.addf %85, %90 : vector<256x8xf32>
    %92 = vector.extract_strided_slice %78 {offsets = [2, 0, 0], sizes = [4, 64, 8], strides = [1, 1, 1]} : vector<6x64x8xf32> to vector<4x64x8xf32>
    %93 = vector.shape_cast %92 : vector<4x64x8xf32> to vector<256x8xf32>
    %94 = vector.extract_strided_slice %15 {offsets = [2, 0, 0], sizes = [1, 8, 8], strides = [1, 1, 1]} : vector<3x8x8xf32> to vector<1x8x8xf32>
    %95 = vector.shape_cast %94 : vector<1x8x8xf32> to vector<8x8xf32>
    %cst_36 = arith.constant dense<0.000000e+00> : vector<256x8xf32>
    %96 = tpu.matmul %93, %95, %cst_36 {dimension_numbers = #tpu.dot_dimension_numbers<[1], [0], [0], [1], [0, 0, 1, 1], [], []>} : vector<256x8xf32>, vector<8x8xf32>, vector<256x8xf32> -> vector<256x8xf32>
    %97 = arith.addf %91, %96 : vector<256x8xf32>
    %c0_37 = arith.constant 0 : index
    %c0_38 = arith.constant 0 : index
    %98 = vector.load %arg8[%c0_37, %c0_38] : memref<1x8xf32, #tpu.memory_space<vmem>>, vector<1x8xf32>
    %99 = vector.broadcast %98 : vector<1x8xf32> to vector<256x8xf32>
    %100 = arith.addf %97, %99 : vector<256x8xf32>
    %cst_39 = arith.constant 0.000000e+00 : f32
    %101 = vector.broadcast %cst_39 : f32 to vector<256x8xf32>
    %102 = arith.maximumf %100, %101 : vector<256x8xf32>
    %c0_40 = arith.constant 0 : index
    %c0_41 = arith.constant 0 : index
    %103 = vector.load %arg9[%c0_40, %c0_41] : memref<8x16xf32, #tpu.memory_space<vmem>>, vector<8x16xf32>
    %cst_42 = arith.constant dense<0.000000e+00> : vector<256x16xf32>
    %104 = tpu.matmul %102, %103, %cst_42 {dimension_numbers = #tpu.dot_dimension_numbers<[1], [0], [0], [1], [0, 0, 1, 1], [], []>} : vector<256x8xf32>, vector<8x16xf32>, vector<256x16xf32> -> vector<256x16xf32>
    %c0_43 = arith.constant 0 : index
    %c0_44 = arith.constant 0 : index
    %105 = vector.load %arg10[%c0_43, %c0_44] : memref<1x16xf32, #tpu.memory_space<vmem>>, vector<1x16xf32>
    %106 = vector.broadcast %105 : vector<1x16xf32> to vector<256x16xf32>
    %107 = arith.addf %104, %106 : vector<256x16xf32>
    %108 = vector.extract_strided_slice %1 {offsets = [0, 1, 1, 0], sizes = [4, 8, 8, 8], strides = [1, 1, 1, 1]} : vector<4x10x10x8xf32> to vector<4x8x8x8xf32>
    %109 = vector.shape_cast %108 : vector<4x8x8x8xf32> to vector<256x8xf32>
    %c0_45 = arith.constant 0 : index
    %c0_46 = arith.constant 0 : index
    %110 = vector.load %arg11[%c0_45, %c0_46] : memref<8x16xf32, #tpu.memory_space<vmem>>, vector<8x16xf32>
    %cst_47 = arith.constant dense<0.000000e+00> : vector<256x16xf32>
    %111 = tpu.matmul %109, %110, %cst_47 {dimension_numbers = #tpu.dot_dimension_numbers<[1], [0], [0], [1], [0, 0, 1, 1], [], []>} : vector<256x8xf32>, vector<8x16xf32>, vector<256x16xf32> -> vector<256x16xf32>
    %c0_48 = arith.constant 0 : index
    %c0_49 = arith.constant 0 : index
    %112 = vector.load %arg12[%c0_48, %c0_49] : memref<1x16xf32, #tpu.memory_space<vmem>>, vector<1x16xf32>
    %113 = vector.broadcast %112 : vector<1x16xf32> to vector<256x16xf32>
    %114 = arith.addf %111, %113 : vector<256x16xf32>
    %115 = arith.addf %107, %114 : vector<256x16xf32>
    %cst_50 = arith.constant 0.000000e+00 : f32
    %116 = vector.broadcast %cst_50 : f32 to vector<256x16xf32>
    %117 = arith.maximumf %115, %116 : vector<256x16xf32>
    %118 = vector.shape_cast %117 : vector<256x16xf32> to vector<4x8x8x16xf32>
    %c0_51 = arith.constant 0 : index
    %c0_52 = arith.constant 0 : index
    %c0_53 = arith.constant 0 : index
    %c0_54 = arith.constant 0 : index
    %c0_55 = arith.constant 0 : index
    %119 = vector.load %arg13[%c0_51, %c0_52, %c0_53, %c0_54, %c0_55] : memref<1x4x8x8x16xf32, #tpu.memory_space<vmem>>, vector<1x4x8x8x16xf32>
    %120 = vector.shape_cast %119 : vector<1x4x8x8x16xf32> to vector<4x8x8x16xf32>
    %121 = vector.shape_cast %118 : vector<4x8x8x16xf32> to vector<1x4x8x8x16xf32>
    tpu.vector_store %arg13[%c0_51, %c0_52, %c0_53, %c0_54, %c0_55], %121 {strides = array<i32>} : memref<1x4x8x8x16xf32, #tpu.memory_space<vmem>>, vector<1x4x8x8x16xf32>,
    return
  }
  func.func @transform_0(%arg0: i32) -> (i32, i32, i32, i32, i32) {
    %c0_i32 = arith.constant 0 : i32
    %c0_i32_0 = arith.constant 0 : i32
    %c0_i32_1 = arith.constant 0 : i32
    %c0_i32_2 = arith.constant 0 : i32
    %c0_i32_3 = arith.constant 0 : i32
    return %arg0, %c0_i32, %c0_i32_0, %c0_i32_1, %c0_i32_2 : i32, i32, i32, i32, i32
  }
  func.func @transform_1(%arg0: i32) -> (i32, i32, i32, i32) {
    %c0_i32 = arith.constant 0 : i32
    %c0_i32_0 = arith.constant 0 : i32
    %c0_i32_1 = arith.constant 0 : i32
    %c0_i32_2 = arith.constant 0 : i32
    %c0_i32_3 = arith.constant 0 : i32
    return %c0_i32, %c0_i32_0, %c0_i32_1, %c0_i32_2 : i32, i32, i32, i32
  }
  func.func @transform_2(%arg0: i32) -> (i32, i32) {
    %c0_i32 = arith.constant 0 : i32
    %c0_i32_0 = arith.constant 0 : i32
    %c0_i32_1 = arith.constant 0 : i32
    return %c0_i32, %c0_i32_0 : i32, i32
  }
  func.func @transform_3(%arg0: i32) -> (i32, i32) {
    %c0_i32 = arith.constant 0 : i32
    %c0_i32_0 = arith.constant 0 : i32
    %c0_i32_1 = arith.constant 0 : i32
    return %c0_i32, %c0_i32_0 : i32, i32
  }
  func.func @transform_4(%arg0: i32) -> (i32, i32, i32) {
    %c0_i32 = arith.constant 0 : i32
    %c0_i32_0 = arith.constant 0 : i32
    %c0_i32_1 = arith.constant 0 : i32
    %c0_i32_2 = arith.constant 0 : i32
    return %c0_i32, %c0_i32_0, %c0_i32_1 : i32, i32, i32
  }
  func.func @transform_5(%arg0: i32) -> (i32, i32) {
    %c0_i32 = arith.constant 0 : i32
    %c0_i32_0 = arith.constant 0 : i32
    %c0_i32_1 = arith.constant 0 : i32
    return %c0_i32, %c0_i32_0 : i32, i32
  }
  func.func @transform_6(%arg0: i32) -> (i32, i32, i32) {
    %c0_i32 = arith.constant 0 : i32
    %c0_i32_0 = arith.constant 0 : i32
    %c0_i32_1 = arith.constant 0 : i32
    %c0_i32_2 = arith.constant 0 : i32
    return %c0_i32, %c0_i32_0, %c0_i32_1 : i32, i32, i32
  }
  func.func @transform_7(%arg0: i32) -> (i32, i32) {
    %c0_i32 = arith.constant 0 : i32
    %c0_i32_0 = arith.constant 0 : i32
    %c0_i32_1 = arith.constant 0 : i32
    return %c0_i32, %c0_i32_0 : i32, i32
  }
  func.func @transform_8(%arg0: i32) -> (i32, i32) {
    %c0_i32 = arith.constant 0 : i32
    %c0_i32_0 = arith.constant 0 : i32
    %c0_i32_1 = arith.constant 0 : i32
    return %c0_i32, %c0_i32_0 : i32, i32
  }
  func.func @transform_9(%arg0: i32) -> (i32, i32) {
    %c0_i32 = arith.constant 0 : i32
    %c0_i32_0 = arith.constant 0 : i32
    %c0_i32_1 = arith.constant 0 : i32
    return %c0_i32, %c0_i32_0 : i32, i32
  }
  func.func @transform_10(%arg0: i32) -> (i32, i32) {
    %c0_i32 = arith.constant 0 : i32
    %c0_i32_0 = arith.constant 0 : i32
    %c0_i32_1 = arith.constant 0 : i32
    return %c0_i32, %c0_i32_0 : i32, i32
  }
  func.func @transform_11(%arg0: i32) -> (i32, i32) {
    %c0_i32 = arith.constant 0 : i32
    %c0_i32_0 = arith.constant 0 : i32
    %c0_i32_1 = arith.constant 0 : i32
    return %c0_i32, %c0_i32_0 : i32, i32
  }
  func.func @transform_12(%arg0: i32) -> (i32, i32, i32, i32, i32) {
    %c0_i32 = arith.constant 0 : i32
    %c0_i32_0 = arith.constant 0 : i32
    %c0_i32_1 = arith.constant 0 : i32
    %c0_i32_2 = arith.constant 0 : i32
    %c0_i32_3 = arith.constant 0 : i32
    return %arg0, %c0_i32, %c0_i32_0, %c0_i32_1, %c0_i32_2 : i32, i32, i32, i32, i32
  }
}

</mosaic_0001>

<llo_original>
// kernel: bottleneck_forward_pallas.1
$region0: #{bottleneck_forward_pallas.1}
  #allocation0 [shape = 'u32[]', space=smem, size = 0x4, offset = 0x4, fixed_abs, tag = 'smem constant byte address 0x4 - core index']
  #allocation1 [shape = 'u32[144,128]{1,0:T(1,128)}', space=vmem, size = 0x12000, scoped, tag = 'internal scratch']
  %s0 = inlined_call_operand.vmem [shape: f32[2,4,10,10,8], index: 0, kind: input, shape index: {}]
  %s1 = inlined_call_operand.vmem [shape: f32[1,10,10,1], index: 1, kind: input, shape index: {}]
  %s2 = inlined_call_operand.vmem [shape: f32[8,8], index: 2, kind: input, shape index: {}]
  %s3 = inlined_call_operand.vmem [shape: f32[1,8], index: 3, kind: input, shape index: {}]
  %s4 = inlined_call_operand.vmem [shape: f32[9,8,8], index: 4, kind: input, shape index: {}]
  %s5 = inlined_call_operand.vmem [shape: f32[1,8], index: 5, kind: input, shape index: {}]
  %s6 = inlined_call_operand.vmem [shape: f32[3,8,8], index: 6, kind: input, shape index: {}]
  %s7 = inlined_call_operand.vmem [shape: f32[1,8], index: 7, kind: input, shape index: {}]
  %s8 = inlined_call_operand.vmem [shape: f32[8,16], index: 8, kind: input, shape index: {}]
  %s9 = inlined_call_operand.vmem [shape: f32[1,16], index: 9, kind: input, shape index: {}]
  %s10 = inlined_call_operand.vmem [shape: f32[8,16], index: 10, kind: input, shape index: {}]
  %s11 = inlined_call_operand.vmem [shape: f32[1,16], index: 11, kind: input, shape index: {}]
  %s12 = inlined_call_operand.hbm [shape: f32[2,4,8,8,16], index: 12, kind: output, shape index: {}]
  %s13 = sld [smem:[#allocation0]]
  $region81: #{bottleneck_forward_pallas.1} parent=0
    _
  %s15 = ssub.s32 1, %s13
  %s16 = scalar_select 0, %s15, %s13
  $region1: #{bottleneck_forward_pallas.1} parent=0
    #allocation2 [shape = 'u8[262144]{0}', space=vmem, size = 0x40000, scoped, tag = 'output window, operand 0']
    #allocation3 [shape = 's32[2]{0}', space=sflag, size = 0x8, scoped, tag = 'scoped memory for bottleneck_forward_pallas.1']
    %17 = vsyncpa [#allocation3], 0
    %s18 = scalar_lea.sflag [#allocation3], 1
    %19 = vsyncpa %s18, 0
    loop: start=0, step=1, limit=4
    $region2: #{bottleneck_forward_pallas.1} parent=1 // loop_pre_header
      _
    $region3: #{bottleneck_forward_pallas.1} parent=1 // loop_header
      %s21 = sphi 0, %s25
      %p22 = scmp.ge.s32.totalorder %s21, 4
      %s31 = sphi 0, %s33
      %s34 = sphi 0, %s31
      %s35 = sphi 0, %s34
      %s51 = sphi 0, %s35
      %s55 = sphi 0, %s55
      %s57 = sphi 0, %s55
      %s58 = sphi 0, %s57
      %s72 = sphi 0, %s58
      %s76 = sphi 0, %s76
      %s78 = sphi 0, %s76
      %s79 = sphi 0, %s78
      %s93 = sphi 0, %s79
      %s97 = sphi 0, %s97
      %s99 = sphi 0, %s97
      %s100 = sphi 0, %s99
      %s114 = sphi 0, %s100
      %s118 = sphi 0, %s118
      %s120 = sphi 0, %s118
      %s121 = sphi 0, %s120
      %s135 = sphi 0, %s121
      %s139 = sphi 0, %s139
      %s141 = sphi 0, %s139
      %s142 = sphi 0, %s141
      %s156 = sphi 0, %s142
      %s160 = sphi 0, %s160
      %s162 = sphi 0, %s160
      %s163 = sphi 0, %s162
      %s177 = sphi 0, %s163
      %s181 = sphi 0, %s181
      %s183 = sphi 0, %s181
      %s184 = sphi 0, %s183
      %s198 = sphi 0, %s184
      %s202 = sphi 0, %s202
      %s204 = sphi 0, %s202
      %s205 = sphi 0, %s204
      %s219 = sphi 0, %s205
      %s223 = sphi 0, %s223
      %s225 = sphi 0, %s223
      %s226 = sphi 0, %s225
      %s240 = sphi 0, %s226
      %s244 = sphi 0, %s244
      %s246 = sphi 0, %s244
      %s247 = sphi 0, %s246
      %s261 = sphi 0, %s247
      %s265 = sphi 0, %s265
      %s267 = sphi 0, %s265
      %s268 = sphi 0, %s267
      %s282 = sphi 0, %s268
      %s288 = sphi 0, %s290
      %s291 = sphi 0, %s288
      %s292 = sphi 0, %s291
      %s308 = sphi 0, %s292
    $region4: #{bottleneck_forward_pallas.1} parent=1 // loop_header_branch
      %24 = sbr.rel (%p22) target = $region8
    $region5: #{bottleneck_forward_pallas.1} parent=1 // loop_body
      %s26 = ssub.s32 %s21, 1
      %s27 = ssub.s32 %s21, 2
      %s28 = sadd.s32 %s21, 1
      %s29 = ssub.s32 %s21, %s28
      %p30 = scmp.eq.s32.totalorder %s29, 0
      %s32 = sadd.s32 %s31, 1
      %s33 = scalar_select %p30, %s31, %s32
      %p36 = pneg %p30
      %p37 = scmp.eq.s32.totalorder %s21, 1
      %p38 = por %p36, %p37
      %p39 = scmp.ne.s32.totalorder %s31, %s34
      %p40 = scmp.eq.s32.totalorder %s21, 0
      %p41 = por %p39, %p40
      %p42 = scmp.ne.s32.totalorder %s31, %s34
      %p43 = scmp.eq.s32.totalorder %s26, 1
      %p44 = por %p42, %p43
      %p45 = scmp.ne.s32.totalorder %s34, %s35
      %p46 = scmp.eq.s32.totalorder %s26, 0
      %p47 = por %p45, %p46
      %p48 = scmp.ne.s32.totalorder %s34, %s35
      %p49 = scmp.eq.s32.totalorder %s27, 1
      %p50 = por %p48, %p49
      %p52 = scmp.ne.s32.totalorder %s35, %s51
      %p53 = scmp.eq.s32.totalorder %s27, 0
      %p54 = por %p52, %p53
      %s56 = sadd.s32 %s55, 1
      %p59 = scmp.eq.s32.totalorder %s21, 1
      %p60 = scmp.ne.s32.totalorder %s55, %s57
      %p61 = scmp.eq.s32.totalorder %s21, 0
      %p62 = por %p60, %p61
      %p63 = scmp.ne.s32.totalorder %s55, %s57
      %p64 = scmp.eq.s32.totalorder %s26, 1
      %p65 = por %p63, %p64
      %p66 = scmp.ne.s32.totalorder %s57, %s58
      %p67 = scmp.eq.s32.totalorder %s26, 0
      %p68 = por %p66, %p67
      %p69 = scmp.ne.s32.totalorder %s57, %s58
      %p70 = scmp.eq.s32.totalorder %s27, 1
      %p71 = por %p69, %p70
      %p73 = scmp.ne.s32.totalorder %s58, %s72
      %p74 = scmp.eq.s32.totalorder %s27, 0
      %p75 = por %p73, %p74
      %s77 = sadd.s32 %s76, 1
      %p80 = scmp.eq.s32.totalorder %s21, 1
      %p81 = scmp.ne.s32.totalorder %s76, %s78
      %p82 = scmp.eq.s32.totalorder %s21, 0
      %p83 = por %p81, %p82
      %p84 = scmp.ne.s32.totalorder %s76, %s78
      %p85 = scmp.eq.s32.totalorder %s26, 1
      %p86 = por %p84, %p85
      %p87 = scmp.ne.s32.totalorder %s78, %s79
      %p88 = scmp.eq.s32.totalorder %s26, 0
      %p89 = por %p87, %p88
      %p90 = scmp.ne.s32.totalorder %s78, %s79
      %p91 = scmp.eq.s32.totalorder %s27, 1
      %p92 = por %p90, %p91
      %p94 = scmp.ne.s32.totalorder %s79, %s93
      %p95 = scmp.eq.s32.totalorder %s27, 0
      %p96 = por %p94, %p95
      %s98 = sadd.s32 %s97, 1
      %p101 = scmp.eq.s32.totalorder %s21, 1
      %p102 = scmp.ne.s32.totalorder %s97, %s99
      %p103 = scmp.eq.s32.totalorder %s21, 0
      %p104 = por %p102, %p103
      %p105 = scmp.ne.s32.totalorder %s97, %s99
      %p106 = scmp.eq.s32.totalorder %s26, 1
      %p107 = por %p105, %p106
      %p108 = scmp.ne.s32.totalorder %s99, %s100
      %p109 = scmp.eq.s32.totalorder %s26, 0
      %p110 = por %p108, %p109
      %p111 = scmp.ne.s32.totalorder %s99, %s100
      %p112 = scmp.eq.s32.totalorder %s27, 1
      %p113 = por %p111, %p112
      %p115 = scmp.ne.s32.totalorder %s100, %s114
      %p116 = scmp.eq.s32.totalorder %s27, 0
      %p117 = por %p115, %p116
      %s119 = sadd.s32 %s118, 1
      %p122 = scmp.eq.s32.totalorder %s21, 1
      %p123 = scmp.ne.s32.totalorder %s118, %s120
      %p124 = scmp.eq.s32.totalorder %s21, 0
      %p125 = por %p123, %p124
      %p126 = scmp.ne.s32.totalorder %s118, %s120
      %p127 = scmp.eq.s32.totalorder %s26, 1
      %p128 = por %p126, %p127
      %p129 = scmp.ne.s32.totalorder %s120, %s121
      %p130 = scmp.eq.s32.totalorder %s26, 0
      %p131 = por %p129, %p130
      %p132 = scmp.ne.s32.totalorder %s120, %s121
      %p133 = scmp.eq.s32.totalorder %s27, 1
      %p134 = por %p132, %p133
      %p136 = scmp.ne.s32.totalorder %s121, %s135
      %p137 = scmp.eq.s32.totalorder %s27, 0
      %p138 = por %p136, %p137
      %s140 = sadd.s32 %s139, 1
      %p143 = scmp.eq.s32.totalorder %s21, 1
      %p144 = scmp.ne.s32.totalorder %s139, %s141
      %p145 = scmp.eq.s32.totalorder %s21, 0
      %p146 = por %p144, %p145
      %p147 = scmp.ne.s32.totalorder %s139, %s141
      %p148 = scmp.eq.s32.totalorder %s26, 1
      %p149 = por %p147, %p148
      %p150 = scmp.ne.s32.totalorder %s141, %s142
      %p151 = scmp.eq.s32.totalorder %s26, 0
      %p152 = por %p150, %p151
      %p153 = scmp.ne.s32.totalorder %s141, %s142
      %p154 = scmp.eq.s32.totalorder %s27, 1
      %p155 = por %p153, %p154
      %p157 = scmp.ne.s32.totalorder %s142, %s156
      %p158 = scmp.eq.s32.totalorder %s27, 0
      %p159 = por %p157, %p158
      %s161 = sadd.s32 %s160, 1
      %p164 = scmp.eq.s32.totalorder %s21, 1
      %p165 = scmp.ne.s32.totalorder %s160, %s162
      %p166 = scmp.eq.s32.totalorder %s21, 0
      %p167 = por %p165, %p166
      %p168 = scmp.ne.s32.totalorder %s160, %s162
      %p169 = scmp.eq.s32.totalorder %s26, 1
      %p170 = por %p168, %p169
      %p171 = scmp.ne.s32.totalorder %s162, %s163
      %p172 = scmp.eq.s32.totalorder %s26, 0
      %p173 = por %p171, %p172
      %p174 = scmp.ne.s32.totalorder %s162, %s163
      %p175 = scmp.eq.s32.totalorder %s27, 1
      %p176 = por %p174, %p175
      %p178 = scmp.ne.s32.totalorder %s163, %s177
      %p179 = scmp.eq.s32.totalorder %s27, 0
      %p180 = por %p178, %p179
      %s182 = sadd.s32 %s181, 1
      %p185 = scmp.eq.s32.totalorder %s21, 1
      %p186 = scmp.ne.s32.totalorder %s181, %s183
      %p187 = scmp.eq.s32.totalorder %s21, 0
      %p188 = por %p186, %p187
      %p189 = scmp.ne.s32.totalorder %s181, %s183
      %p190 = scmp.eq.s32.totalorder %s26, 1
      %p191 = por %p189, %p190
      %p192 = scmp.ne.s32.totalorder %s183, %s184
      %p193 = scmp.eq.s32.totalorder %s26, 0
      %p194 = por %p192, %p193
      %p195 = scmp.ne.s32.totalorder %s183, %s184
      %p196 = scmp.eq.s32.totalorder %s27, 1
      %p197 = por %p195, %p196
      %p199 = scmp.ne.s32.totalorder %s184, %s198
      %p200 = scmp.eq.s32.totalorder %s27, 0
      %p201 = por %p199, %p200
      %s203 = sadd.s32 %s202, 1
      %p206 = scmp.eq.s32.totalorder %s21, 1
      %p207 = scmp.ne.s32.totalorder %s202, %s204
      %p208 = scmp.eq.s32.totalorder %s21, 0
      %p209 = por %p207, %p208
      %p210 = scmp.ne.s32.totalorder %s202, %s204
      %p211 = scmp.eq.s32.totalorder %s26, 1
      %p212 = por %p210, %p211
      %p213 = scmp.ne.s32.totalorder %s204, %s205
      %p214 = scmp.eq.s32.totalorder %s26, 0
      %p215 = por %p213, %p214
      %p216 = scmp.ne.s32.totalorder %s204, %s205
      %p217 = scmp.eq.s32.totalorder %s27, 1
      %p218 = por %p216, %p217
      %p220 = scmp.ne.s32.totalorder %s205, %s219
      %p221 = scmp.eq.s32.totalorder %s27, 0
      %p222 = por %p220, %p221
      %s224 = sadd.s32 %s223, 1
      %p227 = scmp.eq.s32.totalorder %s21, 1
      %p228 = scmp.ne.s32.totalorder %s223, %s225
      %p229 = scmp.eq.s32.totalorder %s21, 0
      %p230 = por %p228, %p229
      %p231 = scmp.ne.s32.totalorder %s223, %s225
      %p232 = scmp.eq.s32.totalorder %s26, 1
      %p233 = por %p231, %p232
      %p234 = scmp.ne.s32.totalorder %s225, %s226
      %p235 = scmp.eq.s32.totalorder %s26, 0
      %p236 = por %p234, %p235
      %p237 = scmp.ne.s32.totalorder %s225, %s226
      %p238 = scmp.eq.s32.totalorder %s27, 1
      %p239 = por %p237, %p238
      %p241 = scmp.ne.s32.totalorder %s226, %s240
      %p242 = scmp.eq.s32.totalorder %s27, 0
      %p243 = por %p241, %p242
      %s245 = sadd.s32 %s244, 1
      %p248 = scmp.eq.s32.totalorder %s21, 1
      %p249 = scmp.ne.s32.totalorder %s244, %s246
      %p250 = scmp.eq.s32.totalorder %s21, 0
      %p251 = por %p249, %p250
      %p252 = scmp.ne.s32.totalorder %s244, %s246
      %p253 = scmp.eq.s32.totalorder %s26, 1
      %p254 = por %p252, %p253
      %p255 = scmp.ne.s32.totalorder %s246, %s247
      %p256 = scmp.eq.s32.totalorder %s26, 0
      %p257 = por %p255, %p256
      %p258 = scmp.ne.s32.totalorder %s246, %s247
      %p259 = scmp.eq.s32.totalorder %s27, 1
      %p260 = por %p258, %p259
      %p262 = scmp.ne.s32.totalorder %s247, %s261
      %p263 = scmp.eq.s32.totalorder %s27, 0
      %p264 = por %p262, %p263
      %s266 = sadd.s32 %s265, 1
      %p269 = scmp.eq.s32.totalorder %s21, 1
      %p270 = scmp.ne.s32.totalorder %s265, %s267
      %p271 = scmp.eq.s32.totalorder %s21, 0
      %p272 = por %p270, %p271
      %p273 = scmp.ne.s32.totalorder %s265, %s267
      %p274 = scmp.eq.s32.totalorder %s26, 1
      %p275 = por %p273, %p274
      %p276 = scmp.ne.s32.totalorder %s267, %s268
      %p277 = scmp.eq.s32.totalorder %s26, 0
      %p278 = por %p276, %p277
      %p279 = scmp.ne.s32.totalorder %s267, %s268
      %p280 = scmp.eq.s32.totalorder %s27, 1
      %p281 = por %p279, %p280
      %p283 = scmp.ne.s32.totalorder %s268, %s282
      %p284 = scmp.eq.s32.totalorder %s27, 0
      %p285 = por %p283, %p284
      %s286 = ssub.s32 %s21, %s28
      %p287 = scmp.eq.s32.totalorder %s286, 0
      %s289 = sadd.s32 %s288, 1
      %s290 = scalar_select %p287, %s288, %s289
      %p293 = pneg %p287
      %p294 = scmp.eq.s32.totalorder %s21, 1
      %p295 = por %p293, %p294
      %p296 = scmp.ne.s32.totalorder %s288, %s291
      %p297 = scmp.eq.s32.totalorder %s21, 0
      %p298 = por %p296, %p297
      %p299 = scmp.ne.s32.totalorder %s288, %s291
      %p300 = scmp.eq.s32.totalorder %s26, 1
      %p301 = por %p299, %p300
      %p302 = scmp.ne.s32.totalorder %s291, %s292
      %p303 = scmp.eq.s32.totalorder %s26, 0
      %p304 = por %p302, %p303
      %p305 = scmp.ne.s32.totalorder %s291, %s292
      %p306 = scmp.eq.s32.totalorder %s27, 1
      %p307 = por %p305, %p306
      %p309 = scmp.ne.s32.totalorder %s292, %s308
      %p310 = scmp.eq.s32.totalorder %s27, 0
      %p311 = por %p309, %p310
      %p312 = scmp.le.s32.totalorder 1, %s21
      %p313 = scmp.lt.s32.totalorder %s21, 3
      %p314 = pnand %p312, %p313
      %p315 = pneg %p314
      // Predicated region
      $region9: #{bottleneck_forward_pallas.1} parent=5 // pred_check
        _
      $region10: #{bottleneck_forward_pallas.1} parent=5 // pred_check_branch
        %317 = sbr.rel (%p314) target = $region12
      $region11: #{bottleneck_forward_pallas.1} parent=5 // pred_region
        %s318 = ssub.s32 %s21, 1
        // Predicated region
        $region13: #{bottleneck_forward_pallas.1} parent=11 // pred_check
          %p319 = pneg %p68
        $region14: #{bottleneck_forward_pallas.1} parent=11 // pred_check_branch
          %321 = sbr.rel (%p319) target = $region16
        $region15: #{bottleneck_forward_pallas.1} parent=11 // pred_region
          _
        $region16: #{bottleneck_forward_pallas.1} parent=11 // pred_fallthru
          _
        // Predicated region
        $region17: #{bottleneck_forward_pallas.1} parent=11 // pred_check
          %p322 = pneg %p89
        $region18: #{bottleneck_forward_pallas.1} parent=11 // pred_check_branch
          %324 = sbr.rel (%p322) target = $region20
        $region19: #{bottleneck_forward_pallas.1} parent=11 // pred_region
          _
        $region20: #{bottleneck_forward_pallas.1} parent=11 // pred_fallthru
          _
        // Predicated region
        $region21: #{bottleneck_forward_pallas.1} parent=11 // pred_check
          %p325 = pneg %p110
        $region22: #{bottleneck_forward_pallas.1} parent=11 // pred_check_branch
          %327 = sbr.rel (%p325) target = $region24
        $region23: #{bottleneck_forward_pallas.1} parent=11 // pred_region
          _
        $region24: #{bottleneck_forward_pallas.1} parent=11 // pred_fallthru
          _
        // Predicated region
        $region25: #{bottleneck_forward_pallas.1} parent=11 // pred_check
          %p328 = pneg %p131
        $region26: #{bottleneck_forward_pallas.1} parent=11 // pred_check_branch
          %330 = sbr.rel (%p328) target = $region28
        $region27: #{bottleneck_forward_pallas.1} parent=11 // pred_region
          _
        $region28: #{bottleneck_forward_pallas.1} parent=11 // pred_fallthru
          _
        // Predicated region
        $region29: #{bottleneck_forward_pallas.1} parent=11 // pred_check
          %p331 = pneg %p152
        $region30: #{bottleneck_forward_pallas.1} parent=11 // pred_check_branch
          %333 = sbr.rel (%p331) target = $region32
        $region31: #{bottleneck_forward_pallas.1} parent=11 // pred_region
          _
        $region32: #{bottleneck_forward_pallas.1} parent=11 // pred_fallthru
          _
        // Predicated region
        $region33: #{bottleneck_forward_pallas.1} parent=11 // pred_check
          %p334 = pneg %p173
        $region34: #{bottleneck_forward_pallas.1} parent=11 // pred_check_branch
          %336 = sbr.rel (%p334) target = $region36
        $region35: #{bottleneck_forward_pallas.1} parent=11 // pred_region
          _
        $region36: #{bottleneck_forward_pallas.1} parent=11 // pred_fallthru
          _
        // Predicated region
        $region37: #{bottleneck_forward_pallas.1} parent=11 // pred_check
          %p337 = pneg %p194
        $region38: #{bottleneck_forward_pallas.1} parent=11 // pred_check_branch
          %339 = sbr.rel (%p337) target = $region40
        $region39: #{bottleneck_forward_pallas.1} parent=11 // pred_region
          _
        $region40: #{bottleneck_forward_pallas.1} parent=11 // pred_fallthru
          _
        // Predicated region
        $region41: #{bottleneck_forward_pallas.1} parent=11 // pred_check
          %p340 = pneg %p215
        $region42: #{bottleneck_forward_pallas.1} parent=11 // pred_check_branch
          %342 = sbr.rel (%p340) target = $region44
        $region43: #{bottleneck_forward_pallas.1} parent=11 // pred_region
          _
        $region44: #{bottleneck_forward_pallas.1} parent=11 // pred_fallthru
          _
        // Predicated region
        $region45: #{bottleneck_forward_pallas.1} parent=11 // pred_check
          %p343 = pneg %p236
        $region46: #{bottleneck_forward_pallas.1} parent=11 // pred_check_branch
          %345 = sbr.rel (%p343) target = $region48
        $region47: #{bottleneck_forward_pallas.1} parent=11 // pred_region
          _
        $region48: #{bottleneck_forward_pallas.1} parent=11 // pred_fallthru
          _
        // Predicated region
        $region49: #{bottleneck_forward_pallas.1} parent=11 // pred_check
          %p346 = pneg %p257
        $region50: #{bottleneck_forward_pallas.1} parent=11 // pred_check_branch
          %348 = sbr.rel (%p346) target = $region52
        $region51: #{bottleneck_forward_pallas.1} parent=11 // pred_region
          _
        $region52: #{bottleneck_forward_pallas.1} parent=11 // pred_fallthru
          _
        // Predicated region
        $region53: #{bottleneck_forward_pallas.1} parent=11 // pred_check
          %p349 = pneg %p278
        $region54: #{bottleneck_forward_pallas.1} parent=11 // pred_check_branch
          %351 = sbr.rel (%p349) target = $region56
        $region55: #{bottleneck_forward_pallas.1} parent=11 // pred_region
          _
        $region56: #{bottleneck_forward_pallas.1} parent=11 // pred_fallthru
          _
      $region12: #{bottleneck_forward_pallas.1} parent=5 // pred_fallthru
        _
      %p352 = scmp.lt.s32.totalorder %s21, 2
      // Predicated region
      $region57: #{bottleneck_forward_pallas.1} parent=5 // pred_check
        %p353 = pneg %p352
      $region58: #{bottleneck_forward_pallas.1} parent=5 // pred_check_branch
        %355 = sbr.rel (%p353) target = $region60
      $region59: #{bottleneck_forward_pallas.1} parent=5 // pred_region
        // Predicated region
        $region61: #{bottleneck_forward_pallas.1} parent=59 // pred_check
          %p356 = pneg %p41
        $region62: #{bottleneck_forward_pallas.1} parent=59 // pred_check_branch
          %358 = sbr.rel (%p356) target = $region64
        $region63: #{bottleneck_forward_pallas.1} parent=59 // pred_region
          %p359 = scmp.lt.s32.totalorder %s21, 1
          %s360 = scalar_select %p359, %s21, 1
          %s361 = smul.addr %s360, 80
          %s362 = smul.addr %s361, 8
          %s363 = scalar_lea.vmem %s0, %s362
        $region64: #{bottleneck_forward_pallas.1} parent=59 // pred_fallthru
          _
      $region60: #{bottleneck_forward_pallas.1} parent=5 // pred_fallthru
        _
      %p364 = scmp.le.s32.totalorder 1, %s21
      %p365 = scmp.lt.s32.totalorder %s21, 3
      %p366 = pnand %p364, %p365
      %p367 = pneg %p366
      // Predicated region
      $region65: #{bottleneck_forward_pallas.1} parent=5 // pred_check
        _
      $region66: #{bottleneck_forward_pallas.1} parent=5 // pred_check_branch
        %369 = sbr.rel (%p366) target = $region68
      $region67: #{bottleneck_forward_pallas.1} parent=5 // pred_region
        %s370 = ssub.s32 %s21, 1
        %p371 = scmp.lt.s32.totalorder %s26, 1
        %s372 = scalar_select %p371, %s26, 1
        %s373 = smul.addr %s372, 80
        %s374 = smul.addr %s373, 8
        %s375 = scalar_lea.vmem %s0, %s374
        %p376 = pneg %p47
        %p377 = pneg %p44
        %p378 = pneg %p68
        %p379 = pneg %p65
        %p380 = pneg %p89
        %p381 = pneg %p86
        %p382 = pneg %p110
        %p383 = pneg %p107
        %p384 = pneg %p131
        %p385 = pneg %p128
        %p386 = pneg %p152
        %p387 = pneg %p149
        %p388 = pneg %p173
        %p389 = pneg %p170
        %p390 = pneg %p194
        %p391 = pneg %p191
        %p392 = pneg %p215
        %p393 = pneg %p212
        %p394 = pneg %p236
        %p395 = pneg %p233
        %p396 = pneg %p257
        %p397 = pneg %p254
        %p398 = pneg %p278
        %p399 = pneg %p275
        %p400 = pneg %p304
        %p401 = pneg %p301
        %s402 = sand.u32 %s291, 1
        %s403 = scalar_lea.sflag [#allocation3], %s402
        %s404 = sand.u32 %s291, 1
        %s405 = smul.addr %s404, 256
        %s406 = scalar_lea.vmem [#allocation2], %s405
        %p407 = scmp.lt.s32.totalorder %s26, 1
        %s408 = scalar_select %p407, %s26, 1
        %s409 = smul.addr %s408, 80
        %s410 = smul.addr %s409, 8
        %s411 = scalar_lea.vmem %s0, %s410
        %v412 = vld [vmem:[%s411] sm:$0xff]
        %v413 = vld [vmem:[%s411 + $0x8] sm:$0x3]
        %v414 = vld [vmem:[%s411 + $0x10] sm:$0xff]
        %v415 = vld [vmem:[%s411 + $0x18] sm:$0x3]
        %v416 = vld [vmem:[%s411 + $0x20] sm:$0xff]
        %v417 = vld [vmem:[%s411 + $0x28] sm:$0x3]
        %v418 = vld [vmem:[%s411 + $0x30] sm:$0xff]
        %v419 = vld [vmem:[%s411 + $0x38] sm:$0x3]
        %v420 = vld [vmem:[%s411 + $0x40] sm:$0xff]
        %v421 = vld [vmem:[%s411 + $0x48] sm:$0x3]
        %v422 = vld [vmem:[%s411 + $0x50] sm:$0xff]
        %v423 = vld [vmem:[%s411 + $0x58] sm:$0x3]
        %v424 = vld [vmem:[%s411 + $0x60] sm:$0xff]
        %v425 = vld [vmem:[%s411 + $0x68] sm:$0x3]
        %v426 = vld [vmem:[%s411 + $0x70] sm:$0xff]
        %v427 = vld [vmem:[%s411 + $0x78] sm:$0x3]
        %v428 = vld [vmem:[%s411 + $0x80] sm:$0xff]
        %v429 = vld [vmem:[%s411 + $0x88] sm:$0x3]
        %v430 = vld [vmem:[%s411 + $0x90] sm:$0xff]
        %v431 = vld [vmem:[%s411 + $0x98] sm:$0x3]
        %v432 = vld [vmem:[%s411 + $0xa0] sm:$0xff]
        %v433 = vld [vmem:[%s411 + $0xa8] sm:$0x3]
        %v434 = vld [vmem:[%s411 + $0xb0] sm:$0xff]
        %v435 = vld [vmem:[%s411 + $0xb8] sm:$0x3]
        %v436 = vld [vmem:[%s411 + $0xc0] sm:$0xff]
        %v437 = vld [vmem:[%s411 + $0xc8] sm:$0x3]
        %v438 = vld [vmem:[%s411 + $0xd0] sm:$0xff]
        %v439 = vld [vmem:[%s411 + $0xd8] sm:$0x3]
        %v440 = vld [vmem:[%s411 + $0xe0] sm:$0xff]
        %v441 = vld [vmem:[%s411 + $0xe8] sm:$0x3]
        %v442 = vld [vmem:[%s411 + $0xf0] sm:$0xff]
        %v443 = vld [vmem:[%s411 + $0xf8] sm:$0x3]
        %v444 = vld [vmem:[%s411 + $0x100] sm:$0xff]
        %v445 = vld [vmem:[%s411 + $0x108] sm:$0x3]
        %v446 = vld [vmem:[%s411 + $0x110] sm:$0xff]
        %v447 = vld [vmem:[%s411 + $0x118] sm:$0x3]
        %v448 = vld [vmem:[%s411 + $0x120] sm:$0xff]
        %v449 = vld [vmem:[%s411 + $0x128] sm:$0x3]
        %v450 = vld [vmem:[%s411 + $0x130] sm:$0xff]
        %v451 = vld [vmem:[%s411 + $0x138] sm:$0x3]
        %v452 = vld [vmem:[%s411 + $0x140] sm:$0xff]
        %v453 = vld [vmem:[%s411 + $0x148] sm:$0x3]
        %v454 = vld [vmem:[%s411 + $0x150] sm:$0xff]
        %v455 = vld [vmem:[%s411 + $0x158] sm:$0x3]
        %v456 = vld [vmem:[%s411 + $0x160] sm:$0xff]
        %v457 = vld [vmem:[%s411 + $0x168] sm:$0x3]
        %v458 = vld [vmem:[%s411 + $0x170] sm:$0xff]
        %v459 = vld [vmem:[%s411 + $0x178] sm:$0x3]
        %v460 = vld [vmem:[%s411 + $0x180] sm:$0xff]
        %v461 = vld [vmem:[%s411 + $0x188] sm:$0x3]
        %v462 = vld [vmem:[%s411 + $0x190] sm:$0xff]
        %v463 = vld [vmem:[%s411 + $0x198] sm:$0x3]
        %v464 = vld [vmem:[%s411 + $0x1a0] sm:$0xff]
        %v465 = vld [vmem:[%s411 + $0x1a8] sm:$0x3]
        %v466 = vld [vmem:[%s411 + $0x1b0] sm:$0xff]
        %v467 = vld [vmem:[%s411 + $0x1b8] sm:$0x3]
        %v468 = vld [vmem:[%s411 + $0x1c0] sm:$0xff]
        %v469 = vld [vmem:[%s411 + $0x1c8] sm:$0x3]
        %v470 = vld [vmem:[%s411 + $0x1d0] sm:$0xff]
        %v471 = vld [vmem:[%s411 + $0x1d8] sm:$0x3]
        %v472 = vld [vmem:[%s411 + $0x1e0] sm:$0xff]
        %v473 = vld [vmem:[%s411 + $0x1e8] sm:$0x3]
        %v474 = vld [vmem:[%s411 + $0x1f0] sm:$0xff]
        %v475 = vld [vmem:[%s411 + $0x1f8] sm:$0x3]
        %v476 = vld [vmem:[%s411 + $0x200] sm:$0xff]
        %v477 = vld [vmem:[%s411 + $0x208] sm:$0x3]
        %v478 = vld [vmem:[%s411 + $0x210] sm:$0xff]
        %v479 = vld [vmem:[%s411 + $0x218] sm:$0x3]
        %v480 = vld [vmem:[%s411 + $0x220] sm:$0xff]
        %v481 = vld [vmem:[%s411 + $0x228] sm:$0x3]
        %v482 = vld [vmem:[%s411 + $0x230] sm:$0xff]
        %v483 = vld [vmem:[%s411 + $0x238] sm:$0x3]
        %v484 = vld [vmem:[%s411 + $0x240] sm:$0xff]
        %v485 = vld [vmem:[%s411 + $0x248] sm:$0x3]
        %v486 = vld [vmem:[%s411 + $0x250] sm:$0xff]
        %v487 = vld [vmem:[%s411 + $0x258] sm:$0x3]
        %v488 = vld [vmem:[%s411 + $0x260] sm:$0xff]
        %v489 = vld [vmem:[%s411 + $0x268] sm:$0x3]
        %v490 = vld [vmem:[%s411 + $0x270] sm:$0xff]
        %v491 = vld [vmem:[%s411 + $0x278] sm:$0x3]
        %v572 = vcombine.high %v412, %v412
        %v574 = vunpack.c.l.s4 1983009808
        %v575 = vunpack.c.0.s8 %v574
        %v576 = vlaneseq
        %v577 = vshrl.u32 %v576, 7
        %v578 = vsub.s32 %v575, %v577
        %v579 = vrot.slane %v412, %v578
        %v581 = vunpack.c.l.s4 1983009808
        %v582 = vunpack.c.0.s8 %v581
        %v583 = vlaneseq
        %v584 = vshrl.u32 %v583, 7
        %v585 = vsub.s32 %v582, %v584
        %v586 = vrot.slane %v572, %v585
        %v587 = vcombine.high %v579, %v579
        %v588 = vcombine.high %v586, %v586
        %v590 = vunpack.c.l.s4 1983009808
        %v591 = vunpack.c.0.s8 %v590
        %v592 = vlaneseq
        %v593 = vshrl.u32 %v592, 7
        %v594 = vsub.s32 %v591, %v593
        %v595 = vrot.slane %v413, %v594
        %v596 = vcombine.high %v414, %v414
        %v598 = vunpack.c.l.s4 1983009808
        %v599 = vunpack.c.0.s8 %v598
        %v600 = vlaneseq
        %v601 = vshrl.u32 %v600, 7
        %v602 = vsub.s32 %v599, %v601
        %v603 = vrot.slane %v414, %v602
        %v605 = vunpack.c.l.s4 1983009808
        %v606 = vunpack.c.0.s8 %v605
        %v607 = vlaneseq
        %v608 = vshrl.u32 %v607, 7
        %v609 = vsub.s32 %v606, %v608
        %v610 = vrot.slane %v596, %v609
        %v611 = vcombine.high %v603, %v603
        %v612 = vcombine.high %v610, %v610
        %v614 = vunpack.c.l.s4 1983009808
        %v615 = vunpack.c.0.s8 %v614
        %v616 = vlaneseq
        %v617 = vshrl.u32 %v616, 7
        %v618 = vsub.s32 %v615, %v617
        %v619 = vrot.slane %v415, %v618
        %v620 = vcombine.high %v416, %v416
        %v622 = vunpack.c.l.s4 1983009808
        %v623 = vunpack.c.0.s8 %v622
        %v624 = vlaneseq
        %v625 = vshrl.u32 %v624, 7
        %v626 = vsub.s32 %v623, %v625
        %v627 = vrot.slane %v416, %v626
        %v629 = vunpack.c.l.s4 1983009808
        %v630 = vunpack.c.0.s8 %v629
        %v631 = vlaneseq
        %v632 = vshrl.u32 %v631, 7
        %v633 = vsub.s32 %v630, %v632
        %v634 = vrot.slane %v620, %v633
        %v635 = vcombine.high %v627, %v627
        %v636 = vcombine.high %v634, %v634
        %v638 = vunpack.c.l.s4 1983009808
        %v639 = vunpack.c.0.s8 %v638
        %v640 = vlaneseq
        %v641 = vshrl.u32 %v640, 7
        %v642 = vsub.s32 %v639, %v641
        %v643 = vrot.slane %v417, %v642
        %v644 = vcombine.high %v418, %v418
        %v646 = vunpack.c.l.s4 1983009808
        %v647 = vunpack.c.0.s8 %v646
        %v648 = vlaneseq
        %v649 = vshrl.u32 %v648, 7
        %v650 = vsub.s32 %v647, %v649
        %v651 = vrot.slane %v418, %v650
        %v653 = vunpack.c.l.s4 1983009808
        %v654 = vunpack.c.0.s8 %v653
        %v655 = vlaneseq
        %v656 = vshrl.u32 %v655, 7
        %v657 = vsub.s32 %v654, %v656
        %v658 = vrot.slane %v644, %v657
        %v659 = vcombine.high %v651, %v651
        %v660 = vcombine.high %v658, %v658
        %v662 = vunpack.c.l.s4 1983009808
        %v663 = vunpack.c.0.s8 %v662
        %v664 = vlaneseq
        %v665 = vshrl.u32 %v664, 7
        %v666 = vsub.s32 %v663, %v665
        %v667 = vrot.slane %v419, %v666
        %v668 = vcombine.high %v420, %v420
        %v670 = vunpack.c.l.s4 1983009808
        %v671 = vunpack.c.0.s8 %v670
        %v672 = vlaneseq
        %v673 = vshrl.u32 %v672, 7
        %v674 = vsub.s32 %v671, %v673
        %v675 = vrot.slane %v420, %v674
        %v677 = vunpack.c.l.s4 1983009808
        %v678 = vunpack.c.0.s8 %v677
        %v679 = vlaneseq
        %v680 = vshrl.u32 %v679, 7
        %v681 = vsub.s32 %v678, %v680
        %v682 = vrot.slane %v668, %v681
        %v683 = vcombine.high %v675, %v675
        %v684 = vcombine.high %v682, %v682
        %v686 = vunpack.c.l.s4 1983009808
        %v687 = vunpack.c.0.s8 %v686
        %v688 = vlaneseq
        %v689 = vshrl.u32 %v688, 7
        %v690 = vsub.s32 %v687, %v689
        %v691 = vrot.slane %v421, %v690
        %v692 = vcombine.high %v422, %v422
        %v694 = vunpack.c.l.s4 1983009808
        %v695 = vunpack.c.0.s8 %v694
        %v696 = vlaneseq
        %v697 = vshrl.u32 %v696, 7
        %v698 = vsub.s32 %v695, %v697
        %v699 = vrot.slane %v422, %v698
        %v701 = vunpack.c.l.s4 1983009808
        %v702 = vunpack.c.0.s8 %v701
        %v703 = vlaneseq
        %v704 = vshrl.u32 %v703, 7
        %v705 = vsub.s32 %v702, %v704
        %v706 = vrot.slane %v692, %v705
        %v707 = vcombine.high %v699, %v699
        %v708 = vcombine.high %v706, %v706
        %v710 = vunpack.c.l.s4 1983009808
        %v711 = vunpack.c.0.s8 %v710
        %v712 = vlaneseq
        %v713 = vshrl.u32 %v712, 7
        %v714 = vsub.s32 %v711, %v713
        %v715 = vrot.slane %v423, %v714
        %v716 = vcombine.high %v424, %v424
        %v718 = vunpack.c.l.s4 1983009808
        %v719 = vunpack.c.0.s8 %v718
        %v720 = vlaneseq
        %v721 = vshrl.u32 %v720, 7
        %v722 = vsub.s32 %v719, %v721
        %v723 = vrot.slane %v424, %v722
        %v725 = vunpack.c.l.s4 1983009808
        %v726 = vunpack.c.0.s8 %v725
        %v727 = vlaneseq
        %v728 = vshrl.u32 %v727, 7
        %v729 = vsub.s32 %v726, %v728
        %v730 = vrot.slane %v716, %v729
        %v731 = vcombine.high %v723, %v723
        %v732 = vcombine.high %v730, %v730
        %v734 = vunpack.c.l.s4 1983009808
        %v735 = vunpack.c.0.s8 %v734
        %v736 = vlaneseq
        %v737 = vshrl.u32 %v736, 7
        %v738 = vsub.s32 %v735, %v737
        %v739 = vrot.slane %v425, %v738
        %v740 = vcombine.high %v426, %v426
        %v742 = vunpack.c.l.s4 1983009808
        %v743 = vunpack.c.0.s8 %v742
        %v744 = vlaneseq
        %v745 = vshrl.u32 %v744, 7
        %v746 = vsub.s32 %v743, %v745
        %v747 = vrot.slane %v426, %v746
        %v749 = vunpack.c.l.s4 1983009808
        %v750 = vunpack.c.0.s8 %v749
        %v751 = vlaneseq
        %v752 = vshrl.u32 %v751, 7
        %v753 = vsub.s32 %v750, %v752
        %v754 = vrot.slane %v740, %v753
        %v755 = vcombine.high %v747, %v747
        %v756 = vcombine.high %v754, %v754
        %v758 = vunpack.c.l.s4 1983009808
        %v759 = vunpack.c.0.s8 %v758
        %v760 = vlaneseq
        %v761 = vshrl.u32 %v760, 7
        %v762 = vsub.s32 %v759, %v761
        %v763 = vrot.slane %v427, %v762
        %v764 = vcombine.high %v428, %v428
        %v766 = vunpack.c.l.s4 1983009808
        %v767 = vunpack.c.0.s8 %v766
        %v768 = vlaneseq
        %v769 = vshrl.u32 %v768, 7
        %v770 = vsub.s32 %v767, %v769
        %v771 = vrot.slane %v428, %v770
        %v773 = vunpack.c.l.s4 1983009808
        %v774 = vunpack.c.0.s8 %v773
        %v775 = vlaneseq
        %v776 = vshrl.u32 %v775, 7
        %v777 = vsub.s32 %v774, %v776
        %v778 = vrot.slane %v764, %v777
        %v779 = vcombine.high %v771, %v771
        %v780 = vcombine.high %v778, %v778
        %v782 = vunpack.c.l.s4 1983009808
        %v783 = vunpack.c.0.s8 %v782
        %v784 = vlaneseq
        %v785 = vshrl.u32 %v784, 7
        %v786 = vsub.s32 %v783, %v785
        %v787 = vrot.slane %v429, %v786
        %v788 = vcombine.high %v430, %v430
        %v790 = vunpack.c.l.s4 1983009808
        %v791 = vunpack.c.0.s8 %v790
        %v792 = vlaneseq
        %v793 = vshrl.u32 %v792, 7
        %v794 = vsub.s32 %v791, %v793
        %v795 = vrot.slane %v430, %v794
        %v797 = vunpack.c.l.s4 1983009808
        %v798 = vunpack.c.0.s8 %v797
        %v799 = vlaneseq
        %v800 = vshrl.u32 %v799, 7
        %v801 = vsub.s32 %v798, %v800
        %v802 = vrot.slane %v788, %v801
        %v803 = vcombine.high %v795, %v795
        %v804 = vcombine.high %v802, %v802
        %v806 = vunpack.c.l.s4 1983009808
        %v807 = vunpack.c.0.s8 %v806
        %v808 = vlaneseq
        %v809 = vshrl.u32 %v808, 7
        %v810 = vsub.s32 %v807, %v809
        %v811 = vrot.slane %v431, %v810
        %v812 = vcombine.high %v432, %v432
        %v814 = vunpack.c.l.s4 1983009808
        %v815 = vunpack.c.0.s8 %v814
        %v816 = vlaneseq
        %v817 = vshrl.u32 %v816, 7
        %v818 = vsub.s32 %v815, %v817
        %v819 = vrot.slane %v432, %v818
        %v821 = vunpack.c.l.s4 1983009808
        %v822 = vunpack.c.0.s8 %v821
        %v823 = vlaneseq
        %v824 = vshrl.u32 %v823, 7
        %v825 = vsub.s32 %v822, %v824
        %v826 = vrot.slane %v812, %v825
        %v827 = vcombine.high %v819, %v819
        %v828 = vcombine.high %v826, %v826
        %v830 = vunpack.c.l.s4 1983009808
        %v831 = vunpack.c.0.s8 %v830
        %v832 = vlaneseq
        %v833 = vshrl.u32 %v832, 7
        %v834 = vsub.s32 %v831, %v833
        %v835 = vrot.slane %v433, %v834
        %v836 = vcombine.high %v434, %v434
        %v838 = vunpack.c.l.s4 1983009808
        %v839 = vunpack.c.0.s8 %v838
        %v840 = vlaneseq
        %v841 = vshrl.u32 %v840, 7
        %v842 = vsub.s32 %v839, %v841
        %v843 = vrot.slane %v434, %v842
        %v845 = vunpack.c.l.s4 1983009808
        %v846 = vunpack.c.0.s8 %v845
        %v847 = vlaneseq
        %v848 = vshrl.u32 %v847, 7
        %v849 = vsub.s32 %v846, %v848
        %v850 = vrot.slane %v836, %v849
        %v851 = vcombine.high %v843, %v843
        %v852 = vcombine.high %v850, %v850
        %v854 = vunpack.c.l.s4 1983009808
        %v855 = vunpack.c.0.s8 %v854
        %v856 = vlaneseq
        %v857 = vshrl.u32 %v856, 7
        %v858 = vsub.s32 %v855, %v857
        %v859 = vrot.slane %v435, %v858
        %v860 = vcombine.high %v436, %v436
        %v862 = vunpack.c.l.s4 1983009808
        %v863 = vunpack.c.0.s8 %v862
        %v864 = vlaneseq
        %v865 = vshrl.u32 %v864, 7
        %v866 = vsub.s32 %v863, %v865
        %v867 = vrot.slane %v436, %v866
        %v869 = vunpack.c.l.s4 1983009808
        %v870 = vunpack.c.0.s8 %v869
        %v871 = vlaneseq
        %v872 = vshrl.u32 %v871, 7
        %v873 = vsub.s32 %v870, %v872
        %v874 = vrot.slane %v860, %v873
        %v875 = vcombine.high %v867, %v867
        %v876 = vcombine.high %v874, %v874
        %v878 = vunpack.c.l.s4 1983009808
        %v879 = vunpack.c.0.s8 %v878
        %v880 = vlaneseq
        %v881 = vshrl.u32 %v880, 7
        %v882 = vsub.s32 %v879, %v881
        %v883 = vrot.slane %v437, %v882
        %v884 = vcombine.high %v438, %v438
        %v886 = vunpack.c.l.s4 1983009808
        %v887 = vunpack.c.0.s8 %v886
        %v888 = vlaneseq
        %v889 = vshrl.u32 %v888, 7
        %v890 = vsub.s32 %v887, %v889
        %v891 = vrot.slane %v438, %v890
        %v893 = vunpack.c.l.s4 1983009808
        %v894 = vunpack.c.0.s8 %v893
        %v895 = vlaneseq
        %v896 = vshrl.u32 %v895, 7
        %v897 = vsub.s32 %v894, %v896
        %v898 = vrot.slane %v884, %v897
        %v899 = vcombine.high %v891, %v891
        %v900 = vcombine.high %v898, %v898
        %v902 = vunpack.c.l.s4 1983009808
        %v903 = vunpack.c.0.s8 %v902
        %v904 = vlaneseq
        %v905 = vshrl.u32 %v904, 7
        %v906 = vsub.s32 %v903, %v905
        %v907 = vrot.slane %v439, %v906
        %v908 = vcombine.high %v440, %v440
        %v910 = vunpack.c.l.s4 1983009808
        %v911 = vunpack.c.0.s8 %v910
        %v912 = vlaneseq
        %v913 = vshrl.u32 %v912, 7
        %v914 = vsub.s32 %v911, %v913
        %v915 = vrot.slane %v440, %v914
        %v917 = vunpack.c.l.s4 1983009808
        %v918 = vunpack.c.0.s8 %v917
        %v919 = vlaneseq
        %v920 = vshrl.u32 %v919, 7
        %v921 = vsub.s32 %v918, %v920
        %v922 = vrot.slane %v908, %v921
        %v923 = vcombine.high %v915, %v915
        %v924 = vcombine.high %v922, %v922
        %v926 = vunpack.c.l.s4 1983009808
        %v927 = vunpack.c.0.s8 %v926
        %v928 = vlaneseq
        %v929 = vshrl.u32 %v928, 7
        %v930 = vsub.s32 %v927, %v929
        %v931 = vrot.slane %v441, %v930
        %v932 = vcombine.high %v442, %v442
        %v934 = vunpack.c.l.s4 1983009808
        %v935 = vunpack.c.0.s8 %v934
        %v936 = vlaneseq
        %v937 = vshrl.u32 %v936, 7
        %v938 = vsub.s32 %v935, %v937
        %v939 = vrot.slane %v442, %v938
        %v941 = vunpack.c.l.s4 1983009808
        %v942 = vunpack.c.0.s8 %v941
        %v943 = vlaneseq
        %v944 = vshrl.u32 %v943, 7
        %v945 = vsub.s32 %v942, %v944
        %v946 = vrot.slane %v932, %v945
        %v947 = vcombine.high %v939, %v939
        %v948 = vcombine.high %v946, %v946
        %v950 = vunpack.c.l.s4 1983009808
        %v951 = vunpack.c.0.s8 %v950
        %v952 = vlaneseq
        %v953 = vshrl.u32 %v952, 7
        %v954 = vsub.s32 %v951, %v953
        %v955 = vrot.slane %v443, %v954
        %v956 = vcombine.high %v444, %v444
        %v958 = vunpack.c.l.s4 1983009808
        %v959 = vunpack.c.0.s8 %v958
        %v960 = vlaneseq
        %v961 = vshrl.u32 %v960, 7
        %v962 = vsub.s32 %v959, %v961
        %v963 = vrot.slane %v444, %v962
        %v965 = vunpack.c.l.s4 1983009808
        %v966 = vunpack.c.0.s8 %v965
        %v967 = vlaneseq
        %v968 = vshrl.u32 %v967, 7
        %v969 = vsub.s32 %v966, %v968
        %v970 = vrot.slane %v956, %v969
        %v971 = vcombine.high %v963, %v963
        %v972 = vcombine.high %v970, %v970
        %v974 = vunpack.c.l.s4 1983009808
        %v975 = vunpack.c.0.s8 %v974
        %v976 = vlaneseq
        %v977 = vshrl.u32 %v976, 7
        %v978 = vsub.s32 %v975, %v977
        %v979 = vrot.slane %v445, %v978
        %v980 = vcombine.high %v446, %v446
        %v982 = vunpack.c.l.s4 1983009808
        %v983 = vunpack.c.0.s8 %v982
        %v984 = vlaneseq
        %v985 = vshrl.u32 %v984, 7
        %v986 = vsub.s32 %v983, %v985
        %v987 = vrot.slane %v446, %v986
        %v989 = vunpack.c.l.s4 1983009808
        %v990 = vunpack.c.0.s8 %v989
        %v991 = vlaneseq
        %v992 = vshrl.u32 %v991, 7
        %v993 = vsub.s32 %v990, %v992
        %v994 = vrot.slane %v980, %v993
        %v995 = vcombine.high %v987, %v987
        %v996 = vcombine.high %v994, %v994
        %v998 = vunpack.c.l.s4 1983009808
        %v999 = vunpack.c.0.s8 %v998
        %v1000 = vlaneseq
        %v1001 = vshrl.u32 %v1000, 7
        %v1002 = vsub.s32 %v999, %v1001
        %v1003 = vrot.slane %v447, %v1002
        %v1004 = vcombine.high %v448, %v448
        %v1006 = vunpack.c.l.s4 1983009808
        %v1007 = vunpack.c.0.s8 %v1006
        %v1008 = vlaneseq
        %v1009 = vshrl.u32 %v1008, 7
        %v1010 = vsub.s32 %v1007, %v1009
        %v1011 = vrot.slane %v448, %v1010
        %v1013 = vunpack.c.l.s4 1983009808
        %v1014 = vunpack.c.0.s8 %v1013
        %v1015 = vlaneseq
        %v1016 = vshrl.u32 %v1015, 7
        %v1017 = vsub.s32 %v1014, %v1016
        %v1018 = vrot.slane %v1004, %v1017
        %v1019 = vcombine.high %v1011, %v1011
        %v1020 = vcombine.high %v1018, %v1018
        %v1022 = vunpack.c.l.s4 1983009808
        %v1023 = vunpack.c.0.s8 %v1022
        %v1024 = vlaneseq
        %v1025 = vshrl.u32 %v1024, 7
        %v1026 = vsub.s32 %v1023, %v1025
        %v1027 = vrot.slane %v449, %v1026
        %v1028 = vcombine.high %v450, %v450
        %v1030 = vunpack.c.l.s4 1983009808
        %v1031 = vunpack.c.0.s8 %v1030
        %v1032 = vlaneseq
        %v1033 = vshrl.u32 %v1032, 7
        %v1034 = vsub.s32 %v1031, %v1033
        %v1035 = vrot.slane %v450, %v1034
        %v1037 = vunpack.c.l.s4 1983009808
        %v1038 = vunpack.c.0.s8 %v1037
        %v1039 = vlaneseq
        %v1040 = vshrl.u32 %v1039, 7
        %v1041 = vsub.s32 %v1038, %v1040
        %v1042 = vrot.slane %v1028, %v1041
        %v1043 = vcombine.high %v1035, %v1035
        %v1044 = vcombine.high %v1042, %v1042
        %v1046 = vunpack.c.l.s4 1983009808
        %v1047 = vunpack.c.0.s8 %v1046
        %v1048 = vlaneseq
        %v1049 = vshrl.u32 %v1048, 7
        %v1050 = vsub.s32 %v1047, %v1049
        %v1051 = vrot.slane %v451, %v1050
        %v1052 = vcombine.high %v452, %v452
        %v1054 = vunpack.c.l.s4 1983009808
        %v1055 = vunpack.c.0.s8 %v1054
        %v1056 = vlaneseq
        %v1057 = vshrl.u32 %v1056, 7
        %v1058 = vsub.s32 %v1055, %v1057
        %v1059 = vrot.slane %v452, %v1058
        %v1061 = vunpack.c.l.s4 1983009808
        %v1062 = vunpack.c.0.s8 %v1061
        %v1063 = vlaneseq
        %v1064 = vshrl.u32 %v1063, 7
        %v1065 = vsub.s32 %v1062, %v1064
        %v1066 = vrot.slane %v1052, %v1065
        %v1067 = vcombine.high %v1059, %v1059
        %v1068 = vcombine.high %v1066, %v1066
        %v1070 = vunpack.c.l.s4 1983009808
        %v1071 = vunpack.c.0.s8 %v1070
        %v1072 = vlaneseq
        %v1073 = vshrl.u32 %v1072, 7
        %v1074 = vsub.s32 %v1071, %v1073
        %v1075 = vrot.slane %v453, %v1074
        %v1076 = vcombine.high %v454, %v454
        %v1078 = vunpack.c.l.s4 1983009808
        %v1079 = vunpack.c.0.s8 %v1078
        %v1080 = vlaneseq
        %v1081 = vshrl.u32 %v1080, 7
        %v1082 = vsub.s32 %v1079, %v1081
        %v1083 = vrot.slane %v454, %v1082
        %v1085 = vunpack.c.l.s4 1983009808
        %v1086 = vunpack.c.0.s8 %v1085
        %v1087 = vlaneseq
        %v1088 = vshrl.u32 %v1087, 7
        %v1089 = vsub.s32 %v1086, %v1088
        %v1090 = vrot.slane %v1076, %v1089
        %v1091 = vcombine.high %v1083, %v1083
        %v1092 = vcombine.high %v1090, %v1090
        %v1094 = vunpack.c.l.s4 1983009808
        %v1095 = vunpack.c.0.s8 %v1094
        %v1096 = vlaneseq
        %v1097 = vshrl.u32 %v1096, 7
        %v1098 = vsub.s32 %v1095, %v1097
        %v1099 = vrot.slane %v455, %v1098
        %v1100 = vcombine.high %v456, %v456
        %v1102 = vunpack.c.l.s4 1983009808
        %v1103 = vunpack.c.0.s8 %v1102
        %v1104 = vlaneseq
        %v1105 = vshrl.u32 %v1104, 7
        %v1106 = vsub.s32 %v1103, %v1105
        %v1107 = vrot.slane %v456, %v1106
        %v1109 = vunpack.c.l.s4 1983009808
        %v1110 = vunpack.c.0.s8 %v1109
        %v1111 = vlaneseq
        %v1112 = vshrl.u32 %v1111, 7
        %v1113 = vsub.s32 %v1110, %v1112
        %v1114 = vrot.slane %v1100, %v1113
        %v1115 = vcombine.high %v1107, %v1107
        %v1116 = vcombine.high %v1114, %v1114
        %v1118 = vunpack.c.l.s4 1983009808
        %v1119 = vunpack.c.0.s8 %v1118
        %v1120 = vlaneseq
        %v1121 = vshrl.u32 %v1120, 7
        %v1122 = vsub.s32 %v1119, %v1121
        %v1123 = vrot.slane %v457, %v1122
        %v1124 = vcombine.high %v458, %v458
        %v1126 = vunpack.c.l.s4 1983009808
        %v1127 = vunpack.c.0.s8 %v1126
        %v1128 = vlaneseq
        %v1129 = vshrl.u32 %v1128, 7
        %v1130 = vsub.s32 %v1127, %v1129
        %v1131 = vrot.slane %v458, %v1130
        %v1133 = vunpack.c.l.s4 1983009808
        %v1134 = vunpack.c.0.s8 %v1133
        %v1135 = vlaneseq
        %v1136 = vshrl.u32 %v1135, 7
        %v1137 = vsub.s32 %v1134, %v1136
        %v1138 = vrot.slane %v1124, %v1137
        %v1139 = vcombine.high %v1131, %v1131
        %v1140 = vcombine.high %v1138, %v1138
        %v1142 = vunpack.c.l.s4 1983009808
        %v1143 = vunpack.c.0.s8 %v1142
        %v1144 = vlaneseq
        %v1145 = vshrl.u32 %v1144, 7
        %v1146 = vsub.s32 %v1143, %v1145
        %v1147 = vrot.slane %v459, %v1146
        %v1148 = vcombine.high %v460, %v460
        %v1150 = vunpack.c.l.s4 1983009808
        %v1151 = vunpack.c.0.s8 %v1150
        %v1152 = vlaneseq
        %v1153 = vshrl.u32 %v1152, 7
        %v1154 = vsub.s32 %v1151, %v1153
        %v1155 = vrot.slane %v460, %v1154
        %v1157 = vunpack.c.l.s4 1983009808
        %v1158 = vunpack.c.0.s8 %v1157
        %v1159 = vlaneseq
        %v1160 = vshrl.u32 %v1159, 7
        %v1161 = vsub.s32 %v1158, %v1160
        %v1162 = vrot.slane %v1148, %v1161
        %v1163 = vcombine.high %v1155, %v1155
        %v1164 = vcombine.high %v1162, %v1162
        %v1166 = vunpack.c.l.s4 1983009808
        %v1167 = vunpack.c.0.s8 %v1166
        %v1168 = vlaneseq
        %v1169 = vshrl.u32 %v1168, 7
        %v1170 = vsub.s32 %v1167, %v1169
        %v1171 = vrot.slane %v461, %v1170
        %v1172 = vcombine.high %v462, %v462
        %v1174 = vunpack.c.l.s4 1983009808
        %v1175 = vunpack.c.0.s8 %v1174
        %v1176 = vlaneseq
        %v1177 = vshrl.u32 %v1176, 7
        %v1178 = vsub.s32 %v1175, %v1177
        %v1179 = vrot.slane %v462, %v1178
        %v1181 = vunpack.c.l.s4 1983009808
        %v1182 = vunpack.c.0.s8 %v1181
        %v1183 = vlaneseq
        %v1184 = vshrl.u32 %v1183, 7
        %v1185 = vsub.s32 %v1182, %v1184
        %v1186 = vrot.slane %v1172, %v1185
        %v1187 = vcombine.high %v1179, %v1179
        %v1188 = vcombine.high %v1186, %v1186
        %v1190 = vunpack.c.l.s4 1983009808
        %v1191 = vunpack.c.0.s8 %v1190
        %v1192 = vlaneseq
        %v1193 = vshrl.u32 %v1192, 7
        %v1194 = vsub.s32 %v1191, %v1193
        %v1195 = vrot.slane %v463, %v1194
        %v1196 = vcombine.high %v464, %v464
        %v1198 = vunpack.c.l.s4 1983009808
        %v1199 = vunpack.c.0.s8 %v1198
        %v1200 = vlaneseq
        %v1201 = vshrl.u32 %v1200, 7
        %v1202 = vsub.s32 %v1199, %v1201
        %v1203 = vrot.slane %v464, %v1202
        %v1205 = vunpack.c.l.s4 1983009808
        %v1206 = vunpack.c.0.s8 %v1205
        %v1207 = vlaneseq
        %v1208 = vshrl.u32 %v1207, 7
        %v1209 = vsub.s32 %v1206, %v1208
        %v1210 = vrot.slane %v1196, %v1209
        %v1211 = vcombine.high %v1203, %v1203
        %v1212 = vcombine.high %v1210, %v1210
        %v1214 = vunpack.c.l.s4 1983009808
        %v1215 = vunpack.c.0.s8 %v1214
        %v1216 = vlaneseq
        %v1217 = vshrl.u32 %v1216, 7
        %v1218 = vsub.s32 %v1215, %v1217
        %v1219 = vrot.slane %v465, %v1218
        %v1220 = vcombine.high %v466, %v466
        %v1222 = vunpack.c.l.s4 1983009808
        %v1223 = vunpack.c.0.s8 %v1222
        %v1224 = vlaneseq
        %v1225 = vshrl.u32 %v1224, 7
        %v1226 = vsub.s32 %v1223, %v1225
        %v1227 = vrot.slane %v466, %v1226
        %v1229 = vunpack.c.l.s4 1983009808
        %v1230 = vunpack.c.0.s8 %v1229
        %v1231 = vlaneseq
        %v1232 = vshrl.u32 %v1231, 7
        %v1233 = vsub.s32 %v1230, %v1232
        %v1234 = vrot.slane %v1220, %v1233
        %v1235 = vcombine.high %v1227, %v1227
        %v1236 = vcombine.high %v1234, %v1234
        %v1238 = vunpack.c.l.s4 1983009808
        %v1239 = vunpack.c.0.s8 %v1238
        %v1240 = vlaneseq
        %v1241 = vshrl.u32 %v1240, 7
        %v1242 = vsub.s32 %v1239, %v1241
        %v1243 = vrot.slane %v467, %v1242
        %v1244 = vcombine.high %v468, %v468
        %v1246 = vunpack.c.l.s4 1983009808
        %v1247 = vunpack.c.0.s8 %v1246
        %v1248 = vlaneseq
        %v1249 = vshrl.u32 %v1248, 7
        %v1250 = vsub.s32 %v1247, %v1249
        %v1251 = vrot.slane %v468, %v1250
        %v1253 = vunpack.c.l.s4 1983009808
        %v1254 = vunpack.c.0.s8 %v1253
        %v1255 = vlaneseq
        %v1256 = vshrl.u32 %v1255, 7
        %v1257 = vsub.s32 %v1254, %v1256
        %v1258 = vrot.slane %v1244, %v1257
        %v1259 = vcombine.high %v1251, %v1251
        %v1260 = vcombine.high %v1258, %v1258
        %v1262 = vunpack.c.l.s4 1983009808
        %v1263 = vunpack.c.0.s8 %v1262
        %v1264 = vlaneseq
        %v1265 = vshrl.u32 %v1264, 7
        %v1266 = vsub.s32 %v1263, %v1265
        %v1267 = vrot.slane %v469, %v1266
        %v1268 = vcombine.high %v470, %v470
        %v1270 = vunpack.c.l.s4 1983009808
        %v1271 = vunpack.c.0.s8 %v1270
        %v1272 = vlaneseq
        %v1273 = vshrl.u32 %v1272, 7
        %v1274 = vsub.s32 %v1271, %v1273
        %v1275 = vrot.slane %v470, %v1274
        %v1277 = vunpack.c.l.s4 1983009808
        %v1278 = vunpack.c.0.s8 %v1277
        %v1279 = vlaneseq
        %v1280 = vshrl.u32 %v1279, 7
        %v1281 = vsub.s32 %v1278, %v1280
        %v1282 = vrot.slane %v1268, %v1281
        %v1283 = vcombine.high %v1275, %v1275
        %v1284 = vcombine.high %v1282, %v1282
        %v1286 = vunpack.c.l.s4 1983009808
        %v1287 = vunpack.c.0.s8 %v1286
        %v1288 = vlaneseq
        %v1289 = vshrl.u32 %v1288, 7
        %v1290 = vsub.s32 %v1287, %v1289
        %v1291 = vrot.slane %v471, %v1290
        %v1292 = vcombine.high %v472, %v472
        %v1294 = vunpack.c.l.s4 1983009808
        %v1295 = vunpack.c.0.s8 %v1294
        %v1296 = vlaneseq
        %v1297 = vshrl.u32 %v1296, 7
        %v1298 = vsub.s32 %v1295, %v1297
        %v1299 = vrot.slane %v472, %v1298
        %v1301 = vunpack.c.l.s4 1983009808
        %v1302 = vunpack.c.0.s8 %v1301
        %v1303 = vlaneseq
        %v1304 = vshrl.u32 %v1303, 7
        %v1305 = vsub.s32 %v1302, %v1304
        %v1306 = vrot.slane %v1292, %v1305
        %v1307 = vcombine.high %v1299, %v1299
        %v1308 = vcombine.high %v1306, %v1306
        %v1310 = vunpack.c.l.s4 1983009808
        %v1311 = vunpack.c.0.s8 %v1310
        %v1312 = vlaneseq
        %v1313 = vshrl.u32 %v1312, 7
        %v1314 = vsub.s32 %v1311, %v1313
        %v1315 = vrot.slane %v473, %v1314
        %v1316 = vcombine.high %v474, %v474
        %v1318 = vunpack.c.l.s4 1983009808
        %v1319 = vunpack.c.0.s8 %v1318
        %v1320 = vlaneseq
        %v1321 = vshrl.u32 %v1320, 7
        %v1322 = vsub.s32 %v1319, %v1321
        %v1323 = vrot.slane %v474, %v1322
        %v1325 = vunpack.c.l.s4 1983009808
        %v1326 = vunpack.c.0.s8 %v1325
        %v1327 = vlaneseq
        %v1328 = vshrl.u32 %v1327, 7
        %v1329 = vsub.s32 %v1326, %v1328
        %v1330 = vrot.slane %v1316, %v1329
        %v1331 = vcombine.high %v1323, %v1323
        %v1332 = vcombine.high %v1330, %v1330
        %v1334 = vunpack.c.l.s4 1983009808
        %v1335 = vunpack.c.0.s8 %v1334
        %v1336 = vlaneseq
        %v1337 = vshrl.u32 %v1336, 7
        %v1338 = vsub.s32 %v1335, %v1337
        %v1339 = vrot.slane %v475, %v1338
        %v1340 = vcombine.high %v476, %v476
        %v1342 = vunpack.c.l.s4 1983009808
        %v1343 = vunpack.c.0.s8 %v1342
        %v1344 = vlaneseq
        %v1345 = vshrl.u32 %v1344, 7
        %v1346 = vsub.s32 %v1343, %v1345
        %v1347 = vrot.slane %v476, %v1346
        %v1349 = vunpack.c.l.s4 1983009808
        %v1350 = vunpack.c.0.s8 %v1349
        %v1351 = vlaneseq
        %v1352 = vshrl.u32 %v1351, 7
        %v1353 = vsub.s32 %v1350, %v1352
        %v1354 = vrot.slane %v1340, %v1353
        %v1355 = vcombine.high %v1347, %v1347
        %v1356 = vcombine.high %v1354, %v1354
        %v1358 = vunpack.c.l.s4 1983009808
        %v1359 = vunpack.c.0.s8 %v1358
        %v1360 = vlaneseq
        %v1361 = vshrl.u32 %v1360, 7
        %v1362 = vsub.s32 %v1359, %v1361
        %v1363 = vrot.slane %v477, %v1362
        %v1364 = vcombine.high %v478, %v478
        %v1366 = vunpack.c.l.s4 1983009808
        %v1367 = vunpack.c.0.s8 %v1366
        %v1368 = vlaneseq
        %v1369 = vshrl.u32 %v1368, 7
        %v1370 = vsub.s32 %v1367, %v1369
        %v1371 = vrot.slane %v478, %v1370
        %v1373 = vunpack.c.l.s4 1983009808
        %v1374 = vunpack.c.0.s8 %v1373
        %v1375 = vlaneseq
        %v1376 = vshrl.u32 %v1375, 7
        %v1377 = vsub.s32 %v1374, %v1376
        %v1378 = vrot.slane %v1364, %v1377
        %v1379 = vcombine.high %v1371, %v1371
        %v1380 = vcombine.high %v1378, %v1378
        %v1382 = vunpack.c.l.s4 1983009808
        %v1383 = vunpack.c.0.s8 %v1382
        %v1384 = vlaneseq
        %v1385 = vshrl.u32 %v1384, 7
        %v1386 = vsub.s32 %v1383, %v1385
        %v1387 = vrot.slane %v479, %v1386
        %v1388 = vcombine.high %v480, %v480
        %v1390 = vunpack.c.l.s4 1983009808
        %v1391 = vunpack.c.0.s8 %v1390
        %v1392 = vlaneseq
        %v1393 = vshrl.u32 %v1392, 7
        %v1394 = vsub.s32 %v1391, %v1393
        %v1395 = vrot.slane %v480, %v1394
        %v1397 = vunpack.c.l.s4 1983009808
        %v1398 = vunpack.c.0.s8 %v1397
        %v1399 = vlaneseq
        %v1400 = vshrl.u32 %v1399, 7
        %v1401 = vsub.s32 %v1398, %v1400
        %v1402 = vrot.slane %v1388, %v1401
        %v1403 = vcombine.high %v1395, %v1395
        %v1404 = vcombine.high %v1402, %v1402
        %v1406 = vunpack.c.l.s4 1983009808
        %v1407 = vunpack.c.0.s8 %v1406
        %v1408 = vlaneseq
        %v1409 = vshrl.u32 %v1408, 7
        %v1410 = vsub.s32 %v1407, %v1409
        %v1411 = vrot.slane %v481, %v1410
        %v1412 = vcombine.high %v482, %v482
        %v1414 = vunpack.c.l.s4 1983009808
        %v1415 = vunpack.c.0.s8 %v1414
        %v1416 = vlaneseq
        %v1417 = vshrl.u32 %v1416, 7
        %v1418 = vsub.s32 %v1415, %v1417
        %v1419 = vrot.slane %v482, %v1418
        %v1421 = vunpack.c.l.s4 1983009808
        %v1422 = vunpack.c.0.s8 %v1421
        %v1423 = vlaneseq
        %v1424 = vshrl.u32 %v1423, 7
        %v1425 = vsub.s32 %v1422, %v1424
        %v1426 = vrot.slane %v1412, %v1425
        %v1427 = vcombine.high %v1419, %v1419
        %v1428 = vcombine.high %v1426, %v1426
        %v1430 = vunpack.c.l.s4 1983009808
        %v1431 = vunpack.c.0.s8 %v1430
        %v1432 = vlaneseq
        %v1433 = vshrl.u32 %v1432, 7
        %v1434 = vsub.s32 %v1431, %v1433
        %v1435 = vrot.slane %v483, %v1434
        %v1436 = vcombine.high %v484, %v484
        %v1438 = vunpack.c.l.s4 1983009808
        %v1439 = vunpack.c.0.s8 %v1438
        %v1440 = vlaneseq
        %v1441 = vshrl.u32 %v1440, 7
        %v1442 = vsub.s32 %v1439, %v1441
        %v1443 = vrot.slane %v484, %v1442
        %v1445 = vunpack.c.l.s4 1983009808
        %v1446 = vunpack.c.0.s8 %v1445
        %v1447 = vlaneseq
        %v1448 = vshrl.u32 %v1447, 7
        %v1449 = vsub.s32 %v1446, %v1448
        %v1450 = vrot.slane %v1436, %v1449
        %v1451 = vcombine.high %v1443, %v1443
        %v1452 = vcombine.high %v1450, %v1450
        %v1454 = vunpack.c.l.s4 1983009808
        %v1455 = vunpack.c.0.s8 %v1454
        %v1456 = vlaneseq
        %v1457 = vshrl.u32 %v1456, 7
        %v1458 = vsub.s32 %v1455, %v1457
        %v1459 = vrot.slane %v485, %v1458
        %v1460 = vcombine.high %v486, %v486
        %v1462 = vunpack.c.l.s4 1983009808
        %v1463 = vunpack.c.0.s8 %v1462
        %v1464 = vlaneseq
        %v1465 = vshrl.u32 %v1464, 7
        %v1466 = vsub.s32 %v1463, %v1465
        %v1467 = vrot.slane %v486, %v1466
        %v1469 = vunpack.c.l.s4 1983009808
        %v1470 = vunpack.c.0.s8 %v1469
        %v1471 = vlaneseq
        %v1472 = vshrl.u32 %v1471, 7
        %v1473 = vsub.s32 %v1470, %v1472
        %v1474 = vrot.slane %v1460, %v1473
        %v1475 = vcombine.high %v1467, %v1467
        %v1476 = vcombine.high %v1474, %v1474
        %v1478 = vunpack.c.l.s4 1983009808
        %v1479 = vunpack.c.0.s8 %v1478
        %v1480 = vlaneseq
        %v1481 = vshrl.u32 %v1480, 7
        %v1482 = vsub.s32 %v1479, %v1481
        %v1483 = vrot.slane %v487, %v1482
        %v1484 = vcombine.high %v488, %v488
        %v1486 = vunpack.c.l.s4 1983009808
        %v1487 = vunpack.c.0.s8 %v1486
        %v1488 = vlaneseq
        %v1489 = vshrl.u32 %v1488, 7
        %v1490 = vsub.s32 %v1487, %v1489
        %v1491 = vrot.slane %v488, %v1490
        %v1493 = vunpack.c.l.s4 1983009808
        %v1494 = vunpack.c.0.s8 %v1493
        %v1495 = vlaneseq
        %v1496 = vshrl.u32 %v1495, 7
        %v1497 = vsub.s32 %v1494, %v1496
        %v1498 = vrot.slane %v1484, %v1497
        %v1499 = vcombine.high %v1491, %v1491
        %v1500 = vcombine.high %v1498, %v1498
        %v1502 = vunpack.c.l.s4 1983009808
        %v1503 = vunpack.c.0.s8 %v1502
        %v1504 = vlaneseq
        %v1505 = vshrl.u32 %v1504, 7
        %v1506 = vsub.s32 %v1503, %v1505
        %v1507 = vrot.slane %v489, %v1506
        %v1508 = vcombine.high %v490, %v490
        %v1510 = vunpack.c.l.s4 1983009808
        %v1511 = vunpack.c.0.s8 %v1510
        %v1512 = vlaneseq
        %v1513 = vshrl.u32 %v1512, 7
        %v1514 = vsub.s32 %v1511, %v1513
        %v1515 = vrot.slane %v490, %v1514
        %v1517 = vunpack.c.l.s4 1983009808
        %v1518 = vunpack.c.0.s8 %v1517
        %v1519 = vlaneseq
        %v1520 = vshrl.u32 %v1519, 7
        %v1521 = vsub.s32 %v1518, %v1520
        %v1522 = vrot.slane %v1508, %v1521
        %v1523 = vcombine.high %v1515, %v1515
        %v1524 = vcombine.high %v1522, %v1522
        %v1526 = vunpack.c.l.s4 1983009808
        %v1527 = vunpack.c.0.s8 %v1526
        %v1528 = vlaneseq
        %v1529 = vshrl.u32 %v1528, 7
        %v1530 = vsub.s32 %v1527, %v1529
        %v1531 = vrot.slane %v491, %v1530
        %v1532 = vld [vmem:[%s2] sm:$0xff]
        %v1533 = vld [vmem:[%s3] sm:$0x1]
        %v1535 = vlaneseq
        %v1536 = vshrl.u32 %v1535, 7
        %v1537 = vsub.s32 0, %v1536
        %v1538 = vrot.slane %v1533, %v1537
        %v1540 = vcombine.low %v579, %v587
        %v1541 = vcombine.low %v586, %v588
        %v1543 = vunpack.c.l.s4 1983009808
        %v1544 = vunpack.c.0.s8 %v1543
        %v1545 = vlaneseq
        %v1546 = vshrl.u32 %v1545, 7
        %v1547 = vsub.s32 %v1544, %v1546
        %v1548 = vrot.slane %v1540, %v1547
        %v1550 = vunpack.c.l.s4 1983009808
        %v1551 = vunpack.c.0.s8 %v1550
        %v1552 = vlaneseq
        %v1553 = vshrl.u32 %v1552, 7
        %v1554 = vsub.s32 %v1551, %v1553
        %v1555 = vrot.slane %v1541, %v1554
        %v1556 = vcombine.low %v1548, %v1555
        %v1557 = vcombine.low %v595, %v603
        %v1558 = vcombine.low %v611, %v610
        %v1560 = vunpack.c.l.s4 1983009808
        %v1561 = vunpack.c.0.s8 %v1560
        %v1562 = vlaneseq
        %v1563 = vshrl.u32 %v1562, 7
        %v1564 = vsub.s32 %v1561, %v1563
        %v1565 = vrot.slane %v1557, %v1564
        %v1567 = vunpack.c.l.s4 1983009808
        %v1568 = vunpack.c.0.s8 %v1567
        %v1569 = vlaneseq
        %v1570 = vshrl.u32 %v1569, 7
        %v1571 = vsub.s32 %v1568, %v1570
        %v1572 = vrot.slane %v1558, %v1571
        %v1573 = vcombine.low %v1565, %v1572
        %v1574 = vcombine.low %v612, %v619
        %v1575 = vcombine.low %v627, %v635
        %v1577 = vunpack.c.l.s4 1983009808
        %v1578 = vunpack.c.0.s8 %v1577
        %v1579 = vlaneseq
        %v1580 = vshrl.u32 %v1579, 7
        %v1581 = vsub.s32 %v1578, %v1580
        %v1582 = vrot.slane %v1574, %v1581
        %v1584 = vunpack.c.l.s4 1983009808
        %v1585 = vunpack.c.0.s8 %v1584
        %v1586 = vlaneseq
        %v1587 = vshrl.u32 %v1586, 7
        %v1588 = vsub.s32 %v1585, %v1587
        %v1589 = vrot.slane %v1575, %v1588
        %v1590 = vcombine.low %v1582, %v1589
        %v1591 = vcombine.low %v634, %v636
        %v1592 = vcombine.low %v643, %v651
        %v1594 = vunpack.c.l.s4 1983009808
        %v1595 = vunpack.c.0.s8 %v1594
        %v1596 = vlaneseq
        %v1597 = vshrl.u32 %v1596, 7
        %v1598 = vsub.s32 %v1595, %v1597
        %v1599 = vrot.slane %v1591, %v1598
        %v1601 = vunpack.c.l.s4 1983009808
        %v1602 = vunpack.c.0.s8 %v1601
        %v1603 = vlaneseq
        %v1604 = vshrl.u32 %v1603, 7
        %v1605 = vsub.s32 %v1602, %v1604
        %v1606 = vrot.slane %v1592, %v1605
        %v1607 = vcombine.low %v1599, %v1606
        %v1608 = vcombine.low %v659, %v658
        %v1609 = vcombine.low %v660, %v667
        %v1611 = vunpack.c.l.s4 1983009808
        %v1612 = vunpack.c.0.s8 %v1611
        %v1613 = vlaneseq
        %v1614 = vshrl.u32 %v1613, 7
        %v1615 = vsub.s32 %v1612, %v1614
        %v1616 = vrot.slane %v1608, %v1615
        %v1618 = vunpack.c.l.s4 1983009808
        %v1619 = vunpack.c.0.s8 %v1618
        %v1620 = vlaneseq
        %v1621 = vshrl.u32 %v1620, 7
        %v1622 = vsub.s32 %v1619, %v1621
        %v1623 = vrot.slane %v1609, %v1622
        %v1624 = vcombine.low %v1616, %v1623
        %v1625 = vcombine.low %v675, %v683
        %v1626 = vcombine.low %v682, %v684
        %v1628 = vunpack.c.l.s4 1983009808
        %v1629 = vunpack.c.0.s8 %v1628
        %v1630 = vlaneseq
        %v1631 = vshrl.u32 %v1630, 7
        %v1632 = vsub.s32 %v1629, %v1631
        %v1633 = vrot.slane %v1625, %v1632
        %v1635 = vunpack.c.l.s4 1983009808
        %v1636 = vunpack.c.0.s8 %v1635
        %v1637 = vlaneseq
        %v1638 = vshrl.u32 %v1637, 7
        %v1639 = vsub.s32 %v1636, %v1638
        %v1640 = vrot.slane %v1626, %v1639
        %v1641 = vcombine.low %v1633, %v1640
        %v1642 = vcombine.low %v691, %v699
        %v1643 = vcombine.low %v707, %v706
        %v1645 = vunpack.c.l.s4 1983009808
        %v1646 = vunpack.c.0.s8 %v1645
        %v1647 = vlaneseq
        %v1648 = vshrl.u32 %v1647, 7
        %v1649 = vsub.s32 %v1646, %v1648
        %v1650 = vrot.slane %v1642, %v1649
        %v1652 = vunpack.c.l.s4 1983009808
        %v1653 = vunpack.c.0.s8 %v1652
        %v1654 = vlaneseq
        %v1655 = vshrl.u32 %v1654, 7
        %v1656 = vsub.s32 %v1653, %v1655
        %v1657 = vrot.slane %v1643, %v1656
        %v1658 = vcombine.low %v1650, %v1657
        %v1659 = vcombine.low %v708, %v715
        %v1660 = vcombine.low %v723, %v731
        %v1662 = vunpack.c.l.s4 1983009808
        %v1663 = vunpack.c.0.s8 %v1662
        %v1664 = vlaneseq
        %v1665 = vshrl.u32 %v1664, 7
        %v1666 = vsub.s32 %v1663, %v1665
        %v1667 = vrot.slane %v1659, %v1666
        %v1669 = vunpack.c.l.s4 1983009808
        %v1670 = vunpack.c.0.s8 %v1669
        %v1671 = vlaneseq
        %v1672 = vshrl.u32 %v1671, 7
        %v1673 = vsub.s32 %v1670, %v1672
        %v1674 = vrot.slane %v1660, %v1673
        %v1675 = vcombine.low %v1667, %v1674
        %v1676 = vcombine.low %v730, %v732
        %v1677 = vcombine.low %v739, %v747
        %v1679 = vunpack.c.l.s4 1983009808
        %v1680 = vunpack.c.0.s8 %v1679
        %v1681 = vlaneseq
        %v1682 = vshrl.u32 %v1681, 7
        %v1683 = vsub.s32 %v1680, %v1682
        %v1684 = vrot.slane %v1676, %v1683
        %v1686 = vunpack.c.l.s4 1983009808
        %v1687 = vunpack.c.0.s8 %v1686
        %v1688 = vlaneseq
        %v1689 = vshrl.u32 %v1688, 7
        %v1690 = vsub.s32 %v1687, %v1689
        %v1691 = vrot.slane %v1677, %v1690
        %v1692 = vcombine.low %v1684, %v1691
        %v1693 = vcombine.low %v755, %v754
        %v1694 = vcombine.low %v756, %v763
        %v1696 = vunpack.c.l.s4 1983009808
        %v1697 = vunpack.c.0.s8 %v1696
        %v1698 = vlaneseq
        %v1699 = vshrl.u32 %v1698, 7
        %v1700 = vsub.s32 %v1697, %v1699
        %v1701 = vrot.slane %v1693, %v1700
        %v1703 = vunpack.c.l.s4 1983009808
        %v1704 = vunpack.c.0.s8 %v1703
        %v1705 = vlaneseq
        %v1706 = vshrl.u32 %v1705, 7
        %v1707 = vsub.s32 %v1704, %v1706
        %v1708 = vrot.slane %v1694, %v1707
        %v1709 = vcombine.low %v1701, %v1708
        %v1710 = vcombine.low %v771, %v779
        %v1711 = vcombine.low %v778, %v780
        %v1713 = vunpack.c.l.s4 1983009808
        %v1714 = vunpack.c.0.s8 %v1713
        %v1715 = vlaneseq
        %v1716 = vshrl.u32 %v1715, 7
        %v1717 = vsub.s32 %v1714, %v1716
        %v1718 = vrot.slane %v1710, %v1717
        %v1720 = vunpack.c.l.s4 1983009808
        %v1721 = vunpack.c.0.s8 %v1720
        %v1722 = vlaneseq
        %v1723 = vshrl.u32 %v1722, 7
        %v1724 = vsub.s32 %v1721, %v1723
        %v1725 = vrot.slane %v1711, %v1724
        %v1726 = vcombine.low %v1718, %v1725
        %v1727 = vcombine.low %v787, %v795
        %v1728 = vcombine.low %v803, %v802
        %v1730 = vunpack.c.l.s4 1983009808
        %v1731 = vunpack.c.0.s8 %v1730
        %v1732 = vlaneseq
        %v1733 = vshrl.u32 %v1732, 7
        %v1734 = vsub.s32 %v1731, %v1733
        %v1735 = vrot.slane %v1727, %v1734
        %v1737 = vunpack.c.l.s4 1983009808
        %v1738 = vunpack.c.0.s8 %v1737
        %v1739 = vlaneseq
        %v1740 = vshrl.u32 %v1739, 7
        %v1741 = vsub.s32 %v1738, %v1740
        %v1742 = vrot.slane %v1728, %v1741
        %v1743 = vcombine.low %v1735, %v1742
        %v1744 = vcombine.low %v804, %v811
        %v1745 = vcombine.low %v819, %v827
        %v1747 = vunpack.c.l.s4 1983009808
        %v1748 = vunpack.c.0.s8 %v1747
        %v1749 = vlaneseq
        %v1750 = vshrl.u32 %v1749, 7
        %v1751 = vsub.s32 %v1748, %v1750
        %v1752 = vrot.slane %v1744, %v1751
        %v1754 = vunpack.c.l.s4 1983009808
        %v1755 = vunpack.c.0.s8 %v1754
        %v1756 = vlaneseq
        %v1757 = vshrl.u32 %v1756, 7
        %v1758 = vsub.s32 %v1755, %v1757
        %v1759 = vrot.slane %v1745, %v1758
        %v1760 = vcombine.low %v1752, %v1759
        %v1761 = vcombine.low %v826, %v828
        %v1762 = vcombine.low %v835, %v843
        %v1764 = vunpack.c.l.s4 1983009808
        %v1765 = vunpack.c.0.s8 %v1764
        %v1766 = vlaneseq
        %v1767 = vshrl.u32 %v1766, 7
        %v1768 = vsub.s32 %v1765, %v1767
        %v1769 = vrot.slane %v1761, %v1768
        %v1771 = vunpack.c.l.s4 1983009808
        %v1772 = vunpack.c.0.s8 %v1771
        %v1773 = vlaneseq
        %v1774 = vshrl.u32 %v1773, 7
        %v1775 = vsub.s32 %v1772, %v1774
        %v1776 = vrot.slane %v1762, %v1775
        %v1777 = vcombine.low %v1769, %v1776
        %v1778 = vcombine.low %v851, %v850
        %v1779 = vcombine.low %v852, %v859
        %v1781 = vunpack.c.l.s4 1983009808
        %v1782 = vunpack.c.0.s8 %v1781
        %v1783 = vlaneseq
        %v1784 = vshrl.u32 %v1783, 7
        %v1785 = vsub.s32 %v1782, %v1784
        %v1786 = vrot.slane %v1778, %v1785
        %v1788 = vunpack.c.l.s4 1983009808
        %v1789 = vunpack.c.0.s8 %v1788
        %v1790 = vlaneseq
        %v1791 = vshrl.u32 %v1790, 7
        %v1792 = vsub.s32 %v1789, %v1791
        %v1793 = vrot.slane %v1779, %v1792
        %v1794 = vcombine.low %v1786, %v1793
        %v1795 = vcombine.low %v867, %v875
        %v1796 = vcombine.low %v874, %v876
        %v1798 = vunpack.c.l.s4 1983009808
        %v1799 = vunpack.c.0.s8 %v1798
        %v1800 = vlaneseq
        %v1801 = vshrl.u32 %v1800, 7
        %v1802 = vsub.s32 %v1799, %v1801
        %v1803 = vrot.slane %v1795, %v1802
        %v1805 = vunpack.c.l.s4 1983009808
        %v1806 = vunpack.c.0.s8 %v1805
        %v1807 = vlaneseq
        %v1808 = vshrl.u32 %v1807, 7
        %v1809 = vsub.s32 %v1806, %v1808
        %v1810 = vrot.slane %v1796, %v1809
        %v1811 = vcombine.low %v1803, %v1810
        %v1812 = vcombine.low %v883, %v891
        %v1813 = vcombine.low %v899, %v898
        %v1815 = vunpack.c.l.s4 1983009808
        %v1816 = vunpack.c.0.s8 %v1815
        %v1817 = vlaneseq
        %v1818 = vshrl.u32 %v1817, 7
        %v1819 = vsub.s32 %v1816, %v1818
        %v1820 = vrot.slane %v1812, %v1819
        %v1822 = vunpack.c.l.s4 1983009808
        %v1823 = vunpack.c.0.s8 %v1822
        %v1824 = vlaneseq
        %v1825 = vshrl.u32 %v1824, 7
        %v1826 = vsub.s32 %v1823, %v1825
        %v1827 = vrot.slane %v1813, %v1826
        %v1828 = vcombine.low %v1820, %v1827
        %v1829 = vcombine.low %v900, %v907
        %v1830 = vcombine.low %v915, %v923
        %v1832 = vunpack.c.l.s4 1983009808
        %v1833 = vunpack.c.0.s8 %v1832
        %v1834 = vlaneseq
        %v1835 = vshrl.u32 %v1834, 7
        %v1836 = vsub.s32 %v1833, %v1835
        %v1837 = vrot.slane %v1829, %v1836
        %v1839 = vunpack.c.l.s4 1983009808
        %v1840 = vunpack.c.0.s8 %v1839
        %v1841 = vlaneseq
        %v1842 = vshrl.u32 %v1841, 7
        %v1843 = vsub.s32 %v1840, %v1842
        %v1844 = vrot.slane %v1830, %v1843
        %v1845 = vcombine.low %v1837, %v1844
        %v1846 = vcombine.low %v922, %v924
        %v1847 = vcombine.low %v931, %v939
        %v1849 = vunpack.c.l.s4 1983009808
        %v1850 = vunpack.c.0.s8 %v1849
        %v1851 = vlaneseq
        %v1852 = vshrl.u32 %v1851, 7
        %v1853 = vsub.s32 %v1850, %v1852
        %v1854 = vrot.slane %v1846, %v1853
        %v1856 = vunpack.c.l.s4 1983009808
        %v1857 = vunpack.c.0.s8 %v1856
        %v1858 = vlaneseq
        %v1859 = vshrl.u32 %v1858, 7
        %v1860 = vsub.s32 %v1857, %v1859
        %v1861 = vrot.slane %v1847, %v1860
        %v1862 = vcombine.low %v1854, %v1861
        %v1863 = vcombine.low %v947, %v946
        %v1864 = vcombine.low %v948, %v955
        %v1866 = vunpack.c.l.s4 1983009808
        %v1867 = vunpack.c.0.s8 %v1866
        %v1868 = vlaneseq
        %v1869 = vshrl.u32 %v1868, 7
        %v1870 = vsub.s32 %v1867, %v1869
        %v1871 = vrot.slane %v1863, %v1870
        %v1873 = vunpack.c.l.s4 1983009808
        %v1874 = vunpack.c.0.s8 %v1873
        %v1875 = vlaneseq
        %v1876 = vshrl.u32 %v1875, 7
        %v1877 = vsub.s32 %v1874, %v1876
        %v1878 = vrot.slane %v1864, %v1877
        %v1879 = vcombine.low %v1871, %v1878
        %v1880 = vcombine.low %v963, %v971
        %v1881 = vcombine.low %v970, %v972
        %v1883 = vunpack.c.l.s4 1983009808
        %v1884 = vunpack.c.0.s8 %v1883
        %v1885 = vlaneseq
        %v1886 = vshrl.u32 %v1885, 7
        %v1887 = vsub.s32 %v1884, %v1886
        %v1888 = vrot.slane %v1880, %v1887
        %v1890 = vunpack.c.l.s4 1983009808
        %v1891 = vunpack.c.0.s8 %v1890
        %v1892 = vlaneseq
        %v1893 = vshrl.u32 %v1892, 7
        %v1894 = vsub.s32 %v1891, %v1893
        %v1895 = vrot.slane %v1881, %v1894
        %v1896 = vcombine.low %v1888, %v1895
        %v1897 = vcombine.low %v979, %v987
        %v1898 = vcombine.low %v995, %v994
        %v1900 = vunpack.c.l.s4 1983009808
        %v1901 = vunpack.c.0.s8 %v1900
        %v1902 = vlaneseq
        %v1903 = vshrl.u32 %v1902, 7
        %v1904 = vsub.s32 %v1901, %v1903
        %v1905 = vrot.slane %v1897, %v1904
        %v1907 = vunpack.c.l.s4 1983009808
        %v1908 = vunpack.c.0.s8 %v1907
        %v1909 = vlaneseq
        %v1910 = vshrl.u32 %v1909, 7
        %v1911 = vsub.s32 %v1908, %v1910
        %v1912 = vrot.slane %v1898, %v1911
        %v1913 = vcombine.low %v1905, %v1912
        %v1914 = vcombine.low %v996, %v1003
        %v1915 = vcombine.low %v1011, %v1019
        %v1917 = vunpack.c.l.s4 1983009808
        %v1918 = vunpack.c.0.s8 %v1917
        %v1919 = vlaneseq
        %v1920 = vshrl.u32 %v1919, 7
        %v1921 = vsub.s32 %v1918, %v1920
        %v1922 = vrot.slane %v1914, %v1921
        %v1924 = vunpack.c.l.s4 1983009808
        %v1925 = vunpack.c.0.s8 %v1924
        %v1926 = vlaneseq
        %v1927 = vshrl.u32 %v1926, 7
        %v1928 = vsub.s32 %v1925, %v1927
        %v1929 = vrot.slane %v1915, %v1928
        %v1930 = vcombine.low %v1922, %v1929
        %v1931 = vcombine.low %v1018, %v1020
        %v1932 = vcombine.low %v1027, %v1035
        %v1934 = vunpack.c.l.s4 1983009808
        %v1935 = vunpack.c.0.s8 %v1934
        %v1936 = vlaneseq
        %v1937 = vshrl.u32 %v1936, 7
        %v1938 = vsub.s32 %v1935, %v1937
        %v1939 = vrot.slane %v1931, %v1938
        %v1941 = vunpack.c.l.s4 1983009808
        %v1942 = vunpack.c.0.s8 %v1941
        %v1943 = vlaneseq
        %v1944 = vshrl.u32 %v1943, 7
        %v1945 = vsub.s32 %v1942, %v1944
        %v1946 = vrot.slane %v1932, %v1945
        %v1947 = vcombine.low %v1939, %v1946
        %v1948 = vcombine.low %v1043, %v1042
        %v1949 = vcombine.low %v1044, %v1051
        %v1951 = vunpack.c.l.s4 1983009808
        %v1952 = vunpack.c.0.s8 %v1951
        %v1953 = vlaneseq
        %v1954 = vshrl.u32 %v1953, 7
        %v1955 = vsub.s32 %v1952, %v1954
        %v1956 = vrot.slane %v1948, %v1955
        %v1958 = vunpack.c.l.s4 1983009808
        %v1959 = vunpack.c.0.s8 %v1958
        %v1960 = vlaneseq
        %v1961 = vshrl.u32 %v1960, 7
        %v1962 = vsub.s32 %v1959, %v1961
        %v1963 = vrot.slane %v1949, %v1962
        %v1964 = vcombine.low %v1956, %v1963
        %v1965 = vcombine.low %v1059, %v1067
        %v1966 = vcombine.low %v1066, %v1068
        %v1968 = vunpack.c.l.s4 1983009808
        %v1969 = vunpack.c.0.s8 %v1968
        %v1970 = vlaneseq
        %v1971 = vshrl.u32 %v1970, 7
        %v1972 = vsub.s32 %v1969, %v1971
        %v1973 = vrot.slane %v1965, %v1972
        %v1975 = vunpack.c.l.s4 1983009808
        %v1976 = vunpack.c.0.s8 %v1975
        %v1977 = vlaneseq
        %v1978 = vshrl.u32 %v1977, 7
        %v1979 = vsub.s32 %v1976, %v1978
        %v1980 = vrot.slane %v1966, %v1979
        %v1981 = vcombine.low %v1973, %v1980
        %v1982 = vcombine.low %v1075, %v1083
        %v1983 = vcombine.low %v1091, %v1090
        %v1985 = vunpack.c.l.s4 1983009808
        %v1986 = vunpack.c.0.s8 %v1985
        %v1987 = vlaneseq
        %v1988 = vshrl.u32 %v1987, 7
        %v1989 = vsub.s32 %v1986, %v1988
        %v1990 = vrot.slane %v1982, %v1989
        %v1992 = vunpack.c.l.s4 1983009808
        %v1993 = vunpack.c.0.s8 %v1992
        %v1994 = vlaneseq
        %v1995 = vshrl.u32 %v1994, 7
        %v1996 = vsub.s32 %v1993, %v1995
        %v1997 = vrot.slane %v1983, %v1996
        %v1998 = vcombine.low %v1990, %v1997
        %v1999 = vcombine.low %v1092, %v1099
        %v2000 = vcombine.low %v1107, %v1115
        %v2002 = vunpack.c.l.s4 1983009808
        %v2003 = vunpack.c.0.s8 %v2002
        %v2004 = vlaneseq
        %v2005 = vshrl.u32 %v2004, 7
        %v2006 = vsub.s32 %v2003, %v2005
        %v2007 = vrot.slane %v1999, %v2006
        %v2009 = vunpack.c.l.s4 1983009808
        %v2010 = vunpack.c.0.s8 %v2009
        %v2011 = vlaneseq
        %v2012 = vshrl.u32 %v2011, 7
        %v2013 = vsub.s32 %v2010, %v2012
        %v2014 = vrot.slane %v2000, %v2013
        %v2015 = vcombine.low %v2007, %v2014
        %v2016 = vcombine.low %v1114, %v1116
        %v2017 = vcombine.low %v1123, %v1131
        %v2019 = vunpack.c.l.s4 1983009808
        %v2020 = vunpack.c.0.s8 %v2019
        %v2021 = vlaneseq
        %v2022 = vshrl.u32 %v2021, 7
        %v2023 = vsub.s32 %v2020, %v2022
        %v2024 = vrot.slane %v2016, %v2023
        %v2026 = vunpack.c.l.s4 1983009808
        %v2027 = vunpack.c.0.s8 %v2026
        %v2028 = vlaneseq
        %v2029 = vshrl.u32 %v2028, 7
        %v2030 = vsub.s32 %v2027, %v2029
        %v2031 = vrot.slane %v2017, %v2030
        %v2032 = vcombine.low %v2024, %v2031
        %v2033 = vcombine.low %v1139, %v1138
        %v2034 = vcombine.low %v1140, %v1147
        %v2036 = vunpack.c.l.s4 1983009808
        %v2037 = vunpack.c.0.s8 %v2036
        %v2038 = vlaneseq
        %v2039 = vshrl.u32 %v2038, 7
        %v2040 = vsub.s32 %v2037, %v2039
        %v2041 = vrot.slane %v2033, %v2040
        %v2043 = vunpack.c.l.s4 1983009808
        %v2044 = vunpack.c.0.s8 %v2043
        %v2045 = vlaneseq
        %v2046 = vshrl.u32 %v2045, 7
        %v2047 = vsub.s32 %v2044, %v2046
        %v2048 = vrot.slane %v2034, %v2047
        %v2049 = vcombine.low %v2041, %v2048
        %v2050 = vcombine.low %v1155, %v1163
        %v2051 = vcombine.low %v1162, %v1164
        %v2053 = vunpack.c.l.s4 1983009808
        %v2054 = vunpack.c.0.s8 %v2053
        %v2055 = vlaneseq
        %v2056 = vshrl.u32 %v2055, 7
        %v2057 = vsub.s32 %v2054, %v2056
        %v2058 = vrot.slane %v2050, %v2057
        %v2060 = vunpack.c.l.s4 1983009808
        %v2061 = vunpack.c.0.s8 %v2060
        %v2062 = vlaneseq
        %v2063 = vshrl.u32 %v2062, 7
        %v2064 = vsub.s32 %v2061, %v2063
        %v2065 = vrot.slane %v2051, %v2064
        %v2066 = vcombine.low %v2058, %v2065
        %v2067 = vcombine.low %v1171, %v1179
        %v2068 = vcombine.low %v1187, %v1186
        %v2070 = vunpack.c.l.s4 1983009808
        %v2071 = vunpack.c.0.s8 %v2070
        %v2072 = vlaneseq
        %v2073 = vshrl.u32 %v2072, 7
        %v2074 = vsub.s32 %v2071, %v2073
        %v2075 = vrot.slane %v2067, %v2074
        %v2077 = vunpack.c.l.s4 1983009808
        %v2078 = vunpack.c.0.s8 %v2077
        %v2079 = vlaneseq
        %v2080 = vshrl.u32 %v2079, 7
        %v2081 = vsub.s32 %v2078, %v2080
        %v2082 = vrot.slane %v2068, %v2081
        %v2083 = vcombine.low %v2075, %v2082
        %v2084 = vcombine.low %v1188, %v1195
        %v2085 = vcombine.low %v1203, %v1211
        %v2087 = vunpack.c.l.s4 1983009808
        %v2088 = vunpack.c.0.s8 %v2087
        %v2089 = vlaneseq
        %v2090 = vshrl.u32 %v2089, 7
        %v2091 = vsub.s32 %v2088, %v2090
        %v2092 = vrot.slane %v2084, %v2091
        %v2094 = vunpack.c.l.s4 1983009808
        %v2095 = vunpack.c.0.s8 %v2094
        %v2096 = vlaneseq
        %v2097 = vshrl.u32 %v2096, 7
        %v2098 = vsub.s32 %v2095, %v2097
        %v2099 = vrot.slane %v2085, %v2098
        %v2100 = vcombine.low %v2092, %v2099
        %v2101 = vcombine.low %v1210, %v1212
        %v2102 = vcombine.low %v1219, %v1227
        %v2104 = vunpack.c.l.s4 1983009808
        %v2105 = vunpack.c.0.s8 %v2104
        %v2106 = vlaneseq
        %v2107 = vshrl.u32 %v2106, 7
        %v2108 = vsub.s32 %v2105, %v2107
        %v2109 = vrot.slane %v2101, %v2108
        %v2111 = vunpack.c.l.s4 1983009808
        %v2112 = vunpack.c.0.s8 %v2111
        %v2113 = vlaneseq
        %v2114 = vshrl.u32 %v2113, 7
        %v2115 = vsub.s32 %v2112, %v2114
        %v2116 = vrot.slane %v2102, %v2115
        %v2117 = vcombine.low %v2109, %v2116
        %v2118 = vcombine.low %v1235, %v1234
        %v2119 = vcombine.low %v1236, %v1243
        %v2121 = vunpack.c.l.s4 1983009808
        %v2122 = vunpack.c.0.s8 %v2121
        %v2123 = vlaneseq
        %v2124 = vshrl.u32 %v2123, 7
        %v2125 = vsub.s32 %v2122, %v2124
        %v2126 = vrot.slane %v2118, %v2125
        %v2128 = vunpack.c.l.s4 1983009808
        %v2129 = vunpack.c.0.s8 %v2128
        %v2130 = vlaneseq
        %v2131 = vshrl.u32 %v2130, 7
        %v2132 = vsub.s32 %v2129, %v2131
        %v2133 = vrot.slane %v2119, %v2132
        %v2134 = vcombine.low %v2126, %v2133
        %v2135 = vcombine.low %v1251, %v1259
        %v2136 = vcombine.low %v1258, %v1260
        %v2138 = vunpack.c.l.s4 1983009808
        %v2139 = vunpack.c.0.s8 %v2138
        %v2140 = vlaneseq
        %v2141 = vshrl.u32 %v2140, 7
        %v2142 = vsub.s32 %v2139, %v2141
        %v2143 = vrot.slane %v2135, %v2142
        %v2145 = vunpack.c.l.s4 1983009808
        %v2146 = vunpack.c.0.s8 %v2145
        %v2147 = vlaneseq
        %v2148 = vshrl.u32 %v2147, 7
        %v2149 = vsub.s32 %v2146, %v2148
        %v2150 = vrot.slane %v2136, %v2149
        %v2151 = vcombine.low %v2143, %v2150
        %v2152 = vcombine.low %v1267, %v1275
        %v2153 = vcombine.low %v1283, %v1282
        %v2155 = vunpack.c.l.s4 1983009808
        %v2156 = vunpack.c.0.s8 %v2155
        %v2157 = vlaneseq
        %v2158 = vshrl.u32 %v2157, 7
        %v2159 = vsub.s32 %v2156, %v2158
        %v2160 = vrot.slane %v2152, %v2159
        %v2162 = vunpack.c.l.s4 1983009808
        %v2163 = vunpack.c.0.s8 %v2162
        %v2164 = vlaneseq
        %v2165 = vshrl.u32 %v2164, 7
        %v2166 = vsub.s32 %v2163, %v2165
        %v2167 = vrot.slane %v2153, %v2166
        %v2168 = vcombine.low %v2160, %v2167
        %v2169 = vcombine.low %v1284, %v1291
        %v2170 = vcombine.low %v1299, %v1307
        %v2172 = vunpack.c.l.s4 1983009808
        %v2173 = vunpack.c.0.s8 %v2172
        %v2174 = vlaneseq
        %v2175 = vshrl.u32 %v2174, 7
        %v2176 = vsub.s32 %v2173, %v2175
        %v2177 = vrot.slane %v2169, %v2176
        %v2179 = vunpack.c.l.s4 1983009808
        %v2180 = vunpack.c.0.s8 %v2179
        %v2181 = vlaneseq
        %v2182 = vshrl.u32 %v2181, 7
        %v2183 = vsub.s32 %v2180, %v2182
        %v2184 = vrot.slane %v2170, %v2183
        %v2185 = vcombine.low %v2177, %v2184
        %v2186 = vcombine.low %v1306, %v1308
        %v2187 = vcombine.low %v1315, %v1323
        %v2189 = vunpack.c.l.s4 1983009808
        %v2190 = vunpack.c.0.s8 %v2189
        %v2191 = vlaneseq
        %v2192 = vshrl.u32 %v2191, 7
        %v2193 = vsub.s32 %v2190, %v2192
        %v2194 = vrot.slane %v2186, %v2193
        %v2196 = vunpack.c.l.s4 1983009808
        %v2197 = vunpack.c.0.s8 %v2196
        %v2198 = vlaneseq
        %v2199 = vshrl.u32 %v2198, 7
        %v2200 = vsub.s32 %v2197, %v2199
        %v2201 = vrot.slane %v2187, %v2200
        %v2202 = vcombine.low %v2194, %v2201
        %v2203 = vcombine.low %v1331, %v1330
        %v2204 = vcombine.low %v1332, %v1339
        %v2206 = vunpack.c.l.s4 1983009808
        %v2207 = vunpack.c.0.s8 %v2206
        %v2208 = vlaneseq
        %v2209 = vshrl.u32 %v2208, 7
        %v2210 = vsub.s32 %v2207, %v2209
        %v2211 = vrot.slane %v2203, %v2210
        %v2213 = vunpack.c.l.s4 1983009808
        %v2214 = vunpack.c.0.s8 %v2213
        %v2215 = vlaneseq
        %v2216 = vshrl.u32 %v2215, 7
        %v2217 = vsub.s32 %v2214, %v2216
        %v2218 = vrot.slane %v2204, %v2217
        %v2219 = vcombine.low %v2211, %v2218
        %v2220 = vcombine.low %v1347, %v1355
        %v2221 = vcombine.low %v1354, %v1356
        %v2223 = vunpack.c.l.s4 1983009808
        %v2224 = vunpack.c.0.s8 %v2223
        %v2225 = vlaneseq
        %v2226 = vshrl.u32 %v2225, 7
        %v2227 = vsub.s32 %v2224, %v2226
        %v2228 = vrot.slane %v2220, %v2227
        %v2230 = vunpack.c.l.s4 1983009808
        %v2231 = vunpack.c.0.s8 %v2230
        %v2232 = vlaneseq
        %v2233 = vshrl.u32 %v2232, 7
        %v2234 = vsub.s32 %v2231, %v2233
        %v2235 = vrot.slane %v2221, %v2234
        %v2236 = vcombine.low %v2228, %v2235
        %v2237 = vcombine.low %v1363, %v1371
        %v2238 = vcombine.low %v1379, %v1378
        %v2240 = vunpack.c.l.s4 1983009808
        %v2241 = vunpack.c.0.s8 %v2240
        %v2242 = vlaneseq
        %v2243 = vshrl.u32 %v2242, 7
        %v2244 = vsub.s32 %v2241, %v2243
        %v2245 = vrot.slane %v2237, %v2244
        %v2247 = vunpack.c.l.s4 1983009808
        %v2248 = vunpack.c.0.s8 %v2247
        %v2249 = vlaneseq
        %v2250 = vshrl.u32 %v2249, 7
        %v2251 = vsub.s32 %v2248, %v2250
        %v2252 = vrot.slane %v2238, %v2251
        %v2253 = vcombine.low %v2245, %v2252
        %v2254 = vcombine.low %v1380, %v1387
        %v2255 = vcombine.low %v1395, %v1403
        %v2257 = vunpack.c.l.s4 1983009808
        %v2258 = vunpack.c.0.s8 %v2257
        %v2259 = vlaneseq
        %v2260 = vshrl.u32 %v2259, 7
        %v2261 = vsub.s32 %v2258, %v2260
        %v2262 = vrot.slane %v2254, %v2261
        %v2264 = vunpack.c.l.s4 1983009808
        %v2265 = vunpack.c.0.s8 %v2264
        %v2266 = vlaneseq
        %v2267 = vshrl.u32 %v2266, 7
        %v2268 = vsub.s32 %v2265, %v2267
        %v2269 = vrot.slane %v2255, %v2268
        %v2270 = vcombine.low %v2262, %v2269
        %v2271 = vcombine.low %v1402, %v1404
        %v2272 = vcombine.low %v1411, %v1419
        %v2274 = vunpack.c.l.s4 1983009808
        %v2275 = vunpack.c.0.s8 %v2274
        %v2276 = vlaneseq
        %v2277 = vshrl.u32 %v2276, 7
        %v2278 = vsub.s32 %v2275, %v2277
        %v2279 = vrot.slane %v2271, %v2278
        %v2281 = vunpack.c.l.s4 1983009808
        %v2282 = vunpack.c.0.s8 %v2281
        %v2283 = vlaneseq
        %v2284 = vshrl.u32 %v2283, 7
        %v2285 = vsub.s32 %v2282, %v2284
        %v2286 = vrot.slane %v2272, %v2285
        %v2287 = vcombine.low %v2279, %v2286
        %v2288 = vcombine.low %v1427, %v1426
        %v2289 = vcombine.low %v1428, %v1435
        %v2291 = vunpack.c.l.s4 1983009808
        %v2292 = vunpack.c.0.s8 %v2291
        %v2293 = vlaneseq
        %v2294 = vshrl.u32 %v2293, 7
        %v2295 = vsub.s32 %v2292, %v2294
        %v2296 = vrot.slane %v2288, %v2295
        %v2298 = vunpack.c.l.s4 1983009808
        %v2299 = vunpack.c.0.s8 %v2298
        %v2300 = vlaneseq
        %v2301 = vshrl.u32 %v2300, 7
        %v2302 = vsub.s32 %v2299, %v2301
        %v2303 = vrot.slane %v2289, %v2302
        %v2304 = vcombine.low %v2296, %v2303
        %v2305 = vcombine.low %v1443, %v1451
        %v2306 = vcombine.low %v1450, %v1452
        %v2308 = vunpack.c.l.s4 1983009808
        %v2309 = vunpack.c.0.s8 %v2308
        %v2310 = vlaneseq
        %v2311 = vshrl.u32 %v2310, 7
        %v2312 = vsub.s32 %v2309, %v2311
        %v2313 = vrot.slane %v2305, %v2312
        %v2315 = vunpack.c.l.s4 1983009808
        %v2316 = vunpack.c.0.s8 %v2315
        %v2317 = vlaneseq
        %v2318 = vshrl.u32 %v2317, 7
        %v2319 = vsub.s32 %v2316, %v2318
        %v2320 = vrot.slane %v2306, %v2319
        %v2321 = vcombine.low %v2313, %v2320
        %v2322 = vcombine.low %v1459, %v1467
        %v2323 = vcombine.low %v1475, %v1474
        %v2325 = vunpack.c.l.s4 1983009808
        %v2326 = vunpack.c.0.s8 %v2325
        %v2327 = vlaneseq
        %v2328 = vshrl.u32 %v2327, 7
        %v2329 = vsub.s32 %v2326, %v2328
        %v2330 = vrot.slane %v2322, %v2329
        %v2332 = vunpack.c.l.s4 1983009808
        %v2333 = vunpack.c.0.s8 %v2332
        %v2334 = vlaneseq
        %v2335 = vshrl.u32 %v2334, 7
        %v2336 = vsub.s32 %v2333, %v2335
        %v2337 = vrot.slane %v2323, %v2336
        %v2338 = vcombine.low %v2330, %v2337
        %v2339 = vcombine.low %v1476, %v1483
        %v2340 = vcombine.low %v1491, %v1499
        %v2342 = vunpack.c.l.s4 1983009808
        %v2343 = vunpack.c.0.s8 %v2342
        %v2344 = vlaneseq
        %v2345 = vshrl.u32 %v2344, 7
        %v2346 = vsub.s32 %v2343, %v2345
        %v2347 = vrot.slane %v2339, %v2346
        %v2349 = vunpack.c.l.s4 1983009808
        %v2350 = vunpack.c.0.s8 %v2349
        %v2351 = vlaneseq
        %v2352 = vshrl.u32 %v2351, 7
        %v2353 = vsub.s32 %v2350, %v2352
        %v2354 = vrot.slane %v2340, %v2353
        %v2355 = vcombine.low %v2347, %v2354
        %v2356 = vcombine.low %v1498, %v1500
        %v2357 = vcombine.low %v1507, %v1515
        %v2359 = vunpack.c.l.s4 1983009808
        %v2360 = vunpack.c.0.s8 %v2359
        %v2361 = vlaneseq
        %v2362 = vshrl.u32 %v2361, 7
        %v2363 = vsub.s32 %v2360, %v2362
        %v2364 = vrot.slane %v2356, %v2363
        %v2366 = vunpack.c.l.s4 1983009808
        %v2367 = vunpack.c.0.s8 %v2366
        %v2368 = vlaneseq
        %v2369 = vshrl.u32 %v2368, 7
        %v2370 = vsub.s32 %v2367, %v2369
        %v2371 = vrot.slane %v2357, %v2370
        %v2372 = vcombine.low %v2364, %v2371
        %v2373 = vcombine.low %v1523, %v1522
        %v2374 = vcombine.low %v1524, %v1531
        %v2376 = vunpack.c.l.s4 1983009808
        %v2377 = vunpack.c.0.s8 %v2376
        %v2378 = vlaneseq
        %v2379 = vshrl.u32 %v2378, 7
        %v2380 = vsub.s32 %v2377, %v2379
        %v2381 = vrot.slane %v2373, %v2380
        %v2383 = vunpack.c.l.s4 1983009808
        %v2384 = vunpack.c.0.s8 %v2383
        %v2385 = vlaneseq
        %v2386 = vshrl.u32 %v2385, 7
        %v2387 = vsub.s32 %v2384, %v2386
        %v2388 = vrot.slane %v2374, %v2387
        %v2389 = vcombine.low %v2381, %v2388
        %vm2390 = vcmask 64512
        %v2391 = vsel %vm2390, %v1556, 0
        %v2393 = vsel %vm2390, %v1573, 0
        %v2395 = vsel %vm2390, %v1590, 0
        %v2397 = vsel %vm2390, %v1607, 0
        %v2399 = vsel %vm2390, %v1624, 0
        %v2401 = vsel %vm2390, %v1641, 0
        %v2403 = vsel %vm2390, %v1658, 0
        %v2405 = vsel %vm2390, %v1675, 0
        %v2407 = vsel %vm2390, %v1692, 0
        %v2409 = vsel %vm2390, %v1709, 0
        %v2411 = vsel %vm2390, %v1726, 0
        %v2413 = vsel %vm2390, %v1743, 0
        %v2415 = vsel %vm2390, %v1760, 0
        %v2417 = vsel %vm2390, %v1777, 0
        %v2419 = vsel %vm2390, %v1794, 0
        %v2421 = vsel %vm2390, %v1811, 0
        %v2423 = vsel %vm2390, %v1828, 0
        %v2425 = vsel %vm2390, %v1845, 0
        %v2427 = vsel %vm2390, %v1862, 0
        %v2429 = vsel %vm2390, %v1879, 0
        %v2431 = vsel %vm2390, %v1896, 0
        %v2433 = vsel %vm2390, %v1913, 0
        %v2435 = vsel %vm2390, %v1930, 0
        %v2437 = vsel %vm2390, %v1947, 0
        %v2439 = vsel %vm2390, %v1964, 0
        %v2441 = vsel %vm2390, %v1981, 0
        %v2443 = vsel %vm2390, %v1998, 0
        %v2445 = vsel %vm2390, %v2015, 0
        %v2447 = vsel %vm2390, %v2032, 0
        %v2449 = vsel %vm2390, %v2049, 0
        %v2451 = vsel %vm2390, %v2066, 0
        %v2453 = vsel %vm2390, %v2083, 0
        %v2455 = vsel %vm2390, %v2100, 0
        %v2457 = vsel %vm2390, %v2117, 0
        %v2459 = vsel %vm2390, %v2134, 0
        %v2461 = vsel %vm2390, %v2151, 0
        %v2463 = vsel %vm2390, %v2168, 0
        %v2465 = vsel %vm2390, %v2185, 0
        %v2467 = vsel %vm2390, %v2202, 0
        %v2469 = vsel %vm2390, %v2219, 0
        %v2471 = vsel %vm2390, %v2236, 0
        %v2473 = vsel %vm2390, %v2253, 0
        %v2475 = vsel %vm2390, %v2270, 0
        %v2477 = vsel %vm2390, %v2287, 0
        %v2479 = vsel %vm2390, %v2304, 0
        %v2481 = vsel %vm2390, %v2321, 0
        %v2483 = vsel %vm2390, %v2338, 0
        %v2485 = vsel %vm2390, %v2355, 0
        %v2487 = vsel %vm2390, %v2372, 0
        %v2489 = vsel %vm2390, %v2389, 0
        %2491 = vmatprep.subr.mxu0 0.0
        %2492 = vmatpush1.msra.mxu0 %v1532
        %2493 = vmatprep.subr.mxu0 0.0
        %2494 = vmatpush1.msra.mxu0 0.0
        %2495 = vmatprep.subr.mxu0 0.0
        %2496 = vmatpush1.msra.mxu0 0.0
        %2497 = vmatprep.subr.mxu0 0.0
        %2498 = vmatpush1.msra.mxu0 0.0
        %2499 = vmatprep.subr.mxu0 0.0
        %2500 = vmatpush1.msra.mxu0 0.0
        %2501 = vmatprep.subr.mxu0 0.0
        %2502 = vmatpush1.msra.mxu0 0.0
        %2503 = vmatprep.subr.mxu0 0.0
        %2504 = vmatpush1.msra.mxu0 0.0
        %2505 = vmatprep.subr.mxu0 0.0
        %2506 = vmatpush1.msra.mxu0 0.0
        %2507 = vmatprep.subr.mxu0 0.0
        %2508 = vmatpush1.msra.mxu0 0.0
        %2509 = vmatprep.subr.mxu0 0.0
        %2510 = vmatpush1.msra.mxu0 0.0
        %2511 = vmatprep.subr.mxu0 0.0
        %2512 = vmatpush1.msra.mxu0 0.0
        %2513 = vmatprep.subr.mxu0 0.0
        %2514 = vmatpush1.msra.mxu0 0.0
        %2515 = vmatprep.subr.mxu0 0.0
        %2516 = vmatpush1.msra.mxu0 0.0
        %2517 = vmatprep.subr.mxu0 0.0
        %2518 = vmatpush1.msra.mxu0 0.0
        %2519 = vmatprep.subr.mxu0 0.0
        %2520 = vmatpush1.msra.mxu0 0.0
        %2521 = vmatprep.subr.mxu0 0.0
        %2522 = vmatpush1.msra.mxu0 0.0
        %2523 = vmatprep.subr.mxu0 0.0
        %2524 = vmatpush1.msra.mxu0 0.0
        %2525 = vmatprep.subr.mxu0 0.0
        %2526 = vmatpush1.msra.mxu0 0.0
        %2527 = vmatprep.subr.mxu0 0.0
        %2528 = vmatpush1.msra.mxu0 0.0
        %2529 = vmatprep.subr.mxu0 0.0
        %2530 = vmatpush1.msra.mxu0 0.0
        %2531 = vmatprep.subr.mxu0 0.0
        %2532 = vmatpush1.msra.mxu0 0.0
        %2533 = vmatprep.subr.mxu0 0.0
        %2534 = vmatpush1.msra.mxu0 0.0
        %2535 = vmatprep.subr.mxu0 0.0
        %2536 = vmatpush1.msra.mxu0 0.0
        %2537 = vmatprep.subr.mxu0 0.0
        %2538 = vmatpush1.msra.mxu0 0.0
        %2539 = vmatprep.subr.mxu0 0.0
        %2540 = vmatpush1.msra.mxu0 0.0
        %2541 = vmatprep.subr.mxu0 0.0
        %2542 = vmatpush1.msra.mxu0 0.0
        %2543 = vmatprep.subr.mxu0 0.0
        %2544 = vmatpush1.msra.mxu0 0.0
        %2545 = vmatprep.subr.mxu0 0.0
        %2546 = vmatpush1.msra.mxu0 0.0
        %2547 = vmatprep.subr.mxu0 0.0
        %2548 = vmatpush1.msra.mxu0 0.0
        %2549 = vmatprep.subr.mxu0 0.0
        %2550 = vmatpush1.msra.mxu0 0.0
        %2551 = vmatprep.subr.mxu0 0.0
        %2552 = vmatpush1.msra.mxu0 0.0
        %2553 = vmatprep.subr.mxu0 0.0
        %2554 = vmatpush1.msra.mxu0 0.0
        %2555 = vmatprep.mubr.f32.mxu0 0.0
        %2556 = vmatmul.mubr.f32.gmra.mrb[0].mxu0 %v2391
        %v2557 = vpop.f32.mrb[0].mxu0
        %v2558 = vadd.f32 %v1538, %v2557
        %v2559 = vpop.f32.mrb[0].mxu0
        %2560 = vmatprep.mubr.f32.mxu0 0.0
        %2561 = vmatmul.mubr.f32.gmra.mrb[0].mxu0 %v2393
        %v2562 = vpop.f32.mrb[0].mxu0
        %v2563 = vadd.f32 %v1538, %v2562
        %v2564 = vpop.f32.mrb[0].mxu0
        %2565 = vmatprep.mubr.f32.mxu0 0.0
        %2566 = vmatmul.mubr.f32.gmra.mrb[0].mxu0 %v2395
        %v2567 = vpop.f32.mrb[0].mxu0
        %v2568 = vadd.f32 %v1538, %v2567
        %v2569 = vpop.f32.mrb[0].mxu0
        %2570 = vmatprep.mubr.f32.mxu0 0.0
        %2571 = vmatmul.mubr.f32.gmra.mrb[0].mxu0 %v2397
        %v2572 = vpop.f32.mrb[0].mxu0
        %v2573 = vadd.f32 %v1538, %v2572
        %v2574 = vpop.f32.mrb[0].mxu0
        %2575 = vmatprep.mubr.f32.mxu0 0.0
        %2576 = vmatmul.mubr.f32.gmra.mrb[0].mxu0 %v2399
        %v2577 = vpop.f32.mrb[0].mxu0
        %v2578 = vadd.f32 %v1538, %v2577
        %v2579 = vpop.f32.mrb[0].mxu0
        %2580 = vmatprep.mubr.f32.mxu0 0.0
        %2581 = vmatmul.mubr.f32.gmra.mrb[0].mxu0 %v2401
        %v2582 = vpop.f32.mrb[0].mxu0
        %v2583 = vadd.f32 %v1538, %v2582
        %v2584 = vpop.f32.mrb[0].mxu0
        %2585 = vmatprep.mubr.f32.mxu0 0.0
        %2586 = vmatmul.mubr.f32.gmra.mrb[0].mxu0 %v2403
        %v2587 = vpop.f32.mrb[0].mxu0
        %v2588 = vadd.f32 %v1538, %v2587
        %v2589 = vpop.f32.mrb[0].mxu0
        %2590 = vmatprep.mubr.f32.mxu0 0.0
        %2591 = vmatmul.mubr.f32.gmra.mrb[0].mxu0 %v2405
        %v2592 = vpop.f32.mrb[0].mxu0
        %v2593 = vadd.f32 %v1538, %v2592
        %v2594 = vpop.f32.mrb[0].mxu0
        %2595 = vmatprep.mubr.f32.mxu0 0.0
        %2596 = vmatmul.mubr.f32.gmra.mrb[0].mxu0 %v2407
        %v2597 = vpop.f32.mrb[0].mxu0
        %v2598 = vadd.f32 %v1538, %v2597
        %v2599 = vpop.f32.mrb[0].mxu0
        %2600 = vmatprep.mubr.f32.mxu0 0.0
        %2601 = vmatmul.mubr.f32.gmra.mrb[0].mxu0 %v2409
        %v2602 = vpop.f32.mrb[0].mxu0
        %v2603 = vadd.f32 %v1538, %v2602
        %v2604 = vpop.f32.mrb[0].mxu0
        %2605 = vmatprep.mubr.f32.mxu0 0.0
        %2606 = vmatmul.mubr.f32.gmra.mrb[0].mxu0 %v2411
        %v2607 = vpop.f32.mrb[0].mxu0
        %v2608 = vadd.f32 %v1538, %v2607
        %v2609 = vpop.f32.mrb[0].mxu0
        %2610 = vmatprep.mubr.f32.mxu0 0.0
        %2611 = vmatmul.mubr.f32.gmra.mrb[0].mxu0 %v2413
        %v2612 = vpop.f32.mrb[0].mxu0
        %v2613 = vadd.f32 %v1538, %v2612
        %v2614 = vpop.f32.mrb[0].mxu0
        %2615 = vmatprep.mubr.f32.mxu0 0.0
        %2616 = vmatmul.mubr.f32.gmra.mrb[0].mxu0 %v2415
        %v2617 = vpop.f32.mrb[0].mxu0
        %v2618 = vadd.f32 %v1538, %v2617
        %v2619 = vpop.f32.mrb[0].mxu0
        %2620 = vmatprep.mubr.f32.mxu0 0.0
        %2621 = vmatmul.mubr.f32.gmra.mrb[0].mxu0 %v2417
        %v2622 = vpop.f32.mrb[0].mxu0
        %v2623 = vadd.f32 %v1538, %v2622
        %v2624 = vpop.f32.mrb[0].mxu0
        %2625 = vmatprep.mubr.f32.mxu0 0.0
        %2626 = vmatmul.mubr.f32.gmra.mrb[0].mxu0 %v2419
        %v2627 = vpop.f32.mrb[0].mxu0
        %v2628 = vadd.f32 %v1538, %v2627
        %v2629 = vpop.f32.mrb[0].mxu0
        %2630 = vmatprep.mubr.f32.mxu0 0.0
        %2631 = vmatmul.mubr.f32.gmra.mrb[0].mxu0 %v2421
        %v2632 = vpop.f32.mrb[0].mxu0
        %v2633 = vadd.f32 %v1538, %v2632
        %v2634 = vpop.f32.mrb[0].mxu0
        %2635 = vmatprep.mubr.f32.mxu0 0.0
        %2636 = vmatmul.mubr.f32.gmra.mrb[0].mxu0 %v2423
        %v2637 = vpop.f32.mrb[0].mxu0
        %v2638 = vadd.f32 %v1538, %v2637
        %v2639 = vpop.f32.mrb[0].mxu0
        %2640 = vmatprep.mubr.f32.mxu0 0.0
        %2641 = vmatmul.mubr.f32.gmra.mrb[0].mxu0 %v2425
        %v2642 = vpop.f32.mrb[0].mxu0
        %v2643 = vadd.f32 %v1538, %v2642
        %v2644 = vpop.f32.mrb[0].mxu0
        %2645 = vmatprep.mubr.f32.mxu0 0.0
        %2646 = vmatmul.mubr.f32.gmra.mrb[0].mxu0 %v2427
        %v2647 = vpop.f32.mrb[0].mxu0
        %v2648 = vadd.f32 %v1538, %v2647
        %v2649 = vpop.f32.mrb[0].mxu0
        %2650 = vmatprep.mubr.f32.mxu0 0.0
        %2651 = vmatmul.mubr.f32.gmra.mrb[0].mxu0 %v2429
        %v2652 = vpop.f32.mrb[0].mxu0
        %v2653 = vadd.f32 %v1538, %v2652
        %v2654 = vpop.f32.mrb[0].mxu0
        %2655 = vmatprep.mubr.f32.mxu0 0.0
        %2656 = vmatmul.mubr.f32.gmra.mrb[0].mxu0 %v2431
        %v2657 = vpop.f32.mrb[0].mxu0
        %v2658 = vadd.f32 %v1538, %v2657
        %v2659 = vpop.f32.mrb[0].mxu0
        %2660 = vmatprep.mubr.f32.mxu0 0.0
        %2661 = vmatmul.mubr.f32.gmra.mrb[0].mxu0 %v2433
        %v2662 = vpop.f32.mrb[0].mxu0
        %v2663 = vadd.f32 %v1538, %v2662
        %v2664 = vpop.f32.mrb[0].mxu0
        %2665 = vmatprep.mubr.f32.mxu0 0.0
        %2666 = vmatmul.mubr.f32.gmra.mrb[0].mxu0 %v2435
        %v2667 = vpop.f32.mrb[0].mxu0
        %v2668 = vadd.f32 %v1538, %v2667
        %v2669 = vpop.f32.mrb[0].mxu0
        %2670 = vmatprep.mubr.f32.mxu0 0.0
        %2671 = vmatmul.mubr.f32.gmra.mrb[0].mxu0 %v2437
        %v2672 = vpop.f32.mrb[0].mxu0
        %v2673 = vadd.f32 %v1538, %v2672
        %v2674 = vpop.f32.mrb[0].mxu0
        %2675 = vmatprep.mubr.f32.mxu0 0.0
        %2676 = vmatmul.mubr.f32.gmra.mrb[0].mxu0 %v2439
        %v2677 = vpop.f32.mrb[0].mxu0
        %v2678 = vadd.f32 %v1538, %v2677
        %v2679 = vpop.f32.mrb[0].mxu0
        %2680 = vmatprep.mubr.f32.mxu0 0.0
        %2681 = vmatmul.mubr.f32.gmra.mrb[0].mxu0 %v2441
        %v2682 = vpop.f32.mrb[0].mxu0
        %v2683 = vadd.f32 %v1538, %v2682
        %v2684 = vpop.f32.mrb[0].mxu0
        %2685 = vmatprep.mubr.f32.mxu0 0.0
        %2686 = vmatmul.mubr.f32.gmra.mrb[0].mxu0 %v2443
        %v2687 = vpop.f32.mrb[0].mxu0
        %v2688 = vadd.f32 %v1538, %v2687
        %v2689 = vpop.f32.mrb[0].mxu0
        %2690 = vmatprep.mubr.f32.mxu0 0.0
        %2691 = vmatmul.mubr.f32.gmra.mrb[0].mxu0 %v2445
        %v2692 = vpop.f32.mrb[0].mxu0
        %v2693 = vadd.f32 %v1538, %v2692
        %v2694 = vpop.f32.mrb[0].mxu0
        %2695 = vmatprep.mubr.f32.mxu0 0.0
        %2696 = vmatmul.mubr.f32.gmra.mrb[0].mxu0 %v2447
        %v2697 = vpop.f32.mrb[0].mxu0
        %v2698 = vadd.f32 %v1538, %v2697
        %v2699 = vpop.f32.mrb[0].mxu0
        %2700 = vmatprep.mubr.f32.mxu0 0.0
        %2701 = vmatmul.mubr.f32.gmra.mrb[0].mxu0 %v2449
        %v2702 = vpop.f32.mrb[0].mxu0
        %v2703 = vadd.f32 %v1538, %v2702
        %v2704 = vpop.f32.mrb[0].mxu0
        %2705 = vmatprep.mubr.f32.mxu0 0.0
        %2706 = vmatmul.mubr.f32.gmra.mrb[0].mxu0 %v2451
        %v2707 = vpop.f32.mrb[0].mxu0
        %v2708 = vadd.f32 %v1538, %v2707
        %v2709 = vpop.f32.mrb[0].mxu0
        %2710 = vmatprep.mubr.f32.mxu0 0.0
        %2711 = vmatmul.mubr.f32.gmra.mrb[0].mxu0 %v2453
        %v2712 = vpop.f32.mrb[0].mxu0
        %v2713 = vadd.f32 %v1538, %v2712
        %v2714 = vpop.f32.mrb[0].mxu0
        %2715 = vmatprep.mubr.f32.mxu0 0.0
        %2716 = vmatmul.mubr.f32.gmra.mrb[0].mxu0 %v2455
        %v2717 = vpop.f32.mrb[0].mxu0
        %v2718 = vadd.f32 %v1538, %v2717
        %v2719 = vpop.f32.mrb[0].mxu0
        %2720 = vmatprep.mubr.f32.mxu0 0.0
        %2721 = vmatmul.mubr.f32.gmra.mrb[0].mxu0 %v2457
        %v2722 = vpop.f32.mrb[0].mxu0
        %v2723 = vadd.f32 %v1538, %v2722
        %v2724 = vpop.f32.mrb[0].mxu0
        %2725 = vmatprep.mubr.f32.mxu0 0.0
        %2726 = vmatmul.mubr.f32.gmra.mrb[0].mxu0 %v2459
        %v2727 = vpop.f32.mrb[0].mxu0
        %v2728 = vadd.f32 %v1538, %v2727
        %v2729 = vpop.f32.mrb[0].mxu0
        %2730 = vmatprep.mubr.f32.mxu0 0.0
        %2731 = vmatmul.mubr.f32.gmra.mrb[0].mxu0 %v2461
        %v2732 = vpop.f32.mrb[0].mxu0
        %v2733 = vadd.f32 %v1538, %v2732
        %v2734 = vpop.f32.mrb[0].mxu0
        %2735 = vmatprep.mubr.f32.mxu0 0.0
        %2736 = vmatmul.mubr.f32.gmra.mrb[0].mxu0 %v2463
        %v2737 = vpop.f32.mrb[0].mxu0
        %v2738 = vadd.f32 %v1538, %v2737
        %v2739 = vpop.f32.mrb[0].mxu0
        %2740 = vmatprep.mubr.f32.mxu0 0.0
        %2741 = vmatmul.mubr.f32.gmra.mrb[0].mxu0 %v2465
        %v2742 = vpop.f32.mrb[0].mxu0
        %v2743 = vadd.f32 %v1538, %v2742
        %v2744 = vpop.f32.mrb[0].mxu0
        %2745 = vmatprep.mubr.f32.mxu0 0.0
        %2746 = vmatmul.mubr.f32.gmra.mrb[0].mxu0 %v2467
        %v2747 = vpop.f32.mrb[0].mxu0
        %v2748 = vadd.f32 %v1538, %v2747
        %v2749 = vpop.f32.mrb[0].mxu0
        %2750 = vmatprep.mubr.f32.mxu0 0.0
        %2751 = vmatmul.mubr.f32.gmra.mrb[0].mxu0 %v2469
        %v2752 = vpop.f32.mrb[0].mxu0
        %v2753 = vadd.f32 %v1538, %v2752
        %v2754 = vpop.f32.mrb[0].mxu0
        %2755 = vmatprep.mubr.f32.mxu0 0.0
        %2756 = vmatmul.mubr.f32.gmra.mrb[0].mxu0 %v2471
        %v2757 = vpop.f32.mrb[0].mxu0
        %v2758 = vadd.f32 %v1538, %v2757
        %v2759 = vpop.f32.mrb[0].mxu0
        %2760 = vmatprep.mubr.f32.mxu0 0.0
        %2761 = vmatmul.mubr.f32.gmra.mrb[0].mxu0 %v2473
        %v2762 = vpop.f32.mrb[0].mxu0
        %v2763 = vadd.f32 %v1538, %v2762
        %v2764 = vpop.f32.mrb[0].mxu0
        %2765 = vmatprep.mubr.f32.mxu0 0.0
        %2766 = vmatmul.mubr.f32.gmra.mrb[0].mxu0 %v2475
        %v2767 = vpop.f32.mrb[0].mxu0
        %v2768 = vadd.f32 %v1538, %v2767
        %v2769 = vpop.f32.mrb[0].mxu0
        %2770 = vmatprep.mubr.f32.mxu0 0.0
        %2771 = vmatmul.mubr.f32.gmra.mrb[0].mxu0 %v2477
        %v2772 = vpop.f32.mrb[0].mxu0
        %v2773 = vadd.f32 %v1538, %v2772
        %v2774 = vpop.f32.mrb[0].mxu0
        %2775 = vmatprep.mubr.f32.mxu0 0.0
        %2776 = vmatmul.mubr.f32.gmra.mrb[0].mxu0 %v2479
        %v2777 = vpop.f32.mrb[0].mxu0
        %v2778 = vadd.f32 %v1538, %v2777
        %v2779 = vpop.f32.mrb[0].mxu0
        %2780 = vmatprep.mubr.f32.mxu0 0.0
        %2781 = vmatmul.mubr.f32.gmra.mrb[0].mxu0 %v2481
        %v2782 = vpop.f32.mrb[0].mxu0
        %v2783 = vadd.f32 %v1538, %v2782
        %v2784 = vpop.f32.mrb[0].mxu0
        %2785 = vmatprep.mubr.f32.mxu0 0.0
        %2786 = vmatmul.mubr.f32.gmra.mrb[0].mxu0 %v2483
        %v2787 = vpop.f32.mrb[0].mxu0
        %v2788 = vadd.f32 %v1538, %v2787
        %v2789 = vpop.f32.mrb[0].mxu0
        %2790 = vmatprep.mubr.f32.mxu0 0.0
        %2791 = vmatmul.mubr.f32.gmra.mrb[0].mxu0 %v2485
        %v2792 = vpop.f32.mrb[0].mxu0
        %v2793 = vadd.f32 %v1538, %v2792
        %v2794 = vpop.f32.mrb[0].mxu0
        %2795 = vmatprep.mubr.f32.mxu0 0.0
        %2796 = vmatmul.mubr.f32.gmra.mrb[0].mxu0 %v2487
        %v2797 = vpop.f32.mrb[0].mxu0
        %v2798 = vadd.f32 %v1538, %v2797
        %v2799 = vpop.f32.mrb[0].mxu0
        %2800 = vmatprep.mubr.f32.mxu0 0.0
        %2801 = vmatmul.mubr.f32.gmra.mrb[0].mxu0 %v2489
        %v2802 = vpop.f32.mrb[0].mxu0
        %v2803 = vadd.f32 %v1538, %v2802
        %v2804 = vpop.f32.mrb[0].mxu0
        %2805 = vdwg.mxu0
        %v2806 = vmax.f32 %v2558, 0.0
        %v2807 = vmax.f32 %v2563, 0.0
        %v2808 = vmax.f32 %v2568, 0.0
        %v2809 = vmax.f32 %v2573, 0.0
        %v2810 = vmax.f32 %v2578, 0.0
        %v2811 = vmax.f32 %v2583, 0.0
        %v2812 = vmax.f32 %v2588, 0.0
        %v2813 = vmax.f32 %v2593, 0.0
        %v2814 = vmax.f32 %v2598, 0.0
        %v2815 = vmax.f32 %v2603, 0.0
        %v2816 = vmax.f32 %v2608, 0.0
        %v2817 = vmax.f32 %v2613, 0.0
        %v2818 = vmax.f32 %v2618, 0.0
        %v2819 = vmax.f32 %v2623, 0.0
        %v2820 = vmax.f32 %v2628, 0.0
        %v2821 = vmax.f32 %v2633, 0.0
        %v2822 = vmax.f32 %v2638, 0.0
        %v2823 = vmax.f32 %v2643, 0.0
        %v2824 = vmax.f32 %v2648, 0.0
        %v2825 = vmax.f32 %v2653, 0.0
        %v2826 = vmax.f32 %v2658, 0.0
        %v2827 = vmax.f32 %v2663, 0.0
        %v2828 = vmax.f32 %v2668, 0.0
        %v2829 = vmax.f32 %v2673, 0.0
        %v2830 = vmax.f32 %v2678, 0.0
        %v2831 = vmax.f32 %v2683, 0.0
        %v2832 = vmax.f32 %v2688, 0.0
        %v2833 = vmax.f32 %v2693, 0.0
        %v2834 = vmax.f32 %v2698, 0.0
        %v2835 = vmax.f32 %v2703, 0.0
        %v2836 = vmax.f32 %v2708, 0.0
        %v2837 = vmax.f32 %v2713, 0.0
        %v2838 = vmax.f32 %v2718, 0.0
        %v2839 = vmax.f32 %v2723, 0.0
        %v2840 = vmax.f32 %v2728, 0.0
        %v2841 = vmax.f32 %v2733, 0.0
        %v2842 = vmax.f32 %v2738, 0.0
        %v2843 = vmax.f32 %v2743, 0.0
        %v2844 = vmax.f32 %v2748, 0.0
        %v2845 = vmax.f32 %v2753, 0.0
        %v2846 = vmax.f32 %v2758, 0.0
        %v2847 = vmax.f32 %v2763, 0.0
        %v2848 = vmax.f32 %v2768, 0.0
        %v2849 = vmax.f32 %v2773, 0.0
        %v2850 = vmax.f32 %v2778, 0.0
        %v2851 = vmax.f32 %v2783, 0.0
        %v2852 = vmax.f32 %v2788, 0.0
        %v2853 = vmax.f32 %v2793, 0.0
        %v2854 = vmax.f32 %v2798, 0.0
        %v2855 = vmax.f32 %v2803, 0.0
        %v2906 = vcombine.high %v2806, %v2806
        %v2908 = vunpack.c.l.s4 1983009808
        %v2909 = vunpack.c.0.s8 %v2908
        %v2910 = vlaneseq
        %v2911 = vshrl.u32 %v2910, 7
        %v2912 = vsub.s32 %v2909, %v2911
        %v2913 = vrot.slane %v2806, %v2912
        %v2915 = vunpack.c.l.s4 1983009808
        %v2916 = vunpack.c.0.s8 %v2915
        %v2917 = vlaneseq
        %v2918 = vshrl.u32 %v2917, 7
        %v2919 = vsub.s32 %v2916, %v2918
        %v2920 = vrot.slane %v2906, %v2919
        %v2921 = vcombine.high %v2913, %v2913
        %v2922 = vcombine.high %v2920, %v2920
        %v2923 = vcombine.high %v2807, %v2807
        %v2925 = vunpack.c.l.s4 1983009808
        %v2926 = vunpack.c.0.s8 %v2925
        %v2927 = vlaneseq
        %v2928 = vshrl.u32 %v2927, 7
        %v2929 = vsub.s32 %v2926, %v2928
        %v2930 = vrot.slane %v2807, %v2929
        %v2932 = vunpack.c.l.s4 1983009808
        %v2933 = vunpack.c.0.s8 %v2932
        %v2934 = vlaneseq
        %v2935 = vshrl.u32 %v2934, 7
        %v2936 = vsub.s32 %v2933, %v2935
        %v2937 = vrot.slane %v2923, %v2936
        %v2938 = vcombine.high %v2930, %v2930
        %v2939 = vcombine.high %v2937, %v2937
        %v2940 = vcombine.high %v2808, %v2808
        %v2942 = vunpack.c.l.s4 1983009808
        %v2943 = vunpack.c.0.s8 %v2942
        %v2944 = vlaneseq
        %v2945 = vshrl.u32 %v2944, 7
        %v2946 = vsub.s32 %v2943, %v2945
        %v2947 = vrot.slane %v2808, %v2946
        %v2949 = vunpack.c.l.s4 1983009808
        %v2950 = vunpack.c.0.s8 %v2949
        %v2951 = vlaneseq
        %v2952 = vshrl.u32 %v2951, 7
        %v2953 = vsub.s32 %v2950, %v2952
        %v2954 = vrot.slane %v2940, %v2953
        %v2955 = vcombine.high %v2947, %v2947
        %v2956 = vcombine.high %v2954, %v2954
        %v2957 = vcombine.high %v2809, %v2809
        %v2959 = vunpack.c.l.s4 1983009808
        %v2960 = vunpack.c.0.s8 %v2959
        %v2961 = vlaneseq
        %v2962 = vshrl.u32 %v2961, 7
        %v2963 = vsub.s32 %v2960, %v2962
        %v2964 = vrot.slane %v2809, %v2963
        %v2966 = vunpack.c.l.s4 1983009808
        %v2967 = vunpack.c.0.s8 %v2966
        %v2968 = vlaneseq
        %v2969 = vshrl.u32 %v2968, 7
        %v2970 = vsub.s32 %v2967, %v2969
        %v2971 = vrot.slane %v2957, %v2970
        %v2972 = vcombine.high %v2964, %v2964
        %v2973 = vcombine.high %v2971, %v2971
        %v2974 = vcombine.high %v2810, %v2810
        %v2976 = vunpack.c.l.s4 1983009808
        %v2977 = vunpack.c.0.s8 %v2976
        %v2978 = vlaneseq
        %v2979 = vshrl.u32 %v2978, 7
        %v2980 = vsub.s32 %v2977, %v2979
        %v2981 = vrot.slane %v2810, %v2980
        %v2983 = vunpack.c.l.s4 1983009808
        %v2984 = vunpack.c.0.s8 %v2983
        %v2985 = vlaneseq
        %v2986 = vshrl.u32 %v2985, 7
        %v2987 = vsub.s32 %v2984, %v2986
        %v2988 = vrot.slane %v2974, %v2987
        %v2989 = vcombine.high %v2981, %v2981
        %v2990 = vcombine.high %v2988, %v2988
        %v2991 = vcombine.high %v2811, %v2811
        %v2993 = vunpack.c.l.s4 1983009808
        %v2994 = vunpack.c.0.s8 %v2993
        %v2995 = vlaneseq
        %v2996 = vshrl.u32 %v2995, 7
        %v2997 = vsub.s32 %v2994, %v2996
        %v2998 = vrot.slane %v2811, %v2997
        %v3000 = vunpack.c.l.s4 1983009808
        %v3001 = vunpack.c.0.s8 %v3000
        %v3002 = vlaneseq
        %v3003 = vshrl.u32 %v3002, 7
        %v3004 = vsub.s32 %v3001, %v3003
        %v3005 = vrot.slane %v2991, %v3004
        %v3006 = vcombine.high %v2998, %v2998
        %v3007 = vcombine.high %v3005, %v3005
        %v3008 = vcombine.high %v2812, %v2812
        %v3010 = vunpack.c.l.s4 1983009808
        %v3011 = vunpack.c.0.s8 %v3010
        %v3012 = vlaneseq
        %v3013 = vshrl.u32 %v3012, 7
        %v3014 = vsub.s32 %v3011, %v3013
        %v3015 = vrot.slane %v2812, %v3014
        %v3017 = vunpack.c.l.s4 1983009808
        %v3018 = vunpack.c.0.s8 %v3017
        %v3019 = vlaneseq
        %v3020 = vshrl.u32 %v3019, 7
        %v3021 = vsub.s32 %v3018, %v3020
        %v3022 = vrot.slane %v3008, %v3021
        %v3023 = vcombine.high %v3015, %v3015
        %v3024 = vcombine.high %v3022, %v3022
        %v3025 = vcombine.high %v2813, %v2813
        %v3027 = vunpack.c.l.s4 1983009808
        %v3028 = vunpack.c.0.s8 %v3027
        %v3029 = vlaneseq
        %v3030 = vshrl.u32 %v3029, 7
        %v3031 = vsub.s32 %v3028, %v3030
        %v3032 = vrot.slane %v2813, %v3031
        %v3034 = vunpack.c.l.s4 1983009808
        %v3035 = vunpack.c.0.s8 %v3034
        %v3036 = vlaneseq
        %v3037 = vshrl.u32 %v3036, 7
        %v3038 = vsub.s32 %v3035, %v3037
        %v3039 = vrot.slane %v3025, %v3038
        %v3040 = vcombine.high %v3032, %v3032
        %v3041 = vcombine.high %v3039, %v3039
        %v3042 = vcombine.high %v2814, %v2814
        %v3044 = vunpack.c.l.s4 1983009808
        %v3045 = vunpack.c.0.s8 %v3044
        %v3046 = vlaneseq
        %v3047 = vshrl.u32 %v3046, 7
        %v3048 = vsub.s32 %v3045, %v3047
        %v3049 = vrot.slane %v2814, %v3048
        %v3051 = vunpack.c.l.s4 1983009808
        %v3052 = vunpack.c.0.s8 %v3051
        %v3053 = vlaneseq
        %v3054 = vshrl.u32 %v3053, 7
        %v3055 = vsub.s32 %v3052, %v3054
        %v3056 = vrot.slane %v3042, %v3055
        %v3057 = vcombine.high %v3049, %v3049
        %v3058 = vcombine.high %v3056, %v3056
        %v3059 = vcombine.high %v2815, %v2815
        %v3061 = vunpack.c.l.s4 1983009808
        %v3062 = vunpack.c.0.s8 %v3061
        %v3063 = vlaneseq
        %v3064 = vshrl.u32 %v3063, 7
        %v3065 = vsub.s32 %v3062, %v3064
        %v3066 = vrot.slane %v2815, %v3065
        %v3068 = vunpack.c.l.s4 1983009808
        %v3069 = vunpack.c.0.s8 %v3068
        %v3070 = vlaneseq
        %v3071 = vshrl.u32 %v3070, 7
        %v3072 = vsub.s32 %v3069, %v3071
        %v3073 = vrot.slane %v3059, %v3072
        %v3074 = vcombine.high %v3066, %v3066
        %v3075 = vcombine.high %v3073, %v3073
        %v3076 = vcombine.high %v2816, %v2816
        %v3078 = vunpack.c.l.s4 1983009808
        %v3079 = vunpack.c.0.s8 %v3078
        %v3080 = vlaneseq
        %v3081 = vshrl.u32 %v3080, 7
        %v3082 = vsub.s32 %v3079, %v3081
        %v3083 = vrot.slane %v2816, %v3082
        %v3085 = vunpack.c.l.s4 1983009808
        %v3086 = vunpack.c.0.s8 %v3085
        %v3087 = vlaneseq
        %v3088 = vshrl.u32 %v3087, 7
        %v3089 = vsub.s32 %v3086, %v3088
        %v3090 = vrot.slane %v3076, %v3089
        %v3091 = vcombine.high %v3083, %v3083
        %v3092 = vcombine.high %v3090, %v3090
        %v3093 = vcombine.high %v2817, %v2817
        %v3095 = vunpack.c.l.s4 1983009808
        %v3096 = vunpack.c.0.s8 %v3095
        %v3097 = vlaneseq
        %v3098 = vshrl.u32 %v3097, 7
        %v3099 = vsub.s32 %v3096, %v3098
        %v3100 = vrot.slane %v2817, %v3099
        %v3102 = vunpack.c.l.s4 1983009808
        %v3103 = vunpack.c.0.s8 %v3102
        %v3104 = vlaneseq
        %v3105 = vshrl.u32 %v3104, 7
        %v3106 = vsub.s32 %v3103, %v3105
        %v3107 = vrot.slane %v3093, %v3106
        %v3108 = vcombine.high %v3100, %v3100
        %v3109 = vcombine.high %v3107, %v3107
        %v3110 = vcombine.high %v2818, %v2818
        %v3112 = vunpack.c.l.s4 1983009808
        %v3113 = vunpack.c.0.s8 %v3112
        %v3114 = vlaneseq
        %v3115 = vshrl.u32 %v3114, 7
        %v3116 = vsub.s32 %v3113, %v3115
        %v3117 = vrot.slane %v2818, %v3116
        %v3119 = vunpack.c.l.s4 1983009808
        %v3120 = vunpack.c.0.s8 %v3119
        %v3121 = vlaneseq
        %v3122 = vshrl.u32 %v3121, 7
        %v3123 = vsub.s32 %v3120, %v3122
        %v3124 = vrot.slane %v3110, %v3123
        %v3125 = vcombine.high %v3117, %v3117
        %v3126 = vcombine.high %v3124, %v3124
        %v3127 = vcombine.high %v2819, %v2819
        %v3129 = vunpack.c.l.s4 1983009808
        %v3130 = vunpack.c.0.s8 %v3129
        %v3131 = vlaneseq
        %v3132 = vshrl.u32 %v3131, 7
        %v3133 = vsub.s32 %v3130, %v3132
        %v3134 = vrot.slane %v2819, %v3133
        %v3136 = vunpack.c.l.s4 1983009808
        %v3137 = vunpack.c.0.s8 %v3136
        %v3138 = vlaneseq
        %v3139 = vshrl.u32 %v3138, 7
        %v3140 = vsub.s32 %v3137, %v3139
        %v3141 = vrot.slane %v3127, %v3140
        %v3142 = vcombine.high %v3134, %v3134
        %v3143 = vcombine.high %v3141, %v3141
        %v3144 = vcombine.high %v2820, %v2820
        %v3146 = vunpack.c.l.s4 1983009808
        %v3147 = vunpack.c.0.s8 %v3146
        %v3148 = vlaneseq
        %v3149 = vshrl.u32 %v3148, 7
        %v3150 = vsub.s32 %v3147, %v3149
        %v3151 = vrot.slane %v2820, %v3150
        %v3153 = vunpack.c.l.s4 1983009808
        %v3154 = vunpack.c.0.s8 %v3153
        %v3155 = vlaneseq
        %v3156 = vshrl.u32 %v3155, 7
        %v3157 = vsub.s32 %v3154, %v3156
        %v3158 = vrot.slane %v3144, %v3157
        %v3159 = vcombine.high %v3151, %v3151
        %v3160 = vcombine.high %v3158, %v3158
        %v3161 = vcombine.high %v2821, %v2821
        %v3163 = vunpack.c.l.s4 1983009808
        %v3164 = vunpack.c.0.s8 %v3163
        %v3165 = vlaneseq
        %v3166 = vshrl.u32 %v3165, 7
        %v3167 = vsub.s32 %v3164, %v3166
        %v3168 = vrot.slane %v2821, %v3167
        %v3170 = vunpack.c.l.s4 1983009808
        %v3171 = vunpack.c.0.s8 %v3170
        %v3172 = vlaneseq
        %v3173 = vshrl.u32 %v3172, 7
        %v3174 = vsub.s32 %v3171, %v3173
        %v3175 = vrot.slane %v3161, %v3174
        %v3176 = vcombine.high %v3168, %v3168
        %v3177 = vcombine.high %v3175, %v3175
        %v3178 = vcombine.high %v2822, %v2822
        %v3180 = vunpack.c.l.s4 1983009808
        %v3181 = vunpack.c.0.s8 %v3180
        %v3182 = vlaneseq
        %v3183 = vshrl.u32 %v3182, 7
        %v3184 = vsub.s32 %v3181, %v3183
        %v3185 = vrot.slane %v2822, %v3184
        %v3187 = vunpack.c.l.s4 1983009808
        %v3188 = vunpack.c.0.s8 %v3187
        %v3189 = vlaneseq
        %v3190 = vshrl.u32 %v3189, 7
        %v3191 = vsub.s32 %v3188, %v3190
        %v3192 = vrot.slane %v3178, %v3191
        %v3193 = vcombine.high %v3185, %v3185
        %v3194 = vcombine.high %v3192, %v3192
        %v3195 = vcombine.high %v2823, %v2823
        %v3197 = vunpack.c.l.s4 1983009808
        %v3198 = vunpack.c.0.s8 %v3197
        %v3199 = vlaneseq
        %v3200 = vshrl.u32 %v3199, 7
        %v3201 = vsub.s32 %v3198, %v3200
        %v3202 = vrot.slane %v2823, %v3201
        %v3204 = vunpack.c.l.s4 1983009808
        %v3205 = vunpack.c.0.s8 %v3204
        %v3206 = vlaneseq
        %v3207 = vshrl.u32 %v3206, 7
        %v3208 = vsub.s32 %v3205, %v3207
        %v3209 = vrot.slane %v3195, %v3208
        %v3210 = vcombine.high %v3202, %v3202
        %v3211 = vcombine.high %v3209, %v3209
        %v3212 = vcombine.high %v2824, %v2824
        %v3214 = vunpack.c.l.s4 1983009808
        %v3215 = vunpack.c.0.s8 %v3214
        %v3216 = vlaneseq
        %v3217 = vshrl.u32 %v3216, 7
        %v3218 = vsub.s32 %v3215, %v3217
        %v3219 = vrot.slane %v2824, %v3218
        %v3221 = vunpack.c.l.s4 1983009808
        %v3222 = vunpack.c.0.s8 %v3221
        %v3223 = vlaneseq
        %v3224 = vshrl.u32 %v3223, 7
        %v3225 = vsub.s32 %v3222, %v3224
        %v3226 = vrot.slane %v3212, %v3225
        %v3227 = vcombine.high %v3219, %v3219
        %v3228 = vcombine.high %v3226, %v3226
        %v3229 = vcombine.high %v2825, %v2825
        %v3231 = vunpack.c.l.s4 1983009808
        %v3232 = vunpack.c.0.s8 %v3231
        %v3233 = vlaneseq
        %v3234 = vshrl.u32 %v3233, 7
        %v3235 = vsub.s32 %v3232, %v3234
        %v3236 = vrot.slane %v2825, %v3235
        %v3238 = vunpack.c.l.s4 1983009808
        %v3239 = vunpack.c.0.s8 %v3238
        %v3240 = vlaneseq
        %v3241 = vshrl.u32 %v3240, 7
        %v3242 = vsub.s32 %v3239, %v3241
        %v3243 = vrot.slane %v3229, %v3242
        %v3244 = vcombine.high %v3236, %v3236
        %v3245 = vcombine.high %v3243, %v3243
        %v3246 = vcombine.high %v2826, %v2826
        %v3248 = vunpack.c.l.s4 1983009808
        %v3249 = vunpack.c.0.s8 %v3248
        %v3250 = vlaneseq
        %v3251 = vshrl.u32 %v3250, 7
        %v3252 = vsub.s32 %v3249, %v3251
        %v3253 = vrot.slane %v2826, %v3252
        %v3255 = vunpack.c.l.s4 1983009808
        %v3256 = vunpack.c.0.s8 %v3255
        %v3257 = vlaneseq
        %v3258 = vshrl.u32 %v3257, 7
        %v3259 = vsub.s32 %v3256, %v3258
        %v3260 = vrot.slane %v3246, %v3259
        %v3261 = vcombine.high %v3253, %v3253
        %v3262 = vcombine.high %v3260, %v3260
        %v3263 = vcombine.high %v2827, %v2827
        %v3265 = vunpack.c.l.s4 1983009808
        %v3266 = vunpack.c.0.s8 %v3265
        %v3267 = vlaneseq
        %v3268 = vshrl.u32 %v3267, 7
        %v3269 = vsub.s32 %v3266, %v3268
        %v3270 = vrot.slane %v2827, %v3269
        %v3272 = vunpack.c.l.s4 1983009808
        %v3273 = vunpack.c.0.s8 %v3272
        %v3274 = vlaneseq
        %v3275 = vshrl.u32 %v3274, 7
        %v3276 = vsub.s32 %v3273, %v3275
        %v3277 = vrot.slane %v3263, %v3276
        %v3278 = vcombine.high %v3270, %v3270
        %v3279 = vcombine.high %v3277, %v3277
        %v3280 = vcombine.high %v2828, %v2828
        %v3282 = vunpack.c.l.s4 1983009808
        %v3283 = vunpack.c.0.s8 %v3282
        %v3284 = vlaneseq
        %v3285 = vshrl.u32 %v3284, 7
        %v3286 = vsub.s32 %v3283, %v3285
        %v3287 = vrot.slane %v2828, %v3286
        %v3289 = vunpack.c.l.s4 1983009808
        %v3290 = vunpack.c.0.s8 %v3289
        %v3291 = vlaneseq
        %v3292 = vshrl.u32 %v3291, 7
        %v3293 = vsub.s32 %v3290, %v3292
        %v3294 = vrot.slane %v3280, %v3293
        %v3295 = vcombine.high %v3287, %v3287
        %v3296 = vcombine.high %v3294, %v3294
        %v3297 = vcombine.high %v2829, %v2829
        %v3299 = vunpack.c.l.s4 1983009808
        %v3300 = vunpack.c.0.s8 %v3299
        %v3301 = vlaneseq
        %v3302 = vshrl.u32 %v3301, 7
        %v3303 = vsub.s32 %v3300, %v3302
        %v3304 = vrot.slane %v2829, %v3303
        %v3306 = vunpack.c.l.s4 1983009808
        %v3307 = vunpack.c.0.s8 %v3306
        %v3308 = vlaneseq
        %v3309 = vshrl.u32 %v3308, 7
        %v3310 = vsub.s32 %v3307, %v3309
        %v3311 = vrot.slane %v3297, %v3310
        %v3312 = vcombine.high %v3304, %v3304
        %v3313 = vcombine.high %v3311, %v3311
        %v3314 = vcombine.high %v2830, %v2830
        %v3316 = vunpack.c.l.s4 1983009808
        %v3317 = vunpack.c.0.s8 %v3316
        %v3318 = vlaneseq
        %v3319 = vshrl.u32 %v3318, 7
        %v3320 = vsub.s32 %v3317, %v3319
        %v3321 = vrot.slane %v2830, %v3320
        %v3323 = vunpack.c.l.s4 1983009808
        %v3324 = vunpack.c.0.s8 %v3323
        %v3325 = vlaneseq
        %v3326 = vshrl.u32 %v3325, 7
        %v3327 = vsub.s32 %v3324, %v3326
        %v3328 = vrot.slane %v3314, %v3327
        %v3329 = vcombine.high %v3321, %v3321
        %v3330 = vcombine.high %v3328, %v3328
        %v3331 = vcombine.high %v2831, %v2831
        %v3333 = vunpack.c.l.s4 1983009808
        %v3334 = vunpack.c.0.s8 %v3333
        %v3335 = vlaneseq
        %v3336 = vshrl.u32 %v3335, 7
        %v3337 = vsub.s32 %v3334, %v3336
        %v3338 = vrot.slane %v2831, %v3337
        %v3340 = vunpack.c.l.s4 1983009808
        %v3341 = vunpack.c.0.s8 %v3340
        %v3342 = vlaneseq
        %v3343 = vshrl.u32 %v3342, 7
        %v3344 = vsub.s32 %v3341, %v3343
        %v3345 = vrot.slane %v3331, %v3344
        %v3346 = vcombine.high %v3338, %v3338
        %v3347 = vcombine.high %v3345, %v3345
        %v3348 = vcombine.high %v2832, %v2832
        %v3350 = vunpack.c.l.s4 1983009808
        %v3351 = vunpack.c.0.s8 %v3350
        %v3352 = vlaneseq
        %v3353 = vshrl.u32 %v3352, 7
        %v3354 = vsub.s32 %v3351, %v3353
        %v3355 = vrot.slane %v2832, %v3354
        %v3357 = vunpack.c.l.s4 1983009808
        %v3358 = vunpack.c.0.s8 %v3357
        %v3359 = vlaneseq
        %v3360 = vshrl.u32 %v3359, 7
        %v3361 = vsub.s32 %v3358, %v3360
        %v3362 = vrot.slane %v3348, %v3361
        %v3363 = vcombine.high %v3355, %v3355
        %v3364 = vcombine.high %v3362, %v3362
        %v3365 = vcombine.high %v2833, %v2833
        %v3367 = vunpack.c.l.s4 1983009808
        %v3368 = vunpack.c.0.s8 %v3367
        %v3369 = vlaneseq
        %v3370 = vshrl.u32 %v3369, 7
        %v3371 = vsub.s32 %v3368, %v3370
        %v3372 = vrot.slane %v2833, %v3371
        %v3374 = vunpack.c.l.s4 1983009808
        %v3375 = vunpack.c.0.s8 %v3374
        %v3376 = vlaneseq
        %v3377 = vshrl.u32 %v3376, 7
        %v3378 = vsub.s32 %v3375, %v3377
        %v3379 = vrot.slane %v3365, %v3378
        %v3380 = vcombine.high %v3372, %v3372
        %v3381 = vcombine.high %v3379, %v3379
        %v3382 = vcombine.high %v2834, %v2834
        %v3384 = vunpack.c.l.s4 1983009808
        %v3385 = vunpack.c.0.s8 %v3384
        %v3386 = vlaneseq
        %v3387 = vshrl.u32 %v3386, 7
        %v3388 = vsub.s32 %v3385, %v3387
        %v3389 = vrot.slane %v2834, %v3388
        %v3391 = vunpack.c.l.s4 1983009808
        %v3392 = vunpack.c.0.s8 %v3391
        %v3393 = vlaneseq
        %v3394 = vshrl.u32 %v3393, 7
        %v3395 = vsub.s32 %v3392, %v3394
        %v3396 = vrot.slane %v3382, %v3395
        %v3397 = vcombine.high %v3389, %v3389
        %v3398 = vcombine.high %v3396, %v3396
        %v3399 = vcombine.high %v2835, %v2835
        %v3401 = vunpack.c.l.s4 1983009808
        %v3402 = vunpack.c.0.s8 %v3401
        %v3403 = vlaneseq
        %v3404 = vshrl.u32 %v3403, 7
        %v3405 = vsub.s32 %v3402, %v3404
        %v3406 = vrot.slane %v2835, %v3405
        %v3408 = vunpack.c.l.s4 1983009808
        %v3409 = vunpack.c.0.s8 %v3408
        %v3410 = vlaneseq
        %v3411 = vshrl.u32 %v3410, 7
        %v3412 = vsub.s32 %v3409, %v3411
        %v3413 = vrot.slane %v3399, %v3412
        %v3414 = vcombine.high %v3406, %v3406
        %v3415 = vcombine.high %v3413, %v3413
        %v3416 = vcombine.high %v2836, %v2836
        %v3418 = vunpack.c.l.s4 1983009808
        %v3419 = vunpack.c.0.s8 %v3418
        %v3420 = vlaneseq
        %v3421 = vshrl.u32 %v3420, 7
        %v3422 = vsub.s32 %v3419, %v3421
        %v3423 = vrot.slane %v2836, %v3422
        %v3425 = vunpack.c.l.s4 1983009808
        %v3426 = vunpack.c.0.s8 %v3425
        %v3427 = vlaneseq
        %v3428 = vshrl.u32 %v3427, 7
        %v3429 = vsub.s32 %v3426, %v3428
        %v3430 = vrot.slane %v3416, %v3429
        %v3431 = vcombine.high %v3423, %v3423
        %v3432 = vcombine.high %v3430, %v3430
        %v3433 = vcombine.high %v2837, %v2837
        %v3435 = vunpack.c.l.s4 1983009808
        %v3436 = vunpack.c.0.s8 %v3435
        %v3437 = vlaneseq
        %v3438 = vshrl.u32 %v3437, 7
        %v3439 = vsub.s32 %v3436, %v3438
        %v3440 = vrot.slane %v2837, %v3439
        %v3442 = vunpack.c.l.s4 1983009808
        %v3443 = vunpack.c.0.s8 %v3442
        %v3444 = vlaneseq
        %v3445 = vshrl.u32 %v3444, 7
        %v3446 = vsub.s32 %v3443, %v3445
        %v3447 = vrot.slane %v3433, %v3446
        %v3448 = vcombine.high %v3440, %v3440
        %v3449 = vcombine.high %v3447, %v3447
        %v3450 = vcombine.high %v2838, %v2838
        %v3452 = vunpack.c.l.s4 1983009808
        %v3453 = vunpack.c.0.s8 %v3452
        %v3454 = vlaneseq
        %v3455 = vshrl.u32 %v3454, 7
        %v3456 = vsub.s32 %v3453, %v3455
        %v3457 = vrot.slane %v2838, %v3456
        %v3459 = vunpack.c.l.s4 1983009808
        %v3460 = vunpack.c.0.s8 %v3459
        %v3461 = vlaneseq
        %v3462 = vshrl.u32 %v3461, 7
        %v3463 = vsub.s32 %v3460, %v3462
        %v3464 = vrot.slane %v3450, %v3463
        %v3465 = vcombine.high %v3457, %v3457
        %v3466 = vcombine.high %v3464, %v3464
        %v3467 = vcombine.high %v2839, %v2839
        %v3469 = vunpack.c.l.s4 1983009808
        %v3470 = vunpack.c.0.s8 %v3469
        %v3471 = vlaneseq
        %v3472 = vshrl.u32 %v3471, 7
        %v3473 = vsub.s32 %v3470, %v3472
        %v3474 = vrot.slane %v2839, %v3473
        %v3476 = vunpack.c.l.s4 1983009808
        %v3477 = vunpack.c.0.s8 %v3476
        %v3478 = vlaneseq
        %v3479 = vshrl.u32 %v3478, 7
        %v3480 = vsub.s32 %v3477, %v3479
        %v3481 = vrot.slane %v3467, %v3480
        %v3482 = vcombine.high %v3474, %v3474
        %v3483 = vcombine.high %v3481, %v3481
        %v3484 = vcombine.high %v2840, %v2840
        %v3486 = vunpack.c.l.s4 1983009808
        %v3487 = vunpack.c.0.s8 %v3486
        %v3488 = vlaneseq
        %v3489 = vshrl.u32 %v3488, 7
        %v3490 = vsub.s32 %v3487, %v3489
        %v3491 = vrot.slane %v2840, %v3490
        %v3493 = vunpack.c.l.s4 1983009808
        %v3494 = vunpack.c.0.s8 %v3493
        %v3495 = vlaneseq
        %v3496 = vshrl.u32 %v3495, 7
        %v3497 = vsub.s32 %v3494, %v3496
        %v3498 = vrot.slane %v3484, %v3497
        %v3499 = vcombine.high %v3491, %v3491
        %v3500 = vcombine.high %v3498, %v3498
        %v3501 = vcombine.high %v2841, %v2841
        %v3503 = vunpack.c.l.s4 1983009808
        %v3504 = vunpack.c.0.s8 %v3503
        %v3505 = vlaneseq
        %v3506 = vshrl.u32 %v3505, 7
        %v3507 = vsub.s32 %v3504, %v3506
        %v3508 = vrot.slane %v2841, %v3507
        %v3510 = vunpack.c.l.s4 1983009808
        %v3511 = vunpack.c.0.s8 %v3510
        %v3512 = vlaneseq
        %v3513 = vshrl.u32 %v3512, 7
        %v3514 = vsub.s32 %v3511, %v3513
        %v3515 = vrot.slane %v3501, %v3514
        %v3516 = vcombine.high %v3508, %v3508
        %v3517 = vcombine.high %v3515, %v3515
        %v3518 = vcombine.high %v2842, %v2842
        %v3520 = vunpack.c.l.s4 1983009808
        %v3521 = vunpack.c.0.s8 %v3520
        %v3522 = vlaneseq
        %v3523 = vshrl.u32 %v3522, 7
        %v3524 = vsub.s32 %v3521, %v3523
        %v3525 = vrot.slane %v2842, %v3524
        %v3527 = vunpack.c.l.s4 1983009808
        %v3528 = vunpack.c.0.s8 %v3527
        %v3529 = vlaneseq
        %v3530 = vshrl.u32 %v3529, 7
        %v3531 = vsub.s32 %v3528, %v3530
        %v3532 = vrot.slane %v3518, %v3531
        %v3533 = vcombine.high %v3525, %v3525
        %v3534 = vcombine.high %v3532, %v3532
        %v3535 = vcombine.high %v2843, %v2843
        %v3537 = vunpack.c.l.s4 1983009808
        %v3538 = vunpack.c.0.s8 %v3537
        %v3539 = vlaneseq
        %v3540 = vshrl.u32 %v3539, 7
        %v3541 = vsub.s32 %v3538, %v3540
        %v3542 = vrot.slane %v2843, %v3541
        %v3544 = vunpack.c.l.s4 1983009808
        %v3545 = vunpack.c.0.s8 %v3544
        %v3546 = vlaneseq
        %v3547 = vshrl.u32 %v3546, 7
        %v3548 = vsub.s32 %v3545, %v3547
        %v3549 = vrot.slane %v3535, %v3548
        %v3550 = vcombine.high %v3542, %v3542
        %v3551 = vcombine.high %v3549, %v3549
        %v3552 = vcombine.high %v2844, %v2844
        %v3554 = vunpack.c.l.s4 1983009808
        %v3555 = vunpack.c.0.s8 %v3554
        %v3556 = vlaneseq
        %v3557 = vshrl.u32 %v3556, 7
        %v3558 = vsub.s32 %v3555, %v3557
        %v3559 = vrot.slane %v2844, %v3558
        %v3561 = vunpack.c.l.s4 1983009808
        %v3562 = vunpack.c.0.s8 %v3561
        %v3563 = vlaneseq
        %v3564 = vshrl.u32 %v3563, 7
        %v3565 = vsub.s32 %v3562, %v3564
        %v3566 = vrot.slane %v3552, %v3565
        %v3567 = vcombine.high %v3559, %v3559
        %v3568 = vcombine.high %v3566, %v3566
        %v3569 = vcombine.high %v2845, %v2845
        %v3571 = vunpack.c.l.s4 1983009808
        %v3572 = vunpack.c.0.s8 %v3571
        %v3573 = vlaneseq
        %v3574 = vshrl.u32 %v3573, 7
        %v3575 = vsub.s32 %v3572, %v3574
        %v3576 = vrot.slane %v2845, %v3575
        %v3578 = vunpack.c.l.s4 1983009808
        %v3579 = vunpack.c.0.s8 %v3578
        %v3580 = vlaneseq
        %v3581 = vshrl.u32 %v3580, 7
        %v3582 = vsub.s32 %v3579, %v3581
        %v3583 = vrot.slane %v3569, %v3582
        %v3584 = vcombine.high %v3576, %v3576
        %v3585 = vcombine.high %v3583, %v3583
        %v3586 = vcombine.high %v2846, %v2846
        %v3588 = vunpack.c.l.s4 1983009808
        %v3589 = vunpack.c.0.s8 %v3588
        %v3590 = vlaneseq
        %v3591 = vshrl.u32 %v3590, 7
        %v3592 = vsub.s32 %v3589, %v3591
        %v3593 = vrot.slane %v2846, %v3592
        %v3595 = vunpack.c.l.s4 1983009808
        %v3596 = vunpack.c.0.s8 %v3595
        %v3597 = vlaneseq
        %v3598 = vshrl.u32 %v3597, 7
        %v3599 = vsub.s32 %v3596, %v3598
        %v3600 = vrot.slane %v3586, %v3599
        %v3601 = vcombine.high %v3593, %v3593
        %v3602 = vcombine.high %v3600, %v3600
        %v3603 = vcombine.high %v2847, %v2847
        %v3605 = vunpack.c.l.s4 1983009808
        %v3606 = vunpack.c.0.s8 %v3605
        %v3607 = vlaneseq
        %v3608 = vshrl.u32 %v3607, 7
        %v3609 = vsub.s32 %v3606, %v3608
        %v3610 = vrot.slane %v2847, %v3609
        %v3612 = vunpack.c.l.s4 1983009808
        %v3613 = vunpack.c.0.s8 %v3612
        %v3614 = vlaneseq
        %v3615 = vshrl.u32 %v3614, 7
        %v3616 = vsub.s32 %v3613, %v3615
        %v3617 = vrot.slane %v3603, %v3616
        %v3618 = vcombine.high %v3610, %v3610
        %v3619 = vcombine.high %v3617, %v3617
        %v3620 = vcombine.high %v2848, %v2848
        %v3622 = vunpack.c.l.s4 1983009808
        %v3623 = vunpack.c.0.s8 %v3622
        %v3624 = vlaneseq
        %v3625 = vshrl.u32 %v3624, 7
        %v3626 = vsub.s32 %v3623, %v3625
        %v3627 = vrot.slane %v2848, %v3626
        %v3629 = vunpack.c.l.s4 1983009808
        %v3630 = vunpack.c.0.s8 %v3629
        %v3631 = vlaneseq
        %v3632 = vshrl.u32 %v3631, 7
        %v3633 = vsub.s32 %v3630, %v3632
        %v3634 = vrot.slane %v3620, %v3633
        %v3635 = vcombine.high %v3627, %v3627
        %v3636 = vcombine.high %v3634, %v3634
        %v3637 = vcombine.high %v2849, %v2849
        %v3639 = vunpack.c.l.s4 1983009808
        %v3640 = vunpack.c.0.s8 %v3639
        %v3641 = vlaneseq
        %v3642 = vshrl.u32 %v3641, 7
        %v3643 = vsub.s32 %v3640, %v3642
        %v3644 = vrot.slane %v2849, %v3643
        %v3646 = vunpack.c.l.s4 1983009808
        %v3647 = vunpack.c.0.s8 %v3646
        %v3648 = vlaneseq
        %v3649 = vshrl.u32 %v3648, 7
        %v3650 = vsub.s32 %v3647, %v3649
        %v3651 = vrot.slane %v3637, %v3650
        %v3652 = vcombine.high %v3644, %v3644
        %v3653 = vcombine.high %v3651, %v3651
        %v3654 = vcombine.high %v2850, %v2850
        %v3656 = vunpack.c.l.s4 1983009808
        %v3657 = vunpack.c.0.s8 %v3656
        %v3658 = vlaneseq
        %v3659 = vshrl.u32 %v3658, 7
        %v3660 = vsub.s32 %v3657, %v3659
        %v3661 = vrot.slane %v2850, %v3660
        %v3663 = vunpack.c.l.s4 1983009808
        %v3664 = vunpack.c.0.s8 %v3663
        %v3665 = vlaneseq
        %v3666 = vshrl.u32 %v3665, 7
        %v3667 = vsub.s32 %v3664, %v3666
        %v3668 = vrot.slane %v3654, %v3667
        %v3669 = vcombine.high %v3661, %v3661
        %v3670 = vcombine.high %v3668, %v3668
        %v3671 = vcombine.high %v2851, %v2851
        %v3673 = vunpack.c.l.s4 1983009808
        %v3674 = vunpack.c.0.s8 %v3673
        %v3675 = vlaneseq
        %v3676 = vshrl.u32 %v3675, 7
        %v3677 = vsub.s32 %v3674, %v3676
        %v3678 = vrot.slane %v2851, %v3677
        %v3680 = vunpack.c.l.s4 1983009808
        %v3681 = vunpack.c.0.s8 %v3680
        %v3682 = vlaneseq
        %v3683 = vshrl.u32 %v3682, 7
        %v3684 = vsub.s32 %v3681, %v3683
        %v3685 = vrot.slane %v3671, %v3684
        %v3686 = vcombine.high %v3678, %v3678
        %v3687 = vcombine.high %v3685, %v3685
        %v3688 = vcombine.high %v2852, %v2852
        %v3690 = vunpack.c.l.s4 1983009808
        %v3691 = vunpack.c.0.s8 %v3690
        %v3692 = vlaneseq
        %v3693 = vshrl.u32 %v3692, 7
        %v3694 = vsub.s32 %v3691, %v3693
        %v3695 = vrot.slane %v2852, %v3694
        %v3697 = vunpack.c.l.s4 1983009808
        %v3698 = vunpack.c.0.s8 %v3697
        %v3699 = vlaneseq
        %v3700 = vshrl.u32 %v3699, 7
        %v3701 = vsub.s32 %v3698, %v3700
        %v3702 = vrot.slane %v3688, %v3701
        %v3703 = vcombine.high %v3695, %v3695
        %v3704 = vcombine.high %v3702, %v3702
        %v3705 = vcombine.high %v2853, %v2853
        %v3707 = vunpack.c.l.s4 1983009808
        %v3708 = vunpack.c.0.s8 %v3707
        %v3709 = vlaneseq
        %v3710 = vshrl.u32 %v3709, 7
        %v3711 = vsub.s32 %v3708, %v3710
        %v3712 = vrot.slane %v2853, %v3711
        %v3714 = vunpack.c.l.s4 1983009808
        %v3715 = vunpack.c.0.s8 %v3714
        %v3716 = vlaneseq
        %v3717 = vshrl.u32 %v3716, 7
        %v3718 = vsub.s32 %v3715, %v3717
        %v3719 = vrot.slane %v3705, %v3718
        %v3720 = vcombine.high %v3712, %v3712
        %v3721 = vcombine.high %v3719, %v3719
        %v3722 = vcombine.high %v2854, %v2854
        %v3724 = vunpack.c.l.s4 1983009808
        %v3725 = vunpack.c.0.s8 %v3724
        %v3726 = vlaneseq
        %v3727 = vshrl.u32 %v3726, 7
        %v3728 = vsub.s32 %v3725, %v3727
        %v3729 = vrot.slane %v2854, %v3728
        %v3731 = vunpack.c.l.s4 1983009808
        %v3732 = vunpack.c.0.s8 %v3731
        %v3733 = vlaneseq
        %v3734 = vshrl.u32 %v3733, 7
        %v3735 = vsub.s32 %v3732, %v3734
        %v3736 = vrot.slane %v3722, %v3735
        %v3737 = vcombine.high %v3729, %v3729
        %v3738 = vcombine.high %v3736, %v3736
        %v3739 = vcombine.high %v2855, %v2855
        %v3741 = vunpack.c.l.s4 1983009808
        %v3742 = vunpack.c.0.s8 %v3741
        %v3743 = vlaneseq
        %v3744 = vshrl.u32 %v3743, 7
        %v3745 = vsub.s32 %v3742, %v3744
        %v3746 = vrot.slane %v2855, %v3745
        %v3748 = vunpack.c.l.s4 1983009808
        %v3749 = vunpack.c.0.s8 %v3748
        %v3750 = vlaneseq
        %v3751 = vshrl.u32 %v3750, 7
        %v3752 = vsub.s32 %v3749, %v3751
        %v3753 = vrot.slane %v3739, %v3752
        %v3754 = vcombine.high %v3746, %v3746
        %v3755 = vcombine.high %v3753, %v3753
        %v3956 = vld [vmem:[%s1] sm:$0xff]
        %v3957 = vld [vmem:[%s1 + $0x8] sm:$0x3]
        %v3958 = vld [vmem:[%s1 + $0x10] sm:$0xff]
        %v3959 = vld [vmem:[%s1 + $0x18] sm:$0x3]
        %v3960 = vld [vmem:[%s1 + $0x20] sm:$0xff]
        %v3961 = vld [vmem:[%s1 + $0x28] sm:$0x3]
        %v3962 = vld [vmem:[%s1 + $0x30] sm:$0xff]
        %v3963 = vld [vmem:[%s1 + $0x38] sm:$0x3]
        %v3964 = vld [vmem:[%s1 + $0x40] sm:$0xff]
        %v3965 = vld [vmem:[%s1 + $0x48] sm:$0x3]
        %v3966 = vld [vmem:[%s1 + $0x50] sm:$0xff]
        %v3967 = vld [vmem:[%s1 + $0x58] sm:$0x3]
        %v3968 = vld [vmem:[%s1 + $0x60] sm:$0xff]
        %v3969 = vld [vmem:[%s1 + $0x68] sm:$0x3]
        %v3970 = vld [vmem:[%s1 + $0x70] sm:$0xff]
        %v3971 = vld [vmem:[%s1 + $0x78] sm:$0x3]
        %v3972 = vld [vmem:[%s1 + $0x80] sm:$0xff]
        %v3973 = vld [vmem:[%s1 + $0x88] sm:$0x3]
        %v3974 = vld [vmem:[%s1 + $0x90] sm:$0xff]
        %v3975 = vld [vmem:[%s1 + $0x98] sm:$0x3]
        %3977 = vset.pattern.permute.xlu0 0
        %3978 = vperm.xlu0 %3977, %v3956
        %v3979 = vpop.permute.xlu0 %3978
        %3981 = vset.pattern.permute.xlu0 0
        %3982 = vperm.xlu0 %3981, %v3957
        %v3983 = vpop.permute.xlu0 %3982
        %3985 = vset.pattern.permute.xlu0 0
        %3986 = vperm.xlu0 %3985, %v3958
        %v3987 = vpop.permute.xlu0 %3986
        %3989 = vset.pattern.permute.xlu0 0
        %3990 = vperm.xlu0 %3989, %v3959
        %v3991 = vpop.permute.xlu0 %3990
        %3993 = vset.pattern.permute.xlu0 0
        %3994 = vperm.xlu0 %3993, %v3960
        %v3995 = vpop.permute.xlu0 %3994
        %3997 = vset.pattern.permute.xlu0 0
        %3998 = vperm.xlu0 %3997, %v3961
        %v3999 = vpop.permute.xlu0 %3998
        %4001 = vset.pattern.permute.xlu0 0
        %4002 = vperm.xlu0 %4001, %v3962
        %v4003 = vpop.permute.xlu0 %4002
        %4005 = vset.pattern.permute.xlu0 0
        %4006 = vperm.xlu0 %4005, %v3963
        %v4007 = vpop.permute.xlu0 %4006
        %4009 = vset.pattern.permute.xlu0 0
        %4010 = vperm.xlu0 %4009, %v3964
        %v4011 = vpop.permute.xlu0 %4010
        %4013 = vset.pattern.permute.xlu0 0
        %4014 = vperm.xlu0 %4013, %v3965
        %v4015 = vpop.permute.xlu0 %4014
        %4017 = vset.pattern.permute.xlu0 0
        %4018 = vperm.xlu0 %4017, %v3966
        %v4019 = vpop.permute.xlu0 %4018
        %4021 = vset.pattern.permute.xlu0 0
        %4022 = vperm.xlu0 %4021, %v3967
        %v4023 = vpop.permute.xlu0 %4022
        %4025 = vset.pattern.permute.xlu0 0
        %4026 = vperm.xlu0 %4025, %v3968
        %v4027 = vpop.permute.xlu0 %4026
        %4029 = vset.pattern.permute.xlu0 0
        %4030 = vperm.xlu0 %4029, %v3969
        %v4031 = vpop.permute.xlu0 %4030
        %4033 = vset.pattern.permute.xlu0 0
        %4034 = vperm.xlu0 %4033, %v3970
        %v4035 = vpop.permute.xlu0 %4034
        %4037 = vset.pattern.permute.xlu0 0
        %4038 = vperm.xlu0 %4037, %v3971
        %v4039 = vpop.permute.xlu0 %4038
        %4041 = vset.pattern.permute.xlu0 0
        %4042 = vperm.xlu0 %4041, %v3972
        %v4043 = vpop.permute.xlu0 %4042
        %4045 = vset.pattern.permute.xlu0 0
        %4046 = vperm.xlu0 %4045, %v3973
        %v4047 = vpop.permute.xlu0 %4046
        %4049 = vset.pattern.permute.xlu0 0
        %4050 = vperm.xlu0 %4049, %v3974
        %v4051 = vpop.permute.xlu0 %4050
        %4053 = vset.pattern.permute.xlu0 0
        %4054 = vperm.xlu0 %4053, %v3975
        %v4055 = vpop.permute.xlu0 %4054
        %v4057 = vunpack.c.l.s4 269488144
        %v4058 = vunpack.c.0.s8 %v4057
        %v4059 = vlaneseq
        %v4060 = vshrl.u32 %v4059, 7
        %v4061 = vsub.s32 %v4058, %v4060
        %v4062 = vrot.slane %v3979, %v4061
        %v4064 = vunpack.c.l.s4 842150450
        %v4065 = vunpack.c.0.s8 %v4064
        %v4066 = vlaneseq
        %v4067 = vshrl.u32 %v4066, 7
        %v4068 = vsub.s32 %v4065, %v4067
        %v4069 = vrot.slane %v3979, %v4068
        %v4071 = vunpack.c.l.s4 1414812756
        %v4072 = vunpack.c.0.s8 %v4071
        %v4073 = vlaneseq
        %v4074 = vshrl.u32 %v4073, 7
        %v4075 = vsub.s32 %v4072, %v4074
        %v4076 = vrot.slane %v3979, %v4075
        %v4078 = vunpack.c.l.s4 1987475062
        %v4079 = vunpack.c.0.s8 %v4078
        %v4080 = vlaneseq
        %v4081 = vshrl.u32 %v4080, 7
        %v4082 = vsub.s32 %v4079, %v4081
        %v4083 = vrot.slane %v3979, %v4082
        %v4085 = vunpack.c.l.s4 269488144
        %v4086 = vunpack.c.0.s8 %v4085
        %v4087 = vlaneseq
        %v4088 = vshrl.u32 %v4087, 7
        %v4089 = vsub.s32 %v4086, %v4088
        %v4090 = vrot.slane %v3983, %v4089
        %v4092 = vunpack.c.l.s4 269488144
        %v4093 = vunpack.c.0.s8 %v4092
        %v4094 = vlaneseq
        %v4095 = vshrl.u32 %v4094, 7
        %v4096 = vsub.s32 %v4093, %v4095
        %v4097 = vrot.slane %v3987, %v4096
        %v4099 = vunpack.c.l.s4 842150450
        %v4100 = vunpack.c.0.s8 %v4099
        %v4101 = vlaneseq
        %v4102 = vshrl.u32 %v4101, 7
        %v4103 = vsub.s32 %v4100, %v4102
        %v4104 = vrot.slane %v3987, %v4103
        %v4106 = vunpack.c.l.s4 1414812756
        %v4107 = vunpack.c.0.s8 %v4106
        %v4108 = vlaneseq
        %v4109 = vshrl.u32 %v4108, 7
        %v4110 = vsub.s32 %v4107, %v4109
        %v4111 = vrot.slane %v3987, %v4110
        %v4113 = vunpack.c.l.s4 1987475062
        %v4114 = vunpack.c.0.s8 %v4113
        %v4115 = vlaneseq
        %v4116 = vshrl.u32 %v4115, 7
        %v4117 = vsub.s32 %v4114, %v4116
        %v4118 = vrot.slane %v3987, %v4117
        %v4120 = vunpack.c.l.s4 269488144
        %v4121 = vunpack.c.0.s8 %v4120
        %v4122 = vlaneseq
        %v4123 = vshrl.u32 %v4122, 7
        %v4124 = vsub.s32 %v4121, %v4123
        %v4125 = vrot.slane %v3991, %v4124
        %v4127 = vunpack.c.l.s4 269488144
        %v4128 = vunpack.c.0.s8 %v4127
        %v4129 = vlaneseq
        %v4130 = vshrl.u32 %v4129, 7
        %v4131 = vsub.s32 %v4128, %v4130
        %v4132 = vrot.slane %v3995, %v4131
        %v4134 = vunpack.c.l.s4 842150450
        %v4135 = vunpack.c.0.s8 %v4134
        %v4136 = vlaneseq
        %v4137 = vshrl.u32 %v4136, 7
        %v4138 = vsub.s32 %v4135, %v4137
        %v4139 = vrot.slane %v3995, %v4138
        %v4141 = vunpack.c.l.s4 1414812756
        %v4142 = vunpack.c.0.s8 %v4141
        %v4143 = vlaneseq
        %v4144 = vshrl.u32 %v4143, 7
        %v4145 = vsub.s32 %v4142, %v4144
        %v4146 = vrot.slane %v3995, %v4145
        %v4148 = vunpack.c.l.s4 1987475062
        %v4149 = vunpack.c.0.s8 %v4148
        %v4150 = vlaneseq
        %v4151 = vshrl.u32 %v4150, 7
        %v4152 = vsub.s32 %v4149, %v4151
        %v4153 = vrot.slane %v3995, %v4152
        %v4155 = vunpack.c.l.s4 269488144
        %v4156 = vunpack.c.0.s8 %v4155
        %v4157 = vlaneseq
        %v4158 = vshrl.u32 %v4157, 7
        %v4159 = vsub.s32 %v4156, %v4158
        %v4160 = vrot.slane %v3999, %v4159
        %v4162 = vunpack.c.l.s4 269488144
        %v4163 = vunpack.c.0.s8 %v4162
        %v4164 = vlaneseq
        %v4165 = vshrl.u32 %v4164, 7
        %v4166 = vsub.s32 %v4163, %v4165
        %v4167 = vrot.slane %v4003, %v4166
        %v4169 = vunpack.c.l.s4 842150450
        %v4170 = vunpack.c.0.s8 %v4169
        %v4171 = vlaneseq
        %v4172 = vshrl.u32 %v4171, 7
        %v4173 = vsub.s32 %v4170, %v4172
        %v4174 = vrot.slane %v4003, %v4173
        %v4176 = vunpack.c.l.s4 1414812756
        %v4177 = vunpack.c.0.s8 %v4176
        %v4178 = vlaneseq
        %v4179 = vshrl.u32 %v4178, 7
        %v4180 = vsub.s32 %v4177, %v4179
        %v4181 = vrot.slane %v4003, %v4180
        %v4183 = vunpack.c.l.s4 1987475062
        %v4184 = vunpack.c.0.s8 %v4183
        %v4185 = vlaneseq
        %v4186 = vshrl.u32 %v4185, 7
        %v4187 = vsub.s32 %v4184, %v4186
        %v4188 = vrot.slane %v4003, %v4187
        %v4190 = vunpack.c.l.s4 269488144
        %v4191 = vunpack.c.0.s8 %v4190
        %v4192 = vlaneseq
        %v4193 = vshrl.u32 %v4192, 7
        %v4194 = vsub.s32 %v4191, %v4193
        %v4195 = vrot.slane %v4007, %v4194
        %v4197 = vunpack.c.l.s4 269488144
        %v4198 = vunpack.c.0.s8 %v4197
        %v4199 = vlaneseq
        %v4200 = vshrl.u32 %v4199, 7
        %v4201 = vsub.s32 %v4198, %v4200
        %v4202 = vrot.slane %v4011, %v4201
        %v4204 = vunpack.c.l.s4 842150450
        %v4205 = vunpack.c.0.s8 %v4204
        %v4206 = vlaneseq
        %v4207 = vshrl.u32 %v4206, 7
        %v4208 = vsub.s32 %v4205, %v4207
        %v4209 = vrot.slane %v4011, %v4208
        %v4211 = vunpack.c.l.s4 1414812756
        %v4212 = vunpack.c.0.s8 %v4211
        %v4213 = vlaneseq
        %v4214 = vshrl.u32 %v4213, 7
        %v4215 = vsub.s32 %v4212, %v4214
        %v4216 = vrot.slane %v4011, %v4215
        %v4218 = vunpack.c.l.s4 1987475062
        %v4219 = vunpack.c.0.s8 %v4218
        %v4220 = vlaneseq
        %v4221 = vshrl.u32 %v4220, 7
        %v4222 = vsub.s32 %v4219, %v4221
        %v4223 = vrot.slane %v4011, %v4222
        %v4225 = vunpack.c.l.s4 269488144
        %v4226 = vunpack.c.0.s8 %v4225
        %v4227 = vlaneseq
        %v4228 = vshrl.u32 %v4227, 7
        %v4229 = vsub.s32 %v4226, %v4228
        %v4230 = vrot.slane %v4015, %v4229
        %v4232 = vunpack.c.l.s4 269488144
        %v4233 = vunpack.c.0.s8 %v4232
        %v4234 = vlaneseq
        %v4235 = vshrl.u32 %v4234, 7
        %v4236 = vsub.s32 %v4233, %v4235
        %v4237 = vrot.slane %v4019, %v4236
        %v4239 = vunpack.c.l.s4 842150450
        %v4240 = vunpack.c.0.s8 %v4239
        %v4241 = vlaneseq
        %v4242 = vshrl.u32 %v4241, 7
        %v4243 = vsub.s32 %v4240, %v4242
        %v4244 = vrot.slane %v4019, %v4243
        %v4246 = vunpack.c.l.s4 1414812756
        %v4247 = vunpack.c.0.s8 %v4246
        %v4248 = vlaneseq
        %v4249 = vshrl.u32 %v4248, 7
        %v4250 = vsub.s32 %v4247, %v4249
        %v4251 = vrot.slane %v4019, %v4250
        %v4253 = vunpack.c.l.s4 1987475062
        %v4254 = vunpack.c.0.s8 %v4253
        %v4255 = vlaneseq
        %v4256 = vshrl.u32 %v4255, 7
        %v4257 = vsub.s32 %v4254, %v4256
        %v4258 = vrot.slane %v4019, %v4257
        %v4260 = vunpack.c.l.s4 269488144
        %v4261 = vunpack.c.0.s8 %v4260
        %v4262 = vlaneseq
        %v4263 = vshrl.u32 %v4262, 7
        %v4264 = vsub.s32 %v4261, %v4263
        %v4265 = vrot.slane %v4023, %v4264
        %v4267 = vunpack.c.l.s4 269488144
        %v4268 = vunpack.c.0.s8 %v4267
        %v4269 = vlaneseq
        %v4270 = vshrl.u32 %v4269, 7
        %v4271 = vsub.s32 %v4268, %v4270
        %v4272 = vrot.slane %v4027, %v4271
        %v4274 = vunpack.c.l.s4 842150450
        %v4275 = vunpack.c.0.s8 %v4274
        %v4276 = vlaneseq
        %v4277 = vshrl.u32 %v4276, 7
        %v4278 = vsub.s32 %v4275, %v4277
        %v4279 = vrot.slane %v4027, %v4278
        %v4281 = vunpack.c.l.s4 1414812756
        %v4282 = vunpack.c.0.s8 %v4281
        %v4283 = vlaneseq
        %v4284 = vshrl.u32 %v4283, 7
        %v4285 = vsub.s32 %v4282, %v4284
        %v4286 = vrot.slane %v4027, %v4285
        %v4288 = vunpack.c.l.s4 1987475062
        %v4289 = vunpack.c.0.s8 %v4288
        %v4290 = vlaneseq
        %v4291 = vshrl.u32 %v4290, 7
        %v4292 = vsub.s32 %v4289, %v4291
        %v4293 = vrot.slane %v4027, %v4292
        %v4295 = vunpack.c.l.s4 269488144
        %v4296 = vunpack.c.0.s8 %v4295
        %v4297 = vlaneseq
        %v4298 = vshrl.u32 %v4297, 7
        %v4299 = vsub.s32 %v4296, %v4298
        %v4300 = vrot.slane %v4031, %v4299
        %v4302 = vunpack.c.l.s4 269488144
        %v4303 = vunpack.c.0.s8 %v4302
        %v4304 = vlaneseq
        %v4305 = vshrl.u32 %v4304, 7
        %v4306 = vsub.s32 %v4303, %v4305
        %v4307 = vrot.slane %v4035, %v4306
        %v4309 = vunpack.c.l.s4 842150450
        %v4310 = vunpack.c.0.s8 %v4309
        %v4311 = vlaneseq
        %v4312 = vshrl.u32 %v4311, 7
        %v4313 = vsub.s32 %v4310, %v4312
        %v4314 = vrot.slane %v4035, %v4313
        %v4316 = vunpack.c.l.s4 1414812756
        %v4317 = vunpack.c.0.s8 %v4316
        %v4318 = vlaneseq
        %v4319 = vshrl.u32 %v4318, 7
        %v4320 = vsub.s32 %v4317, %v4319
        %v4321 = vrot.slane %v4035, %v4320
        %v4323 = vunpack.c.l.s4 1987475062
        %v4324 = vunpack.c.0.s8 %v4323
        %v4325 = vlaneseq
        %v4326 = vshrl.u32 %v4325, 7
        %v4327 = vsub.s32 %v4324, %v4326
        %v4328 = vrot.slane %v4035, %v4327
        %v4330 = vunpack.c.l.s4 269488144
        %v4331 = vunpack.c.0.s8 %v4330
        %v4332 = vlaneseq
        %v4333 = vshrl.u32 %v4332, 7
        %v4334 = vsub.s32 %v4331, %v4333
        %v4335 = vrot.slane %v4039, %v4334
        %v4337 = vunpack.c.l.s4 269488144
        %v4338 = vunpack.c.0.s8 %v4337
        %v4339 = vlaneseq
        %v4340 = vshrl.u32 %v4339, 7
        %v4341 = vsub.s32 %v4338, %v4340
        %v4342 = vrot.slane %v4043, %v4341
        %v4344 = vunpack.c.l.s4 842150450
        %v4345 = vunpack.c.0.s8 %v4344
        %v4346 = vlaneseq
        %v4347 = vshrl.u32 %v4346, 7
        %v4348 = vsub.s32 %v4345, %v4347
        %v4349 = vrot.slane %v4043, %v4348
        %v4351 = vunpack.c.l.s4 1414812756
        %v4352 = vunpack.c.0.s8 %v4351
        %v4353 = vlaneseq
        %v4354 = vshrl.u32 %v4353, 7
        %v4355 = vsub.s32 %v4352, %v4354
        %v4356 = vrot.slane %v4043, %v4355
        %v4358 = vunpack.c.l.s4 1987475062
        %v4359 = vunpack.c.0.s8 %v4358
        %v4360 = vlaneseq
        %v4361 = vshrl.u32 %v4360, 7
        %v4362 = vsub.s32 %v4359, %v4361
        %v4363 = vrot.slane %v4043, %v4362
        %v4365 = vunpack.c.l.s4 269488144
        %v4366 = vunpack.c.0.s8 %v4365
        %v4367 = vlaneseq
        %v4368 = vshrl.u32 %v4367, 7
        %v4369 = vsub.s32 %v4366, %v4368
        %v4370 = vrot.slane %v4047, %v4369
        %v4372 = vunpack.c.l.s4 269488144
        %v4373 = vunpack.c.0.s8 %v4372
        %v4374 = vlaneseq
        %v4375 = vshrl.u32 %v4374, 7
        %v4376 = vsub.s32 %v4373, %v4375
        %v4377 = vrot.slane %v4051, %v4376
        %v4379 = vunpack.c.l.s4 842150450
        %v4380 = vunpack.c.0.s8 %v4379
        %v4381 = vlaneseq
        %v4382 = vshrl.u32 %v4381, 7
        %v4383 = vsub.s32 %v4380, %v4382
        %v4384 = vrot.slane %v4051, %v4383
        %v4386 = vunpack.c.l.s4 1414812756
        %v4387 = vunpack.c.0.s8 %v4386
        %v4388 = vlaneseq
        %v4389 = vshrl.u32 %v4388, 7
        %v4390 = vsub.s32 %v4387, %v4389
        %v4391 = vrot.slane %v4051, %v4390
        %v4393 = vunpack.c.l.s4 1987475062
        %v4394 = vunpack.c.0.s8 %v4393
        %v4395 = vlaneseq
        %v4396 = vshrl.u32 %v4395, 7
        %v4397 = vsub.s32 %v4394, %v4396
        %v4398 = vrot.slane %v4051, %v4397
        %v4400 = vunpack.c.l.s4 269488144
        %v4401 = vunpack.c.0.s8 %v4400
        %v4402 = vlaneseq
        %v4403 = vshrl.u32 %v4402, 7
        %v4404 = vsub.s32 %v4401, %v4403
        %v4405 = vrot.slane %v4055, %v4404
        %v4456 = vmul.f32 %v2913, %v4062
        %v4457 = vmul.f32 %v2921, %v4069
        %v4458 = vmul.f32 %v2920, %v4076
        %v4459 = vmul.f32 %v2922, %v4083
        %v4460 = vmul.f32 %v2930, %v4090
        %v4461 = vmul.f32 %v2938, %v4097
        %v4462 = vmul.f32 %v2937, %v4104
        %v4463 = vmul.f32 %v2939, %v4111
        %v4464 = vmul.f32 %v2947, %v4118
        %v4465 = vmul.f32 %v2955, %v4125
        %v4466 = vmul.f32 %v2954, %v4132
        %v4467 = vmul.f32 %v2956, %v4139
        %v4468 = vmul.f32 %v2964, %v4146
        %v4469 = vmul.f32 %v2972, %v4153
        %v4470 = vmul.f32 %v2971, %v4160
        %v4471 = vmul.f32 %v2973, %v4167
        %v4472 = vmul.f32 %v2981, %v4174
        %v4473 = vmul.f32 %v2989, %v4181
        %v4474 = vmul.f32 %v2988, %v4188
        %v4475 = vmul.f32 %v2990, %v4195
        %v4476 = vmul.f32 %v2998, %v4202
        %v4477 = vmul.f32 %v3006, %v4209
        %v4478 = vmul.f32 %v3005, %v4216
        %v4479 = vmul.f32 %v3007, %v4223
        %v4480 = vmul.f32 %v3015, %v4230
        %v4481 = vmul.f32 %v3023, %v4237
        %v4482 = vmul.f32 %v3022, %v4244
        %v4483 = vmul.f32 %v3024, %v4251
        %v4484 = vmul.f32 %v3032, %v4258
        %v4485 = vmul.f32 %v3040, %v4265
        %v4486 = vmul.f32 %v3039, %v4272
        %v4487 = vmul.f32 %v3041, %v4279
        %v4488 = vmul.f32 %v3049, %v4286
        %v4489 = vmul.f32 %v3057, %v4293
        %v4490 = vmul.f32 %v3056, %v4300
        %v4491 = vmul.f32 %v3058, %v4307
        %v4492 = vmul.f32 %v3066, %v4314
        %v4493 = vmul.f32 %v3074, %v4321
        %v4494 = vmul.f32 %v3073, %v4328
        %v4495 = vmul.f32 %v3075, %v4335
        %v4496 = vmul.f32 %v3083, %v4342
        %v4497 = vmul.f32 %v3091, %v4349
        %v4498 = vmul.f32 %v3090, %v4356
        %v4499 = vmul.f32 %v3092, %v4363
        %v4500 = vmul.f32 %v3100, %v4370
        %v4501 = vmul.f32 %v3108, %v4377
        %v4502 = vmul.f32 %v3107, %v4384
        %v4503 = vmul.f32 %v3109, %v4391
        %v4504 = vmul.f32 %v3117, %v4398
        %v4505 = vmul.f32 %v3125, %v4405
        %v4506 = vmul.f32 %v3124, %v4062
        %v4507 = vmul.f32 %v3126, %v4069
        %v4508 = vmul.f32 %v3134, %v4076
        %v4509 = vmul.f32 %v3142, %v4083
        %v4510 = vmul.f32 %v3141, %v4090
        %v4511 = vmul.f32 %v3143, %v4097
        %v4512 = vmul.f32 %v3151, %v4104
        %v4513 = vmul.f32 %v3159, %v4111
        %v4514 = vmul.f32 %v3158, %v4118
        %v4515 = vmul.f32 %v3160, %v4125
        %v4516 = vmul.f32 %v3168, %v4132
        %v4517 = vmul.f32 %v3176, %v4139
        %v4518 = vmul.f32 %v3175, %v4146
        %v4519 = vmul.f32 %v3177, %v4153
        %v4520 = vmul.f32 %v3185, %v4160
        %v4521 = vmul.f32 %v3193, %v4167
        %v4522 = vmul.f32 %v3192, %v4174
        %v4523 = vmul.f32 %v3194, %v4181
        %v4524 = vmul.f32 %v3202, %v4188
        %v4525 = vmul.f32 %v3210, %v4195
        %v4526 = vmul.f32 %v3209, %v4202
        %v4527 = vmul.f32 %v3211, %v4209
        %v4528 = vmul.f32 %v3219, %v4216
        %v4529 = vmul.f32 %v3227, %v4223
        %v4530 = vmul.f32 %v3226, %v4230
        %v4531 = vmul.f32 %v3228, %v4237
        %v4532 = vmul.f32 %v3236, %v4244
        %v4533 = vmul.f32 %v3244, %v4251
        %v4534 = vmul.f32 %v3243, %v4258
        %v4535 = vmul.f32 %v3245, %v4265
        %v4536 = vmul.f32 %v3253, %v4272
        %v4537 = vmul.f32 %v3261, %v4279
        %v4538 = vmul.f32 %v3260, %v4286
        %v4539 = vmul.f32 %v3262, %v4293
        %v4540 = vmul.f32 %v3270, %v4300
        %v4541 = vmul.f32 %v3278, %v4307
        %v4542 = vmul.f32 %v3277, %v4314
        %v4543 = vmul.f32 %v3279, %v4321
        %v4544 = vmul.f32 %v3287, %v4328
        %v4545 = vmul.f32 %v3295, %v4335
        %v4546 = vmul.f32 %v3294, %v4342
        %v4547 = vmul.f32 %v3296, %v4349
        %v4548 = vmul.f32 %v3304, %v4356
        %v4549 = vmul.f32 %v3312, %v4363
        %v4550 = vmul.f32 %v3311, %v4370
        %v4551 = vmul.f32 %v3313, %v4377
        %v4552 = vmul.f32 %v3321, %v4384
        %v4553 = vmul.f32 %v3329, %v4391
        %v4554 = vmul.f32 %v3328, %v4398
        %v4555 = vmul.f32 %v3330, %v4405
        %v4556 = vmul.f32 %v3338, %v4062
        %v4557 = vmul.f32 %v3346, %v4069
        %v4558 = vmul.f32 %v3345, %v4076
        %v4559 = vmul.f32 %v3347, %v4083
        %v4560 = vmul.f32 %v3355, %v4090
        %v4561 = vmul.f32 %v3363, %v4097
        %v4562 = vmul.f32 %v3362, %v4104
        %v4563 = vmul.f32 %v3364, %v4111
        %v4564 = vmul.f32 %v3372, %v4118
        %v4565 = vmul.f32 %v3380, %v4125
        %v4566 = vmul.f32 %v3379, %v4132
        %v4567 = vmul.f32 %v3381, %v4139
        %v4568 = vmul.f32 %v3389, %v4146
        %v4569 = vmul.f32 %v3397, %v4153
        %v4570 = vmul.f32 %v3396, %v4160
        %v4571 = vmul.f32 %v3398, %v4167
        %v4572 = vmul.f32 %v3406, %v4174
        %v4573 = vmul.f32 %v3414, %v4181
        %v4574 = vmul.f32 %v3413, %v4188
        %v4575 = vmul.f32 %v3415, %v4195
        %v4576 = vmul.f32 %v3423, %v4202
        %v4577 = vmul.f32 %v3431, %v4209
        %v4578 = vmul.f32 %v3430, %v4216
        %v4579 = vmul.f32 %v3432, %v4223
        %v4580 = vmul.f32 %v3440, %v4230
        %v4581 = vmul.f32 %v3448, %v4237
        %v4582 = vmul.f32 %v3447, %v4244
        %v4583 = vmul.f32 %v3449, %v4251
        %v4584 = vmul.f32 %v3457, %v4258
        %v4585 = vmul.f32 %v3465, %v4265
        %v4586 = vmul.f32 %v3464, %v4272
        %v4587 = vmul.f32 %v3466, %v4279
        %v4588 = vmul.f32 %v3474, %v4286
        %v4589 = vmul.f32 %v3482, %v4293
        %v4590 = vmul.f32 %v3481, %v4300
        %v4591 = vmul.f32 %v3483, %v4307
        %v4592 = vmul.f32 %v3491, %v4314
        %v4593 = vmul.f32 %v3499, %v4321
        %v4594 = vmul.f32 %v3498, %v4328
        %v4595 = vmul.f32 %v3500, %v4335
        %v4596 = vmul.f32 %v3508, %v4342
        %v4597 = vmul.f32 %v3516, %v4349
        %v4598 = vmul.f32 %v3515, %v4356
        %v4599 = vmul.f32 %v3517, %v4363
        %v4600 = vmul.f32 %v3525, %v4370
        %v4601 = vmul.f32 %v3533, %v4377
        %v4602 = vmul.f32 %v3532, %v4384
        %v4603 = vmul.f32 %v3534, %v4391
        %v4604 = vmul.f32 %v3542, %v4398
        %v4605 = vmul.f32 %v3550, %v4405
        %v4606 = vmul.f32 %v3549, %v4062
        %v4607 = vmul.f32 %v3551, %v4069
        %v4608 = vmul.f32 %v3559, %v4076
        %v4609 = vmul.f32 %v3567, %v4083
        %v4610 = vmul.f32 %v3566, %v4090
        %v4611 = vmul.f32 %v3568, %v4097
        %v4612 = vmul.f32 %v3576, %v4104
        %v4613 = vmul.f32 %v3584, %v4111
        %v4614 = vmul.f32 %v3583, %v4118
        %v4615 = vmul.f32 %v3585, %v4125
        %v4616 = vmul.f32 %v3593, %v4132
        %v4617 = vmul.f32 %v3601, %v4139
        %v4618 = vmul.f32 %v3600, %v4146
        %v4619 = vmul.f32 %v3602, %v4153
        %v4620 = vmul.f32 %v3610, %v4160
        %v4621 = vmul.f32 %v3618, %v4167
        %v4622 = vmul.f32 %v3617, %v4174
        %v4623 = vmul.f32 %v3619, %v4181
        %v4624 = vmul.f32 %v3627, %v4188
        %v4625 = vmul.f32 %v3635, %v4195
        %v4626 = vmul.f32 %v3634, %v4202
        %v4627 = vmul.f32 %v3636, %v4209
        %v4628 = vmul.f32 %v3644, %v4216
        %v4629 = vmul.f32 %v3652, %v4223
        %v4630 = vmul.f32 %v3651, %v4230
        %v4631 = vmul.f32 %v3653, %v4237
        %v4632 = vmul.f32 %v3661, %v4244
        %v4633 = vmul.f32 %v3669, %v4251
        %v4634 = vmul.f32 %v3668, %v4258
        %v4635 = vmul.f32 %v3670, %v4265
        %v4636 = vmul.f32 %v3678, %v4272
        %v4637 = vmul.f32 %v3686, %v4279
        %v4638 = vmul.f32 %v3685, %v4286
        %v4639 = vmul.f32 %v3687, %v4293
        %v4640 = vmul.f32 %v3695, %v4300
        %v4641 = vmul.f32 %v3703, %v4307
        %v4642 = vmul.f32 %v3702, %v4314
        %v4643 = vmul.f32 %v3704, %v4321
        %v4644 = vmul.f32 %v3712, %v4328
        %v4645 = vmul.f32 %v3720, %v4335
        %v4646 = vmul.f32 %v3719, %v4342
        %v4647 = vmul.f32 %v3721, %v4349
        %v4648 = vmul.f32 %v3729, %v4356
        %v4649 = vmul.f32 %v3737, %v4363
        %v4650 = vmul.f32 %v3736, %v4370
        %v4651 = vmul.f32 %v3738, %v4377
        %v4652 = vmul.f32 %v3746, %v4384
        %v4653 = vmul.f32 %v3754, %v4391
        %v4654 = vmul.f32 %v3753, %v4398
        %v4655 = vmul.f32 %v3755, %v4405
        %v4656 = vld [vmem:[%s4] sm:$0xff]
        %v4657 = vld [vmem:[%s4 + $0x8] sm:$0xff]
        %v4658 = vld [vmem:[%s4 + $0x10] sm:$0xff]
        %v4659 = vld [vmem:[%s4 + $0x18] sm:$0xff]
        %v4660 = vld [vmem:[%s4 + $0x20] sm:$0xff]
        %v4661 = vld [vmem:[%s4 + $0x28] sm:$0xff]
        %v4662 = vld [vmem:[%s4 + $0x30] sm:$0xff]
        %v4663 = vld [vmem:[%s4 + $0x38] sm:$0xff]
        %v4664 = vld [vmem:[%s4 + $0x40] sm:$0xff]
        %v4665 = vld [vmem:[%s6] sm:$0xff]
        %v4666 = vld [vmem:[%s6 + $0x8] sm:$0xff]
        %v4667 = vld [vmem:[%s6 + $0x10] sm:$0xff]
        %vm4828 = vcmask 1040384
        %vm4829 = vcmask 1042434
        %vm4830 = vmor %vm4828, %vm4829
        %vm4831 = vcmask 1044484
        %vm4832 = vmor %vm4830, %vm4831
        %vm4833 = vcmask 1046534
        %vm4834 = vmor %vm4832, %vm4833
        %v4835 = vrot.slane %v4456, 7
        %v4836 = vrot.slane %v4835, 2
        %v4837 = vrot.slane %v4457, 7
        %v4838 = vsel %vm4834, %v4836, %v4837
        %v4839 = vrot.slane %v4837, 2
        %v4840 = vrot.slane %v4458, 7
        %v4841 = vsel %vm4834, %v4839, %v4840
        %v4842 = vrot.slane %v4840, 2
        %v4843 = vrot.slane %v4459, 7
        %v4844 = vsel %vm4834, %v4842, %v4843
        %v4845 = vrot.slane %v4843, 2
        %v4846 = vrot.slane %v4460, 7
        %v4847 = vsel %vm4834, %v4845, %v4846
        %v4848 = vrot.slane %v4461, 7
        %v4849 = vrot.slane %v4848, 2
        %v4850 = vrot.slane %v4462, 7
        %v4851 = vsel %vm4834, %v4849, %v4850
        %v4852 = vrot.slane %v4850, 2
        %v4853 = vrot.slane %v4463, 7
        %v4854 = vsel %vm4834, %v4852, %v4853
        %v4855 = vrot.slane %v4853, 2
        %v4856 = vrot.slane %v4464, 7
        %v4857 = vsel %vm4834, %v4855, %v4856
        %v4858 = vrot.slane %v4856, 2
        %v4859 = vrot.slane %v4465, 7
        %v4860 = vsel %vm4834, %v4858, %v4859
        %v4861 = vrot.slane %v4466, 7
        %v4862 = vrot.slane %v4861, 2
        %v4863 = vrot.slane %v4467, 7
        %v4864 = vsel %vm4834, %v4862, %v4863
        %v4865 = vrot.slane %v4863, 2
        %v4866 = vrot.slane %v4468, 7
        %v4867 = vsel %vm4834, %v4865, %v4866
        %v4868 = vrot.slane %v4866, 2
        %v4869 = vrot.slane %v4469, 7
        %v4870 = vsel %vm4834, %v4868, %v4869
        %v4871 = vrot.slane %v4869, 2
        %v4872 = vrot.slane %v4470, 7
        %v4873 = vsel %vm4834, %v4871, %v4872
        %v4874 = vrot.slane %v4471, 7
        %v4875 = vrot.slane %v4874, 2
        %v4876 = vrot.slane %v4472, 7
        %v4877 = vsel %vm4834, %v4875, %v4876
        %v4878 = vrot.slane %v4876, 2
        %v4879 = vrot.slane %v4473, 7
        %v4880 = vsel %vm4834, %v4878, %v4879
        %v4881 = vrot.slane %v4879, 2
        %v4882 = vrot.slane %v4474, 7
        %v4883 = vsel %vm4834, %v4881, %v4882
        %v4884 = vrot.slane %v4882, 2
        %v4885 = vrot.slane %v4475, 7
        %v4886 = vsel %vm4834, %v4884, %v4885
        %v4887 = vrot.slane %v4476, 7
        %v4888 = vrot.slane %v4887, 2
        %v4889 = vrot.slane %v4477, 7
        %v4890 = vsel %vm4834, %v4888, %v4889
        %v4891 = vrot.slane %v4889, 2
        %v4892 = vrot.slane %v4478, 7
        %v4893 = vsel %vm4834, %v4891, %v4892
        %v4894 = vrot.slane %v4892, 2
        %v4895 = vrot.slane %v4479, 7
        %v4896 = vsel %vm4834, %v4894, %v4895
        %v4897 = vrot.slane %v4895, 2
        %v4898 = vrot.slane %v4480, 7
        %v4899 = vsel %vm4834, %v4897, %v4898
        %v4900 = vrot.slane %v4481, 7
        %v4901 = vrot.slane %v4900, 2
        %v4902 = vrot.slane %v4482, 7
        %v4903 = vsel %vm4834, %v4901, %v4902
        %v4904 = vrot.slane %v4902, 2
        %v4905 = vrot.slane %v4483, 7
        %v4906 = vsel %vm4834, %v4904, %v4905
        %v4907 = vrot.slane %v4905, 2
        %v4908 = vrot.slane %v4484, 7
        %v4909 = vsel %vm4834, %v4907, %v4908
        %v4910 = vrot.slane %v4908, 2
        %v4911 = vrot.slane %v4485, 7
        %v4912 = vsel %vm4834, %v4910, %v4911
        %v4913 = vrot.slane %v4486, 7
        %v4914 = vrot.slane %v4913, 2
        %v4915 = vrot.slane %v4487, 7
        %v4916 = vsel %vm4834, %v4914, %v4915
        %v4917 = vrot.slane %v4915, 2
        %v4918 = vrot.slane %v4488, 7
        %v4919 = vsel %vm4834, %v4917, %v4918
        %v4920 = vrot.slane %v4918, 2
        %v4921 = vrot.slane %v4489, 7
        %v4922 = vsel %vm4834, %v4920, %v4921
        %v4923 = vrot.slane %v4921, 2
        %v4924 = vrot.slane %v4490, 7
        %v4925 = vsel %vm4834, %v4923, %v4924
        %v4926 = vrot.slane %v4491, 7
        %v4927 = vrot.slane %v4926, 2
        %v4928 = vrot.slane %v4492, 7
        %v4929 = vsel %vm4834, %v4927, %v4928
        %v4930 = vrot.slane %v4928, 2
        %v4931 = vrot.slane %v4493, 7
        %v4932 = vsel %vm4834, %v4930, %v4931
        %v4933 = vrot.slane %v4931, 2
        %v4934 = vrot.slane %v4494, 7
        %v4935 = vsel %vm4834, %v4933, %v4934
        %v4936 = vrot.slane %v4934, 2
        %v4937 = vrot.slane %v4495, 7
        %v4938 = vsel %vm4834, %v4936, %v4937
        %v4939 = vrot.slane %v4506, 7
        %v4940 = vrot.slane %v4939, 2
        %v4941 = vrot.slane %v4507, 7
        %v4942 = vsel %vm4834, %v4940, %v4941
        %v4943 = vrot.slane %v4941, 2
        %v4944 = vrot.slane %v4508, 7
        %v4945 = vsel %vm4834, %v4943, %v4944
        %v4946 = vrot.slane %v4944, 2
        %v4947 = vrot.slane %v4509, 7
        %v4948 = vsel %vm4834, %v4946, %v4947
        %v4949 = vrot.slane %v4947, 2
        %v4950 = vrot.slane %v4510, 7
        %v4951 = vsel %vm4834, %v4949, %v4950
        %v4952 = vrot.slane %v4511, 7
        %v4953 = vrot.slane %v4952, 2
        %v4954 = vrot.slane %v4512, 7
        %v4955 = vsel %vm4834, %v4953, %v4954
        %v4956 = vrot.slane %v4954, 2
        %v4957 = vrot.slane %v4513, 7
        %v4958 = vsel %vm4834, %v4956, %v4957
        %v4959 = vrot.slane %v4957, 2
        %v4960 = vrot.slane %v4514, 7
        %v4961 = vsel %vm4834, %v4959, %v4960
        %v4962 = vrot.slane %v4960, 2
        %v4963 = vrot.slane %v4515, 7
        %v4964 = vsel %vm4834, %v4962, %v4963
        %v4965 = vrot.slane %v4516, 7
        %v4966 = vrot.slane %v4965, 2
        %v4967 = vrot.slane %v4517, 7
        %v4968 = vsel %vm4834, %v4966, %v4967
        %v4969 = vrot.slane %v4967, 2
        %v4970 = vrot.slane %v4518, 7
        %v4971 = vsel %vm4834, %v4969, %v4970
        %v4972 = vrot.slane %v4970, 2
        %v4973 = vrot.slane %v4519, 7
        %v4974 = vsel %vm4834, %v4972, %v4973
        %v4975 = vrot.slane %v4973, 2
        %v4976 = vrot.slane %v4520, 7
        %v4977 = vsel %vm4834, %v4975, %v4976
        %v4978 = vrot.slane %v4521, 7
        %v4979 = vrot.slane %v4978, 2
        %v4980 = vrot.slane %v4522, 7
        %v4981 = vsel %vm4834, %v4979, %v4980
        %v4982 = vrot.slane %v4980, 2
        %v4983 = vrot.slane %v4523, 7
        %v4984 = vsel %vm4834, %v4982, %v4983
        %v4985 = vrot.slane %v4983, 2
        %v4986 = vrot.slane %v4524, 7
        %v4987 = vsel %vm4834, %v4985, %v4986
        %v4988 = vrot.slane %v4986, 2
        %v4989 = vrot.slane %v4525, 7
        %v4990 = vsel %vm4834, %v4988, %v4989
        %v4991 = vrot.slane %v4526, 7
        %v4992 = vrot.slane %v4991, 2
        %v4993 = vrot.slane %v4527, 7
        %v4994 = vsel %vm4834, %v4992, %v4993
        %v4995 = vrot.slane %v4993, 2
        %v4996 = vrot.slane %v4528, 7
        %v4997 = vsel %vm4834, %v4995, %v4996
        %v4998 = vrot.slane %v4996, 2
        %v4999 = vrot.slane %v4529, 7
        %v5000 = vsel %vm4834, %v4998, %v4999
        %v5001 = vrot.slane %v4999, 2
        %v5002 = vrot.slane %v4530, 7
        %v5003 = vsel %vm4834, %v5001, %v5002
        %v5004 = vrot.slane %v4531, 7
        %v5005 = vrot.slane %v5004, 2
        %v5006 = vrot.slane %v4532, 7
        %v5007 = vsel %vm4834, %v5005, %v5006
        %v5008 = vrot.slane %v5006, 2
        %v5009 = vrot.slane %v4533, 7
        %v5010 = vsel %vm4834, %v5008, %v5009
        %v5011 = vrot.slane %v5009, 2
        %v5012 = vrot.slane %v4534, 7
        %v5013 = vsel %vm4834, %v5011, %v5012
        %v5014 = vrot.slane %v5012, 2
        %v5015 = vrot.slane %v4535, 7
        %v5016 = vsel %vm4834, %v5014, %v5015
        %v5017 = vrot.slane %v4536, 7
        %v5018 = vrot.slane %v5017, 2
        %v5019 = vrot.slane %v4537, 7
        %v5020 = vsel %vm4834, %v5018, %v5019
        %v5021 = vrot.slane %v5019, 2
        %v5022 = vrot.slane %v4538, 7
        %v5023 = vsel %vm4834, %v5021, %v5022
        %v5024 = vrot.slane %v5022, 2
        %v5025 = vrot.slane %v4539, 7
        %v5026 = vsel %vm4834, %v5024, %v5025
        %v5027 = vrot.slane %v5025, 2
        %v5028 = vrot.slane %v4540, 7
        %v5029 = vsel %vm4834, %v5027, %v5028
        %v5030 = vrot.slane %v4541, 7
        %v5031 = vrot.slane %v5030, 2
        %v5032 = vrot.slane %v4542, 7
        %v5033 = vsel %vm4834, %v5031, %v5032
        %v5034 = vrot.slane %v5032, 2
        %v5035 = vrot.slane %v4543, 7
        %v5036 = vsel %vm4834, %v5034, %v5035
        %v5037 = vrot.slane %v5035, 2
        %v5038 = vrot.slane %v4544, 7
        %v5039 = vsel %vm4834, %v5037, %v5038
        %v5040 = vrot.slane %v5038, 2
        %v5041 = vrot.slane %v4545, 7
        %v5042 = vsel %vm4834, %v5040, %v5041
        %v5043 = vrot.slane %v4556, 7
        %v5044 = vrot.slane %v5043, 2
        %v5045 = vrot.slane %v4557, 7
        %v5046 = vsel %vm4834, %v5044, %v5045
        %v5047 = vrot.slane %v5045, 2
        %v5048 = vrot.slane %v4558, 7
        %v5049 = vsel %vm4834, %v5047, %v5048
        %v5050 = vrot.slane %v5048, 2
        %v5051 = vrot.slane %v4559, 7
        %v5052 = vsel %vm4834, %v5050, %v5051
        %v5053 = vrot.slane %v5051, 2
        %v5054 = vrot.slane %v4560, 7
        %v5055 = vsel %vm4834, %v5053, %v5054
        %v5056 = vrot.slane %v4561, 7
        %v5057 = vrot.slane %v5056, 2
        %v5058 = vrot.slane %v4562, 7
        %v5059 = vsel %vm4834, %v5057, %v5058
        %v5060 = vrot.slane %v5058, 2
        %v5061 = vrot.slane %v4563, 7
        %v5062 = vsel %vm4834, %v5060, %v5061
        %v5063 = vrot.slane %v5061, 2
        %v5064 = vrot.slane %v4564, 7
        %v5065 = vsel %vm4834, %v5063, %v5064
        %v5066 = vrot.slane %v5064, 2
        %v5067 = vrot.slane %v4565, 7
        %v5068 = vsel %vm4834, %v5066, %v5067
        %v5069 = vrot.slane %v4566, 7
        %v5070 = vrot.slane %v5069, 2
        %v5071 = vrot.slane %v4567, 7
        %v5072 = vsel %vm4834, %v5070, %v5071
        %v5073 = vrot.slane %v5071, 2
        %v5074 = vrot.slane %v4568, 7
        %v5075 = vsel %vm4834, %v5073, %v5074
        %v5076 = vrot.slane %v5074, 2
        %v5077 = vrot.slane %v4569, 7
        %v5078 = vsel %vm4834, %v5076, %v5077
        %v5079 = vrot.slane %v5077, 2
        %v5080 = vrot.slane %v4570, 7
        %v5081 = vsel %vm4834, %v5079, %v5080
        %v5082 = vrot.slane %v4571, 7
        %v5083 = vrot.slane %v5082, 2
        %v5084 = vrot.slane %v4572, 7
        %v5085 = vsel %vm4834, %v5083, %v5084
        %v5086 = vrot.slane %v5084, 2
        %v5087 = vrot.slane %v4573, 7
        %v5088 = vsel %vm4834, %v5086, %v5087
        %v5089 = vrot.slane %v5087, 2
        %v5090 = vrot.slane %v4574, 7
        %v5091 = vsel %vm4834, %v5089, %v5090
        %v5092 = vrot.slane %v5090, 2
        %v5093 = vrot.slane %v4575, 7
        %v5094 = vsel %vm4834, %v5092, %v5093
        %v5095 = vrot.slane %v4576, 7
        %v5096 = vrot.slane %v5095, 2
        %v5097 = vrot.slane %v4577, 7
        %v5098 = vsel %vm4834, %v5096, %v5097
        %v5099 = vrot.slane %v5097, 2
        %v5100 = vrot.slane %v4578, 7
        %v5101 = vsel %vm4834, %v5099, %v5100
        %v5102 = vrot.slane %v5100, 2
        %v5103 = vrot.slane %v4579, 7
        %v5104 = vsel %vm4834, %v5102, %v5103
        %v5105 = vrot.slane %v5103, 2
        %v5106 = vrot.slane %v4580, 7
        %v5107 = vsel %vm4834, %v5105, %v5106
        %v5108 = vrot.slane %v4581, 7
        %v5109 = vrot.slane %v5108, 2
        %v5110 = vrot.slane %v4582, 7
        %v5111 = vsel %vm4834, %v5109, %v5110
        %v5112 = vrot.slane %v5110, 2
        %v5113 = vrot.slane %v4583, 7
        %v5114 = vsel %vm4834, %v5112, %v5113
        %v5115 = vrot.slane %v5113, 2
        %v5116 = vrot.slane %v4584, 7
        %v5117 = vsel %vm4834, %v5115, %v5116
        %v5118 = vrot.slane %v5116, 2
        %v5119 = vrot.slane %v4585, 7
        %v5120 = vsel %vm4834, %v5118, %v5119
        %v5121 = vrot.slane %v4586, 7
        %v5122 = vrot.slane %v5121, 2
        %v5123 = vrot.slane %v4587, 7
        %v5124 = vsel %vm4834, %v5122, %v5123
        %v5125 = vrot.slane %v5123, 2
        %v5126 = vrot.slane %v4588, 7
        %v5127 = vsel %vm4834, %v5125, %v5126
        %v5128 = vrot.slane %v5126, 2
        %v5129 = vrot.slane %v4589, 7
        %v5130 = vsel %vm4834, %v5128, %v5129
        %v5131 = vrot.slane %v5129, 2
        %v5132 = vrot.slane %v4590, 7
        %v5133 = vsel %vm4834, %v5131, %v5132
        %v5134 = vrot.slane %v4591, 7
        %v5135 = vrot.slane %v5134, 2
        %v5136 = vrot.slane %v4592, 7
        %v5137 = vsel %vm4834, %v5135, %v5136
        %v5138 = vrot.slane %v5136, 2
        %v5139 = vrot.slane %v4593, 7
        %v5140 = vsel %vm4834, %v5138, %v5139
        %v5141 = vrot.slane %v5139, 2
        %v5142 = vrot.slane %v4594, 7
        %v5143 = vsel %vm4834, %v5141, %v5142
        %v5144 = vrot.slane %v5142, 2
        %v5145 = vrot.slane %v4595, 7
        %v5146 = vsel %vm4834, %v5144, %v5145
        %v5147 = vrot.slane %v4606, 7
        %v5148 = vrot.slane %v5147, 2
        %v5149 = vrot.slane %v4607, 7
        %v5150 = vsel %vm4834, %v5148, %v5149
        %v5151 = vrot.slane %v5149, 2
        %v5152 = vrot.slane %v4608, 7
        %v5153 = vsel %vm4834, %v5151, %v5152
        %v5154 = vrot.slane %v5152, 2
        %v5155 = vrot.slane %v4609, 7
        %v5156 = vsel %vm4834, %v5154, %v5155
        %v5157 = vrot.slane %v5155, 2
        %v5158 = vrot.slane %v4610, 7
        %v5159 = vsel %vm4834, %v5157, %v5158
        %v5160 = vrot.slane %v4611, 7
        %v5161 = vrot.slane %v5160, 2
        %v5162 = vrot.slane %v4612, 7
        %v5163 = vsel %vm4834, %v5161, %v5162
        %v5164 = vrot.slane %v5162, 2
        %v5165 = vrot.slane %v4613, 7
        %v5166 = vsel %vm4834, %v5164, %v5165
        %v5167 = vrot.slane %v5165, 2
        %v5168 = vrot.slane %v4614, 7
        %v5169 = vsel %vm4834, %v5167, %v5168
        %v5170 = vrot.slane %v5168, 2
        %v5171 = vrot.slane %v4615, 7
        %v5172 = vsel %vm4834, %v5170, %v5171
        %v5173 = vrot.slane %v4616, 7
        %v5174 = vrot.slane %v5173, 2
        %v5175 = vrot.slane %v4617, 7
        %v5176 = vsel %vm4834, %v5174, %v5175
        %v5177 = vrot.slane %v5175, 2
        %v5178 = vrot.slane %v4618, 7
        %v5179 = vsel %vm4834, %v5177, %v5178
        %v5180 = vrot.slane %v5178, 2
        %v5181 = vrot.slane %v4619, 7
        %v5182 = vsel %vm4834, %v5180, %v5181
        %v5183 = vrot.slane %v5181, 2
        %v5184 = vrot.slane %v4620, 7
        %v5185 = vsel %vm4834, %v5183, %v5184
        %v5186 = vrot.slane %v4621, 7
        %v5187 = vrot.slane %v5186, 2
        %v5188 = vrot.slane %v4622, 7
        %v5189 = vsel %vm4834, %v5187, %v5188
        %v5190 = vrot.slane %v5188, 2
        %v5191 = vrot.slane %v4623, 7
        %v5192 = vsel %vm4834, %v5190, %v5191
        %v5193 = vrot.slane %v5191, 2
        %v5194 = vrot.slane %v4624, 7
        %v5195 = vsel %vm4834, %v5193, %v5194
        %v5196 = vrot.slane %v5194, 2
        %v5197 = vrot.slane %v4625, 7
        %v5198 = vsel %vm4834, %v5196, %v5197
        %v5199 = vrot.slane %v4626, 7
        %v5200 = vrot.slane %v5199, 2
        %v5201 = vrot.slane %v4627, 7
        %v5202 = vsel %vm4834, %v5200, %v5201
        %v5203 = vrot.slane %v5201, 2
        %v5204 = vrot.slane %v4628, 7
        %v5205 = vsel %vm4834, %v5203, %v5204
        %v5206 = vrot.slane %v5204, 2
        %v5207 = vrot.slane %v4629, 7
        %v5208 = vsel %vm4834, %v5206, %v5207
        %v5209 = vrot.slane %v5207, 2
        %v5210 = vrot.slane %v4630, 7
        %v5211 = vsel %vm4834, %v5209, %v5210
        %v5212 = vrot.slane %v4631, 7
        %v5213 = vrot.slane %v5212, 2
        %v5214 = vrot.slane %v4632, 7
        %v5215 = vsel %vm4834, %v5213, %v5214
        %v5216 = vrot.slane %v5214, 2
        %v5217 = vrot.slane %v4633, 7
        %v5218 = vsel %vm4834, %v5216, %v5217
        %v5219 = vrot.slane %v5217, 2
        %v5220 = vrot.slane %v4634, 7
        %v5221 = vsel %vm4834, %v5219, %v5220
        %v5222 = vrot.slane %v5220, 2
        %v5223 = vrot.slane %v4635, 7
        %v5224 = vsel %vm4834, %v5222, %v5223
        %v5225 = vrot.slane %v4636, 7
        %v5226 = vrot.slane %v5225, 2
        %v5227 = vrot.slane %v4637, 7
        %v5228 = vsel %vm4834, %v5226, %v5227
        %v5229 = vrot.slane %v5227, 2
        %v5230 = vrot.slane %v4638, 7
        %v5231 = vsel %vm4834, %v5229, %v5230
        %v5232 = vrot.slane %v5230, 2
        %v5233 = vrot.slane %v4639, 7
        %v5234 = vsel %vm4834, %v5232, %v5233
        %v5235 = vrot.slane %v5233, 2
        %v5236 = vrot.slane %v4640, 7
        %v5237 = vsel %vm4834, %v5235, %v5236
        %v5238 = vrot.slane %v4641, 7
        %v5239 = vrot.slane %v5238, 2
        %v5240 = vrot.slane %v4642, 7
        %v5241 = vsel %vm4834, %v5239, %v5240
        %v5242 = vrot.slane %v5240, 2
        %v5243 = vrot.slane %v4643, 7
        %v5244 = vsel %vm4834, %v5242, %v5243
        %v5245 = vrot.slane %v5243, 2
        %v5246 = vrot.slane %v4644, 7
        %v5247 = vsel %vm4834, %v5245, %v5246
        %v5248 = vrot.slane %v5246, 2
        %v5249 = vrot.slane %v4645, 7
        %v5250 = vsel %vm4834, %v5248, %v5249
        %v5251 = vcombine.low %v4838, %v4841
        %v5252 = vcombine.low %v4844, %v4847
        %v5254 = vunpack.c.l.s4 1983009808
        %v5255 = vunpack.c.0.s8 %v5254
        %v5256 = vlaneseq
        %v5257 = vshrl.u32 %v5256, 7
        %v5258 = vsub.s32 %v5255, %v5257
        %v5259 = vrot.slane %v5251, %v5258
        %v5261 = vunpack.c.l.s4 1983009808
        %v5262 = vunpack.c.0.s8 %v5261
        %v5263 = vlaneseq
        %v5264 = vshrl.u32 %v5263, 7
        %v5265 = vsub.s32 %v5262, %v5264
        %v5266 = vrot.slane %v5252, %v5265
        %v5267 = vcombine.low %v5259, %v5266
        %v5268 = vcombine.low %v4851, %v4854
        %v5269 = vcombine.low %v4857, %v4860
        %v5271 = vunpack.c.l.s4 1983009808
        %v5272 = vunpack.c.0.s8 %v5271
        %v5273 = vlaneseq
        %v5274 = vshrl.u32 %v5273, 7
        %v5275 = vsub.s32 %v5272, %v5274
        %v5276 = vrot.slane %v5268, %v5275
        %v5278 = vunpack.c.l.s4 1983009808
        %v5279 = vunpack.c.0.s8 %v5278
        %v5280 = vlaneseq
        %v5281 = vshrl.u32 %v5280, 7
        %v5282 = vsub.s32 %v5279, %v5281
        %v5283 = vrot.slane %v5269, %v5282
        %v5284 = vcombine.low %v5276, %v5283
        %v5285 = vcombine.low %v4864, %v4867
        %v5286 = vcombine.low %v4870, %v4873
        %v5288 = vunpack.c.l.s4 1983009808
        %v5289 = vunpack.c.0.s8 %v5288
        %v5290 = vlaneseq
        %v5291 = vshrl.u32 %v5290, 7
        %v5292 = vsub.s32 %v5289, %v5291
        %v5293 = vrot.slane %v5285, %v5292
        %v5295 = vunpack.c.l.s4 1983009808
        %v5296 = vunpack.c.0.s8 %v5295
        %v5297 = vlaneseq
        %v5298 = vshrl.u32 %v5297, 7
        %v5299 = vsub.s32 %v5296, %v5298
        %v5300 = vrot.slane %v5286, %v5299
        %v5301 = vcombine.low %v5293, %v5300
        %v5302 = vcombine.low %v4877, %v4880
        %v5303 = vcombine.low %v4883, %v4886
        %v5305 = vunpack.c.l.s4 1983009808
        %v5306 = vunpack.c.0.s8 %v5305
        %v5307 = vlaneseq
        %v5308 = vshrl.u32 %v5307, 7
        %v5309 = vsub.s32 %v5306, %v5308
        %v5310 = vrot.slane %v5302, %v5309
        %v5312 = vunpack.c.l.s4 1983009808
        %v5313 = vunpack.c.0.s8 %v5312
        %v5314 = vlaneseq
        %v5315 = vshrl.u32 %v5314, 7
        %v5316 = vsub.s32 %v5313, %v5315
        %v5317 = vrot.slane %v5303, %v5316
        %v5318 = vcombine.low %v5310, %v5317
        %v5319 = vcombine.low %v4890, %v4893
        %v5320 = vcombine.low %v4896, %v4899
        %v5322 = vunpack.c.l.s4 1983009808
        %v5323 = vunpack.c.0.s8 %v5322
        %v5324 = vlaneseq
        %v5325 = vshrl.u32 %v5324, 7
        %v5326 = vsub.s32 %v5323, %v5325
        %v5327 = vrot.slane %v5319, %v5326
        %v5329 = vunpack.c.l.s4 1983009808
        %v5330 = vunpack.c.0.s8 %v5329
        %v5331 = vlaneseq
        %v5332 = vshrl.u32 %v5331, 7
        %v5333 = vsub.s32 %v5330, %v5332
        %v5334 = vrot.slane %v5320, %v5333
        %v5335 = vcombine.low %v5327, %v5334
        %v5336 = vcombine.low %v4903, %v4906
        %v5337 = vcombine.low %v4909, %v4912
        %v5339 = vunpack.c.l.s4 1983009808
        %v5340 = vunpack.c.0.s8 %v5339
        %v5341 = vlaneseq
        %v5342 = vshrl.u32 %v5341, 7
        %v5343 = vsub.s32 %v5340, %v5342
        %v5344 = vrot.slane %v5336, %v5343
        %v5346 = vunpack.c.l.s4 1983009808
        %v5347 = vunpack.c.0.s8 %v5346
        %v5348 = vlaneseq
        %v5349 = vshrl.u32 %v5348, 7
        %v5350 = vsub.s32 %v5347, %v5349
        %v5351 = vrot.slane %v5337, %v5350
        %v5352 = vcombine.low %v5344, %v5351
        %v5353 = vcombine.low %v4916, %v4919
        %v5354 = vcombine.low %v4922, %v4925
        %v5356 = vunpack.c.l.s4 1983009808
        %v5357 = vunpack.c.0.s8 %v5356
        %v5358 = vlaneseq
        %v5359 = vshrl.u32 %v5358, 7
        %v5360 = vsub.s32 %v5357, %v5359
        %v5361 = vrot.slane %v5353, %v5360
        %v5363 = vunpack.c.l.s4 1983009808
        %v5364 = vunpack.c.0.s8 %v5363
        %v5365 = vlaneseq
        %v5366 = vshrl.u32 %v5365, 7
        %v5367 = vsub.s32 %v5364, %v5366
        %v5368 = vrot.slane %v5354, %v5367
        %v5369 = vcombine.low %v5361, %v5368
        %v5370 = vcombine.low %v4929, %v4932
        %v5371 = vcombine.low %v4935, %v4938
        %v5373 = vunpack.c.l.s4 1983009808
        %v5374 = vunpack.c.0.s8 %v5373
        %v5375 = vlaneseq
        %v5376 = vshrl.u32 %v5375, 7
        %v5377 = vsub.s32 %v5374, %v5376
        %v5378 = vrot.slane %v5370, %v5377
        %v5380 = vunpack.c.l.s4 1983009808
        %v5381 = vunpack.c.0.s8 %v5380
        %v5382 = vlaneseq
        %v5383 = vshrl.u32 %v5382, 7
        %v5384 = vsub.s32 %v5381, %v5383
        %v5385 = vrot.slane %v5371, %v5384
        %v5386 = vcombine.low %v5378, %v5385
        %v5387 = vcombine.low %v4942, %v4945
        %v5388 = vcombine.low %v4948, %v4951
        %v5390 = vunpack.c.l.s4 1983009808
        %v5391 = vunpack.c.0.s8 %v5390
        %v5392 = vlaneseq
        %v5393 = vshrl.u32 %v5392, 7
        %v5394 = vsub.s32 %v5391, %v5393
        %v5395 = vrot.slane %v5387, %v5394
        %v5397 = vunpack.c.l.s4 1983009808
        %v5398 = vunpack.c.0.s8 %v5397
        %v5399 = vlaneseq
        %v5400 = vshrl.u32 %v5399, 7
        %v5401 = vsub.s32 %v5398, %v5400
        %v5402 = vrot.slane %v5388, %v5401
        %v5403 = vcombine.low %v5395, %v5402
        %v5404 = vcombine.low %v4955, %v4958
        %v5405 = vcombine.low %v4961, %v4964
        %v5407 = vunpack.c.l.s4 1983009808
        %v5408 = vunpack.c.0.s8 %v5407
        %v5409 = vlaneseq
        %v5410 = vshrl.u32 %v5409, 7
        %v5411 = vsub.s32 %v5408, %v5410
        %v5412 = vrot.slane %v5404, %v5411
        %v5414 = vunpack.c.l.s4 1983009808
        %v5415 = vunpack.c.0.s8 %v5414
        %v5416 = vlaneseq
        %v5417 = vshrl.u32 %v5416, 7
        %v5418 = vsub.s32 %v5415, %v5417
        %v5419 = vrot.slane %v5405, %v5418
        %v5420 = vcombine.low %v5412, %v5419
        %v5421 = vcombine.low %v4968, %v4971
        %v5422 = vcombine.low %v4974, %v4977
        %v5424 = vunpack.c.l.s4 1983009808
        %v5425 = vunpack.c.0.s8 %v5424
        %v5426 = vlaneseq
        %v5427 = vshrl.u32 %v5426, 7
        %v5428 = vsub.s32 %v5425, %v5427
        %v5429 = vrot.slane %v5421, %v5428
        %v5431 = vunpack.c.l.s4 1983009808
        %v5432 = vunpack.c.0.s8 %v5431
        %v5433 = vlaneseq
        %v5434 = vshrl.u32 %v5433, 7
        %v5435 = vsub.s32 %v5432, %v5434
        %v5436 = vrot.slane %v5422, %v5435
        %v5437 = vcombine.low %v5429, %v5436
        %v5438 = vcombine.low %v4981, %v4984
        %v5439 = vcombine.low %v4987, %v4990
        %v5441 = vunpack.c.l.s4 1983009808
        %v5442 = vunpack.c.0.s8 %v5441
        %v5443 = vlaneseq
        %v5444 = vshrl.u32 %v5443, 7
        %v5445 = vsub.s32 %v5442, %v5444
        %v5446 = vrot.slane %v5438, %v5445
        %v5448 = vunpack.c.l.s4 1983009808
        %v5449 = vunpack.c.0.s8 %v5448
        %v5450 = vlaneseq
        %v5451 = vshrl.u32 %v5450, 7
        %v5452 = vsub.s32 %v5449, %v5451
        %v5453 = vrot.slane %v5439, %v5452
        %v5454 = vcombine.low %v5446, %v5453
        %v5455 = vcombine.low %v4994, %v4997
        %v5456 = vcombine.low %v5000, %v5003
        %v5458 = vunpack.c.l.s4 1983009808
        %v5459 = vunpack.c.0.s8 %v5458
        %v5460 = vlaneseq
        %v5461 = vshrl.u32 %v5460, 7
        %v5462 = vsub.s32 %v5459, %v5461
        %v5463 = vrot.slane %v5455, %v5462
        %v5465 = vunpack.c.l.s4 1983009808
        %v5466 = vunpack.c.0.s8 %v5465
        %v5467 = vlaneseq
        %v5468 = vshrl.u32 %v5467, 7
        %v5469 = vsub.s32 %v5466, %v5468
        %v5470 = vrot.slane %v5456, %v5469
        %v5471 = vcombine.low %v5463, %v5470
        %v5472 = vcombine.low %v5007, %v5010
        %v5473 = vcombine.low %v5013, %v5016
        %v5475 = vunpack.c.l.s4 1983009808
        %v5476 = vunpack.c.0.s8 %v5475
        %v5477 = vlaneseq
        %v5478 = vshrl.u32 %v5477, 7
        %v5479 = vsub.s32 %v5476, %v5478
        %v5480 = vrot.slane %v5472, %v5479
        %v5482 = vunpack.c.l.s4 1983009808
        %v5483 = vunpack.c.0.s8 %v5482
        %v5484 = vlaneseq
        %v5485 = vshrl.u32 %v5484, 7
        %v5486 = vsub.s32 %v5483, %v5485
        %v5487 = vrot.slane %v5473, %v5486
        %v5488 = vcombine.low %v5480, %v5487
        %v5489 = vcombine.low %v5020, %v5023
        %v5490 = vcombine.low %v5026, %v5029
        %v5492 = vunpack.c.l.s4 1983009808
        %v5493 = vunpack.c.0.s8 %v5492
        %v5494 = vlaneseq
        %v5495 = vshrl.u32 %v5494, 7
        %v5496 = vsub.s32 %v5493, %v5495
        %v5497 = vrot.slane %v5489, %v5496
        %v5499 = vunpack.c.l.s4 1983009808
        %v5500 = vunpack.c.0.s8 %v5499
        %v5501 = vlaneseq
        %v5502 = vshrl.u32 %v5501, 7
        %v5503 = vsub.s32 %v5500, %v5502
        %v5504 = vrot.slane %v5490, %v5503
        %v5505 = vcombine.low %v5497, %v5504
        %v5506 = vcombine.low %v5033, %v5036
        %v5507 = vcombine.low %v5039, %v5042
        %v5509 = vunpack.c.l.s4 1983009808
        %v5510 = vunpack.c.0.s8 %v5509
        %v5511 = vlaneseq
        %v5512 = vshrl.u32 %v5511, 7
        %v5513 = vsub.s32 %v5510, %v5512
        %v5514 = vrot.slane %v5506, %v5513
        %v5516 = vunpack.c.l.s4 1983009808
        %v5517 = vunpack.c.0.s8 %v5516
        %v5518 = vlaneseq
        %v5519 = vshrl.u32 %v5518, 7
        %v5520 = vsub.s32 %v5517, %v5519
        %v5521 = vrot.slane %v5507, %v5520
        %v5522 = vcombine.low %v5514, %v5521
        %v5523 = vcombine.low %v5046, %v5049
        %v5524 = vcombine.low %v5052, %v5055
        %v5526 = vunpack.c.l.s4 1983009808
        %v5527 = vunpack.c.0.s8 %v5526
        %v5528 = vlaneseq
        %v5529 = vshrl.u32 %v5528, 7
        %v5530 = vsub.s32 %v5527, %v5529
        %v5531 = vrot.slane %v5523, %v5530
        %v5533 = vunpack.c.l.s4 1983009808
        %v5534 = vunpack.c.0.s8 %v5533
        %v5535 = vlaneseq
        %v5536 = vshrl.u32 %v5535, 7
        %v5537 = vsub.s32 %v5534, %v5536
        %v5538 = vrot.slane %v5524, %v5537
        %v5539 = vcombine.low %v5531, %v5538
        %v5540 = vcombine.low %v5059, %v5062
        %v5541 = vcombine.low %v5065, %v5068
        %v5543 = vunpack.c.l.s4 1983009808
        %v5544 = vunpack.c.0.s8 %v5543
        %v5545 = vlaneseq
        %v5546 = vshrl.u32 %v5545, 7
        %v5547 = vsub.s32 %v5544, %v5546
        %v5548 = vrot.slane %v5540, %v5547
        %v5550 = vunpack.c.l.s4 1983009808
        %v5551 = vunpack.c.0.s8 %v5550
        %v5552 = vlaneseq
        %v5553 = vshrl.u32 %v5552, 7
        %v5554 = vsub.s32 %v5551, %v5553
        %v5555 = vrot.slane %v5541, %v5554
        %v5556 = vcombine.low %v5548, %v5555
        %v5557 = vcombine.low %v5072, %v5075
        %v5558 = vcombine.low %v5078, %v5081
        %v5560 = vunpack.c.l.s4 1983009808
        %v5561 = vunpack.c.0.s8 %v5560
        %v5562 = vlaneseq
        %v5563 = vshrl.u32 %v5562, 7
        %v5564 = vsub.s32 %v5561, %v5563
        %v5565 = vrot.slane %v5557, %v5564
        %v5567 = vunpack.c.l.s4 1983009808
        %v5568 = vunpack.c.0.s8 %v5567
        %v5569 = vlaneseq
        %v5570 = vshrl.u32 %v5569, 7
        %v5571 = vsub.s32 %v5568, %v5570
        %v5572 = vrot.slane %v5558, %v5571
        %v5573 = vcombine.low %v5565, %v5572
        %v5574 = vcombine.low %v5085, %v5088
        %v5575 = vcombine.low %v5091, %v5094
        %v5577 = vunpack.c.l.s4 1983009808
        %v5578 = vunpack.c.0.s8 %v5577
        %v5579 = vlaneseq
        %v5580 = vshrl.u32 %v5579, 7
        %v5581 = vsub.s32 %v5578, %v5580
        %v5582 = vrot.slane %v5574, %v5581
        %v5584 = vunpack.c.l.s4 1983009808
        %v5585 = vunpack.c.0.s8 %v5584
        %v5586 = vlaneseq
        %v5587 = vshrl.u32 %v5586, 7
        %v5588 = vsub.s32 %v5585, %v5587
        %v5589 = vrot.slane %v5575, %v5588
        %v5590 = vcombine.low %v5582, %v5589
        %v5591 = vcombine.low %v5098, %v5101
        %v5592 = vcombine.low %v5104, %v5107
        %v5594 = vunpack.c.l.s4 1983009808
        %v5595 = vunpack.c.0.s8 %v5594
        %v5596 = vlaneseq
        %v5597 = vshrl.u32 %v5596, 7
        %v5598 = vsub.s32 %v5595, %v5597
        %v5599 = vrot.slane %v5591, %v5598
        %v5601 = vunpack.c.l.s4 1983009808
        %v5602 = vunpack.c.0.s8 %v5601
        %v5603 = vlaneseq
        %v5604 = vshrl.u32 %v5603, 7
        %v5605 = vsub.s32 %v5602, %v5604
        %v5606 = vrot.slane %v5592, %v5605
        %v5607 = vcombine.low %v5599, %v5606
        %v5608 = vcombine.low %v5111, %v5114
        %v5609 = vcombine.low %v5117, %v5120
        %v5611 = vunpack.c.l.s4 1983009808
        %v5612 = vunpack.c.0.s8 %v5611
        %v5613 = vlaneseq
        %v5614 = vshrl.u32 %v5613, 7
        %v5615 = vsub.s32 %v5612, %v5614
        %v5616 = vrot.slane %v5608, %v5615
        %v5618 = vunpack.c.l.s4 1983009808
        %v5619 = vunpack.c.0.s8 %v5618
        %v5620 = vlaneseq
        %v5621 = vshrl.u32 %v5620, 7
        %v5622 = vsub.s32 %v5619, %v5621
        %v5623 = vrot.slane %v5609, %v5622
        %v5624 = vcombine.low %v5616, %v5623
        %v5625 = vcombine.low %v5124, %v5127
        %v5626 = vcombine.low %v5130, %v5133
        %v5628 = vunpack.c.l.s4 1983009808
        %v5629 = vunpack.c.0.s8 %v5628
        %v5630 = vlaneseq
        %v5631 = vshrl.u32 %v5630, 7
        %v5632 = vsub.s32 %v5629, %v5631
        %v5633 = vrot.slane %v5625, %v5632
        %v5635 = vunpack.c.l.s4 1983009808
        %v5636 = vunpack.c.0.s8 %v5635
        %v5637 = vlaneseq
        %v5638 = vshrl.u32 %v5637, 7
        %v5639 = vsub.s32 %v5636, %v5638
        %v5640 = vrot.slane %v5626, %v5639
        %v5641 = vcombine.low %v5633, %v5640
        %v5642 = vcombine.low %v5137, %v5140
        %v5643 = vcombine.low %v5143, %v5146
        %v5645 = vunpack.c.l.s4 1983009808
        %v5646 = vunpack.c.0.s8 %v5645
        %v5647 = vlaneseq
        %v5648 = vshrl.u32 %v5647, 7
        %v5649 = vsub.s32 %v5646, %v5648
        %v5650 = vrot.slane %v5642, %v5649
        %v5652 = vunpack.c.l.s4 1983009808
        %v5653 = vunpack.c.0.s8 %v5652
        %v5654 = vlaneseq
        %v5655 = vshrl.u32 %v5654, 7
        %v5656 = vsub.s32 %v5653, %v5655
        %v5657 = vrot.slane %v5643, %v5656
        %v5658 = vcombine.low %v5650, %v5657
        %v5659 = vcombine.low %v5150, %v5153
        %v5660 = vcombine.low %v5156, %v5159
        %v5662 = vunpack.c.l.s4 1983009808
        %v5663 = vunpack.c.0.s8 %v5662
        %v5664 = vlaneseq
        %v5665 = vshrl.u32 %v5664, 7
        %v5666 = vsub.s32 %v5663, %v5665
        %v5667 = vrot.slane %v5659, %v5666
        %v5669 = vunpack.c.l.s4 1983009808
        %v5670 = vunpack.c.0.s8 %v5669
        %v5671 = vlaneseq
        %v5672 = vshrl.u32 %v5671, 7
        %v5673 = vsub.s32 %v5670, %v5672
        %v5674 = vrot.slane %v5660, %v5673
        %v5675 = vcombine.low %v5667, %v5674
        %v5676 = vcombine.low %v5163, %v5166
        %v5677 = vcombine.low %v5169, %v5172
        %v5679 = vunpack.c.l.s4 1983009808
        %v5680 = vunpack.c.0.s8 %v5679
        %v5681 = vlaneseq
        %v5682 = vshrl.u32 %v5681, 7
        %v5683 = vsub.s32 %v5680, %v5682
        %v5684 = vrot.slane %v5676, %v5683
        %v5686 = vunpack.c.l.s4 1983009808
        %v5687 = vunpack.c.0.s8 %v5686
        %v5688 = vlaneseq
        %v5689 = vshrl.u32 %v5688, 7
        %v5690 = vsub.s32 %v5687, %v5689
        %v5691 = vrot.slane %v5677, %v5690
        %v5692 = vcombine.low %v5684, %v5691
        %v5693 = vcombine.low %v5176, %v5179
        %v5694 = vcombine.low %v5182, %v5185
        %v5696 = vunpack.c.l.s4 1983009808
        %v5697 = vunpack.c.0.s8 %v5696
        %v5698 = vlaneseq
        %v5699 = vshrl.u32 %v5698, 7
        %v5700 = vsub.s32 %v5697, %v5699
        %v5701 = vrot.slane %v5693, %v5700
        %v5703 = vunpack.c.l.s4 1983009808
        %v5704 = vunpack.c.0.s8 %v5703
        %v5705 = vlaneseq
        %v5706 = vshrl.u32 %v5705, 7
        %v5707 = vsub.s32 %v5704, %v5706
        %v5708 = vrot.slane %v5694, %v5707
        %v5709 = vcombine.low %v5701, %v5708
        %v5710 = vcombine.low %v5189, %v5192
        %v5711 = vcombine.low %v5195, %v5198
        %v5713 = vunpack.c.l.s4 1983009808
        %v5714 = vunpack.c.0.s8 %v5713
        %v5715 = vlaneseq
        %v5716 = vshrl.u32 %v5715, 7
        %v5717 = vsub.s32 %v5714, %v5716
        %v5718 = vrot.slane %v5710, %v5717
        %v5720 = vunpack.c.l.s4 1983009808
        %v5721 = vunpack.c.0.s8 %v5720
        %v5722 = vlaneseq
        %v5723 = vshrl.u32 %v5722, 7
        %v5724 = vsub.s32 %v5721, %v5723
        %v5725 = vrot.slane %v5711, %v5724
        %v5726 = vcombine.low %v5718, %v5725
        %v5727 = vcombine.low %v5202, %v5205
        %v5728 = vcombine.low %v5208, %v5211
        %v5730 = vunpack.c.l.s4 1983009808
        %v5731 = vunpack.c.0.s8 %v5730
        %v5732 = vlaneseq
        %v5733 = vshrl.u32 %v5732, 7
        %v5734 = vsub.s32 %v5731, %v5733
        %v5735 = vrot.slane %v5727, %v5734
        %v5737 = vunpack.c.l.s4 1983009808
        %v5738 = vunpack.c.0.s8 %v5737
        %v5739 = vlaneseq
        %v5740 = vshrl.u32 %v5739, 7
        %v5741 = vsub.s32 %v5738, %v5740
        %v5742 = vrot.slane %v5728, %v5741
        %v5743 = vcombine.low %v5735, %v5742
        %v5744 = vcombine.low %v5215, %v5218
        %v5745 = vcombine.low %v5221, %v5224
        %v5747 = vunpack.c.l.s4 1983009808
        %v5748 = vunpack.c.0.s8 %v5747
        %v5749 = vlaneseq
        %v5750 = vshrl.u32 %v5749, 7
        %v5751 = vsub.s32 %v5748, %v5750
        %v5752 = vrot.slane %v5744, %v5751
        %v5754 = vunpack.c.l.s4 1983009808
        %v5755 = vunpack.c.0.s8 %v5754
        %v5756 = vlaneseq
        %v5757 = vshrl.u32 %v5756, 7
        %v5758 = vsub.s32 %v5755, %v5757
        %v5759 = vrot.slane %v5745, %v5758
        %v5760 = vcombine.low %v5752, %v5759
        %v5761 = vcombine.low %v5228, %v5231
        %v5762 = vcombine.low %v5234, %v5237
        %v5764 = vunpack.c.l.s4 1983009808
        %v5765 = vunpack.c.0.s8 %v5764
        %v5766 = vlaneseq
        %v5767 = vshrl.u32 %v5766, 7
        %v5768 = vsub.s32 %v5765, %v5767
        %v5769 = vrot.slane %v5761, %v5768
        %v5771 = vunpack.c.l.s4 1983009808
        %v5772 = vunpack.c.0.s8 %v5771
        %v5773 = vlaneseq
        %v5774 = vshrl.u32 %v5773, 7
        %v5775 = vsub.s32 %v5772, %v5774
        %v5776 = vrot.slane %v5762, %v5775
        %v5777 = vcombine.low %v5769, %v5776
        %v5778 = vcombine.low %v5241, %v5244
        %v5779 = vcombine.low %v5247, %v5250
        %v5781 = vunpack.c.l.s4 1983009808
        %v5782 = vunpack.c.0.s8 %v5781
        %v5783 = vlaneseq
        %v5784 = vshrl.u32 %v5783, 7
        %v5785 = vsub.s32 %v5782, %v5784
        %v5786 = vrot.slane %v5778, %v5785
        %v5788 = vunpack.c.l.s4 1983009808
        %v5789 = vunpack.c.0.s8 %v5788
        %v5790 = vlaneseq
        %v5791 = vshrl.u32 %v5790, 7
        %v5792 = vsub.s32 %v5789, %v5791
        %v5793 = vrot.slane %v5779, %v5792
        %v5794 = vcombine.low %v5786, %v5793
        %v5795 = vsel %vm2390, %v5267, 0
        %v5797 = vsel %vm2390, %v5284, 0
        %v5799 = vsel %vm2390, %v5301, 0
        %v5801 = vsel %vm2390, %v5318, 0
        %v5803 = vsel %vm2390, %v5335, 0
        %v5805 = vsel %vm2390, %v5352, 0
        %v5807 = vsel %vm2390, %v5369, 0
        %v5809 = vsel %vm2390, %v5386, 0
        %v5811 = vsel %vm2390, %v5403, 0
        %v5813 = vsel %vm2390, %v5420, 0
        %v5815 = vsel %vm2390, %v5437, 0
        %v5817 = vsel %vm2390, %v5454, 0
        %v5819 = vsel %vm2390, %v5471, 0
        %v5821 = vsel %vm2390, %v5488, 0
        %v5823 = vsel %vm2390, %v5505, 0
        %v5825 = vsel %vm2390, %v5522, 0
        %v5827 = vsel %vm2390, %v5539, 0
        %v5829 = vsel %vm2390, %v5556, 0
        %v5831 = vsel %vm2390, %v5573, 0
        %v5833 = vsel %vm2390, %v5590, 0
        %v5835 = vsel %vm2390, %v5607, 0
        %v5837 = vsel %vm2390, %v5624, 0
        %v5839 = vsel %vm2390, %v5641, 0
        %v5841 = vsel %vm2390, %v5658, 0
        %v5843 = vsel %vm2390, %v5675, 0
        %v5845 = vsel %vm2390, %v5692, 0
        %v5847 = vsel %vm2390, %v5709, 0
        %v5849 = vsel %vm2390, %v5726, 0
        %v5851 = vsel %vm2390, %v5743, 0
        %v5853 = vsel %vm2390, %v5760, 0
        %v5855 = vsel %vm2390, %v5777, 0
        %v5857 = vsel %vm2390, %v5794, 0
        %5859 = vmatprep.subr.mxu0 0.0
        %5860 = vmatpush1.msra.mxu0 %v4657
        %5861 = vmatprep.subr.mxu0 0.0
        %5862 = vmatpush1.msra.mxu0 0.0
        %5863 = vmatprep.subr.mxu0 0.0
        %5864 = vmatpush1.msra.mxu0 0.0
        %5865 = vmatprep.subr.mxu0 0.0
        %5866 = vmatpush1.msra.mxu0 0.0
        %5867 = vmatprep.subr.mxu0 0.0
        %5868 = vmatpush1.msra.mxu0 0.0
        %5869 = vmatprep.subr.mxu0 0.0
        %5870 = vmatpush1.msra.mxu0 0.0
        %5871 = vmatprep.subr.mxu0 0.0
        %5872 = vmatpush1.msra.mxu0 0.0
        %5873 = vmatprep.subr.mxu0 0.0
        %5874 = vmatpush1.msra.mxu0 0.0
        %5875 = vmatprep.subr.mxu0 0.0
        %5876 = vmatpush1.msra.mxu0 0.0
        %5877 = vmatprep.subr.mxu0 0.0
        %5878 = vmatpush1.msra.mxu0 0.0
        %5879 = vmatprep.subr.mxu0 0.0
        %5880 = vmatpush1.msra.mxu0 0.0
        %5881 = vmatprep.subr.mxu0 0.0
        %5882 = vmatpush1.msra.mxu0 0.0
        %5883 = vmatprep.subr.mxu0 0.0
        %5884 = vmatpush1.msra.mxu0 0.0
        %5885 = vmatprep.subr.mxu0 0.0
        %5886 = vmatpush1.msra.mxu0 0.0
        %5887 = vmatprep.subr.mxu0 0.0
        %5888 = vmatpush1.msra.mxu0 0.0
        %5889 = vmatprep.subr.mxu0 0.0
        %5890 = vmatpush1.msra.mxu0 0.0
        %5891 = vmatprep.subr.mxu0 0.0
        %5892 = vmatpush1.msra.mxu0 0.0
        %5893 = vmatprep.subr.mxu0 0.0
        %5894 = vmatpush1.msra.mxu0 0.0
        %5895 = vmatprep.subr.mxu0 0.0
        %5896 = vmatpush1.msra.mxu0 0.0
        %5897 = vmatprep.subr.mxu0 0.0
        %5898 = vmatpush1.msra.mxu0 0.0
        %5899 = vmatprep.subr.mxu0 0.0
        %5900 = vmatpush1.msra.mxu0 0.0
        %5901 = vmatprep.subr.mxu0 0.0
        %5902 = vmatpush1.msra.mxu0 0.0
        %5903 = vmatprep.subr.mxu0 0.0
        %5904 = vmatpush1.msra.mxu0 0.0
        %5905 = vmatprep.subr.mxu0 0.0
        %5906 = vmatpush1.msra.mxu0 0.0
        %5907 = vmatprep.subr.mxu0 0.0
        %5908 = vmatpush1.msra.mxu0 0.0
        %5909 = vmatprep.subr.mxu0 0.0
        %5910 = vmatpush1.msra.mxu0 0.0
        %5911 = vmatprep.subr.mxu0 0.0
        %5912 = vmatpush1.msra.mxu0 0.0
        %5913 = vmatprep.subr.mxu0 0.0
        %5914 = vmatpush1.msra.mxu0 0.0
        %5915 = vmatprep.subr.mxu0 0.0
        %5916 = vmatpush1.msra.mxu0 0.0
        %5917 = vmatprep.subr.mxu0 0.0
        %5918 = vmatpush1.msra.mxu0 0.0
        %5919 = vmatprep.subr.mxu0 0.0
        %5920 = vmatpush1.msra.mxu0 0.0
        %5921 = vmatprep.subr.mxu0 0.0
        %5922 = vmatpush1.msra.mxu0 0.0
        %5923 = vmatprep.mubr.f32.mxu0 0.0
        %5924 = vmatmul.mubr.f32.gmra.mrb[0].mxu0 %v5795
        %v5925 = vpop.f32.mrb[0].mxu0
        %v5926 = vadd.f32 0.0, %v5925
        %v5927 = vpop.f32.mrb[0].mxu0
        %5928 = vmatprep.mubr.f32.mxu0 0.0
        %5929 = vmatmul.mubr.f32.gmra.mrb[0].mxu0 %v5797
        %v5930 = vpop.f32.mrb[0].mxu0
        %v5931 = vadd.f32 0.0, %v5930
        %v5932 = vpop.f32.mrb[0].mxu0
        %5933 = vmatprep.mubr.f32.mxu0 0.0
        %5934 = vmatmul.mubr.f32.gmra.mrb[0].mxu0 %v5799
        %v5935 = vpop.f32.mrb[0].mxu0
        %v5936 = vadd.f32 0.0, %v5935
        %v5937 = vpop.f32.mrb[0].mxu0
        %5938 = vmatprep.mubr.f32.mxu0 0.0
        %5939 = vmatmul.mubr.f32.gmra.mrb[0].mxu0 %v5801
        %v5940 = vpop.f32.mrb[0].mxu0
        %v5941 = vadd.f32 0.0, %v5940
        %v5942 = vpop.f32.mrb[0].mxu0
        %5943 = vmatprep.mubr.f32.mxu0 0.0
        %5944 = vmatmul.mubr.f32.gmra.mrb[0].mxu0 %v5803
        %v5945 = vpop.f32.mrb[0].mxu0
        %v5946 = vadd.f32 0.0, %v5945
        %v5947 = vpop.f32.mrb[0].mxu0
        %5948 = vmatprep.mubr.f32.mxu0 0.0
        %5949 = vmatmul.mubr.f32.gmra.mrb[0].mxu0 %v5805
        %v5950 = vpop.f32.mrb[0].mxu0
        %v5951 = vadd.f32 0.0, %v5950
        %v5952 = vpop.f32.mrb[0].mxu0
        %5953 = vmatprep.mubr.f32.mxu0 0.0
        %5954 = vmatmul.mubr.f32.gmra.mrb[0].mxu0 %v5807
        %v5955 = vpop.f32.mrb[0].mxu0
        %v5956 = vadd.f32 0.0, %v5955
        %v5957 = vpop.f32.mrb[0].mxu0
        %5958 = vmatprep.mubr.f32.mxu0 0.0
        %5959 = vmatmul.mubr.f32.gmra.mrb[0].mxu0 %v5809
        %v5960 = vpop.f32.mrb[0].mxu0
        %v5961 = vadd.f32 0.0, %v5960
        %v5962 = vpop.f32.mrb[0].mxu0
        %5963 = vmatprep.mubr.f32.mxu0 0.0
        %5964 = vmatmul.mubr.f32.gmra.mrb[0].mxu0 %v5811
        %v5965 = vpop.f32.mrb[0].mxu0
        %v5966 = vadd.f32 0.0, %v5965
        %v5967 = vpop.f32.mrb[0].mxu0
        %5968 = vmatprep.mubr.f32.mxu0 0.0
        %5969 = vmatmul.mubr.f32.gmra.mrb[0].mxu0 %v5813
        %v5970 = vpop.f32.mrb[0].mxu0
        %v5971 = vadd.f32 0.0, %v5970
        %v5972 = vpop.f32.mrb[0].mxu0
        %5973 = vmatprep.mubr.f32.mxu0 0.0
        %5974 = vmatmul.mubr.f32.gmra.mrb[0].mxu0 %v5815
        %v5975 = vpop.f32.mrb[0].mxu0
        %v5976 = vadd.f32 0.0, %v5975
        %v5977 = vpop.f32.mrb[0].mxu0
        %5978 = vmatprep.mubr.f32.mxu0 0.0
        %5979 = vmatmul.mubr.f32.gmra.mrb[0].mxu0 %v5817
        %v5980 = vpop.f32.mrb[0].mxu0
        %v5981 = vadd.f32 0.0, %v5980
        %v5982 = vpop.f32.mrb[0].mxu0
        %5983 = vmatprep.mubr.f32.mxu0 0.0
        %5984 = vmatmul.mubr.f32.gmra.mrb[0].mxu0 %v5819
        %v5985 = vpop.f32.mrb[0].mxu0
        %v5986 = vadd.f32 0.0, %v5985
        %v5987 = vpop.f32.mrb[0].mxu0
        %5988 = vmatprep.mubr.f32.mxu0 0.0
        %5989 = vmatmul.mubr.f32.gmra.mrb[0].mxu0 %v5821
        %v5990 = vpop.f32.mrb[0].mxu0
        %v5991 = vadd.f32 0.0, %v5990
        %v5992 = vpop.f32.mrb[0].mxu0
        %5993 = vmatprep.mubr.f32.mxu0 0.0
        %5994 = vmatmul.mubr.f32.gmra.mrb[0].mxu0 %v5823
        %v5995 = vpop.f32.mrb[0].mxu0
        %v5996 = vadd.f32 0.0, %v5995
        %v5997 = vpop.f32.mrb[0].mxu0
        %5998 = vmatprep.mubr.f32.mxu0 0.0
        %5999 = vmatmul.mubr.f32.gmra.mrb[0].mxu0 %v5825
        %v6000 = vpop.f32.mrb[0].mxu0
        %v6001 = vadd.f32 0.0, %v6000
        %v6002 = vpop.f32.mrb[0].mxu0
        %6003 = vmatprep.mubr.f32.mxu0 0.0
        %6004 = vmatmul.mubr.f32.gmra.mrb[0].mxu0 %v5827
        %v6005 = vpop.f32.mrb[0].mxu0
        %v6006 = vadd.f32 0.0, %v6005
        %v6007 = vpop.f32.mrb[0].mxu0
        %6008 = vmatprep.mubr.f32.mxu0 0.0
        %6009 = vmatmul.mubr.f32.gmra.mrb[0].mxu0 %v5829
        %v6010 = vpop.f32.mrb[0].mxu0
        %v6011 = vadd.f32 0.0, %v6010
        %v6012 = vpop.f32.mrb[0].mxu0
        %6013 = vmatprep.mubr.f32.mxu0 0.0
        %6014 = vmatmul.mubr.f32.gmra.mrb[0].mxu0 %v5831
        %v6015 = vpop.f32.mrb[0].mxu0
        %v6016 = vadd.f32 0.0, %v6015
        %v6017 = vpop.f32.mrb[0].mxu0
        %6018 = vmatprep.mubr.f32.mxu0 0.0
        %6019 = vmatmul.mubr.f32.gmra.mrb[0].mxu0 %v5833
        %v6020 = vpop.f32.mrb[0].mxu0
        %v6021 = vadd.f32 0.0, %v6020
        %v6022 = vpop.f32.mrb[0].mxu0
        %6023 = vmatprep.mubr.f32.mxu0 0.0
        %6024 = vmatmul.mubr.f32.gmra.mrb[0].mxu0 %v5835
        %v6025 = vpop.f32.mrb[0].mxu0
        %v6026 = vadd.f32 0.0, %v6025
        %v6027 = vpop.f32.mrb[0].mxu0
        %6028 = vmatprep.mubr.f32.mxu0 0.0
        %6029 = vmatmul.mubr.f32.gmra.mrb[0].mxu0 %v5837
        %v6030 = vpop.f32.mrb[0].mxu0
        %v6031 = vadd.f32 0.0, %v6030
        %v6032 = vpop.f32.mrb[0].mxu0
        %6033 = vmatprep.mubr.f32.mxu0 0.0
        %6034 = vmatmul.mubr.f32.gmra.mrb[0].mxu0 %v5839
        %v6035 = vpop.f32.mrb[0].mxu0
        %v6036 = vadd.f32 0.0, %v6035
        %v6037 = vpop.f32.mrb[0].mxu0
        %6038 = vmatprep.mubr.f32.mxu0 0.0
        %6039 = vmatmul.mubr.f32.gmra.mrb[0].mxu0 %v5841
        %v6040 = vpop.f32.mrb[0].mxu0
        %v6041 = vadd.f32 0.0, %v6040
        %v6042 = vpop.f32.mrb[0].mxu0
        %6043 = vmatprep.mubr.f32.mxu0 0.0
        %6044 = vmatmul.mubr.f32.gmra.mrb[0].mxu0 %v5843
        %v6045 = vpop.f32.mrb[0].mxu0
        %v6046 = vadd.f32 0.0, %v6045
        %v6047 = vpop.f32.mrb[0].mxu0
        %6048 = vmatprep.mubr.f32.mxu0 0.0
        %6049 = vmatmul.mubr.f32.gmra.mrb[0].mxu0 %v5845
        %v6050 = vpop.f32.mrb[0].mxu0
        %v6051 = vadd.f32 0.0, %v6050
        %v6052 = vpop.f32.mrb[0].mxu0
        %6053 = vmatprep.mubr.f32.mxu0 0.0
        %6054 = vmatmul.mubr.f32.gmra.mrb[0].mxu0 %v5847
        %v6055 = vpop.f32.mrb[0].mxu0
        %v6056 = vadd.f32 0.0, %v6055
        %v6057 = vpop.f32.mrb[0].mxu0
        %6058 = vmatprep.mubr.f32.mxu0 0.0
        %6059 = vmatmul.mubr.f32.gmra.mrb[0].mxu0 %v5849
        %v6060 = vpop.f32.mrb[0].mxu0
        %v6061 = vadd.f32 0.0, %v6060
        %v6062 = vpop.f32.mrb[0].mxu0
        %6063 = vmatprep.mubr.f32.mxu0 0.0
        %6064 = vmatmul.mubr.f32.gmra.mrb[0].mxu0 %v5851
        %v6065 = vpop.f32.mrb[0].mxu0
        %v6066 = vadd.f32 0.0, %v6065
        %v6067 = vpop.f32.mrb[0].mxu0
        %6068 = vmatprep.mubr.f32.mxu0 0.0
        %6069 = vmatmul.mubr.f32.gmra.mrb[0].mxu0 %v5853
        %v6070 = vpop.f32.mrb[0].mxu0
        %v6071 = vadd.f32 0.0, %v6070
        %v6072 = vpop.f32.mrb[0].mxu0
        %6073 = vmatprep.mubr.f32.mxu0 0.0
        %6074 = vmatmul.mubr.f32.gmra.mrb[0].mxu0 %v5855
        %v6075 = vpop.f32.mrb[0].mxu0
        %v6076 = vadd.f32 0.0, %v6075
        %v6077 = vpop.f32.mrb[0].mxu0
        %6078 = vmatprep.mubr.f32.mxu0 0.0
        %6079 = vmatmul.mubr.f32.gmra.mrb[0].mxu0 %v5857
        %v6080 = vpop.f32.mrb[0].mxu0
        %v6081 = vadd.f32 0.0, %v6080
        %v6082 = vpop.f32.mrb[0].mxu0
        %6083 = vdwg.mxu0
        %v6084 = vcombine.low %v4456, %v4457
        %v6085 = vcombine.low %v4458, %v4459
        %v6087 = vunpack.c.l.s4 1983009808
        %v6088 = vunpack.c.0.s8 %v6087
        %v6089 = vlaneseq
        %v6090 = vshrl.u32 %v6089, 7
        %v6091 = vsub.s32 %v6088, %v6090
        %v6092 = vrot.slane %v6084, %v6091
        %v6094 = vunpack.c.l.s4 1983009808
        %v6095 = vunpack.c.0.s8 %v6094
        %v6096 = vlaneseq
        %v6097 = vshrl.u32 %v6096, 7
        %v6098 = vsub.s32 %v6095, %v6097
        %v6099 = vrot.slane %v6085, %v6098
        %v6100 = vcombine.low %v6092, %v6099
        %v6101 = vcombine.low %v4461, %v4462
        %v6102 = vcombine.low %v4463, %v4464
        %v6104 = vunpack.c.l.s4 1983009808
        %v6105 = vunpack.c.0.s8 %v6104
        %v6106 = vlaneseq
        %v6107 = vshrl.u32 %v6106, 7
        %v6108 = vsub.s32 %v6105, %v6107
        %v6109 = vrot.slane %v6101, %v6108
        %v6111 = vunpack.c.l.s4 1983009808
        %v6112 = vunpack.c.0.s8 %v6111
        %v6113 = vlaneseq
        %v6114 = vshrl.u32 %v6113, 7
        %v6115 = vsub.s32 %v6112, %v6114
        %v6116 = vrot.slane %v6102, %v6115
        %v6117 = vcombine.low %v6109, %v6116
        %v6118 = vcombine.low %v4466, %v4467
        %v6119 = vcombine.low %v4468, %v4469
        %v6121 = vunpack.c.l.s4 1983009808
        %v6122 = vunpack.c.0.s8 %v6121
        %v6123 = vlaneseq
        %v6124 = vshrl.u32 %v6123, 7
        %v6125 = vsub.s32 %v6122, %v6124
        %v6126 = vrot.slane %v6118, %v6125
        %v6128 = vunpack.c.l.s4 1983009808
        %v6129 = vunpack.c.0.s8 %v6128
        %v6130 = vlaneseq
        %v6131 = vshrl.u32 %v6130, 7
        %v6132 = vsub.s32 %v6129, %v6131
        %v6133 = vrot.slane %v6119, %v6132
        %v6134 = vcombine.low %v6126, %v6133
        %v6135 = vcombine.low %v4471, %v4472
        %v6136 = vcombine.low %v4473, %v4474
        %v6138 = vunpack.c.l.s4 1983009808
        %v6139 = vunpack.c.0.s8 %v6138
        %v6140 = vlaneseq
        %v6141 = vshrl.u32 %v6140, 7
        %v6142 = vsub.s32 %v6139, %v6141
        %v6143 = vrot.slane %v6135, %v6142
        %v6145 = vunpack.c.l.s4 1983009808
        %v6146 = vunpack.c.0.s8 %v6145
        %v6147 = vlaneseq
        %v6148 = vshrl.u32 %v6147, 7
        %v6149 = vsub.s32 %v6146, %v6148
        %v6150 = vrot.slane %v6136, %v6149
        %v6151 = vcombine.low %v6143, %v6150
        %v6152 = vcombine.low %v4476, %v4477
        %v6153 = vcombine.low %v4478, %v4479
        %v6155 = vunpack.c.l.s4 1983009808
        %v6156 = vunpack.c.0.s8 %v6155
        %v6157 = vlaneseq
        %v6158 = vshrl.u32 %v6157, 7
        %v6159 = vsub.s32 %v6156, %v6158
        %v6160 = vrot.slane %v6152, %v6159
        %v6162 = vunpack.c.l.s4 1983009808
        %v6163 = vunpack.c.0.s8 %v6162
        %v6164 = vlaneseq
        %v6165 = vshrl.u32 %v6164, 7
        %v6166 = vsub.s32 %v6163, %v6165
        %v6167 = vrot.slane %v6153, %v6166
        %v6168 = vcombine.low %v6160, %v6167
        %v6169 = vcombine.low %v4481, %v4482
        %v6170 = vcombine.low %v4483, %v4484
        %v6172 = vunpack.c.l.s4 1983009808
        %v6173 = vunpack.c.0.s8 %v6172
        %v6174 = vlaneseq
        %v6175 = vshrl.u32 %v6174, 7
        %v6176 = vsub.s32 %v6173, %v6175
        %v6177 = vrot.slane %v6169, %v6176
        %v6179 = vunpack.c.l.s4 1983009808
        %v6180 = vunpack.c.0.s8 %v6179
        %v6181 = vlaneseq
        %v6182 = vshrl.u32 %v6181, 7
        %v6183 = vsub.s32 %v6180, %v6182
        %v6184 = vrot.slane %v6170, %v6183
        %v6185 = vcombine.low %v6177, %v6184
        %v6186 = vcombine.low %v4486, %v4487
        %v6187 = vcombine.low %v4488, %v4489
        %v6189 = vunpack.c.l.s4 1983009808
        %v6190 = vunpack.c.0.s8 %v6189
        %v6191 = vlaneseq
        %v6192 = vshrl.u32 %v6191, 7
        %v6193 = vsub.s32 %v6190, %v6192
        %v6194 = vrot.slane %v6186, %v6193
        %v6196 = vunpack.c.l.s4 1983009808
        %v6197 = vunpack.c.0.s8 %v6196
        %v6198 = vlaneseq
        %v6199 = vshrl.u32 %v6198, 7
        %v6200 = vsub.s32 %v6197, %v6199
        %v6201 = vrot.slane %v6187, %v6200
        %v6202 = vcombine.low %v6194, %v6201
        %v6203 = vcombine.low %v4491, %v4492
        %v6204 = vcombine.low %v4493, %v4494
        %v6206 = vunpack.c.l.s4 1983009808
        %v6207 = vunpack.c.0.s8 %v6206
        %v6208 = vlaneseq
        %v6209 = vshrl.u32 %v6208, 7
        %v6210 = vsub.s32 %v6207, %v6209
        %v6211 = vrot.slane %v6203, %v6210
        %v6213 = vunpack.c.l.s4 1983009808
        %v6214 = vunpack.c.0.s8 %v6213
        %v6215 = vlaneseq
        %v6216 = vshrl.u32 %v6215, 7
        %v6217 = vsub.s32 %v6214, %v6216
        %v6218 = vrot.slane %v6204, %v6217
        %v6219 = vcombine.low %v6211, %v6218
        %v6220 = vcombine.low %v4506, %v4507
        %v6221 = vcombine.low %v4508, %v4509
        %v6223 = vunpack.c.l.s4 1983009808
        %v6224 = vunpack.c.0.s8 %v6223
        %v6225 = vlaneseq
        %v6226 = vshrl.u32 %v6225, 7
        %v6227 = vsub.s32 %v6224, %v6226
        %v6228 = vrot.slane %v6220, %v6227
        %v6230 = vunpack.c.l.s4 1983009808
        %v6231 = vunpack.c.0.s8 %v6230
        %v6232 = vlaneseq
        %v6233 = vshrl.u32 %v6232, 7
        %v6234 = vsub.s32 %v6231, %v6233
        %v6235 = vrot.slane %v6221, %v6234
        %v6236 = vcombine.low %v6228, %v6235
        %v6237 = vcombine.low %v4511, %v4512
        %v6238 = vcombine.low %v4513, %v4514
        %v6240 = vunpack.c.l.s4 1983009808
        %v6241 = vunpack.c.0.s8 %v6240
        %v6242 = vlaneseq
        %v6243 = vshrl.u32 %v6242, 7
        %v6244 = vsub.s32 %v6241, %v6243
        %v6245 = vrot.slane %v6237, %v6244
        %v6247 = vunpack.c.l.s4 1983009808
        %v6248 = vunpack.c.0.s8 %v6247
        %v6249 = vlaneseq
        %v6250 = vshrl.u32 %v6249, 7
        %v6251 = vsub.s32 %v6248, %v6250
        %v6252 = vrot.slane %v6238, %v6251
        %v6253 = vcombine.low %v6245, %v6252
        %v6254 = vcombine.low %v4516, %v4517
        %v6255 = vcombine.low %v4518, %v4519
        %v6257 = vunpack.c.l.s4 1983009808
        %v6258 = vunpack.c.0.s8 %v6257
        %v6259 = vlaneseq
        %v6260 = vshrl.u32 %v6259, 7
        %v6261 = vsub.s32 %v6258, %v6260
        %v6262 = vrot.slane %v6254, %v6261
        %v6264 = vunpack.c.l.s4 1983009808
        %v6265 = vunpack.c.0.s8 %v6264
        %v6266 = vlaneseq
        %v6267 = vshrl.u32 %v6266, 7
        %v6268 = vsub.s32 %v6265, %v6267
        %v6269 = vrot.slane %v6255, %v6268
        %v6270 = vcombine.low %v6262, %v6269
        %v6271 = vcombine.low %v4521, %v4522
        %v6272 = vcombine.low %v4523, %v4524
        %v6274 = vunpack.c.l.s4 1983009808
        %v6275 = vunpack.c.0.s8 %v6274
        %v6276 = vlaneseq
        %v6277 = vshrl.u32 %v6276, 7
        %v6278 = vsub.s32 %v6275, %v6277
        %v6279 = vrot.slane %v6271, %v6278
        %v6281 = vunpack.c.l.s4 1983009808
        %v6282 = vunpack.c.0.s8 %v6281
        %v6283 = vlaneseq
        %v6284 = vshrl.u32 %v6283, 7
        %v6285 = vsub.s32 %v6282, %v6284
        %v6286 = vrot.slane %v6272, %v6285
        %v6287 = vcombine.low %v6279, %v6286
        %v6288 = vcombine.low %v4526, %v4527
        %v6289 = vcombine.low %v4528, %v4529
        %v6291 = vunpack.c.l.s4 1983009808
        %v6292 = vunpack.c.0.s8 %v6291
        %v6293 = vlaneseq
        %v6294 = vshrl.u32 %v6293, 7
        %v6295 = vsub.s32 %v6292, %v6294
        %v6296 = vrot.slane %v6288, %v6295
        %v6298 = vunpack.c.l.s4 1983009808
        %v6299 = vunpack.c.0.s8 %v6298
        %v6300 = vlaneseq
        %v6301 = vshrl.u32 %v6300, 7
        %v6302 = vsub.s32 %v6299, %v6301
        %v6303 = vrot.slane %v6289, %v6302
        %v6304 = vcombine.low %v6296, %v6303
        %v6305 = vcombine.low %v4531, %v4532
        %v6306 = vcombine.low %v4533, %v4534
        %v6308 = vunpack.c.l.s4 1983009808
        %v6309 = vunpack.c.0.s8 %v6308
        %v6310 = vlaneseq
        %v6311 = vshrl.u32 %v6310, 7
        %v6312 = vsub.s32 %v6309, %v6311
        %v6313 = vrot.slane %v6305, %v6312
        %v6315 = vunpack.c.l.s4 1983009808
        %v6316 = vunpack.c.0.s8 %v6315
        %v6317 = vlaneseq
        %v6318 = vshrl.u32 %v6317, 7
        %v6319 = vsub.s32 %v6316, %v6318
        %v6320 = vrot.slane %v6306, %v6319
        %v6321 = vcombine.low %v6313, %v6320
        %v6322 = vcombine.low %v4536, %v4537
        %v6323 = vcombine.low %v4538, %v4539
        %v6325 = vunpack.c.l.s4 1983009808
        %v6326 = vunpack.c.0.s8 %v6325
        %v6327 = vlaneseq
        %v6328 = vshrl.u32 %v6327, 7
        %v6329 = vsub.s32 %v6326, %v6328
        %v6330 = vrot.slane %v6322, %v6329
        %v6332 = vunpack.c.l.s4 1983009808
        %v6333 = vunpack.c.0.s8 %v6332
        %v6334 = vlaneseq
        %v6335 = vshrl.u32 %v6334, 7
        %v6336 = vsub.s32 %v6333, %v6335
        %v6337 = vrot.slane %v6323, %v6336
        %v6338 = vcombine.low %v6330, %v6337
        %v6339 = vcombine.low %v4541, %v4542
        %v6340 = vcombine.low %v4543, %v4544
        %v6342 = vunpack.c.l.s4 1983009808
        %v6343 = vunpack.c.0.s8 %v6342
        %v6344 = vlaneseq
        %v6345 = vshrl.u32 %v6344, 7
        %v6346 = vsub.s32 %v6343, %v6345
        %v6347 = vrot.slane %v6339, %v6346
        %v6349 = vunpack.c.l.s4 1983009808
        %v6350 = vunpack.c.0.s8 %v6349
        %v6351 = vlaneseq
        %v6352 = vshrl.u32 %v6351, 7
        %v6353 = vsub.s32 %v6350, %v6352
        %v6354 = vrot.slane %v6340, %v6353
        %v6355 = vcombine.low %v6347, %v6354
        %v6356 = vcombine.low %v4556, %v4557
        %v6357 = vcombine.low %v4558, %v4559
        %v6359 = vunpack.c.l.s4 1983009808
        %v6360 = vunpack.c.0.s8 %v6359
        %v6361 = vlaneseq
        %v6362 = vshrl.u32 %v6361, 7
        %v6363 = vsub.s32 %v6360, %v6362
        %v6364 = vrot.slane %v6356, %v6363
        %v6366 = vunpack.c.l.s4 1983009808
        %v6367 = vunpack.c.0.s8 %v6366
        %v6368 = vlaneseq
        %v6369 = vshrl.u32 %v6368, 7
        %v6370 = vsub.s32 %v6367, %v6369
        %v6371 = vrot.slane %v6357, %v6370
        %v6372 = vcombine.low %v6364, %v6371
        %v6373 = vcombine.low %v4561, %v4562
        %v6374 = vcombine.low %v4563, %v4564
        %v6376 = vunpack.c.l.s4 1983009808
        %v6377 = vunpack.c.0.s8 %v6376
        %v6378 = vlaneseq
        %v6379 = vshrl.u32 %v6378, 7
        %v6380 = vsub.s32 %v6377, %v6379
        %v6381 = vrot.slane %v6373, %v6380
        %v6383 = vunpack.c.l.s4 1983009808
        %v6384 = vunpack.c.0.s8 %v6383
        %v6385 = vlaneseq
        %v6386 = vshrl.u32 %v6385, 7
        %v6387 = vsub.s32 %v6384, %v6386
        %v6388 = vrot.slane %v6374, %v6387
        %v6389 = vcombine.low %v6381, %v6388
        %v6390 = vcombine.low %v4566, %v4567
        %v6391 = vcombine.low %v4568, %v4569
        %v6393 = vunpack.c.l.s4 1983009808
        %v6394 = vunpack.c.0.s8 %v6393
        %v6395 = vlaneseq
        %v6396 = vshrl.u32 %v6395, 7
        %v6397 = vsub.s32 %v6394, %v6396
        %v6398 = vrot.slane %v6390, %v6397
        %v6400 = vunpack.c.l.s4 1983009808
        %v6401 = vunpack.c.0.s8 %v6400
        %v6402 = vlaneseq
        %v6403 = vshrl.u32 %v6402, 7
        %v6404 = vsub.s32 %v6401, %v6403
        %v6405 = vrot.slane %v6391, %v6404
        %v6406 = vcombine.low %v6398, %v6405
        %v6407 = vcombine.low %v4571, %v4572
        %v6408 = vcombine.low %v4573, %v4574
        %v6410 = vunpack.c.l.s4 1983009808
        %v6411 = vunpack.c.0.s8 %v6410
        %v6412 = vlaneseq
        %v6413 = vshrl.u32 %v6412, 7
        %v6414 = vsub.s32 %v6411, %v6413
        %v6415 = vrot.slane %v6407, %v6414
        %v6417 = vunpack.c.l.s4 1983009808
        %v6418 = vunpack.c.0.s8 %v6417
        %v6419 = vlaneseq
        %v6420 = vshrl.u32 %v6419, 7
        %v6421 = vsub.s32 %v6418, %v6420
        %v6422 = vrot.slane %v6408, %v6421
        %v6423 = vcombine.low %v6415, %v6422
        %v6424 = vcombine.low %v4576, %v4577
        %v6425 = vcombine.low %v4578, %v4579
        %v6427 = vunpack.c.l.s4 1983009808
        %v6428 = vunpack.c.0.s8 %v6427
        %v6429 = vlaneseq
        %v6430 = vshrl.u32 %v6429, 7
        %v6431 = vsub.s32 %v6428, %v6430
        %v6432 = vrot.slane %v6424, %v6431
        %v6434 = vunpack.c.l.s4 1983009808
        %v6435 = vunpack.c.0.s8 %v6434
        %v6436 = vlaneseq
        %v6437 = vshrl.u32 %v6436, 7
        %v6438 = vsub.s32 %v6435, %v6437
        %v6439 = vrot.slane %v6425, %v6438
        %v6440 = vcombine.low %v6432, %v6439
        %v6441 = vcombine.low %v4581, %v4582
        %v6442 = vcombine.low %v4583, %v4584
        %v6444 = vunpack.c.l.s4 1983009808
        %v6445 = vunpack.c.0.s8 %v6444
        %v6446 = vlaneseq
        %v6447 = vshrl.u32 %v6446, 7
        %v6448 = vsub.s32 %v6445, %v6447
        %v6449 = vrot.slane %v6441, %v6448
        %v6451 = vunpack.c.l.s4 1983009808
        %v6452 = vunpack.c.0.s8 %v6451
        %v6453 = vlaneseq
        %v6454 = vshrl.u32 %v6453, 7
        %v6455 = vsub.s32 %v6452, %v6454
        %v6456 = vrot.slane %v6442, %v6455
        %v6457 = vcombine.low %v6449, %v6456
        %v6458 = vcombine.low %v4586, %v4587
        %v6459 = vcombine.low %v4588, %v4589
        %v6461 = vunpack.c.l.s4 1983009808
        %v6462 = vunpack.c.0.s8 %v6461
        %v6463 = vlaneseq
        %v6464 = vshrl.u32 %v6463, 7
        %v6465 = vsub.s32 %v6462, %v6464
        %v6466 = vrot.slane %v6458, %v6465
        %v6468 = vunpack.c.l.s4 1983009808
        %v6469 = vunpack.c.0.s8 %v6468
        %v6470 = vlaneseq
        %v6471 = vshrl.u32 %v6470, 7
        %v6472 = vsub.s32 %v6469, %v6471
        %v6473 = vrot.slane %v6459, %v6472
        %v6474 = vcombine.low %v6466, %v6473
        %v6475 = vcombine.low %v4591, %v4592
        %v6476 = vcombine.low %v4593, %v4594
        %v6478 = vunpack.c.l.s4 1983009808
        %v6479 = vunpack.c.0.s8 %v6478
        %v6480 = vlaneseq
        %v6481 = vshrl.u32 %v6480, 7
        %v6482 = vsub.s32 %v6479, %v6481
        %v6483 = vrot.slane %v6475, %v6482
        %v6485 = vunpack.c.l.s4 1983009808
        %v6486 = vunpack.c.0.s8 %v6485
        %v6487 = vlaneseq
        %v6488 = vshrl.u32 %v6487, 7
        %v6489 = vsub.s32 %v6486, %v6488
        %v6490 = vrot.slane %v6476, %v6489
        %v6491 = vcombine.low %v6483, %v6490
        %v6492 = vcombine.low %v4606, %v4607
        %v6493 = vcombine.low %v4608, %v4609
        %v6495 = vunpack.c.l.s4 1983009808
        %v6496 = vunpack.c.0.s8 %v6495
        %v6497 = vlaneseq
        %v6498 = vshrl.u32 %v6497, 7
        %v6499 = vsub.s32 %v6496, %v6498
        %v6500 = vrot.slane %v6492, %v6499
        %v6502 = vunpack.c.l.s4 1983009808
        %v6503 = vunpack.c.0.s8 %v6502
        %v6504 = vlaneseq
        %v6505 = vshrl.u32 %v6504, 7
        %v6506 = vsub.s32 %v6503, %v6505
        %v6507 = vrot.slane %v6493, %v6506
        %v6508 = vcombine.low %v6500, %v6507
        %v6509 = vcombine.low %v4611, %v4612
        %v6510 = vcombine.low %v4613, %v4614
        %v6512 = vunpack.c.l.s4 1983009808
        %v6513 = vunpack.c.0.s8 %v6512
        %v6514 = vlaneseq
        %v6515 = vshrl.u32 %v6514, 7
        %v6516 = vsub.s32 %v6513, %v6515
        %v6517 = vrot.slane %v6509, %v6516
        %v6519 = vunpack.c.l.s4 1983009808
        %v6520 = vunpack.c.0.s8 %v6519
        %v6521 = vlaneseq
        %v6522 = vshrl.u32 %v6521, 7
        %v6523 = vsub.s32 %v6520, %v6522
        %v6524 = vrot.slane %v6510, %v6523
        %v6525 = vcombine.low %v6517, %v6524
        %v6526 = vcombine.low %v4616, %v4617
        %v6527 = vcombine.low %v4618, %v4619
        %v6529 = vunpack.c.l.s4 1983009808
        %v6530 = vunpack.c.0.s8 %v6529
        %v6531 = vlaneseq
        %v6532 = vshrl.u32 %v6531, 7
        %v6533 = vsub.s32 %v6530, %v6532
        %v6534 = vrot.slane %v6526, %v6533
        %v6536 = vunpack.c.l.s4 1983009808
        %v6537 = vunpack.c.0.s8 %v6536
        %v6538 = vlaneseq
        %v6539 = vshrl.u32 %v6538, 7
        %v6540 = vsub.s32 %v6537, %v6539
        %v6541 = vrot.slane %v6527, %v6540
        %v6542 = vcombine.low %v6534, %v6541
        %v6543 = vcombine.low %v4621, %v4622
        %v6544 = vcombine.low %v4623, %v4624
        %v6546 = vunpack.c.l.s4 1983009808
        %v6547 = vunpack.c.0.s8 %v6546
        %v6548 = vlaneseq
        %v6549 = vshrl.u32 %v6548, 7
        %v6550 = vsub.s32 %v6547, %v6549
        %v6551 = vrot.slane %v6543, %v6550
        %v6553 = vunpack.c.l.s4 1983009808
        %v6554 = vunpack.c.0.s8 %v6553
        %v6555 = vlaneseq
        %v6556 = vshrl.u32 %v6555, 7
        %v6557 = vsub.s32 %v6554, %v6556
        %v6558 = vrot.slane %v6544, %v6557
        %v6559 = vcombine.low %v6551, %v6558
        %v6560 = vcombine.low %v4626, %v4627
        %v6561 = vcombine.low %v4628, %v4629
        %v6563 = vunpack.c.l.s4 1983009808
        %v6564 = vunpack.c.0.s8 %v6563
        %v6565 = vlaneseq
        %v6566 = vshrl.u32 %v6565, 7
        %v6567 = vsub.s32 %v6564, %v6566
        %v6568 = vrot.slane %v6560, %v6567
        %v6570 = vunpack.c.l.s4 1983009808
        %v6571 = vunpack.c.0.s8 %v6570
        %v6572 = vlaneseq
        %v6573 = vshrl.u32 %v6572, 7
        %v6574 = vsub.s32 %v6571, %v6573
        %v6575 = vrot.slane %v6561, %v6574
        %v6576 = vcombine.low %v6568, %v6575
        %v6577 = vcombine.low %v4631, %v4632
        %v6578 = vcombine.low %v4633, %v4634
        %v6580 = vunpack.c.l.s4 1983009808
        %v6581 = vunpack.c.0.s8 %v6580
        %v6582 = vlaneseq
        %v6583 = vshrl.u32 %v6582, 7
        %v6584 = vsub.s32 %v6581, %v6583
        %v6585 = vrot.slane %v6577, %v6584
        %v6587 = vunpack.c.l.s4 1983009808
        %v6588 = vunpack.c.0.s8 %v6587
        %v6589 = vlaneseq
        %v6590 = vshrl.u32 %v6589, 7
        %v6591 = vsub.s32 %v6588, %v6590
        %v6592 = vrot.slane %v6578, %v6591
        %v6593 = vcombine.low %v6585, %v6592
        %v6594 = vcombine.low %v4636, %v4637
        %v6595 = vcombine.low %v4638, %v4639
        %v6597 = vunpack.c.l.s4 1983009808
        %v6598 = vunpack.c.0.s8 %v6597
        %v6599 = vlaneseq
        %v6600 = vshrl.u32 %v6599, 7
        %v6601 = vsub.s32 %v6598, %v6600
        %v6602 = vrot.slane %v6594, %v6601
        %v6604 = vunpack.c.l.s4 1983009808
        %v6605 = vunpack.c.0.s8 %v6604
        %v6606 = vlaneseq
        %v6607 = vshrl.u32 %v6606, 7
        %v6608 = vsub.s32 %v6605, %v6607
        %v6609 = vrot.slane %v6595, %v6608
        %v6610 = vcombine.low %v6602, %v6609
        %v6611 = vcombine.low %v4641, %v4642
        %v6612 = vcombine.low %v4643, %v4644
        %v6614 = vunpack.c.l.s4 1983009808
        %v6615 = vunpack.c.0.s8 %v6614
        %v6616 = vlaneseq
        %v6617 = vshrl.u32 %v6616, 7
        %v6618 = vsub.s32 %v6615, %v6617
        %v6619 = vrot.slane %v6611, %v6618
        %v6621 = vunpack.c.l.s4 1983009808
        %v6622 = vunpack.c.0.s8 %v6621
        %v6623 = vlaneseq
        %v6624 = vshrl.u32 %v6623, 7
        %v6625 = vsub.s32 %v6622, %v6624
        %v6626 = vrot.slane %v6612, %v6625
        %v6627 = vcombine.low %v6619, %v6626
        %v6628 = vsel %vm2390, %v6100, 0
        %v6630 = vsel %vm2390, %v6117, 0
        %v6632 = vsel %vm2390, %v6134, 0
        %v6634 = vsel %vm2390, %v6151, 0
        %v6636 = vsel %vm2390, %v6168, 0
        %v6638 = vsel %vm2390, %v6185, 0
        %v6640 = vsel %vm2390, %v6202, 0
        %v6642 = vsel %vm2390, %v6219, 0
        %v6644 = vsel %vm2390, %v6236, 0
        %v6646 = vsel %vm2390, %v6253, 0
        %v6648 = vsel %vm2390, %v6270, 0
        %v6650 = vsel %vm2390, %v6287, 0
        %v6652 = vsel %vm2390, %v6304, 0
        %v6654 = vsel %vm2390, %v6321, 0
        %v6656 = vsel %vm2390, %v6338, 0
        %v6658 = vsel %vm2390, %v6355, 0
        %v6660 = vsel %vm2390, %v6372, 0
        %v6662 = vsel %vm2390, %v6389, 0
        %v6664 = vsel %vm2390, %v6406, 0
        %v6666 = vsel %vm2390, %v6423, 0
        %v6668 = vsel %vm2390, %v6440, 0
        %v6670 = vsel %vm2390, %v6457, 0
        %v6672 = vsel %vm2390, %v6474, 0
        %v6674 = vsel %vm2390, %v6491, 0
        %v6676 = vsel %vm2390, %v6508, 0
        %v6678 = vsel %vm2390, %v6525, 0
        %v6680 = vsel %vm2390, %v6542, 0
        %v6682 = vsel %vm2390, %v6559, 0
        %v6684 = vsel %vm2390, %v6576, 0
        %v6686 = vsel %vm2390, %v6593, 0
        %v6688 = vsel %vm2390, %v6610, 0
        %v6690 = vsel %vm2390, %v6627, 0
        %6692 = vmatprep.subr.mxu0 0.0
        %6693 = vmatpush1.msra.mxu0 %v4656
        %6694 = vmatprep.subr.mxu0 0.0
        %6695 = vmatpush1.msra.mxu0 0.0
        %6696 = vmatprep.subr.mxu0 0.0
        %6697 = vmatpush1.msra.mxu0 0.0
        %6698 = vmatprep.subr.mxu0 0.0
        %6699 = vmatpush1.msra.mxu0 0.0
        %6700 = vmatprep.subr.mxu0 0.0
        %6701 = vmatpush1.msra.mxu0 0.0
        %6702 = vmatprep.subr.mxu0 0.0
        %6703 = vmatpush1.msra.mxu0 0.0
        %6704 = vmatprep.subr.mxu0 0.0
        %6705 = vmatpush1.msra.mxu0 0.0
        %6706 = vmatprep.subr.mxu0 0.0
        %6707 = vmatpush1.msra.mxu0 0.0
        %6708 = vmatprep.subr.mxu0 0.0
        %6709 = vmatpush1.msra.mxu0 0.0
        %6710 = vmatprep.subr.mxu0 0.0
        %6711 = vmatpush1.msra.mxu0 0.0
        %6712 = vmatprep.subr.mxu0 0.0
        %6713 = vmatpush1.msra.mxu0 0.0
        %6714 = vmatprep.subr.mxu0 0.0
        %6715 = vmatpush1.msra.mxu0 0.0
        %6716 = vmatprep.subr.mxu0 0.0
        %6717 = vmatpush1.msra.mxu0 0.0
        %6718 = vmatprep.subr.mxu0 0.0
        %6719 = vmatpush1.msra.mxu0 0.0
        %6720 = vmatprep.subr.mxu0 0.0
        %6721 = vmatpush1.msra.mxu0 0.0
        %6722 = vmatprep.subr.mxu0 0.0
        %6723 = vmatpush1.msra.mxu0 0.0
        %6724 = vmatprep.subr.mxu0 0.0
        %6725 = vmatpush1.msra.mxu0 0.0
        %6726 = vmatprep.subr.mxu0 0.0
        %6727 = vmatpush1.msra.mxu0 0.0
        %6728 = vmatprep.subr.mxu0 0.0
        %6729 = vmatpush1.msra.mxu0 0.0
        %6730 = vmatprep.subr.mxu0 0.0
        %6731 = vmatpush1.msra.mxu0 0.0
        %6732 = vmatprep.subr.mxu0 0.0
        %6733 = vmatpush1.msra.mxu0 0.0
        %6734 = vmatprep.subr.mxu0 0.0
        %6735 = vmatpush1.msra.mxu0 0.0
        %6736 = vmatprep.subr.mxu0 0.0
        %6737 = vmatpush1.msra.mxu0 0.0
        %6738 = vmatprep.subr.mxu0 0.0
        %6739 = vmatpush1.msra.mxu0 0.0
        %6740 = vmatprep.subr.mxu0 0.0
        %6741 = vmatpush1.msra.mxu0 0.0
        %6742 = vmatprep.subr.mxu0 0.0
        %6743 = vmatpush1.msra.mxu0 0.0
        %6744 = vmatprep.subr.mxu0 0.0
        %6745 = vmatpush1.msra.mxu0 0.0
        %6746 = vmatprep.subr.mxu0 0.0
        %6747 = vmatpush1.msra.mxu0 0.0
        %6748 = vmatprep.subr.mxu0 0.0
        %6749 = vmatpush1.msra.mxu0 0.0
        %6750 = vmatprep.subr.mxu0 0.0
        %6751 = vmatpush1.msra.mxu0 0.0
        %6752 = vmatprep.subr.mxu0 0.0
        %6753 = vmatpush1.msra.mxu0 0.0
        %6754 = vmatprep.subr.mxu0 0.0
        %6755 = vmatpush1.msra.mxu0 0.0
        %6756 = vmatprep.mubr.f32.mxu0 0.0
        %6757 = vmatmul.mubr.f32.gmra.mrb[0].mxu0 %v6628
        %v6758 = vpop.f32.mrb[0].mxu0
        %v6759 = vadd.f32 %v5926, %v6758
        %v6760 = vpop.f32.mrb[0].mxu0
        %6761 = vmatprep.mubr.f32.mxu0 0.0
        %6762 = vmatmul.mubr.f32.gmra.mrb[0].mxu0 %v6630
        %v6763 = vpop.f32.mrb[0].mxu0
        %v6764 = vadd.f32 %v5931, %v6763
        %v6765 = vpop.f32.mrb[0].mxu0
        %6766 = vmatprep.mubr.f32.mxu0 0.0
        %6767 = vmatmul.mubr.f32.gmra.mrb[0].mxu0 %v6632
        %v6768 = vpop.f32.mrb[0].mxu0
        %v6769 = vadd.f32 %v5936, %v6768
        %v6770 = vpop.f32.mrb[0].mxu0
        %6771 = vmatprep.mubr.f32.mxu0 0.0
        %6772 = vmatmul.mubr.f32.gmra.mrb[0].mxu0 %v6634
        %v6773 = vpop.f32.mrb[0].mxu0
        %v6774 = vadd.f32 %v5941, %v6773
        %v6775 = vpop.f32.mrb[0].mxu0
        %6776 = vmatprep.mubr.f32.mxu0 0.0
        %6777 = vmatmul.mubr.f32.gmra.mrb[0].mxu0 %v6636
        %v6778 = vpop.f32.mrb[0].mxu0
        %v6779 = vadd.f32 %v5946, %v6778
        %v6780 = vpop.f32.mrb[0].mxu0
        %6781 = vmatprep.mubr.f32.mxu0 0.0
        %6782 = vmatmul.mubr.f32.gmra.mrb[0].mxu0 %v6638
        %v6783 = vpop.f32.mrb[0].mxu0
        %v6784 = vadd.f32 %v5951, %v6783
        %v6785 = vpop.f32.mrb[0].mxu0
        %6786 = vmatprep.mubr.f32.mxu0 0.0
        %6787 = vmatmul.mubr.f32.gmra.mrb[0].mxu0 %v6640
        %v6788 = vpop.f32.mrb[0].mxu0
        %v6789 = vadd.f32 %v5956, %v6788
        %v6790 = vpop.f32.mrb[0].mxu0
        %6791 = vmatprep.mubr.f32.mxu0 0.0
        %6792 = vmatmul.mubr.f32.gmra.mrb[0].mxu0 %v6642
        %v6793 = vpop.f32.mrb[0].mxu0
        %v6794 = vadd.f32 %v5961, %v6793
        %v6795 = vpop.f32.mrb[0].mxu0
        %6796 = vmatprep.mubr.f32.mxu0 0.0
        %6797 = vmatmul.mubr.f32.gmra.mrb[0].mxu0 %v6644
        %v6798 = vpop.f32.mrb[0].mxu0
        %v6799 = vadd.f32 %v5966, %v6798
        %v6800 = vpop.f32.mrb[0].mxu0
        %6801 = vmatprep.mubr.f32.mxu0 0.0
        %6802 = vmatmul.mubr.f32.gmra.mrb[0].mxu0 %v6646
        %v6803 = vpop.f32.mrb[0].mxu0
        %v6804 = vadd.f32 %v5971, %v6803
        %v6805 = vpop.f32.mrb[0].mxu0
        %6806 = vmatprep.mubr.f32.mxu0 0.0
        %6807 = vmatmul.mubr.f32.gmra.mrb[0].mxu0 %v6648
        %v6808 = vpop.f32.mrb[0].mxu0
        %v6809 = vadd.f32 %v5976, %v6808
        %v6810 = vpop.f32.mrb[0].mxu0
        %6811 = vmatprep.mubr.f32.mxu0 0.0
        %6812 = vmatmul.mubr.f32.gmra.mrb[0].mxu0 %v6650
        %v6813 = vpop.f32.mrb[0].mxu0
        %v6814 = vadd.f32 %v5981, %v6813
        %v6815 = vpop.f32.mrb[0].mxu0
        %6816 = vmatprep.mubr.f32.mxu0 0.0
        %6817 = vmatmul.mubr.f32.gmra.mrb[0].mxu0 %v6652
        %v6818 = vpop.f32.mrb[0].mxu0
        %v6819 = vadd.f32 %v5986, %v6818
        %v6820 = vpop.f32.mrb[0].mxu0
        %6821 = vmatprep.mubr.f32.mxu0 0.0
        %6822 = vmatmul.mubr.f32.gmra.mrb[0].mxu0 %v6654
        %v6823 = vpop.f32.mrb[0].mxu0
        %v6824 = vadd.f32 %v5991, %v6823
        %v6825 = vpop.f32.mrb[0].mxu0
        %6826 = vmatprep.mubr.f32.mxu0 0.0
        %6827 = vmatmul.mubr.f32.gmra.mrb[0].mxu0 %v6656
        %v6828 = vpop.f32.mrb[0].mxu0
        %v6829 = vadd.f32 %v5996, %v6828
        %v6830 = vpop.f32.mrb[0].mxu0
        %6831 = vmatprep.mubr.f32.mxu0 0.0
        %6832 = vmatmul.mubr.f32.gmra.mrb[0].mxu0 %v6658
        %v6833 = vpop.f32.mrb[0].mxu0
        %v6834 = vadd.f32 %v6001, %v6833
        %v6835 = vpop.f32.mrb[0].mxu0
        %6836 = vmatprep.mubr.f32.mxu0 0.0
        %6837 = vmatmul.mubr.f32.gmra.mrb[0].mxu0 %v6660
        %v6838 = vpop.f32.mrb[0].mxu0
        %v6839 = vadd.f32 %v6006, %v6838
        %v6840 = vpop.f32.mrb[0].mxu0
        %6841 = vmatprep.mubr.f32.mxu0 0.0
        %6842 = vmatmul.mubr.f32.gmra.mrb[0].mxu0 %v6662
        %v6843 = vpop.f32.mrb[0].mxu0
        %v6844 = vadd.f32 %v6011, %v6843
        %v6845 = vpop.f32.mrb[0].mxu0
        %6846 = vmatprep.mubr.f32.mxu0 0.0
        %6847 = vmatmul.mubr.f32.gmra.mrb[0].mxu0 %v6664
        %v6848 = vpop.f32.mrb[0].mxu0
        %v6849 = vadd.f32 %v6016, %v6848
        %v6850 = vpop.f32.mrb[0].mxu0
        %6851 = vmatprep.mubr.f32.mxu0 0.0
        %6852 = vmatmul.mubr.f32.gmra.mrb[0].mxu0 %v6666
        %v6853 = vpop.f32.mrb[0].mxu0
        %v6854 = vadd.f32 %v6021, %v6853
        %v6855 = vpop.f32.mrb[0].mxu0
        %6856 = vmatprep.mubr.f32.mxu0 0.0
        %6857 = vmatmul.mubr.f32.gmra.mrb[0].mxu0 %v6668
        %v6858 = vpop.f32.mrb[0].mxu0
        %v6859 = vadd.f32 %v6026, %v6858
        %v6860 = vpop.f32.mrb[0].mxu0
        %6861 = vmatprep.mubr.f32.mxu0 0.0
        %6862 = vmatmul.mubr.f32.gmra.mrb[0].mxu0 %v6670
        %v6863 = vpop.f32.mrb[0].mxu0
        %v6864 = vadd.f32 %v6031, %v6863
        %v6865 = vpop.f32.mrb[0].mxu0
        %6866 = vmatprep.mubr.f32.mxu0 0.0
        %6867 = vmatmul.mubr.f32.gmra.mrb[0].mxu0 %v6672
        %v6868 = vpop.f32.mrb[0].mxu0
        %v6869 = vadd.f32 %v6036, %v6868
        %v6870 = vpop.f32.mrb[0].mxu0
        %6871 = vmatprep.mubr.f32.mxu0 0.0
        %6872 = vmatmul.mubr.f32.gmra.mrb[0].mxu0 %v6674
        %v6873 = vpop.f32.mrb[0].mxu0
        %v6874 = vadd.f32 %v6041, %v6873
        %v6875 = vpop.f32.mrb[0].mxu0
        %6876 = vmatprep.mubr.f32.mxu0 0.0
        %6877 = vmatmul.mubr.f32.gmra.mrb[0].mxu0 %v6676
        %v6878 = vpop.f32.mrb[0].mxu0
        %v6879 = vadd.f32 %v6046, %v6878
        %v6880 = vpop.f32.mrb[0].mxu0
        %6881 = vmatprep.mubr.f32.mxu0 0.0
        %6882 = vmatmul.mubr.f32.gmra.mrb[0].mxu0 %v6678
        %v6883 = vpop.f32.mrb[0].mxu0
        %v6884 = vadd.f32 %v6051, %v6883
        %v6885 = vpop.f32.mrb[0].mxu0
        %6886 = vmatprep.mubr.f32.mxu0 0.0
        %6887 = vmatmul.mubr.f32.gmra.mrb[0].mxu0 %v6680
        %v6888 = vpop.f32.mrb[0].mxu0
        %v6889 = vadd.f32 %v6056, %v6888
        %v6890 = vpop.f32.mrb[0].mxu0
        %6891 = vmatprep.mubr.f32.mxu0 0.0
        %6892 = vmatmul.mubr.f32.gmra.mrb[0].mxu0 %v6682
        %v6893 = vpop.f32.mrb[0].mxu0
        %v6894 = vadd.f32 %v6061, %v6893
        %v6895 = vpop.f32.mrb[0].mxu0
        %6896 = vmatprep.mubr.f32.mxu0 0.0
        %6897 = vmatmul.mubr.f32.gmra.mrb[0].mxu0 %v6684
        %v6898 = vpop.f32.mrb[0].mxu0
        %v6899 = vadd.f32 %v6066, %v6898
        %v6900 = vpop.f32.mrb[0].mxu0
        %6901 = vmatprep.mubr.f32.mxu0 0.0
        %6902 = vmatmul.mubr.f32.gmra.mrb[0].mxu0 %v6686
        %v6903 = vpop.f32.mrb[0].mxu0
        %v6904 = vadd.f32 %v6071, %v6903
        %v6905 = vpop.f32.mrb[0].mxu0
        %6906 = vmatprep.mubr.f32.mxu0 0.0
        %6907 = vmatmul.mubr.f32.gmra.mrb[0].mxu0 %v6688
        %v6908 = vpop.f32.mrb[0].mxu0
        %v6909 = vadd.f32 %v6076, %v6908
        %v6910 = vpop.f32.mrb[0].mxu0
        %6911 = vmatprep.mubr.f32.mxu0 0.0
        %6912 = vmatmul.mubr.f32.gmra.mrb[0].mxu0 %v6690
        %v6913 = vpop.f32.mrb[0].mxu0
        %v6914 = vadd.f32 %v6081, %v6913
        %v6915 = vpop.f32.mrb[0].mxu0
        %6916 = vdwg.mxu0
        %v6917 = vcombine.low %v4457, %v4458
        %v6918 = vcombine.low %v4459, %v4460
        %v6920 = vunpack.c.l.s4 1983009808
        %v6921 = vunpack.c.0.s8 %v6920
        %v6922 = vlaneseq
        %v6923 = vshrl.u32 %v6922, 7
        %v6924 = vsub.s32 %v6921, %v6923
        %v6925 = vrot.slane %v6917, %v6924
        %v6927 = vunpack.c.l.s4 1983009808
        %v6928 = vunpack.c.0.s8 %v6927
        %v6929 = vlaneseq
        %v6930 = vshrl.u32 %v6929, 7
        %v6931 = vsub.s32 %v6928, %v6930
        %v6932 = vrot.slane %v6918, %v6931
        %v6933 = vcombine.low %v6925, %v6932
        %v6934 = vcombine.low %v4462, %v4463
        %v6935 = vcombine.low %v4464, %v4465
        %v6937 = vunpack.c.l.s4 1983009808
        %v6938 = vunpack.c.0.s8 %v6937
        %v6939 = vlaneseq
        %v6940 = vshrl.u32 %v6939, 7
        %v6941 = vsub.s32 %v6938, %v6940
        %v6942 = vrot.slane %v6934, %v6941
        %v6944 = vunpack.c.l.s4 1983009808
        %v6945 = vunpack.c.0.s8 %v6944
        %v6946 = vlaneseq
        %v6947 = vshrl.u32 %v6946, 7
        %v6948 = vsub.s32 %v6945, %v6947
        %v6949 = vrot.slane %v6935, %v6948
        %v6950 = vcombine.low %v6942, %v6949
        %v6951 = vcombine.low %v4467, %v4468
        %v6952 = vcombine.low %v4469, %v4470
        %v6954 = vunpack.c.l.s4 1983009808
        %v6955 = vunpack.c.0.s8 %v6954
        %v6956 = vlaneseq
        %v6957 = vshrl.u32 %v6956, 7
        %v6958 = vsub.s32 %v6955, %v6957
        %v6959 = vrot.slane %v6951, %v6958
        %v6961 = vunpack.c.l.s4 1983009808
        %v6962 = vunpack.c.0.s8 %v6961
        %v6963 = vlaneseq
        %v6964 = vshrl.u32 %v6963, 7
        %v6965 = vsub.s32 %v6962, %v6964
        %v6966 = vrot.slane %v6952, %v6965
        %v6967 = vcombine.low %v6959, %v6966
        %v6968 = vcombine.low %v4472, %v4473
        %v6969 = vcombine.low %v4474, %v4475
        %v6971 = vunpack.c.l.s4 1983009808
        %v6972 = vunpack.c.0.s8 %v6971
        %v6973 = vlaneseq
        %v6974 = vshrl.u32 %v6973, 7
        %v6975 = vsub.s32 %v6972, %v6974
        %v6976 = vrot.slane %v6968, %v6975
        %v6978 = vunpack.c.l.s4 1983009808
        %v6979 = vunpack.c.0.s8 %v6978
        %v6980 = vlaneseq
        %v6981 = vshrl.u32 %v6980, 7
        %v6982 = vsub.s32 %v6979, %v6981
        %v6983 = vrot.slane %v6969, %v6982
        %v6984 = vcombine.low %v6976, %v6983
        %v6985 = vcombine.low %v4477, %v4478
        %v6986 = vcombine.low %v4479, %v4480
        %v6988 = vunpack.c.l.s4 1983009808
        %v6989 = vunpack.c.0.s8 %v6988
        %v6990 = vlaneseq
        %v6991 = vshrl.u32 %v6990, 7
        %v6992 = vsub.s32 %v6989, %v6991
        %v6993 = vrot.slane %v6985, %v6992
        %v6995 = vunpack.c.l.s4 1983009808
        %v6996 = vunpack.c.0.s8 %v6995
        %v6997 = vlaneseq
        %v6998 = vshrl.u32 %v6997, 7
        %v6999 = vsub.s32 %v6996, %v6998
        %v7000 = vrot.slane %v6986, %v6999
        %v7001 = vcombine.low %v6993, %v7000
        %v7002 = vcombine.low %v4482, %v4483
        %v7003 = vcombine.low %v4484, %v4485
        %v7005 = vunpack.c.l.s4 1983009808
        %v7006 = vunpack.c.0.s8 %v7005
        %v7007 = vlaneseq
        %v7008 = vshrl.u32 %v7007, 7
        %v7009 = vsub.s32 %v7006, %v7008
        %v7010 = vrot.slane %v7002, %v7009
        %v7012 = vunpack.c.l.s4 1983009808
        %v7013 = vunpack.c.0.s8 %v7012
        %v7014 = vlaneseq
        %v7015 = vshrl.u32 %v7014, 7
        %v7016 = vsub.s32 %v7013, %v7015
        %v7017 = vrot.slane %v7003, %v7016
        %v7018 = vcombine.low %v7010, %v7017
        %v7019 = vcombine.low %v4487, %v4488
        %v7020 = vcombine.low %v4489, %v4490
        %v7022 = vunpack.c.l.s4 1983009808
        %v7023 = vunpack.c.0.s8 %v7022
        %v7024 = vlaneseq
        %v7025 = vshrl.u32 %v7024, 7
        %v7026 = vsub.s32 %v7023, %v7025
        %v7027 = vrot.slane %v7019, %v7026
        %v7029 = vunpack.c.l.s4 1983009808
        %v7030 = vunpack.c.0.s8 %v7029
        %v7031 = vlaneseq
        %v7032 = vshrl.u32 %v7031, 7
        %v7033 = vsub.s32 %v7030, %v7032
        %v7034 = vrot.slane %v7020, %v7033
        %v7035 = vcombine.low %v7027, %v7034
        %v7036 = vcombine.low %v4492, %v4493
        %v7037 = vcombine.low %v4494, %v4495
        %v7039 = vunpack.c.l.s4 1983009808
        %v7040 = vunpack.c.0.s8 %v7039
        %v7041 = vlaneseq
        %v7042 = vshrl.u32 %v7041, 7
        %v7043 = vsub.s32 %v7040, %v7042
        %v7044 = vrot.slane %v7036, %v7043
        %v7046 = vunpack.c.l.s4 1983009808
        %v7047 = vunpack.c.0.s8 %v7046
        %v7048 = vlaneseq
        %v7049 = vshrl.u32 %v7048, 7
        %v7050 = vsub.s32 %v7047, %v7049
        %v7051 = vrot.slane %v7037, %v7050
        %v7052 = vcombine.low %v7044, %v7051
        %v7053 = vcombine.low %v4507, %v4508
        %v7054 = vcombine.low %v4509, %v4510
        %v7056 = vunpack.c.l.s4 1983009808
        %v7057 = vunpack.c.0.s8 %v7056
        %v7058 = vlaneseq
        %v7059 = vshrl.u32 %v7058, 7
        %v7060 = vsub.s32 %v7057, %v7059
        %v7061 = vrot.slane %v7053, %v7060
        %v7063 = vunpack.c.l.s4 1983009808
        %v7064 = vunpack.c.0.s8 %v7063
        %v7065 = vlaneseq
        %v7066 = vshrl.u32 %v7065, 7
        %v7067 = vsub.s32 %v7064, %v7066
        %v7068 = vrot.slane %v7054, %v7067
        %v7069 = vcombine.low %v7061, %v7068
        %v7070 = vcombine.low %v4512, %v4513
        %v7071 = vcombine.low %v4514, %v4515
        %v7073 = vunpack.c.l.s4 1983009808
        %v7074 = vunpack.c.0.s8 %v7073
        %v7075 = vlaneseq
        %v7076 = vshrl.u32 %v7075, 7
        %v7077 = vsub.s32 %v7074, %v7076
        %v7078 = vrot.slane %v7070, %v7077
        %v7080 = vunpack.c.l.s4 1983009808
        %v7081 = vunpack.c.0.s8 %v7080
        %v7082 = vlaneseq
        %v7083 = vshrl.u32 %v7082, 7
        %v7084 = vsub.s32 %v7081, %v7083
        %v7085 = vrot.slane %v7071, %v7084
        %v7086 = vcombine.low %v7078, %v7085
        %v7087 = vcombine.low %v4517, %v4518
        %v7088 = vcombine.low %v4519, %v4520
        %v7090 = vunpack.c.l.s4 1983009808
        %v7091 = vunpack.c.0.s8 %v7090
        %v7092 = vlaneseq
        %v7093 = vshrl.u32 %v7092, 7
        %v7094 = vsub.s32 %v7091, %v7093
        %v7095 = vrot.slane %v7087, %v7094
        %v7097 = vunpack.c.l.s4 1983009808
        %v7098 = vunpack.c.0.s8 %v7097
        %v7099 = vlaneseq
        %v7100 = vshrl.u32 %v7099, 7
        %v7101 = vsub.s32 %v7098, %v7100
        %v7102 = vrot.slane %v7088, %v7101
        %v7103 = vcombine.low %v7095, %v7102
        %v7104 = vcombine.low %v4522, %v4523
        %v7105 = vcombine.low %v4524, %v4525
        %v7107 = vunpack.c.l.s4 1983009808
        %v7108 = vunpack.c.0.s8 %v7107
        %v7109 = vlaneseq
        %v7110 = vshrl.u32 %v7109, 7
        %v7111 = vsub.s32 %v7108, %v7110
        %v7112 = vrot.slane %v7104, %v7111
        %v7114 = vunpack.c.l.s4 1983009808
        %v7115 = vunpack.c.0.s8 %v7114
        %v7116 = vlaneseq
        %v7117 = vshrl.u32 %v7116, 7
        %v7118 = vsub.s32 %v7115, %v7117
        %v7119 = vrot.slane %v7105, %v7118
        %v7120 = vcombine.low %v7112, %v7119
        %v7121 = vcombine.low %v4527, %v4528
        %v7122 = vcombine.low %v4529, %v4530
        %v7124 = vunpack.c.l.s4 1983009808
        %v7125 = vunpack.c.0.s8 %v7124
        %v7126 = vlaneseq
        %v7127 = vshrl.u32 %v7126, 7
        %v7128 = vsub.s32 %v7125, %v7127
        %v7129 = vrot.slane %v7121, %v7128
        %v7131 = vunpack.c.l.s4 1983009808
        %v7132 = vunpack.c.0.s8 %v7131
        %v7133 = vlaneseq
        %v7134 = vshrl.u32 %v7133, 7
        %v7135 = vsub.s32 %v7132, %v7134
        %v7136 = vrot.slane %v7122, %v7135
        %v7137 = vcombine.low %v7129, %v7136
        %v7138 = vcombine.low %v4532, %v4533
        %v7139 = vcombine.low %v4534, %v4535
        %v7141 = vunpack.c.l.s4 1983009808
        %v7142 = vunpack.c.0.s8 %v7141
        %v7143 = vlaneseq
        %v7144 = vshrl.u32 %v7143, 7
        %v7145 = vsub.s32 %v7142, %v7144
        %v7146 = vrot.slane %v7138, %v7145
        %v7148 = vunpack.c.l.s4 1983009808
        %v7149 = vunpack.c.0.s8 %v7148
        %v7150 = vlaneseq
        %v7151 = vshrl.u32 %v7150, 7
        %v7152 = vsub.s32 %v7149, %v7151
        %v7153 = vrot.slane %v7139, %v7152
        %v7154 = vcombine.low %v7146, %v7153
        %v7155 = vcombine.low %v4537, %v4538
        %v7156 = vcombine.low %v4539, %v4540
        %v7158 = vunpack.c.l.s4 1983009808
        %v7159 = vunpack.c.0.s8 %v7158
        %v7160 = vlaneseq
        %v7161 = vshrl.u32 %v7160, 7
        %v7162 = vsub.s32 %v7159, %v7161
        %v7163 = vrot.slane %v7155, %v7162
        %v7165 = vunpack.c.l.s4 1983009808
        %v7166 = vunpack.c.0.s8 %v7165
        %v7167 = vlaneseq
        %v7168 = vshrl.u32 %v7167, 7
        %v7169 = vsub.s32 %v7166, %v7168
        %v7170 = vrot.slane %v7156, %v7169
        %v7171 = vcombine.low %v7163, %v7170
        %v7172 = vcombine.low %v4542, %v4543
        %v7173 = vcombine.low %v4544, %v4545
        %v7175 = vunpack.c.l.s4 1983009808
        %v7176 = vunpack.c.0.s8 %v7175
        %v7177 = vlaneseq
        %v7178 = vshrl.u32 %v7177, 7
        %v7179 = vsub.s32 %v7176, %v7178
        %v7180 = vrot.slane %v7172, %v7179
        %v7182 = vunpack.c.l.s4 1983009808
        %v7183 = vunpack.c.0.s8 %v7182
        %v7184 = vlaneseq
        %v7185 = vshrl.u32 %v7184, 7
        %v7186 = vsub.s32 %v7183, %v7185
        %v7187 = vrot.slane %v7173, %v7186
        %v7188 = vcombine.low %v7180, %v7187
        %v7189 = vcombine.low %v4557, %v4558
        %v7190 = vcombine.low %v4559, %v4560
        %v7192 = vunpack.c.l.s4 1983009808
        %v7193 = vunpack.c.0.s8 %v7192
        %v7194 = vlaneseq
        %v7195 = vshrl.u32 %v7194, 7
        %v7196 = vsub.s32 %v7193, %v7195
        %v7197 = vrot.slane %v7189, %v7196
        %v7199 = vunpack.c.l.s4 1983009808
        %v7200 = vunpack.c.0.s8 %v7199
        %v7201 = vlaneseq
        %v7202 = vshrl.u32 %v7201, 7
        %v7203 = vsub.s32 %v7200, %v7202
        %v7204 = vrot.slane %v7190, %v7203
        %v7205 = vcombine.low %v7197, %v7204
        %v7206 = vcombine.low %v4562, %v4563
        %v7207 = vcombine.low %v4564, %v4565
        %v7209 = vunpack.c.l.s4 1983009808
        %v7210 = vunpack.c.0.s8 %v7209
        %v7211 = vlaneseq
        %v7212 = vshrl.u32 %v7211, 7
        %v7213 = vsub.s32 %v7210, %v7212
        %v7214 = vrot.slane %v7206, %v7213
        %v7216 = vunpack.c.l.s4 1983009808
        %v7217 = vunpack.c.0.s8 %v7216
        %v7218 = vlaneseq
        %v7219 = vshrl.u32 %v7218, 7
        %v7220 = vsub.s32 %v7217, %v7219
        %v7221 = vrot.slane %v7207, %v7220
        %v7222 = vcombine.low %v7214, %v7221
        %v7223 = vcombine.low %v4567, %v4568
        %v7224 = vcombine.low %v4569, %v4570
        %v7226 = vunpack.c.l.s4 1983009808
        %v7227 = vunpack.c.0.s8 %v7226
        %v7228 = vlaneseq
        %v7229 = vshrl.u32 %v7228, 7
        %v7230 = vsub.s32 %v7227, %v7229
        %v7231 = vrot.slane %v7223, %v7230
        %v7233 = vunpack.c.l.s4 1983009808
        %v7234 = vunpack.c.0.s8 %v7233
        %v7235 = vlaneseq
        %v7236 = vshrl.u32 %v7235, 7
        %v7237 = vsub.s32 %v7234, %v7236
        %v7238 = vrot.slane %v7224, %v7237
        %v7239 = vcombine.low %v7231, %v7238
        %v7240 = vcombine.low %v4572, %v4573
        %v7241 = vcombine.low %v4574, %v4575
        %v7243 = vunpack.c.l.s4 1983009808
        %v7244 = vunpack.c.0.s8 %v7243
        %v7245 = vlaneseq
        %v7246 = vshrl.u32 %v7245, 7
        %v7247 = vsub.s32 %v7244, %v7246
        %v7248 = vrot.slane %v7240, %v7247
        %v7250 = vunpack.c.l.s4 1983009808
        %v7251 = vunpack.c.0.s8 %v7250
        %v7252 = vlaneseq
        %v7253 = vshrl.u32 %v7252, 7
        %v7254 = vsub.s32 %v7251, %v7253
        %v7255 = vrot.slane %v7241, %v7254
        %v7256 = vcombine.low %v7248, %v7255
        %v7257 = vcombine.low %v4577, %v4578
        %v7258 = vcombine.low %v4579, %v4580
        %v7260 = vunpack.c.l.s4 1983009808
        %v7261 = vunpack.c.0.s8 %v7260
        %v7262 = vlaneseq
        %v7263 = vshrl.u32 %v7262, 7
        %v7264 = vsub.s32 %v7261, %v7263
        %v7265 = vrot.slane %v7257, %v7264
        %v7267 = vunpack.c.l.s4 1983009808
        %v7268 = vunpack.c.0.s8 %v7267
        %v7269 = vlaneseq
        %v7270 = vshrl.u32 %v7269, 7
        %v7271 = vsub.s32 %v7268, %v7270
        %v7272 = vrot.slane %v7258, %v7271
        %v7273 = vcombine.low %v7265, %v7272
        %v7274 = vcombine.low %v4582, %v4583
        %v7275 = vcombine.low %v4584, %v4585
        %v7277 = vunpack.c.l.s4 1983009808
        %v7278 = vunpack.c.0.s8 %v7277
        %v7279 = vlaneseq
        %v7280 = vshrl.u32 %v7279, 7
        %v7281 = vsub.s32 %v7278, %v7280
        %v7282 = vrot.slane %v7274, %v7281
        %v7284 = vunpack.c.l.s4 1983009808
        %v7285 = vunpack.c.0.s8 %v7284
        %v7286 = vlaneseq
        %v7287 = vshrl.u32 %v7286, 7
        %v7288 = vsub.s32 %v7285, %v7287
        %v7289 = vrot.slane %v7275, %v7288
        %v7290 = vcombine.low %v7282, %v7289
        %v7291 = vcombine.low %v4587, %v4588
        %v7292 = vcombine.low %v4589, %v4590
        %v7294 = vunpack.c.l.s4 1983009808
        %v7295 = vunpack.c.0.s8 %v7294
        %v7296 = vlaneseq
        %v7297 = vshrl.u32 %v7296, 7
        %v7298 = vsub.s32 %v7295, %v7297
        %v7299 = vrot.slane %v7291, %v7298
        %v7301 = vunpack.c.l.s4 1983009808
        %v7302 = vunpack.c.0.s8 %v7301
        %v7303 = vlaneseq
        %v7304 = vshrl.u32 %v7303, 7
        %v7305 = vsub.s32 %v7302, %v7304
        %v7306 = vrot.slane %v7292, %v7305
        %v7307 = vcombine.low %v7299, %v7306
        %v7308 = vcombine.low %v4592, %v4593
        %v7309 = vcombine.low %v4594, %v4595
        %v7311 = vunpack.c.l.s4 1983009808
        %v7312 = vunpack.c.0.s8 %v7311
        %v7313 = vlaneseq
        %v7314 = vshrl.u32 %v7313, 7
        %v7315 = vsub.s32 %v7312, %v7314
        %v7316 = vrot.slane %v7308, %v7315
        %v7318 = vunpack.c.l.s4 1983009808
        %v7319 = vunpack.c.0.s8 %v7318
        %v7320 = vlaneseq
        %v7321 = vshrl.u32 %v7320, 7
        %v7322 = vsub.s32 %v7319, %v7321
        %v7323 = vrot.slane %v7309, %v7322
        %v7324 = vcombine.low %v7316, %v7323
        %v7325 = vcombine.low %v4607, %v4608
        %v7326 = vcombine.low %v4609, %v4610
        %v7328 = vunpack.c.l.s4 1983009808
        %v7329 = vunpack.c.0.s8 %v7328
        %v7330 = vlaneseq
        %v7331 = vshrl.u32 %v7330, 7
        %v7332 = vsub.s32 %v7329, %v7331
        %v7333 = vrot.slane %v7325, %v7332
        %v7335 = vunpack.c.l.s4 1983009808
        %v7336 = vunpack.c.0.s8 %v7335
        %v7337 = vlaneseq
        %v7338 = vshrl.u32 %v7337, 7
        %v7339 = vsub.s32 %v7336, %v7338
        %v7340 = vrot.slane %v7326, %v7339
        %v7341 = vcombine.low %v7333, %v7340
        %v7342 = vcombine.low %v4612, %v4613
        %v7343 = vcombine.low %v4614, %v4615
        %v7345 = vunpack.c.l.s4 1983009808
        %v7346 = vunpack.c.0.s8 %v7345
        %v7347 = vlaneseq
        %v7348 = vshrl.u32 %v7347, 7
        %v7349 = vsub.s32 %v7346, %v7348
        %v7350 = vrot.slane %v7342, %v7349
        %v7352 = vunpack.c.l.s4 1983009808
        %v7353 = vunpack.c.0.s8 %v7352
        %v7354 = vlaneseq
        %v7355 = vshrl.u32 %v7354, 7
        %v7356 = vsub.s32 %v7353, %v7355
        %v7357 = vrot.slane %v7343, %v7356
        %v7358 = vcombine.low %v7350, %v7357
        %v7359 = vcombine.low %v4617, %v4618
        %v7360 = vcombine.low %v4619, %v4620
        %v7362 = vunpack.c.l.s4 1983009808
        %v7363 = vunpack.c.0.s8 %v7362
        %v7364 = vlaneseq
        %v7365 = vshrl.u32 %v7364, 7
        %v7366 = vsub.s32 %v7363, %v7365
        %v7367 = vrot.slane %v7359, %v7366
        %v7369 = vunpack.c.l.s4 1983009808
        %v7370 = vunpack.c.0.s8 %v7369
        %v7371 = vlaneseq
        %v7372 = vshrl.u32 %v7371, 7
        %v7373 = vsub.s32 %v7370, %v7372
        %v7374 = vrot.slane %v7360, %v7373
        %v7375 = vcombine.low %v7367, %v7374
        %v7376 = vcombine.low %v4622, %v4623
        %v7377 = vcombine.low %v4624, %v4625
        %v7379 = vunpack.c.l.s4 1983009808
        %v7380 = vunpack.c.0.s8 %v7379
        %v7381 = vlaneseq
        %v7382 = vshrl.u32 %v7381, 7
        %v7383 = vsub.s32 %v7380, %v7382
        %v7384 = vrot.slane %v7376, %v7383
        %v7386 = vunpack.c.l.s4 1983009808
        %v7387 = vunpack.c.0.s8 %v7386
        %v7388 = vlaneseq
        %v7389 = vshrl.u32 %v7388, 7
        %v7390 = vsub.s32 %v7387, %v7389
        %v7391 = vrot.slane %v7377, %v7390
        %v7392 = vcombine.low %v7384, %v7391
        %v7393 = vcombine.low %v4627, %v4628
        %v7394 = vcombine.low %v4629, %v4630
        %v7396 = vunpack.c.l.s4 1983009808
        %v7397 = vunpack.c.0.s8 %v7396
        %v7398 = vlaneseq
        %v7399 = vshrl.u32 %v7398, 7
        %v7400 = vsub.s32 %v7397, %v7399
        %v7401 = vrot.slane %v7393, %v7400
        %v7403 = vunpack.c.l.s4 1983009808
        %v7404 = vunpack.c.0.s8 %v7403
        %v7405 = vlaneseq
        %v7406 = vshrl.u32 %v7405, 7
        %v7407 = vsub.s32 %v7404, %v7406
        %v7408 = vrot.slane %v7394, %v7407
        %v7409 = vcombine.low %v7401, %v7408
        %v7410 = vcombine.low %v4632, %v4633
        %v7411 = vcombine.low %v4634, %v4635
        %v7413 = vunpack.c.l.s4 1983009808
        %v7414 = vunpack.c.0.s8 %v7413
        %v7415 = vlaneseq
        %v7416 = vshrl.u32 %v7415, 7
        %v7417 = vsub.s32 %v7414, %v7416
        %v7418 = vrot.slane %v7410, %v7417
        %v7420 = vunpack.c.l.s4 1983009808
        %v7421 = vunpack.c.0.s8 %v7420
        %v7422 = vlaneseq
        %v7423 = vshrl.u32 %v7422, 7
        %v7424 = vsub.s32 %v7421, %v7423
        %v7425 = vrot.slane %v7411, %v7424
        %v7426 = vcombine.low %v7418, %v7425
        %v7427 = vcombine.low %v4637, %v4638
        %v7428 = vcombine.low %v4639, %v4640
        %v7430 = vunpack.c.l.s4 1983009808
        %v7431 = vunpack.c.0.s8 %v7430
        %v7432 = vlaneseq
        %v7433 = vshrl.u32 %v7432, 7
        %v7434 = vsub.s32 %v7431, %v7433
        %v7435 = vrot.slane %v7427, %v7434
        %v7437 = vunpack.c.l.s4 1983009808
        %v7438 = vunpack.c.0.s8 %v7437
        %v7439 = vlaneseq
        %v7440 = vshrl.u32 %v7439, 7
        %v7441 = vsub.s32 %v7438, %v7440
        %v7442 = vrot.slane %v7428, %v7441
        %v7443 = vcombine.low %v7435, %v7442
        %v7444 = vcombine.low %v4642, %v4643
        %v7445 = vcombine.low %v4644, %v4645
        %v7447 = vunpack.c.l.s4 1983009808
        %v7448 = vunpack.c.0.s8 %v7447
        %v7449 = vlaneseq
        %v7450 = vshrl.u32 %v7449, 7
        %v7451 = vsub.s32 %v7448, %v7450
        %v7452 = vrot.slane %v7444, %v7451
        %v7454 = vunpack.c.l.s4 1983009808
        %v7455 = vunpack.c.0.s8 %v7454
        %v7456 = vlaneseq
        %v7457 = vshrl.u32 %v7456, 7
        %v7458 = vsub.s32 %v7455, %v7457
        %v7459 = vrot.slane %v7445, %v7458
        %v7460 = vcombine.low %v7452, %v7459
        %v7461 = vsel %vm2390, %v6933, 0
        %v7463 = vsel %vm2390, %v6950, 0
        %v7465 = vsel %vm2390, %v6967, 0
        %v7467 = vsel %vm2390, %v6984, 0
        %v7469 = vsel %vm2390, %v7001, 0
        %v7471 = vsel %vm2390, %v7018, 0
        %v7473 = vsel %vm2390, %v7035, 0
        %v7475 = vsel %vm2390, %v7052, 0
        %v7477 = vsel %vm2390, %v7069, 0
        %v7479 = vsel %vm2390, %v7086, 0
        %v7481 = vsel %vm2390, %v7103, 0
        %v7483 = vsel %vm2390, %v7120, 0
        %v7485 = vsel %vm2390, %v7137, 0
        %v7487 = vsel %vm2390, %v7154, 0
        %v7489 = vsel %vm2390, %v7171, 0
        %v7491 = vsel %vm2390, %v7188, 0
        %v7493 = vsel %vm2390, %v7205, 0
        %v7495 = vsel %vm2390, %v7222, 0
        %v7497 = vsel %vm2390, %v7239, 0
        %v7499 = vsel %vm2390, %v7256, 0
        %v7501 = vsel %vm2390, %v7273, 0
        %v7503 = vsel %vm2390, %v7290, 0
        %v7505 = vsel %vm2390, %v7307, 0
        %v7507 = vsel %vm2390, %v7324, 0
        %v7509 = vsel %vm2390, %v7341, 0
        %v7511 = vsel %vm2390, %v7358, 0
        %v7513 = vsel %vm2390, %v7375, 0
        %v7515 = vsel %vm2390, %v7392, 0
        %v7517 = vsel %vm2390, %v7409, 0
        %v7519 = vsel %vm2390, %v7426, 0
        %v7521 = vsel %vm2390, %v7443, 0
        %v7523 = vsel %vm2390, %v7460, 0
        %7525 = vmatprep.subr.mxu0 0.0
        %7526 = vmatpush1.msra.mxu0 %v4658
        %7527 = vmatprep.subr.mxu0 0.0
        %7528 = vmatpush1.msra.mxu0 0.0
        %7529 = vmatprep.subr.mxu0 0.0
        %7530 = vmatpush1.msra.mxu0 0.0
        %7531 = vmatprep.subr.mxu0 0.0
        %7532 = vmatpush1.msra.mxu0 0.0
        %7533 = vmatprep.subr.mxu0 0.0
        %7534 = vmatpush1.msra.mxu0 0.0
        %7535 = vmatprep.subr.mxu0 0.0
        %7536 = vmatpush1.msra.mxu0 0.0
        %7537 = vmatprep.subr.mxu0 0.0
        %7538 = vmatpush1.msra.mxu0 0.0
        %7539 = vmatprep.subr.mxu0 0.0
        %7540 = vmatpush1.msra.mxu0 0.0
        %7541 = vmatprep.subr.mxu0 0.0
        %7542 = vmatpush1.msra.mxu0 0.0
        %7543 = vmatprep.subr.mxu0 0.0
        %7544 = vmatpush1.msra.mxu0 0.0
        %7545 = vmatprep.subr.mxu0 0.0
        %7546 = vmatpush1.msra.mxu0 0.0
        %7547 = vmatprep.subr.mxu0 0.0
        %7548 = vmatpush1.msra.mxu0 0.0
        %7549 = vmatprep.subr.mxu0 0.0
        %7550 = vmatpush1.msra.mxu0 0.0
        %7551 = vmatprep.subr.mxu0 0.0
        %7552 = vmatpush1.msra.mxu0 0.0
        %7553 = vmatprep.subr.mxu0 0.0
        %7554 = vmatpush1.msra.mxu0 0.0
        %7555 = vmatprep.subr.mxu0 0.0
        %7556 = vmatpush1.msra.mxu0 0.0
        %7557 = vmatprep.subr.mxu0 0.0
        %7558 = vmatpush1.msra.mxu0 0.0
        %7559 = vmatprep.subr.mxu0 0.0
        %7560 = vmatpush1.msra.mxu0 0.0
        %7561 = vmatprep.subr.mxu0 0.0
        %7562 = vmatpush1.msra.mxu0 0.0
        %7563 = vmatprep.subr.mxu0 0.0
        %7564 = vmatpush1.msra.mxu0 0.0
        %7565 = vmatprep.subr.mxu0 0.0
        %7566 = vmatpush1.msra.mxu0 0.0
        %7567 = vmatprep.subr.mxu0 0.0
        %7568 = vmatpush1.msra.mxu0 0.0
        %7569 = vmatprep.subr.mxu0 0.0
        %7570 = vmatpush1.msra.mxu0 0.0
        %7571 = vmatprep.subr.mxu0 0.0
        %7572 = vmatpush1.msra.mxu0 0.0
        %7573 = vmatprep.subr.mxu0 0.0
        %7574 = vmatpush1.msra.mxu0 0.0
        %7575 = vmatprep.subr.mxu0 0.0
        %7576 = vmatpush1.msra.mxu0 0.0
        %7577 = vmatprep.subr.mxu0 0.0
        %7578 = vmatpush1.msra.mxu0 0.0
        %7579 = vmatprep.subr.mxu0 0.0
        %7580 = vmatpush1.msra.mxu0 0.0
        %7581 = vmatprep.subr.mxu0 0.0
        %7582 = vmatpush1.msra.mxu0 0.0
        %7583 = vmatprep.subr.mxu0 0.0
        %7584 = vmatpush1.msra.mxu0 0.0
        %7585 = vmatprep.subr.mxu0 0.0
        %7586 = vmatpush1.msra.mxu0 0.0
        %7587 = vmatprep.subr.mxu0 0.0
        %7588 = vmatpush1.msra.mxu0 0.0
        %7589 = vmatprep.mubr.f32.mxu0 0.0
        %7590 = vmatmul.mubr.f32.gmra.mrb[0].mxu0 %v7461
        %v7591 = vpop.f32.mrb[0].mxu0
        %v7592 = vadd.f32 0.0, %v7591
        %v7593 = vpop.f32.mrb[0].mxu0
        %7594 = vmatprep.mubr.f32.mxu0 0.0
        %7595 = vmatmul.mubr.f32.gmra.mrb[0].mxu0 %v7463
        %v7596 = vpop.f32.mrb[0].mxu0
        %v7597 = vadd.f32 0.0, %v7596
        %v7598 = vpop.f32.mrb[0].mxu0
        %7599 = vmatprep.mubr.f32.mxu0 0.0
        %7600 = vmatmul.mubr.f32.gmra.mrb[0].mxu0 %v7465
        %v7601 = vpop.f32.mrb[0].mxu0
        %v7602 = vadd.f32 0.0, %v7601
        %v7603 = vpop.f32.mrb[0].mxu0
        %7604 = vmatprep.mubr.f32.mxu0 0.0
        %7605 = vmatmul.mubr.f32.gmra.mrb[0].mxu0 %v7467
        %v7606 = vpop.f32.mrb[0].mxu0
        %v7607 = vadd.f32 0.0, %v7606
        %v7608 = vpop.f32.mrb[0].mxu0
        %7609 = vmatprep.mubr.f32.mxu0 0.0
        %7610 = vmatmul.mubr.f32.gmra.mrb[0].mxu0 %v7469
        %v7611 = vpop.f32.mrb[0].mxu0
        %v7612 = vadd.f32 0.0, %v7611
        %v7613 = vpop.f32.mrb[0].mxu0
        %7614 = vmatprep.mubr.f32.mxu0 0.0
        %7615 = vmatmul.mubr.f32.gmra.mrb[0].mxu0 %v7471
        %v7616 = vpop.f32.mrb[0].mxu0
        %v7617 = vadd.f32 0.0, %v7616
        %v7618 = vpop.f32.mrb[0].mxu0
        %7619 = vmatprep.mubr.f32.mxu0 0.0
        %7620 = vmatmul.mubr.f32.gmra.mrb[0].mxu0 %v7473
        %v7621 = vpop.f32.mrb[0].mxu0
        %v7622 = vadd.f32 0.0, %v7621
        %v7623 = vpop.f32.mrb[0].mxu0
        %7624 = vmatprep.mubr.f32.mxu0 0.0
        %7625 = vmatmul.mubr.f32.gmra.mrb[0].mxu0 %v7475
        %v7626 = vpop.f32.mrb[0].mxu0
        %v7627 = vadd.f32 0.0, %v7626
        %v7628 = vpop.f32.mrb[0].mxu0
        %7629 = vmatprep.mubr.f32.mxu0 0.0
        %7630 = vmatmul.mubr.f32.gmra.mrb[0].mxu0 %v7477
        %v7631 = vpop.f32.mrb[0].mxu0
        %v7632 = vadd.f32 0.0, %v7631
        %v7633 = vpop.f32.mrb[0].mxu0
        %7634 = vmatprep.mubr.f32.mxu0 0.0
        %7635 = vmatmul.mubr.f32.gmra.mrb[0].mxu0 %v7479
        %v7636 = vpop.f32.mrb[0].mxu0
        %v7637 = vadd.f32 0.0, %v7636
        %v7638 = vpop.f32.mrb[0].mxu0
        %7639 = vmatprep.mubr.f32.mxu0 0.0
        %7640 = vmatmul.mubr.f32.gmra.mrb[0].mxu0 %v7481
        %v7641 = vpop.f32.mrb[0].mxu0
        %v7642 = vadd.f32 0.0, %v7641
        %v7643 = vpop.f32.mrb[0].mxu0
        %7644 = vmatprep.mubr.f32.mxu0 0.0
        %7645 = vmatmul.mubr.f32.gmra.mrb[0].mxu0 %v7483
        %v7646 = vpop.f32.mrb[0].mxu0
        %v7647 = vadd.f32 0.0, %v7646
        %v7648 = vpop.f32.mrb[0].mxu0
        %7649 = vmatprep.mubr.f32.mxu0 0.0
        %7650 = vmatmul.mubr.f32.gmra.mrb[0].mxu0 %v7485
        %v7651 = vpop.f32.mrb[0].mxu0
        %v7652 = vadd.f32 0.0, %v7651
        %v7653 = vpop.f32.mrb[0].mxu0
        %7654 = vmatprep.mubr.f32.mxu0 0.0
        %7655 = vmatmul.mubr.f32.gmra.mrb[0].mxu0 %v7487
        %v7656 = vpop.f32.mrb[0].mxu0
        %v7657 = vadd.f32 0.0, %v7656
        %v7658 = vpop.f32.mrb[0].mxu0
        %7659 = vmatprep.mubr.f32.mxu0 0.0
        %7660 = vmatmul.mubr.f32.gmra.mrb[0].mxu0 %v7489
        %v7661 = vpop.f32.mrb[0].mxu0
        %v7662 = vadd.f32 0.0, %v7661
        %v7663 = vpop.f32.mrb[0].mxu0
        %7664 = vmatprep.mubr.f32.mxu0 0.0
        %7665 = vmatmul.mubr.f32.gmra.mrb[0].mxu0 %v7491
        %v7666 = vpop.f32.mrb[0].mxu0
        %v7667 = vadd.f32 0.0, %v7666
        %v7668 = vpop.f32.mrb[0].mxu0
        %7669 = vmatprep.mubr.f32.mxu0 0.0
        %7670 = vmatmul.mubr.f32.gmra.mrb[0].mxu0 %v7493
        %v7671 = vpop.f32.mrb[0].mxu0
        %v7672 = vadd.f32 0.0, %v7671
        %v7673 = vpop.f32.mrb[0].mxu0
        %7674 = vmatprep.mubr.f32.mxu0 0.0
        %7675 = vmatmul.mubr.f32.gmra.mrb[0].mxu0 %v7495
        %v7676 = vpop.f32.mrb[0].mxu0
        %v7677 = vadd.f32 0.0, %v7676
        %v7678 = vpop.f32.mrb[0].mxu0
        %7679 = vmatprep.mubr.f32.mxu0 0.0
        %7680 = vmatmul.mubr.f32.gmra.mrb[0].mxu0 %v7497
        %v7681 = vpop.f32.mrb[0].mxu0
        %v7682 = vadd.f32 0.0, %v7681
        %v7683 = vpop.f32.mrb[0].mxu0
        %7684 = vmatprep.mubr.f32.mxu0 0.0
        %7685 = vmatmul.mubr.f32.gmra.mrb[0].mxu0 %v7499
        %v7686 = vpop.f32.mrb[0].mxu0
        %v7687 = vadd.f32 0.0, %v7686
        %v7688 = vpop.f32.mrb[0].mxu0
        %7689 = vmatprep.mubr.f32.mxu0 0.0
        %7690 = vmatmul.mubr.f32.gmra.mrb[0].mxu0 %v7501
        %v7691 = vpop.f32.mrb[0].mxu0
        %v7692 = vadd.f32 0.0, %v7691
        %v7693 = vpop.f32.mrb[0].mxu0
        %7694 = vmatprep.mubr.f32.mxu0 0.0
        %7695 = vmatmul.mubr.f32.gmra.mrb[0].mxu0 %v7503
        %v7696 = vpop.f32.mrb[0].mxu0
        %v7697 = vadd.f32 0.0, %v7696
        %v7698 = vpop.f32.mrb[0].mxu0
        %7699 = vmatprep.mubr.f32.mxu0 0.0
        %7700 = vmatmul.mubr.f32.gmra.mrb[0].mxu0 %v7505
        %v7701 = vpop.f32.mrb[0].mxu0
        %v7702 = vadd.f32 0.0, %v7701
        %v7703 = vpop.f32.mrb[0].mxu0
        %7704 = vmatprep.mubr.f32.mxu0 0.0
        %7705 = vmatmul.mubr.f32.gmra.mrb[0].mxu0 %v7507
        %v7706 = vpop.f32.mrb[0].mxu0
        %v7707 = vadd.f32 0.0, %v7706
        %v7708 = vpop.f32.mrb[0].mxu0
        %7709 = vmatprep.mubr.f32.mxu0 0.0
        %7710 = vmatmul.mubr.f32.gmra.mrb[0].mxu0 %v7509
        %v7711 = vpop.f32.mrb[0].mxu0
        %v7712 = vadd.f32 0.0, %v7711
        %v7713 = vpop.f32.mrb[0].mxu0
        %7714 = vmatprep.mubr.f32.mxu0 0.0
        %7715 = vmatmul.mubr.f32.gmra.mrb[0].mxu0 %v7511
        %v7716 = vpop.f32.mrb[0].mxu0
        %v7717 = vadd.f32 0.0, %v7716
        %v7718 = vpop.f32.mrb[0].mxu0
        %7719 = vmatprep.mubr.f32.mxu0 0.0
        %7720 = vmatmul.mubr.f32.gmra.mrb[0].mxu0 %v7513
        %v7721 = vpop.f32.mrb[0].mxu0
        %v7722 = vadd.f32 0.0, %v7721
        %v7723 = vpop.f32.mrb[0].mxu0
        %7724 = vmatprep.mubr.f32.mxu0 0.0
        %7725 = vmatmul.mubr.f32.gmra.mrb[0].mxu0 %v7515
        %v7726 = vpop.f32.mrb[0].mxu0
        %v7727 = vadd.f32 0.0, %v7726
        %v7728 = vpop.f32.mrb[0].mxu0
        %7729 = vmatprep.mubr.f32.mxu0 0.0
        %7730 = vmatmul.mubr.f32.gmra.mrb[0].mxu0 %v7517
        %v7731 = vpop.f32.mrb[0].mxu0
        %v7732 = vadd.f32 0.0, %v7731
        %v7733 = vpop.f32.mrb[0].mxu0
        %7734 = vmatprep.mubr.f32.mxu0 0.0
        %7735 = vmatmul.mubr.f32.gmra.mrb[0].mxu0 %v7519
        %v7736 = vpop.f32.mrb[0].mxu0
        %v7737 = vadd.f32 0.0, %v7736
        %v7738 = vpop.f32.mrb[0].mxu0
        %7739 = vmatprep.mubr.f32.mxu0 0.0
        %7740 = vmatmul.mubr.f32.gmra.mrb[0].mxu0 %v7521
        %v7741 = vpop.f32.mrb[0].mxu0
        %v7742 = vadd.f32 0.0, %v7741
        %v7743 = vpop.f32.mrb[0].mxu0
        %7744 = vmatprep.mubr.f32.mxu0 0.0
        %7745 = vmatmul.mubr.f32.gmra.mrb[0].mxu0 %v7523
        %v7746 = vpop.f32.mrb[0].mxu0
        %v7747 = vadd.f32 0.0, %v7746
        %v7748 = vpop.f32.mrb[0].mxu0
        %7749 = vdwg.mxu0
        %v7750 = vadd.f32 %v6759, %v7592
        %v7751 = vadd.f32 %v6764, %v7597
        %v7752 = vadd.f32 %v6769, %v7602
        %v7753 = vadd.f32 %v6774, %v7607
        %v7754 = vadd.f32 %v6779, %v7612
        %v7755 = vadd.f32 %v6784, %v7617
        %v7756 = vadd.f32 %v6789, %v7622
        %v7757 = vadd.f32 %v6794, %v7627
        %v7758 = vadd.f32 %v6799, %v7632
        %v7759 = vadd.f32 %v6804, %v7637
        %v7760 = vadd.f32 %v6809, %v7642
        %v7761 = vadd.f32 %v6814, %v7647
        %v7762 = vadd.f32 %v6819, %v7652
        %v7763 = vadd.f32 %v6824, %v7657
        %v7764 = vadd.f32 %v6829, %v7662
        %v7765 = vadd.f32 %v6834, %v7667
        %v7766 = vadd.f32 %v6839, %v7672
        %v7767 = vadd.f32 %v6844, %v7677
        %v7768 = vadd.f32 %v6849, %v7682
        %v7769 = vadd.f32 %v6854, %v7687
        %v7770 = vadd.f32 %v6859, %v7692
        %v7771 = vadd.f32 %v6864, %v7697
        %v7772 = vadd.f32 %v6869, %v7702
        %v7773 = vadd.f32 %v6874, %v7707
        %v7774 = vadd.f32 %v6879, %v7712
        %v7775 = vadd.f32 %v6884, %v7717
        %v7776 = vadd.f32 %v6889, %v7722
        %v7777 = vadd.f32 %v6894, %v7727
        %v7778 = vadd.f32 %v6899, %v7732
        %v7779 = vadd.f32 %v6904, %v7737
        %v7780 = vadd.f32 %v6909, %v7742
        %v7781 = vadd.f32 %v6914, %v7747
        %v7798 = vcombine.low %v4496, %v4497
        %v7799 = vcombine.low %v4498, %v4499
        %v7801 = vunpack.c.l.s4 1983009808
        %v7802 = vunpack.c.0.s8 %v7801
        %v7803 = vlaneseq
        %v7804 = vshrl.u32 %v7803, 7
        %v7805 = vsub.s32 %v7802, %v7804
        %v7806 = vrot.slane %v7798, %v7805
        %v7808 = vunpack.c.l.s4 1983009808
        %v7809 = vunpack.c.0.s8 %v7808
        %v7810 = vlaneseq
        %v7811 = vshrl.u32 %v7810, 7
        %v7812 = vsub.s32 %v7809, %v7811
        %v7813 = vrot.slane %v7799, %v7812
        %v7814 = vcombine.low %v7806, %v7813
        %v7815 = vcombine.low %v4546, %v4547
        %v7816 = vcombine.low %v4548, %v4549
        %v7818 = vunpack.c.l.s4 1983009808
        %v7819 = vunpack.c.0.s8 %v7818
        %v7820 = vlaneseq
        %v7821 = vshrl.u32 %v7820, 7
        %v7822 = vsub.s32 %v7819, %v7821
        %v7823 = vrot.slane %v7815, %v7822
        %v7825 = vunpack.c.l.s4 1983009808
        %v7826 = vunpack.c.0.s8 %v7825
        %v7827 = vlaneseq
        %v7828 = vshrl.u32 %v7827, 7
        %v7829 = vsub.s32 %v7826, %v7828
        %v7830 = vrot.slane %v7816, %v7829
        %v7831 = vcombine.low %v7823, %v7830
        %v7832 = vcombine.low %v4596, %v4597
        %v7833 = vcombine.low %v4598, %v4599
        %v7835 = vunpack.c.l.s4 1983009808
        %v7836 = vunpack.c.0.s8 %v7835
        %v7837 = vlaneseq
        %v7838 = vshrl.u32 %v7837, 7
        %v7839 = vsub.s32 %v7836, %v7838
        %v7840 = vrot.slane %v7832, %v7839
        %v7842 = vunpack.c.l.s4 1983009808
        %v7843 = vunpack.c.0.s8 %v7842
        %v7844 = vlaneseq
        %v7845 = vshrl.u32 %v7844, 7
        %v7846 = vsub.s32 %v7843, %v7845
        %v7847 = vrot.slane %v7833, %v7846
        %v7848 = vcombine.low %v7840, %v7847
        %v7849 = vcombine.low %v4646, %v4647
        %v7850 = vcombine.low %v4648, %v4649
        %v7852 = vunpack.c.l.s4 1983009808
        %v7853 = vunpack.c.0.s8 %v7852
        %v7854 = vlaneseq
        %v7855 = vshrl.u32 %v7854, 7
        %v7856 = vsub.s32 %v7853, %v7855
        %v7857 = vrot.slane %v7849, %v7856
        %v7859 = vunpack.c.l.s4 1983009808
        %v7860 = vunpack.c.0.s8 %v7859
        %v7861 = vlaneseq
        %v7862 = vshrl.u32 %v7861, 7
        %v7863 = vsub.s32 %v7860, %v7862
        %v7864 = vrot.slane %v7850, %v7863
        %v7865 = vcombine.low %v7857, %v7864
        %v7866 = vsel %vm2390, %v7814, 0
        %v7868 = vsel %vm2390, %v7831, 0
        %v7870 = vsel %vm2390, %v7848, 0
        %v7872 = vsel %vm2390, %v7865, 0
        %7874 = vmatprep.subr.mxu0 0.0
        %7875 = vmatpush1.msra.mxu0 %v4659
        %7876 = vmatprep.subr.mxu0 0.0
        %7877 = vmatpush1.msra.mxu0 0.0
        %7878 = vmatprep.subr.mxu0 0.0
        %7879 = vmatpush1.msra.mxu0 0.0
        %7880 = vmatprep.subr.mxu0 0.0
        %7881 = vmatpush1.msra.mxu0 0.0
        %7882 = vmatprep.subr.mxu0 0.0
        %7883 = vmatpush1.msra.mxu0 0.0
        %7884 = vmatprep.subr.mxu0 0.0
        %7885 = vmatpush1.msra.mxu0 0.0
        %7886 = vmatprep.subr.mxu0 0.0
        %7887 = vmatpush1.msra.mxu0 0.0
        %7888 = vmatprep.subr.mxu0 0.0
        %7889 = vmatpush1.msra.mxu0 0.0
        %7890 = vmatprep.subr.mxu0 0.0
        %7891 = vmatpush1.msra.mxu0 0.0
        %7892 = vmatprep.subr.mxu0 0.0
        %7893 = vmatpush1.msra.mxu0 0.0
        %7894 = vmatprep.subr.mxu0 0.0
        %7895 = vmatpush1.msra.mxu0 0.0
        %7896 = vmatprep.subr.mxu0 0.0
        %7897 = vmatpush1.msra.mxu0 0.0
        %7898 = vmatprep.subr.mxu0 0.0
        %7899 = vmatpush1.msra.mxu0 0.0
        %7900 = vmatprep.subr.mxu0 0.0
        %7901 = vmatpush1.msra.mxu0 0.0
        %7902 = vmatprep.subr.mxu0 0.0
        %7903 = vmatpush1.msra.mxu0 0.0
        %7904 = vmatprep.subr.mxu0 0.0
        %7905 = vmatpush1.msra.mxu0 0.0
        %7906 = vmatprep.subr.mxu0 0.0
        %7907 = vmatpush1.msra.mxu0 0.0
        %7908 = vmatprep.subr.mxu0 0.0
        %7909 = vmatpush1.msra.mxu0 0.0
        %7910 = vmatprep.subr.mxu0 0.0
        %7911 = vmatpush1.msra.mxu0 0.0
        %7912 = vmatprep.subr.mxu0 0.0
        %7913 = vmatpush1.msra.mxu0 0.0
        %7914 = vmatprep.subr.mxu0 0.0
        %7915 = vmatpush1.msra.mxu0 0.0
        %7916 = vmatprep.subr.mxu0 0.0
        %7917 = vmatpush1.msra.mxu0 0.0
        %7918 = vmatprep.subr.mxu0 0.0
        %7919 = vmatpush1.msra.mxu0 0.0
        %7920 = vmatprep.subr.mxu0 0.0
        %7921 = vmatpush1.msra.mxu0 0.0
        %7922 = vmatprep.subr.mxu0 0.0
        %7923 = vmatpush1.msra.mxu0 0.0
        %7924 = vmatprep.subr.mxu0 0.0
        %7925 = vmatpush1.msra.mxu0 0.0
        %7926 = vmatprep.subr.mxu0 0.0
        %7927 = vmatpush1.msra.mxu0 0.0
        %7928 = vmatprep.subr.mxu0 0.0
        %7929 = vmatpush1.msra.mxu0 0.0
        %7930 = vmatprep.subr.mxu0 0.0
        %7931 = vmatpush1.msra.mxu0 0.0
        %7932 = vmatprep.subr.mxu0 0.0
        %7933 = vmatpush1.msra.mxu0 0.0
        %7934 = vmatprep.subr.mxu0 0.0
        %7935 = vmatpush1.msra.mxu0 0.0
        %7936 = vmatprep.subr.mxu0 0.0
        %7937 = vmatpush1.msra.mxu0 0.0
        %7938 = vmatprep.mubr.f32.mxu0 0.0
        %7939 = vmatmul.mubr.f32.gmra.mrb[0].mxu0 %v6630
        %v7940 = vpop.f32.mrb[0].mxu0
        %v7941 = vadd.f32 0.0, %v7940
        %v7942 = vpop.f32.mrb[0].mxu0
        %7943 = vmatprep.mubr.f32.mxu0 0.0
        %7944 = vmatmul.mubr.f32.gmra.mrb[0].mxu0 %v6632
        %v7945 = vpop.f32.mrb[0].mxu0
        %v7946 = vadd.f32 0.0, %v7945
        %v7947 = vpop.f32.mrb[0].mxu0
        %7948 = vmatprep.mubr.f32.mxu0 0.0
        %7949 = vmatmul.mubr.f32.gmra.mrb[0].mxu0 %v6634
        %v7950 = vpop.f32.mrb[0].mxu0
        %v7951 = vadd.f32 0.0, %v7950
        %v7952 = vpop.f32.mrb[0].mxu0
        %7953 = vmatprep.mubr.f32.mxu0 0.0
        %7954 = vmatmul.mubr.f32.gmra.mrb[0].mxu0 %v6636
        %v7955 = vpop.f32.mrb[0].mxu0
        %v7956 = vadd.f32 0.0, %v7955
        %v7957 = vpop.f32.mrb[0].mxu0
        %7958 = vmatprep.mubr.f32.mxu0 0.0
        %7959 = vmatmul.mubr.f32.gmra.mrb[0].mxu0 %v6638
        %v7960 = vpop.f32.mrb[0].mxu0
        %v7961 = vadd.f32 0.0, %v7960
        %v7962 = vpop.f32.mrb[0].mxu0
        %7963 = vmatprep.mubr.f32.mxu0 0.0
        %7964 = vmatmul.mubr.f32.gmra.mrb[0].mxu0 %v6640
        %v7965 = vpop.f32.mrb[0].mxu0
        %v7966 = vadd.f32 0.0, %v7965
        %v7967 = vpop.f32.mrb[0].mxu0
        %7968 = vmatprep.mubr.f32.mxu0 0.0
        %7969 = vmatmul.mubr.f32.gmra.mrb[0].mxu0 %v6642
        %v7970 = vpop.f32.mrb[0].mxu0
        %v7971 = vadd.f32 0.0, %v7970
        %v7972 = vpop.f32.mrb[0].mxu0
        %7973 = vmatprep.mubr.f32.mxu0 0.0
        %7974 = vmatmul.mubr.f32.gmra.mrb[0].mxu0 %v7866
        %v7975 = vpop.f32.mrb[0].mxu0
        %v7976 = vadd.f32 0.0, %v7975
        %v7977 = vpop.f32.mrb[0].mxu0
        %7978 = vmatprep.mubr.f32.mxu0 0.0
        %7979 = vmatmul.mubr.f32.gmra.mrb[0].mxu0 %v6646
        %v7980 = vpop.f32.mrb[0].mxu0
        %v7981 = vadd.f32 0.0, %v7980
        %v7982 = vpop.f32.mrb[0].mxu0
        %7983 = vmatprep.mubr.f32.mxu0 0.0
        %7984 = vmatmul.mubr.f32.gmra.mrb[0].mxu0 %v6648
        %v7985 = vpop.f32.mrb[0].mxu0
        %v7986 = vadd.f32 0.0, %v7985
        %v7987 = vpop.f32.mrb[0].mxu0
        %7988 = vmatprep.mubr.f32.mxu0 0.0
        %7989 = vmatmul.mubr.f32.gmra.mrb[0].mxu0 %v6650
        %v7990 = vpop.f32.mrb[0].mxu0
        %v7991 = vadd.f32 0.0, %v7990
        %v7992 = vpop.f32.mrb[0].mxu0
        %7993 = vmatprep.mubr.f32.mxu0 0.0
        %7994 = vmatmul.mubr.f32.gmra.mrb[0].mxu0 %v6652
        %v7995 = vpop.f32.mrb[0].mxu0
        %v7996 = vadd.f32 0.0, %v7995
        %v7997 = vpop.f32.mrb[0].mxu0
        %7998 = vmatprep.mubr.f32.mxu0 0.0
        %7999 = vmatmul.mubr.f32.gmra.mrb[0].mxu0 %v6654
        %v8000 = vpop.f32.mrb[0].mxu0
        %v8001 = vadd.f32 0.0, %v8000
        %v8002 = vpop.f32.mrb[0].mxu0
        %8003 = vmatprep.mubr.f32.mxu0 0.0
        %8004 = vmatmul.mubr.f32.gmra.mrb[0].mxu0 %v6656
        %v8005 = vpop.f32.mrb[0].mxu0
        %v8006 = vadd.f32 0.0, %v8005
        %v8007 = vpop.f32.mrb[0].mxu0
        %8008 = vmatprep.mubr.f32.mxu0 0.0
        %8009 = vmatmul.mubr.f32.gmra.mrb[0].mxu0 %v6658
        %v8010 = vpop.f32.mrb[0].mxu0
        %v8011 = vadd.f32 0.0, %v8010
        %v8012 = vpop.f32.mrb[0].mxu0
        %8013 = vmatprep.mubr.f32.mxu0 0.0
        %8014 = vmatmul.mubr.f32.gmra.mrb[0].mxu0 %v7868
        %v8015 = vpop.f32.mrb[0].mxu0
        %v8016 = vadd.f32 0.0, %v8015
        %v8017 = vpop.f32.mrb[0].mxu0
        %8018 = vmatprep.mubr.f32.mxu0 0.0
        %8019 = vmatmul.mubr.f32.gmra.mrb[0].mxu0 %v6662
        %v8020 = vpop.f32.mrb[0].mxu0
        %v8021 = vadd.f32 0.0, %v8020
        %v8022 = vpop.f32.mrb[0].mxu0
        %8023 = vmatprep.mubr.f32.mxu0 0.0
        %8024 = vmatmul.mubr.f32.gmra.mrb[0].mxu0 %v6664
        %v8025 = vpop.f32.mrb[0].mxu0
        %v8026 = vadd.f32 0.0, %v8025
        %v8027 = vpop.f32.mrb[0].mxu0
        %8028 = vmatprep.mubr.f32.mxu0 0.0
        %8029 = vmatmul.mubr.f32.gmra.mrb[0].mxu0 %v6666
        %v8030 = vpop.f32.mrb[0].mxu0
        %v8031 = vadd.f32 0.0, %v8030
        %v8032 = vpop.f32.mrb[0].mxu0
        %8033 = vmatprep.mubr.f32.mxu0 0.0
        %8034 = vmatmul.mubr.f32.gmra.mrb[0].mxu0 %v6668
        %v8035 = vpop.f32.mrb[0].mxu0
        %v8036 = vadd.f32 0.0, %v8035
        %v8037 = vpop.f32.mrb[0].mxu0
        %8038 = vmatprep.mubr.f32.mxu0 0.0
        %8039 = vmatmul.mubr.f32.gmra.mrb[0].mxu0 %v6670
        %v8040 = vpop.f32.mrb[0].mxu0
        %v8041 = vadd.f32 0.0, %v8040
        %v8042 = vpop.f32.mrb[0].mxu0
        %8043 = vmatprep.mubr.f32.mxu0 0.0
        %8044 = vmatmul.mubr.f32.gmra.mrb[0].mxu0 %v6672
        %v8045 = vpop.f32.mrb[0].mxu0
        %v8046 = vadd.f32 0.0, %v8045
        %v8047 = vpop.f32.mrb[0].mxu0
        %8048 = vmatprep.mubr.f32.mxu0 0.0
        %8049 = vmatmul.mubr.f32.gmra.mrb[0].mxu0 %v6674
        %v8050 = vpop.f32.mrb[0].mxu0
        %v8051 = vadd.f32 0.0, %v8050
        %v8052 = vpop.f32.mrb[0].mxu0
        %8053 = vmatprep.mubr.f32.mxu0 0.0
        %8054 = vmatmul.mubr.f32.gmra.mrb[0].mxu0 %v7870
        %v8055 = vpop.f32.mrb[0].mxu0
        %v8056 = vadd.f32 0.0, %v8055
        %v8057 = vpop.f32.mrb[0].mxu0
        %8058 = vmatprep.mubr.f32.mxu0 0.0
        %8059 = vmatmul.mubr.f32.gmra.mrb[0].mxu0 %v6678
        %v8060 = vpop.f32.mrb[0].mxu0
        %v8061 = vadd.f32 0.0, %v8060
        %v8062 = vpop.f32.mrb[0].mxu0
        %8063 = vmatprep.mubr.f32.mxu0 0.0
        %8064 = vmatmul.mubr.f32.gmra.mrb[0].mxu0 %v6680
        %v8065 = vpop.f32.mrb[0].mxu0
        %v8066 = vadd.f32 0.0, %v8065
        %v8067 = vpop.f32.mrb[0].mxu0
        %8068 = vmatprep.mubr.f32.mxu0 0.0
        %8069 = vmatmul.mubr.f32.gmra.mrb[0].mxu0 %v6682
        %v8070 = vpop.f32.mrb[0].mxu0
        %v8071 = vadd.f32 0.0, %v8070
        %v8072 = vpop.f32.mrb[0].mxu0
        %8073 = vmatprep.mubr.f32.mxu0 0.0
        %8074 = vmatmul.mubr.f32.gmra.mrb[0].mxu0 %v6684
        %v8075 = vpop.f32.mrb[0].mxu0
        %v8076 = vadd.f32 0.0, %v8075
        %v8077 = vpop.f32.mrb[0].mxu0
        %8078 = vmatprep.mubr.f32.mxu0 0.0
        %8079 = vmatmul.mubr.f32.gmra.mrb[0].mxu0 %v6686
        %v8080 = vpop.f32.mrb[0].mxu0
        %v8081 = vadd.f32 0.0, %v8080
        %v8082 = vpop.f32.mrb[0].mxu0
        %8083 = vmatprep.mubr.f32.mxu0 0.0
        %8084 = vmatmul.mubr.f32.gmra.mrb[0].mxu0 %v6688
        %v8085 = vpop.f32.mrb[0].mxu0
        %v8086 = vadd.f32 0.0, %v8085
        %v8087 = vpop.f32.mrb[0].mxu0
        %8088 = vmatprep.mubr.f32.mxu0 0.0
        %8089 = vmatmul.mubr.f32.gmra.mrb[0].mxu0 %v6690
        %v8090 = vpop.f32.mrb[0].mxu0
        %v8091 = vadd.f32 0.0, %v8090
        %v8092 = vpop.f32.mrb[0].mxu0
        %8093 = vmatprep.mubr.f32.mxu0 0.0
        %8094 = vmatmul.mubr.f32.gmra.mrb[0].mxu0 %v7872
        %v8095 = vpop.f32.mrb[0].mxu0
        %v8096 = vadd.f32 0.0, %v8095
        %v8097 = vpop.f32.mrb[0].mxu0
        %8098 = vdwg.mxu0
        %v8099 = vadd.f32 %v7750, %v7941
        %v8100 = vadd.f32 %v7751, %v7946
        %v8101 = vadd.f32 %v7752, %v7951
        %v8102 = vadd.f32 %v7753, %v7956
        %v8103 = vadd.f32 %v7754, %v7961
        %v8104 = vadd.f32 %v7755, %v7966
        %v8105 = vadd.f32 %v7756, %v7971
        %v8106 = vadd.f32 %v7757, %v7976
        %v8107 = vadd.f32 %v7758, %v7981
        %v8108 = vadd.f32 %v7759, %v7986
        %v8109 = vadd.f32 %v7760, %v7991
        %v8110 = vadd.f32 %v7761, %v7996
        %v8111 = vadd.f32 %v7762, %v8001
        %v8112 = vadd.f32 %v7763, %v8006
        %v8113 = vadd.f32 %v7764, %v8011
        %v8114 = vadd.f32 %v7765, %v8016
        %v8115 = vadd.f32 %v7766, %v8021
        %v8116 = vadd.f32 %v7767, %v8026
        %v8117 = vadd.f32 %v7768, %v8031
        %v8118 = vadd.f32 %v7769, %v8036
        %v8119 = vadd.f32 %v7770, %v8041
        %v8120 = vadd.f32 %v7771, %v8046
        %v8121 = vadd.f32 %v7772, %v8051
        %v8122 = vadd.f32 %v7773, %v8056
        %v8123 = vadd.f32 %v7774, %v8061
        %v8124 = vadd.f32 %v7775, %v8066
        %v8125 = vadd.f32 %v7776, %v8071
        %v8126 = vadd.f32 %v7777, %v8076
        %v8127 = vadd.f32 %v7778, %v8081
        %v8128 = vadd.f32 %v7779, %v8086
        %v8129 = vadd.f32 %v7780, %v8091
        %v8130 = vadd.f32 %v7781, %v8096
        %v8135 = vrot.slane %v4496, 7
        %v8136 = vrot.slane %v8135, 2
        %v8137 = vrot.slane %v4497, 7
        %v8138 = vsel %vm4834, %v8136, %v8137
        %v8139 = vrot.slane %v8137, 2
        %v8140 = vrot.slane %v4498, 7
        %v8141 = vsel %vm4834, %v8139, %v8140
        %v8142 = vrot.slane %v8140, 2
        %v8143 = vrot.slane %v4499, 7
        %v8144 = vsel %vm4834, %v8142, %v8143
        %v8145 = vrot.slane %v8143, 2
        %v8146 = vrot.slane %v4500, 7
        %v8147 = vsel %vm4834, %v8145, %v8146
        %v8148 = vrot.slane %v4546, 7
        %v8149 = vrot.slane %v8148, 2
        %v8150 = vrot.slane %v4547, 7
        %v8151 = vsel %vm4834, %v8149, %v8150
        %v8152 = vrot.slane %v8150, 2
        %v8153 = vrot.slane %v4548, 7
        %v8154 = vsel %vm4834, %v8152, %v8153
        %v8155 = vrot.slane %v8153, 2
        %v8156 = vrot.slane %v4549, 7
        %v8157 = vsel %vm4834, %v8155, %v8156
        %v8158 = vrot.slane %v8156, 2
        %v8159 = vrot.slane %v4550, 7
        %v8160 = vsel %vm4834, %v8158, %v8159
        %v8161 = vrot.slane %v4596, 7
        %v8162 = vrot.slane %v8161, 2
        %v8163 = vrot.slane %v4597, 7
        %v8164 = vsel %vm4834, %v8162, %v8163
        %v8165 = vrot.slane %v8163, 2
        %v8166 = vrot.slane %v4598, 7
        %v8167 = vsel %vm4834, %v8165, %v8166
        %v8168 = vrot.slane %v8166, 2
        %v8169 = vrot.slane %v4599, 7
        %v8170 = vsel %vm4834, %v8168, %v8169
        %v8171 = vrot.slane %v8169, 2
        %v8172 = vrot.slane %v4600, 7
        %v8173 = vsel %vm4834, %v8171, %v8172
        %v8174 = vrot.slane %v4646, 7
        %v8175 = vrot.slane %v8174, 2
        %v8176 = vrot.slane %v4647, 7
        %v8177 = vsel %vm4834, %v8175, %v8176
        %v8178 = vrot.slane %v8176, 2
        %v8179 = vrot.slane %v4648, 7
        %v8180 = vsel %vm4834, %v8178, %v8179
        %v8181 = vrot.slane %v8179, 2
        %v8182 = vrot.slane %v4649, 7
        %v8183 = vsel %vm4834, %v8181, %v8182
        %v8184 = vrot.slane %v8182, 2
        %v8185 = vrot.slane %v4650, 7
        %v8186 = vsel %vm4834, %v8184, %v8185
        %v8187 = vcombine.low %v8138, %v8141
        %v8188 = vcombine.low %v8144, %v8147
        %v8190 = vunpack.c.l.s4 1983009808
        %v8191 = vunpack.c.0.s8 %v8190
        %v8192 = vlaneseq
        %v8193 = vshrl.u32 %v8192, 7
        %v8194 = vsub.s32 %v8191, %v8193
        %v8195 = vrot.slane %v8187, %v8194
        %v8197 = vunpack.c.l.s4 1983009808
        %v8198 = vunpack.c.0.s8 %v8197
        %v8199 = vlaneseq
        %v8200 = vshrl.u32 %v8199, 7
        %v8201 = vsub.s32 %v8198, %v8200
        %v8202 = vrot.slane %v8188, %v8201
        %v8203 = vcombine.low %v8195, %v8202
        %v8204 = vcombine.low %v8151, %v8154
        %v8205 = vcombine.low %v8157, %v8160
        %v8207 = vunpack.c.l.s4 1983009808
        %v8208 = vunpack.c.0.s8 %v8207
        %v8209 = vlaneseq
        %v8210 = vshrl.u32 %v8209, 7
        %v8211 = vsub.s32 %v8208, %v8210
        %v8212 = vrot.slane %v8204, %v8211
        %v8214 = vunpack.c.l.s4 1983009808
        %v8215 = vunpack.c.0.s8 %v8214
        %v8216 = vlaneseq
        %v8217 = vshrl.u32 %v8216, 7
        %v8218 = vsub.s32 %v8215, %v8217
        %v8219 = vrot.slane %v8205, %v8218
        %v8220 = vcombine.low %v8212, %v8219
        %v8221 = vcombine.low %v8164, %v8167
        %v8222 = vcombine.low %v8170, %v8173
        %v8224 = vunpack.c.l.s4 1983009808
        %v8225 = vunpack.c.0.s8 %v8224
        %v8226 = vlaneseq
        %v8227 = vshrl.u32 %v8226, 7
        %v8228 = vsub.s32 %v8225, %v8227
        %v8229 = vrot.slane %v8221, %v8228
        %v8231 = vunpack.c.l.s4 1983009808
        %v8232 = vunpack.c.0.s8 %v8231
        %v8233 = vlaneseq
        %v8234 = vshrl.u32 %v8233, 7
        %v8235 = vsub.s32 %v8232, %v8234
        %v8236 = vrot.slane %v8222, %v8235
        %v8237 = vcombine.low %v8229, %v8236
        %v8238 = vcombine.low %v8177, %v8180
        %v8239 = vcombine.low %v8183, %v8186
        %v8241 = vunpack.c.l.s4 1983009808
        %v8242 = vunpack.c.0.s8 %v8241
        %v8243 = vlaneseq
        %v8244 = vshrl.u32 %v8243, 7
        %v8245 = vsub.s32 %v8242, %v8244
        %v8246 = vrot.slane %v8238, %v8245
        %v8248 = vunpack.c.l.s4 1983009808
        %v8249 = vunpack.c.0.s8 %v8248
        %v8250 = vlaneseq
        %v8251 = vshrl.u32 %v8250, 7
        %v8252 = vsub.s32 %v8249, %v8251
        %v8253 = vrot.slane %v8239, %v8252
        %v8254 = vcombine.low %v8246, %v8253
        %v8255 = vsel %vm2390, %v8203, 0
        %v8257 = vsel %vm2390, %v8220, 0
        %v8259 = vsel %vm2390, %v8237, 0
        %v8261 = vsel %vm2390, %v8254, 0
        %8263 = vmatprep.subr.mxu0 0.0
        %8264 = vmatpush1.msra.mxu0 %v4660
        %8265 = vmatprep.subr.mxu0 0.0
        %8266 = vmatpush1.msra.mxu0 0.0
        %8267 = vmatprep.subr.mxu0 0.0
        %8268 = vmatpush1.msra.mxu0 0.0
        %8269 = vmatprep.subr.mxu0 0.0
        %8270 = vmatpush1.msra.mxu0 0.0
        %8271 = vmatprep.subr.mxu0 0.0
        %8272 = vmatpush1.msra.mxu0 0.0
        %8273 = vmatprep.subr.mxu0 0.0
        %8274 = vmatpush1.msra.mxu0 0.0
        %8275 = vmatprep.subr.mxu0 0.0
        %8276 = vmatpush1.msra.mxu0 0.0
        %8277 = vmatprep.subr.mxu0 0.0
        %8278 = vmatpush1.msra.mxu0 0.0
        %8279 = vmatprep.subr.mxu0 0.0
        %8280 = vmatpush1.msra.mxu0 0.0
        %8281 = vmatprep.subr.mxu0 0.0
        %8282 = vmatpush1.msra.mxu0 0.0
        %8283 = vmatprep.subr.mxu0 0.0
        %8284 = vmatpush1.msra.mxu0 0.0
        %8285 = vmatprep.subr.mxu0 0.0
        %8286 = vmatpush1.msra.mxu0 0.0
        %8287 = vmatprep.subr.mxu0 0.0
        %8288 = vmatpush1.msra.mxu0 0.0
        %8289 = vmatprep.subr.mxu0 0.0
        %8290 = vmatpush1.msra.mxu0 0.0
        %8291 = vmatprep.subr.mxu0 0.0
        %8292 = vmatpush1.msra.mxu0 0.0
        %8293 = vmatprep.subr.mxu0 0.0
        %8294 = vmatpush1.msra.mxu0 0.0
        %8295 = vmatprep.subr.mxu0 0.0
        %8296 = vmatpush1.msra.mxu0 0.0
        %8297 = vmatprep.subr.mxu0 0.0
        %8298 = vmatpush1.msra.mxu0 0.0
        %8299 = vmatprep.subr.mxu0 0.0
        %8300 = vmatpush1.msra.mxu0 0.0
        %8301 = vmatprep.subr.mxu0 0.0
        %8302 = vmatpush1.msra.mxu0 0.0
        %8303 = vmatprep.subr.mxu0 0.0
        %8304 = vmatpush1.msra.mxu0 0.0
        %8305 = vmatprep.subr.mxu0 0.0
        %8306 = vmatpush1.msra.mxu0 0.0
        %8307 = vmatprep.subr.mxu0 0.0
        %8308 = vmatpush1.msra.mxu0 0.0
        %8309 = vmatprep.subr.mxu0 0.0
        %8310 = vmatpush1.msra.mxu0 0.0
        %8311 = vmatprep.subr.mxu0 0.0
        %8312 = vmatpush1.msra.mxu0 0.0
        %8313 = vmatprep.subr.mxu0 0.0
        %8314 = vmatpush1.msra.mxu0 0.0
        %8315 = vmatprep.subr.mxu0 0.0
        %8316 = vmatpush1.msra.mxu0 0.0
        %8317 = vmatprep.subr.mxu0 0.0
        %8318 = vmatpush1.msra.mxu0 0.0
        %8319 = vmatprep.subr.mxu0 0.0
        %8320 = vmatpush1.msra.mxu0 0.0
        %8321 = vmatprep.subr.mxu0 0.0
        %8322 = vmatpush1.msra.mxu0 0.0
        %8323 = vmatprep.subr.mxu0 0.0
        %8324 = vmatpush1.msra.mxu0 0.0
        %8325 = vmatprep.subr.mxu0 0.0
        %8326 = vmatpush1.msra.mxu0 0.0
        %8327 = vmatprep.mubr.f32.mxu0 0.0
        %8328 = vmatmul.mubr.f32.gmra.mrb[0].mxu0 %v5797
        %v8329 = vpop.f32.mrb[0].mxu0
        %v8330 = vadd.f32 0.0, %v8329
        %v8331 = vpop.f32.mrb[0].mxu0
        %8332 = vmatprep.mubr.f32.mxu0 0.0
        %8333 = vmatmul.mubr.f32.gmra.mrb[0].mxu0 %v5799
        %v8334 = vpop.f32.mrb[0].mxu0
        %v8335 = vadd.f32 0.0, %v8334
        %v8336 = vpop.f32.mrb[0].mxu0
        %8337 = vmatprep.mubr.f32.mxu0 0.0
        %8338 = vmatmul.mubr.f32.gmra.mrb[0].mxu0 %v5801
        %v8339 = vpop.f32.mrb[0].mxu0
        %v8340 = vadd.f32 0.0, %v8339
        %v8341 = vpop.f32.mrb[0].mxu0
        %8342 = vmatprep.mubr.f32.mxu0 0.0
        %8343 = vmatmul.mubr.f32.gmra.mrb[0].mxu0 %v5803
        %v8344 = vpop.f32.mrb[0].mxu0
        %v8345 = vadd.f32 0.0, %v8344
        %v8346 = vpop.f32.mrb[0].mxu0
        %8347 = vmatprep.mubr.f32.mxu0 0.0
        %8348 = vmatmul.mubr.f32.gmra.mrb[0].mxu0 %v5805
        %v8349 = vpop.f32.mrb[0].mxu0
        %v8350 = vadd.f32 0.0, %v8349
        %v8351 = vpop.f32.mrb[0].mxu0
        %8352 = vmatprep.mubr.f32.mxu0 0.0
        %8353 = vmatmul.mubr.f32.gmra.mrb[0].mxu0 %v5807
        %v8354 = vpop.f32.mrb[0].mxu0
        %v8355 = vadd.f32 0.0, %v8354
        %v8356 = vpop.f32.mrb[0].mxu0
        %8357 = vmatprep.mubr.f32.mxu0 0.0
        %8358 = vmatmul.mubr.f32.gmra.mrb[0].mxu0 %v5809
        %v8359 = vpop.f32.mrb[0].mxu0
        %v8360 = vadd.f32 0.0, %v8359
        %v8361 = vpop.f32.mrb[0].mxu0
        %8362 = vmatprep.mubr.f32.mxu0 0.0
        %8363 = vmatmul.mubr.f32.gmra.mrb[0].mxu0 %v8255
        %v8364 = vpop.f32.mrb[0].mxu0
        %v8365 = vadd.f32 0.0, %v8364
        %v8366 = vpop.f32.mrb[0].mxu0
        %8367 = vmatprep.mubr.f32.mxu0 0.0
        %8368 = vmatmul.mubr.f32.gmra.mrb[0].mxu0 %v5813
        %v8369 = vpop.f32.mrb[0].mxu0
        %v8370 = vadd.f32 0.0, %v8369
        %v8371 = vpop.f32.mrb[0].mxu0
        %8372 = vmatprep.mubr.f32.mxu0 0.0
        %8373 = vmatmul.mubr.f32.gmra.mrb[0].mxu0 %v5815
        %v8374 = vpop.f32.mrb[0].mxu0
        %v8375 = vadd.f32 0.0, %v8374
        %v8376 = vpop.f32.mrb[0].mxu0
        %8377 = vmatprep.mubr.f32.mxu0 0.0
        %8378 = vmatmul.mubr.f32.gmra.mrb[0].mxu0 %v5817
        %v8379 = vpop.f32.mrb[0].mxu0
        %v8380 = vadd.f32 0.0, %v8379
        %v8381 = vpop.f32.mrb[0].mxu0
        %8382 = vmatprep.mubr.f32.mxu0 0.0
        %8383 = vmatmul.mubr.f32.gmra.mrb[0].mxu0 %v5819
        %v8384 = vpop.f32.mrb[0].mxu0
        %v8385 = vadd.f32 0.0, %v8384
        %v8386 = vpop.f32.mrb[0].mxu0
        %8387 = vmatprep.mubr.f32.mxu0 0.0
        %8388 = vmatmul.mubr.f32.gmra.mrb[0].mxu0 %v5821
        %v8389 = vpop.f32.mrb[0].mxu0
        %v8390 = vadd.f32 0.0, %v8389
        %v8391 = vpop.f32.mrb[0].mxu0
        %8392 = vmatprep.mubr.f32.mxu0 0.0
        %8393 = vmatmul.mubr.f32.gmra.mrb[0].mxu0 %v5823
        %v8394 = vpop.f32.mrb[0].mxu0
        %v8395 = vadd.f32 0.0, %v8394
        %v8396 = vpop.f32.mrb[0].mxu0
        %8397 = vmatprep.mubr.f32.mxu0 0.0
        %8398 = vmatmul.mubr.f32.gmra.mrb[0].mxu0 %v5825
        %v8399 = vpop.f32.mrb[0].mxu0
        %v8400 = vadd.f32 0.0, %v8399
        %v8401 = vpop.f32.mrb[0].mxu0
        %8402 = vmatprep.mubr.f32.mxu0 0.0
        %8403 = vmatmul.mubr.f32.gmra.mrb[0].mxu0 %v8257
        %v8404 = vpop.f32.mrb[0].mxu0
        %v8405 = vadd.f32 0.0, %v8404
        %v8406 = vpop.f32.mrb[0].mxu0
        %8407 = vmatprep.mubr.f32.mxu0 0.0
        %8408 = vmatmul.mubr.f32.gmra.mrb[0].mxu0 %v5829
        %v8409 = vpop.f32.mrb[0].mxu0
        %v8410 = vadd.f32 0.0, %v8409
        %v8411 = vpop.f32.mrb[0].mxu0
        %8412 = vmatprep.mubr.f32.mxu0 0.0
        %8413 = vmatmul.mubr.f32.gmra.mrb[0].mxu0 %v5831
        %v8414 = vpop.f32.mrb[0].mxu0
        %v8415 = vadd.f32 0.0, %v8414
        %v8416 = vpop.f32.mrb[0].mxu0
        %8417 = vmatprep.mubr.f32.mxu0 0.0
        %8418 = vmatmul.mubr.f32.gmra.mrb[0].mxu0 %v5833
        %v8419 = vpop.f32.mrb[0].mxu0
        %v8420 = vadd.f32 0.0, %v8419
        %v8421 = vpop.f32.mrb[0].mxu0
        %8422 = vmatprep.mubr.f32.mxu0 0.0
        %8423 = vmatmul.mubr.f32.gmra.mrb[0].mxu0 %v5835
        %v8424 = vpop.f32.mrb[0].mxu0
        %v8425 = vadd.f32 0.0, %v8424
        %v8426 = vpop.f32.mrb[0].mxu0
        %8427 = vmatprep.mubr.f32.mxu0 0.0
        %8428 = vmatmul.mubr.f32.gmra.mrb[0].mxu0 %v5837
        %v8429 = vpop.f32.mrb[0].mxu0
        %v8430 = vadd.f32 0.0, %v8429
        %v8431 = vpop.f32.mrb[0].mxu0
        %8432 = vmatprep.mubr.f32.mxu0 0.0
        %8433 = vmatmul.mubr.f32.gmra.mrb[0].mxu0 %v5839
        %v8434 = vpop.f32.mrb[0].mxu0
        %v8435 = vadd.f32 0.0, %v8434
        %v8436 = vpop.f32.mrb[0].mxu0
        %8437 = vmatprep.mubr.f32.mxu0 0.0
        %8438 = vmatmul.mubr.f32.gmra.mrb[0].mxu0 %v5841
        %v8439 = vpop.f32.mrb[0].mxu0
        %v8440 = vadd.f32 0.0, %v8439
        %v8441 = vpop.f32.mrb[0].mxu0
        %8442 = vmatprep.mubr.f32.mxu0 0.0
        %8443 = vmatmul.mubr.f32.gmra.mrb[0].mxu0 %v8259
        %v8444 = vpop.f32.mrb[0].mxu0
        %v8445 = vadd.f32 0.0, %v8444
        %v8446 = vpop.f32.mrb[0].mxu0
        %8447 = vmatprep.mubr.f32.mxu0 0.0
        %8448 = vmatmul.mubr.f32.gmra.mrb[0].mxu0 %v5845
        %v8449 = vpop.f32.mrb[0].mxu0
        %v8450 = vadd.f32 0.0, %v8449
        %v8451 = vpop.f32.mrb[0].mxu0
        %8452 = vmatprep.mubr.f32.mxu0 0.0
        %8453 = vmatmul.mubr.f32.gmra.mrb[0].mxu0 %v5847
        %v8454 = vpop.f32.mrb[0].mxu0
        %v8455 = vadd.f32 0.0, %v8454
        %v8456 = vpop.f32.mrb[0].mxu0
        %8457 = vmatprep.mubr.f32.mxu0 0.0
        %8458 = vmatmul.mubr.f32.gmra.mrb[0].mxu0 %v5849
        %v8459 = vpop.f32.mrb[0].mxu0
        %v8460 = vadd.f32 0.0, %v8459
        %v8461 = vpop.f32.mrb[0].mxu0
        %8462 = vmatprep.mubr.f32.mxu0 0.0
        %8463 = vmatmul.mubr.f32.gmra.mrb[0].mxu0 %v5851
        %v8464 = vpop.f32.mrb[0].mxu0
        %v8465 = vadd.f32 0.0, %v8464
        %v8466 = vpop.f32.mrb[0].mxu0
        %8467 = vmatprep.mubr.f32.mxu0 0.0
        %8468 = vmatmul.mubr.f32.gmra.mrb[0].mxu0 %v5853
        %v8469 = vpop.f32.mrb[0].mxu0
        %v8470 = vadd.f32 0.0, %v8469
        %v8471 = vpop.f32.mrb[0].mxu0
        %8472 = vmatprep.mubr.f32.mxu0 0.0
        %8473 = vmatmul.mubr.f32.gmra.mrb[0].mxu0 %v5855
        %v8474 = vpop.f32.mrb[0].mxu0
        %v8475 = vadd.f32 0.0, %v8474
        %v8476 = vpop.f32.mrb[0].mxu0
        %8477 = vmatprep.mubr.f32.mxu0 0.0
        %8478 = vmatmul.mubr.f32.gmra.mrb[0].mxu0 %v5857
        %v8479 = vpop.f32.mrb[0].mxu0
        %v8480 = vadd.f32 0.0, %v8479
        %v8481 = vpop.f32.mrb[0].mxu0
        %8482 = vmatprep.mubr.f32.mxu0 0.0
        %8483 = vmatmul.mubr.f32.gmra.mrb[0].mxu0 %v8261
        %v8484 = vpop.f32.mrb[0].mxu0
        %v8485 = vadd.f32 0.0, %v8484
        %v8486 = vpop.f32.mrb[0].mxu0
        %8487 = vdwg.mxu0
        %v8488 = vadd.f32 %v8099, %v8330
        %v8489 = vadd.f32 %v8100, %v8335
        %v8490 = vadd.f32 %v8101, %v8340
        %v8491 = vadd.f32 %v8102, %v8345
        %v8492 = vadd.f32 %v8103, %v8350
        %v8493 = vadd.f32 %v8104, %v8355
        %v8494 = vadd.f32 %v8105, %v8360
        %v8495 = vadd.f32 %v8106, %v8365
        %v8496 = vadd.f32 %v8107, %v8370
        %v8497 = vadd.f32 %v8108, %v8375
        %v8498 = vadd.f32 %v8109, %v8380
        %v8499 = vadd.f32 %v8110, %v8385
        %v8500 = vadd.f32 %v8111, %v8390
        %v8501 = vadd.f32 %v8112, %v8395
        %v8502 = vadd.f32 %v8113, %v8400
        %v8503 = vadd.f32 %v8114, %v8405
        %v8504 = vadd.f32 %v8115, %v8410
        %v8505 = vadd.f32 %v8116, %v8415
        %v8506 = vadd.f32 %v8117, %v8420
        %v8507 = vadd.f32 %v8118, %v8425
        %v8508 = vadd.f32 %v8119, %v8430
        %v8509 = vadd.f32 %v8120, %v8435
        %v8510 = vadd.f32 %v8121, %v8440
        %v8511 = vadd.f32 %v8122, %v8445
        %v8512 = vadd.f32 %v8123, %v8450
        %v8513 = vadd.f32 %v8124, %v8455
        %v8514 = vadd.f32 %v8125, %v8460
        %v8515 = vadd.f32 %v8126, %v8465
        %v8516 = vadd.f32 %v8127, %v8470
        %v8517 = vadd.f32 %v8128, %v8475
        %v8518 = vadd.f32 %v8129, %v8480
        %v8519 = vadd.f32 %v8130, %v8485
        %v8520 = vcombine.low %v4497, %v4498
        %v8521 = vcombine.low %v4499, %v4500
        %v8523 = vunpack.c.l.s4 1983009808
        %v8524 = vunpack.c.0.s8 %v8523
        %v8525 = vlaneseq
        %v8526 = vshrl.u32 %v8525, 7
        %v8527 = vsub.s32 %v8524, %v8526
        %v8528 = vrot.slane %v8520, %v8527
        %v8530 = vunpack.c.l.s4 1983009808
        %v8531 = vunpack.c.0.s8 %v8530
        %v8532 = vlaneseq
        %v8533 = vshrl.u32 %v8532, 7
        %v8534 = vsub.s32 %v8531, %v8533
        %v8535 = vrot.slane %v8521, %v8534
        %v8536 = vcombine.low %v8528, %v8535
        %v8537 = vcombine.low %v4547, %v4548
        %v8538 = vcombine.low %v4549, %v4550
        %v8540 = vunpack.c.l.s4 1983009808
        %v8541 = vunpack.c.0.s8 %v8540
        %v8542 = vlaneseq
        %v8543 = vshrl.u32 %v8542, 7
        %v8544 = vsub.s32 %v8541, %v8543
        %v8545 = vrot.slane %v8537, %v8544
        %v8547 = vunpack.c.l.s4 1983009808
        %v8548 = vunpack.c.0.s8 %v8547
        %v8549 = vlaneseq
        %v8550 = vshrl.u32 %v8549, 7
        %v8551 = vsub.s32 %v8548, %v8550
        %v8552 = vrot.slane %v8538, %v8551
        %v8553 = vcombine.low %v8545, %v8552
        %v8554 = vcombine.low %v4597, %v4598
        %v8555 = vcombine.low %v4599, %v4600
        %v8557 = vunpack.c.l.s4 1983009808
        %v8558 = vunpack.c.0.s8 %v8557
        %v8559 = vlaneseq
        %v8560 = vshrl.u32 %v8559, 7
        %v8561 = vsub.s32 %v8558, %v8560
        %v8562 = vrot.slane %v8554, %v8561
        %v8564 = vunpack.c.l.s4 1983009808
        %v8565 = vunpack.c.0.s8 %v8564
        %v8566 = vlaneseq
        %v8567 = vshrl.u32 %v8566, 7
        %v8568 = vsub.s32 %v8565, %v8567
        %v8569 = vrot.slane %v8555, %v8568
        %v8570 = vcombine.low %v8562, %v8569
        %v8571 = vcombine.low %v4647, %v4648
        %v8572 = vcombine.low %v4649, %v4650
        %v8574 = vunpack.c.l.s4 1983009808
        %v8575 = vunpack.c.0.s8 %v8574
        %v8576 = vlaneseq
        %v8577 = vshrl.u32 %v8576, 7
        %v8578 = vsub.s32 %v8575, %v8577
        %v8579 = vrot.slane %v8571, %v8578
        %v8581 = vunpack.c.l.s4 1983009808
        %v8582 = vunpack.c.0.s8 %v8581
        %v8583 = vlaneseq
        %v8584 = vshrl.u32 %v8583, 7
        %v8585 = vsub.s32 %v8582, %v8584
        %v8586 = vrot.slane %v8572, %v8585
        %v8587 = vcombine.low %v8579, %v8586
        %v8588 = vsel %vm2390, %v8536, 0
        %v8590 = vsel %vm2390, %v8553, 0
        %v8592 = vsel %vm2390, %v8570, 0
        %v8594 = vsel %vm2390, %v8587, 0
        %8596 = vmatprep.subr.mxu0 0.0
        %8597 = vmatpush1.msra.mxu0 %v4661
        %8598 = vmatprep.subr.mxu0 0.0
        %8599 = vmatpush1.msra.mxu0 0.0
        %8600 = vmatprep.subr.mxu0 0.0
        %8601 = vmatpush1.msra.mxu0 0.0
        %8602 = vmatprep.subr.mxu0 0.0
        %8603 = vmatpush1.msra.mxu0 0.0
        %8604 = vmatprep.subr.mxu0 0.0
        %8605 = vmatpush1.msra.mxu0 0.0
        %8606 = vmatprep.subr.mxu0 0.0
        %8607 = vmatpush1.msra.mxu0 0.0
        %8608 = vmatprep.subr.mxu0 0.0
        %8609 = vmatpush1.msra.mxu0 0.0
        %8610 = vmatprep.subr.mxu0 0.0
        %8611 = vmatpush1.msra.mxu0 0.0
        %8612 = vmatprep.subr.mxu0 0.0
        %8613 = vmatpush1.msra.mxu0 0.0
        %8614 = vmatprep.subr.mxu0 0.0
        %8615 = vmatpush1.msra.mxu0 0.0
        %8616 = vmatprep.subr.mxu0 0.0
        %8617 = vmatpush1.msra.mxu0 0.0
        %8618 = vmatprep.subr.mxu0 0.0
        %8619 = vmatpush1.msra.mxu0 0.0
        %8620 = vmatprep.subr.mxu0 0.0
        %8621 = vmatpush1.msra.mxu0 0.0
        %8622 = vmatprep.subr.mxu0 0.0
        %8623 = vmatpush1.msra.mxu0 0.0
        %8624 = vmatprep.subr.mxu0 0.0
        %8625 = vmatpush1.msra.mxu0 0.0
        %8626 = vmatprep.subr.mxu0 0.0
        %8627 = vmatpush1.msra.mxu0 0.0
        %8628 = vmatprep.subr.mxu0 0.0
        %8629 = vmatpush1.msra.mxu0 0.0
        %8630 = vmatprep.subr.mxu0 0.0
        %8631 = vmatpush1.msra.mxu0 0.0
        %8632 = vmatprep.subr.mxu0 0.0
        %8633 = vmatpush1.msra.mxu0 0.0
        %8634 = vmatprep.subr.mxu0 0.0
        %8635 = vmatpush1.msra.mxu0 0.0
        %8636 = vmatprep.subr.mxu0 0.0
        %8637 = vmatpush1.msra.mxu0 0.0
        %8638 = vmatprep.subr.mxu0 0.0
        %8639 = vmatpush1.msra.mxu0 0.0
        %8640 = vmatprep.subr.mxu0 0.0
        %8641 = vmatpush1.msra.mxu0 0.0
        %8642 = vmatprep.subr.mxu0 0.0
        %8643 = vmatpush1.msra.mxu0 0.0
        %8644 = vmatprep.subr.mxu0 0.0
        %8645 = vmatpush1.msra.mxu0 0.0
        %8646 = vmatprep.subr.mxu0 0.0
        %8647 = vmatpush1.msra.mxu0 0.0
        %8648 = vmatprep.subr.mxu0 0.0
        %8649 = vmatpush1.msra.mxu0 0.0
        %8650 = vmatprep.subr.mxu0 0.0
        %8651 = vmatpush1.msra.mxu0 0.0
        %8652 = vmatprep.subr.mxu0 0.0
        %8653 = vmatpush1.msra.mxu0 0.0
        %8654 = vmatprep.subr.mxu0 0.0
        %8655 = vmatpush1.msra.mxu0 0.0
        %8656 = vmatprep.subr.mxu0 0.0
        %8657 = vmatpush1.msra.mxu0 0.0
        %8658 = vmatprep.subr.mxu0 0.0
        %8659 = vmatpush1.msra.mxu0 0.0
        %8660 = vmatprep.mubr.f32.mxu0 0.0
        %8661 = vmatmul.mubr.f32.gmra.mrb[0].mxu0 %v7463
        %v8662 = vpop.f32.mrb[0].mxu0
        %v8663 = vadd.f32 0.0, %v8662
        %v8664 = vpop.f32.mrb[0].mxu0
        %8665 = vmatprep.mubr.f32.mxu0 0.0
        %8666 = vmatmul.mubr.f32.gmra.mrb[0].mxu0 %v7465
        %v8667 = vpop.f32.mrb[0].mxu0
        %v8668 = vadd.f32 0.0, %v8667
        %v8669 = vpop.f32.mrb[0].mxu0
        %8670 = vmatprep.mubr.f32.mxu0 0.0
        %8671 = vmatmul.mubr.f32.gmra.mrb[0].mxu0 %v7467
        %v8672 = vpop.f32.mrb[0].mxu0
        %v8673 = vadd.f32 0.0, %v8672
        %v8674 = vpop.f32.mrb[0].mxu0
        %8675 = vmatprep.mubr.f32.mxu0 0.0
        %8676 = vmatmul.mubr.f32.gmra.mrb[0].mxu0 %v7469
        %v8677 = vpop.f32.mrb[0].mxu0
        %v8678 = vadd.f32 0.0, %v8677
        %v8679 = vpop.f32.mrb[0].mxu0
        %8680 = vmatprep.mubr.f32.mxu0 0.0
        %8681 = vmatmul.mubr.f32.gmra.mrb[0].mxu0 %v7471
        %v8682 = vpop.f32.mrb[0].mxu0
        %v8683 = vadd.f32 0.0, %v8682
        %v8684 = vpop.f32.mrb[0].mxu0
        %8685 = vmatprep.mubr.f32.mxu0 0.0
        %8686 = vmatmul.mubr.f32.gmra.mrb[0].mxu0 %v7473
        %v8687 = vpop.f32.mrb[0].mxu0
        %v8688 = vadd.f32 0.0, %v8687
        %v8689 = vpop.f32.mrb[0].mxu0
        %8690 = vmatprep.mubr.f32.mxu0 0.0
        %8691 = vmatmul.mubr.f32.gmra.mrb[0].mxu0 %v7475
        %v8692 = vpop.f32.mrb[0].mxu0
        %v8693 = vadd.f32 0.0, %v8692
        %v8694 = vpop.f32.mrb[0].mxu0
        %8695 = vmatprep.mubr.f32.mxu0 0.0
        %8696 = vmatmul.mubr.f32.gmra.mrb[0].mxu0 %v8588
        %v8697 = vpop.f32.mrb[0].mxu0
        %v8698 = vadd.f32 0.0, %v8697
        %v8699 = vpop.f32.mrb[0].mxu0
        %8700 = vmatprep.mubr.f32.mxu0 0.0
        %8701 = vmatmul.mubr.f32.gmra.mrb[0].mxu0 %v7479
        %v8702 = vpop.f32.mrb[0].mxu0
        %v8703 = vadd.f32 0.0, %v8702
        %v8704 = vpop.f32.mrb[0].mxu0
        %8705 = vmatprep.mubr.f32.mxu0 0.0
        %8706 = vmatmul.mubr.f32.gmra.mrb[0].mxu0 %v7481
        %v8707 = vpop.f32.mrb[0].mxu0
        %v8708 = vadd.f32 0.0, %v8707
        %v8709 = vpop.f32.mrb[0].mxu0
        %8710 = vmatprep.mubr.f32.mxu0 0.0
        %8711 = vmatmul.mubr.f32.gmra.mrb[0].mxu0 %v7483
        %v8712 = vpop.f32.mrb[0].mxu0
        %v8713 = vadd.f32 0.0, %v8712
        %v8714 = vpop.f32.mrb[0].mxu0
        %8715 = vmatprep.mubr.f32.mxu0 0.0
        %8716 = vmatmul.mubr.f32.gmra.mrb[0].mxu0 %v7485
        %v8717 = vpop.f32.mrb[0].mxu0
        %v8718 = vadd.f32 0.0, %v8717
        %v8719 = vpop.f32.mrb[0].mxu0
        %8720 = vmatprep.mubr.f32.mxu0 0.0
        %8721 = vmatmul.mubr.f32.gmra.mrb[0].mxu0 %v7487
        %v8722 = vpop.f32.mrb[0].mxu0
        %v8723 = vadd.f32 0.0, %v8722
        %v8724 = vpop.f32.mrb[0].mxu0
        %8725 = vmatprep.mubr.f32.mxu0 0.0
        %8726 = vmatmul.mubr.f32.gmra.mrb[0].mxu0 %v7489
        %v8727 = vpop.f32.mrb[0].mxu0
        %v8728 = vadd.f32 0.0, %v8727
        %v8729 = vpop.f32.mrb[0].mxu0
        %8730 = vmatprep.mubr.f32.mxu0 0.0
        %8731 = vmatmul.mubr.f32.gmra.mrb[0].mxu0 %v7491
        %v8732 = vpop.f32.mrb[0].mxu0
        %v8733 = vadd.f32 0.0, %v8732
        %v8734 = vpop.f32.mrb[0].mxu0
        %8735 = vmatprep.mubr.f32.mxu0 0.0
        %8736 = vmatmul.mubr.f32.gmra.mrb[0].mxu0 %v8590
        %v8737 = vpop.f32.mrb[0].mxu0
        %v8738 = vadd.f32 0.0, %v8737
        %v8739 = vpop.f32.mrb[0].mxu0
        %8740 = vmatprep.mubr.f32.mxu0 0.0
        %8741 = vmatmul.mubr.f32.gmra.mrb[0].mxu0 %v7495
        %v8742 = vpop.f32.mrb[0].mxu0
        %v8743 = vadd.f32 0.0, %v8742
        %v8744 = vpop.f32.mrb[0].mxu0
        %8745 = vmatprep.mubr.f32.mxu0 0.0
        %8746 = vmatmul.mubr.f32.gmra.mrb[0].mxu0 %v7497
        %v8747 = vpop.f32.mrb[0].mxu0
        %v8748 = vadd.f32 0.0, %v8747
        %v8749 = vpop.f32.mrb[0].mxu0
        %8750 = vmatprep.mubr.f32.mxu0 0.0
        %8751 = vmatmul.mubr.f32.gmra.mrb[0].mxu0 %v7499
        %v8752 = vpop.f32.mrb[0].mxu0
        %v8753 = vadd.f32 0.0, %v8752
        %v8754 = vpop.f32.mrb[0].mxu0
        %8755 = vmatprep.mubr.f32.mxu0 0.0
        %8756 = vmatmul.mubr.f32.gmra.mrb[0].mxu0 %v7501
        %v8757 = vpop.f32.mrb[0].mxu0
        %v8758 = vadd.f32 0.0, %v8757
        %v8759 = vpop.f32.mrb[0].mxu0
        %8760 = vmatprep.mubr.f32.mxu0 0.0
        %8761 = vmatmul.mubr.f32.gmra.mrb[0].mxu0 %v7503
        %v8762 = vpop.f32.mrb[0].mxu0
        %v8763 = vadd.f32 0.0, %v8762
        %v8764 = vpop.f32.mrb[0].mxu0
        %8765 = vmatprep.mubr.f32.mxu0 0.0
        %8766 = vmatmul.mubr.f32.gmra.mrb[0].mxu0 %v7505
        %v8767 = vpop.f32.mrb[0].mxu0
        %v8768 = vadd.f32 0.0, %v8767
        %v8769 = vpop.f32.mrb[0].mxu0
        %8770 = vmatprep.mubr.f32.mxu0 0.0
        %8771 = vmatmul.mubr.f32.gmra.mrb[0].mxu0 %v7507
        %v8772 = vpop.f32.mrb[0].mxu0
        %v8773 = vadd.f32 0.0, %v8772
        %v8774 = vpop.f32.mrb[0].mxu0
        %8775 = vmatprep.mubr.f32.mxu0 0.0
        %8776 = vmatmul.mubr.f32.gmra.mrb[0].mxu0 %v8592
        %v8777 = vpop.f32.mrb[0].mxu0
        %v8778 = vadd.f32 0.0, %v8777
        %v8779 = vpop.f32.mrb[0].mxu0
        %8780 = vmatprep.mubr.f32.mxu0 0.0
        %8781 = vmatmul.mubr.f32.gmra.mrb[0].mxu0 %v7511
        %v8782 = vpop.f32.mrb[0].mxu0
        %v8783 = vadd.f32 0.0, %v8782
        %v8784 = vpop.f32.mrb[0].mxu0
        %8785 = vmatprep.mubr.f32.mxu0 0.0
        %8786 = vmatmul.mubr.f32.gmra.mrb[0].mxu0 %v7513
        %v8787 = vpop.f32.mrb[0].mxu0
        %v8788 = vadd.f32 0.0, %v8787
        %v8789 = vpop.f32.mrb[0].mxu0
        %8790 = vmatprep.mubr.f32.mxu0 0.0
        %8791 = vmatmul.mubr.f32.gmra.mrb[0].mxu0 %v7515
        %v8792 = vpop.f32.mrb[0].mxu0
        %v8793 = vadd.f32 0.0, %v8792
        %v8794 = vpop.f32.mrb[0].mxu0
        %8795 = vmatprep.mubr.f32.mxu0 0.0
        %8796 = vmatmul.mubr.f32.gmra.mrb[0].mxu0 %v7517
        %v8797 = vpop.f32.mrb[0].mxu0
        %v8798 = vadd.f32 0.0, %v8797
        %v8799 = vpop.f32.mrb[0].mxu0
        %8800 = vmatprep.mubr.f32.mxu0 0.0
        %8801 = vmatmul.mubr.f32.gmra.mrb[0].mxu0 %v7519
        %v8802 = vpop.f32.mrb[0].mxu0
        %v8803 = vadd.f32 0.0, %v8802
        %v8804 = vpop.f32.mrb[0].mxu0
        %8805 = vmatprep.mubr.f32.mxu0 0.0
        %8806 = vmatmul.mubr.f32.gmra.mrb[0].mxu0 %v7521
        %v8807 = vpop.f32.mrb[0].mxu0
        %v8808 = vadd.f32 0.0, %v8807
        %v8809 = vpop.f32.mrb[0].mxu0
        %8810 = vmatprep.mubr.f32.mxu0 0.0
        %8811 = vmatmul.mubr.f32.gmra.mrb[0].mxu0 %v7523
        %v8812 = vpop.f32.mrb[0].mxu0
        %v8813 = vadd.f32 0.0, %v8812
        %v8814 = vpop.f32.mrb[0].mxu0
        %8815 = vmatprep.mubr.f32.mxu0 0.0
        %8816 = vmatmul.mubr.f32.gmra.mrb[0].mxu0 %v8594
        %v8817 = vpop.f32.mrb[0].mxu0
        %v8818 = vadd.f32 0.0, %v8817
        %v8819 = vpop.f32.mrb[0].mxu0
        %8820 = vdwg.mxu0
        %v8821 = vadd.f32 %v8488, %v8663
        %v8822 = vadd.f32 %v8489, %v8668
        %v8823 = vadd.f32 %v8490, %v8673
        %v8824 = vadd.f32 %v8491, %v8678
        %v8825 = vadd.f32 %v8492, %v8683
        %v8826 = vadd.f32 %v8493, %v8688
        %v8827 = vadd.f32 %v8494, %v8693
        %v8828 = vadd.f32 %v8495, %v8698
        %v8829 = vadd.f32 %v8496, %v8703
        %v8830 = vadd.f32 %v8497, %v8708
        %v8831 = vadd.f32 %v8498, %v8713
        %v8832 = vadd.f32 %v8499, %v8718
        %v8833 = vadd.f32 %v8500, %v8723
        %v8834 = vadd.f32 %v8501, %v8728
        %v8835 = vadd.f32 %v8502, %v8733
        %v8836 = vadd.f32 %v8503, %v8738
        %v8837 = vadd.f32 %v8504, %v8743
        %v8838 = vadd.f32 %v8505, %v8748
        %v8839 = vadd.f32 %v8506, %v8753
        %v8840 = vadd.f32 %v8507, %v8758
        %v8841 = vadd.f32 %v8508, %v8763
        %v8842 = vadd.f32 %v8509, %v8768
        %v8843 = vadd.f32 %v8510, %v8773
        %v8844 = vadd.f32 %v8511, %v8778
        %v8845 = vadd.f32 %v8512, %v8783
        %v8846 = vadd.f32 %v8513, %v8788
        %v8847 = vadd.f32 %v8514, %v8793
        %v8848 = vadd.f32 %v8515, %v8798
        %v8849 = vadd.f32 %v8516, %v8803
        %v8850 = vadd.f32 %v8517, %v8808
        %v8851 = vadd.f32 %v8518, %v8813
        %v8852 = vadd.f32 %v8519, %v8818
        %v8869 = vcombine.low %v4501, %v4502
        %v8870 = vcombine.low %v4503, %v4504
        %v8872 = vunpack.c.l.s4 1983009808
        %v8873 = vunpack.c.0.s8 %v8872
        %v8874 = vlaneseq
        %v8875 = vshrl.u32 %v8874, 7
        %v8876 = vsub.s32 %v8873, %v8875
        %v8877 = vrot.slane %v8869, %v8876
        %v8879 = vunpack.c.l.s4 1983009808
        %v8880 = vunpack.c.0.s8 %v8879
        %v8881 = vlaneseq
        %v8882 = vshrl.u32 %v8881, 7
        %v8883 = vsub.s32 %v8880, %v8882
        %v8884 = vrot.slane %v8870, %v8883
        %v8885 = vcombine.low %v8877, %v8884
        %v8886 = vcombine.low %v4551, %v4552
        %v8887 = vcombine.low %v4553, %v4554
        %v8889 = vunpack.c.l.s4 1983009808
        %v8890 = vunpack.c.0.s8 %v8889
        %v8891 = vlaneseq
        %v8892 = vshrl.u32 %v8891, 7
        %v8893 = vsub.s32 %v8890, %v8892
        %v8894 = vrot.slane %v8886, %v8893
        %v8896 = vunpack.c.l.s4 1983009808
        %v8897 = vunpack.c.0.s8 %v8896
        %v8898 = vlaneseq
        %v8899 = vshrl.u32 %v8898, 7
        %v8900 = vsub.s32 %v8897, %v8899
        %v8901 = vrot.slane %v8887, %v8900
        %v8902 = vcombine.low %v8894, %v8901
        %v8903 = vcombine.low %v4601, %v4602
        %v8904 = vcombine.low %v4603, %v4604
        %v8906 = vunpack.c.l.s4 1983009808
        %v8907 = vunpack.c.0.s8 %v8906
        %v8908 = vlaneseq
        %v8909 = vshrl.u32 %v8908, 7
        %v8910 = vsub.s32 %v8907, %v8909
        %v8911 = vrot.slane %v8903, %v8910
        %v8913 = vunpack.c.l.s4 1983009808
        %v8914 = vunpack.c.0.s8 %v8913
        %v8915 = vlaneseq
        %v8916 = vshrl.u32 %v8915, 7
        %v8917 = vsub.s32 %v8914, %v8916
        %v8918 = vrot.slane %v8904, %v8917
        %v8919 = vcombine.low %v8911, %v8918
        %v8920 = vcombine.low %v4651, %v4652
        %v8921 = vcombine.low %v4653, %v4654
        %v8923 = vunpack.c.l.s4 1983009808
        %v8924 = vunpack.c.0.s8 %v8923
        %v8925 = vlaneseq
        %v8926 = vshrl.u32 %v8925, 7
        %v8927 = vsub.s32 %v8924, %v8926
        %v8928 = vrot.slane %v8920, %v8927
        %v8930 = vunpack.c.l.s4 1983009808
        %v8931 = vunpack.c.0.s8 %v8930
        %v8932 = vlaneseq
        %v8933 = vshrl.u32 %v8932, 7
        %v8934 = vsub.s32 %v8931, %v8933
        %v8935 = vrot.slane %v8921, %v8934
        %v8936 = vcombine.low %v8928, %v8935
        %v8937 = vsel %vm2390, %v8885, 0
        %v8939 = vsel %vm2390, %v8902, 0
        %v8941 = vsel %vm2390, %v8919, 0
        %v8943 = vsel %vm2390, %v8936, 0
        %8945 = vmatprep.subr.mxu0 0.0
        %8946 = vmatpush1.msra.mxu0 %v4662
        %8947 = vmatprep.subr.mxu0 0.0
        %8948 = vmatpush1.msra.mxu0 0.0
        %8949 = vmatprep.subr.mxu0 0.0
        %8950 = vmatpush1.msra.mxu0 0.0
        %8951 = vmatprep.subr.mxu0 0.0
        %8952 = vmatpush1.msra.mxu0 0.0
        %8953 = vmatprep.subr.mxu0 0.0
        %8954 = vmatpush1.msra.mxu0 0.0
        %8955 = vmatprep.subr.mxu0 0.0
        %8956 = vmatpush1.msra.mxu0 0.0
        %8957 = vmatprep.subr.mxu0 0.0
        %8958 = vmatpush1.msra.mxu0 0.0
        %8959 = vmatprep.subr.mxu0 0.0
        %8960 = vmatpush1.msra.mxu0 0.0
        %8961 = vmatprep.subr.mxu0 0.0
        %8962 = vmatpush1.msra.mxu0 0.0
        %8963 = vmatprep.subr.mxu0 0.0
        %8964 = vmatpush1.msra.mxu0 0.0
        %8965 = vmatprep.subr.mxu0 0.0
        %8966 = vmatpush1.msra.mxu0 0.0
        %8967 = vmatprep.subr.mxu0 0.0
        %8968 = vmatpush1.msra.mxu0 0.0
        %8969 = vmatprep.subr.mxu0 0.0
        %8970 = vmatpush1.msra.mxu0 0.0
        %8971 = vmatprep.subr.mxu0 0.0
        %8972 = vmatpush1.msra.mxu0 0.0
        %8973 = vmatprep.subr.mxu0 0.0
        %8974 = vmatpush1.msra.mxu0 0.0
        %8975 = vmatprep.subr.mxu0 0.0
        %8976 = vmatpush1.msra.mxu0 0.0
        %8977 = vmatprep.subr.mxu0 0.0
        %8978 = vmatpush1.msra.mxu0 0.0
        %8979 = vmatprep.subr.mxu0 0.0
        %8980 = vmatpush1.msra.mxu0 0.0
        %8981 = vmatprep.subr.mxu0 0.0
        %8982 = vmatpush1.msra.mxu0 0.0
        %8983 = vmatprep.subr.mxu0 0.0
        %8984 = vmatpush1.msra.mxu0 0.0
        %8985 = vmatprep.subr.mxu0 0.0
        %8986 = vmatpush1.msra.mxu0 0.0
        %8987 = vmatprep.subr.mxu0 0.0
        %8988 = vmatpush1.msra.mxu0 0.0
        %8989 = vmatprep.subr.mxu0 0.0
        %8990 = vmatpush1.msra.mxu0 0.0
        %8991 = vmatprep.subr.mxu0 0.0
        %8992 = vmatpush1.msra.mxu0 0.0
        %8993 = vmatprep.subr.mxu0 0.0
        %8994 = vmatpush1.msra.mxu0 0.0
        %8995 = vmatprep.subr.mxu0 0.0
        %8996 = vmatpush1.msra.mxu0 0.0
        %8997 = vmatprep.subr.mxu0 0.0
        %8998 = vmatpush1.msra.mxu0 0.0
        %8999 = vmatprep.subr.mxu0 0.0
        %9000 = vmatpush1.msra.mxu0 0.0
        %9001 = vmatprep.subr.mxu0 0.0
        %9002 = vmatpush1.msra.mxu0 0.0
        %9003 = vmatprep.subr.mxu0 0.0
        %9004 = vmatpush1.msra.mxu0 0.0
        %9005 = vmatprep.subr.mxu0 0.0
        %9006 = vmatpush1.msra.mxu0 0.0
        %9007 = vmatprep.subr.mxu0 0.0
        %9008 = vmatpush1.msra.mxu0 0.0
        %9009 = vmatprep.mubr.f32.mxu0 0.0
        %9010 = vmatmul.mubr.f32.gmra.mrb[0].mxu0 %v6632
        %v9011 = vpop.f32.mrb[0].mxu0
        %v9012 = vadd.f32 0.0, %v9011
        %v9013 = vpop.f32.mrb[0].mxu0
        %9014 = vmatprep.mubr.f32.mxu0 0.0
        %9015 = vmatmul.mubr.f32.gmra.mrb[0].mxu0 %v6634
        %v9016 = vpop.f32.mrb[0].mxu0
        %v9017 = vadd.f32 0.0, %v9016
        %v9018 = vpop.f32.mrb[0].mxu0
        %9019 = vmatprep.mubr.f32.mxu0 0.0
        %9020 = vmatmul.mubr.f32.gmra.mrb[0].mxu0 %v6636
        %v9021 = vpop.f32.mrb[0].mxu0
        %v9022 = vadd.f32 0.0, %v9021
        %v9023 = vpop.f32.mrb[0].mxu0
        %9024 = vmatprep.mubr.f32.mxu0 0.0
        %9025 = vmatmul.mubr.f32.gmra.mrb[0].mxu0 %v6638
        %v9026 = vpop.f32.mrb[0].mxu0
        %v9027 = vadd.f32 0.0, %v9026
        %v9028 = vpop.f32.mrb[0].mxu0
        %9029 = vmatprep.mubr.f32.mxu0 0.0
        %9030 = vmatmul.mubr.f32.gmra.mrb[0].mxu0 %v6640
        %v9031 = vpop.f32.mrb[0].mxu0
        %v9032 = vadd.f32 0.0, %v9031
        %v9033 = vpop.f32.mrb[0].mxu0
        %9034 = vmatprep.mubr.f32.mxu0 0.0
        %9035 = vmatmul.mubr.f32.gmra.mrb[0].mxu0 %v6642
        %v9036 = vpop.f32.mrb[0].mxu0
        %v9037 = vadd.f32 0.0, %v9036
        %v9038 = vpop.f32.mrb[0].mxu0
        %9039 = vmatprep.mubr.f32.mxu0 0.0
        %9040 = vmatmul.mubr.f32.gmra.mrb[0].mxu0 %v7866
        %v9041 = vpop.f32.mrb[0].mxu0
        %v9042 = vadd.f32 0.0, %v9041
        %v9043 = vpop.f32.mrb[0].mxu0
        %9044 = vmatprep.mubr.f32.mxu0 0.0
        %9045 = vmatmul.mubr.f32.gmra.mrb[0].mxu0 %v8937
        %v9046 = vpop.f32.mrb[0].mxu0
        %v9047 = vadd.f32 0.0, %v9046
        %v9048 = vpop.f32.mrb[0].mxu0
        %9049 = vmatprep.mubr.f32.mxu0 0.0
        %9050 = vmatmul.mubr.f32.gmra.mrb[0].mxu0 %v6648
        %v9051 = vpop.f32.mrb[0].mxu0
        %v9052 = vadd.f32 0.0, %v9051
        %v9053 = vpop.f32.mrb[0].mxu0
        %9054 = vmatprep.mubr.f32.mxu0 0.0
        %9055 = vmatmul.mubr.f32.gmra.mrb[0].mxu0 %v6650
        %v9056 = vpop.f32.mrb[0].mxu0
        %v9057 = vadd.f32 0.0, %v9056
        %v9058 = vpop.f32.mrb[0].mxu0
        %9059 = vmatprep.mubr.f32.mxu0 0.0
        %9060 = vmatmul.mubr.f32.gmra.mrb[0].mxu0 %v6652
        %v9061 = vpop.f32.mrb[0].mxu0
        %v9062 = vadd.f32 0.0, %v9061
        %v9063 = vpop.f32.mrb[0].mxu0
        %9064 = vmatprep.mubr.f32.mxu0 0.0
        %9065 = vmatmul.mubr.f32.gmra.mrb[0].mxu0 %v6654
        %v9066 = vpop.f32.mrb[0].mxu0
        %v9067 = vadd.f32 0.0, %v9066
        %v9068 = vpop.f32.mrb[0].mxu0
        %9069 = vmatprep.mubr.f32.mxu0 0.0
        %9070 = vmatmul.mubr.f32.gmra.mrb[0].mxu0 %v6656
        %v9071 = vpop.f32.mrb[0].mxu0
        %v9072 = vadd.f32 0.0, %v9071
        %v9073 = vpop.f32.mrb[0].mxu0
        %9074 = vmatprep.mubr.f32.mxu0 0.0
        %9075 = vmatmul.mubr.f32.gmra.mrb[0].mxu0 %v6658
        %v9076 = vpop.f32.mrb[0].mxu0
        %v9077 = vadd.f32 0.0, %v9076
        %v9078 = vpop.f32.mrb[0].mxu0
        %9079 = vmatprep.mubr.f32.mxu0 0.0
        %9080 = vmatmul.mubr.f32.gmra.mrb[0].mxu0 %v7868
        %v9081 = vpop.f32.mrb[0].mxu0
        %v9082 = vadd.f32 0.0, %v9081
        %v9083 = vpop.f32.mrb[0].mxu0
        %9084 = vmatprep.mubr.f32.mxu0 0.0
        %9085 = vmatmul.mubr.f32.gmra.mrb[0].mxu0 %v8939
        %v9086 = vpop.f32.mrb[0].mxu0
        %v9087 = vadd.f32 0.0, %v9086
        %v9088 = vpop.f32.mrb[0].mxu0
        %9089 = vmatprep.mubr.f32.mxu0 0.0
        %9090 = vmatmul.mubr.f32.gmra.mrb[0].mxu0 %v6664
        %v9091 = vpop.f32.mrb[0].mxu0
        %v9092 = vadd.f32 0.0, %v9091
        %v9093 = vpop.f32.mrb[0].mxu0
        %9094 = vmatprep.mubr.f32.mxu0 0.0
        %9095 = vmatmul.mubr.f32.gmra.mrb[0].mxu0 %v6666
        %v9096 = vpop.f32.mrb[0].mxu0
        %v9097 = vadd.f32 0.0, %v9096
        %v9098 = vpop.f32.mrb[0].mxu0
        %9099 = vmatprep.mubr.f32.mxu0 0.0
        %9100 = vmatmul.mubr.f32.gmra.mrb[0].mxu0 %v6668
        %v9101 = vpop.f32.mrb[0].mxu0
        %v9102 = vadd.f32 0.0, %v9101
        %v9103 = vpop.f32.mrb[0].mxu0
        %9104 = vmatprep.mubr.f32.mxu0 0.0
        %9105 = vmatmul.mubr.f32.gmra.mrb[0].mxu0 %v6670
        %v9106 = vpop.f32.mrb[0].mxu0
        %v9107 = vadd.f32 0.0, %v9106
        %v9108 = vpop.f32.mrb[0].mxu0
        %9109 = vmatprep.mubr.f32.mxu0 0.0
        %9110 = vmatmul.mubr.f32.gmra.mrb[0].mxu0 %v6672
        %v9111 = vpop.f32.mrb[0].mxu0
        %v9112 = vadd.f32 0.0, %v9111
        %v9113 = vpop.f32.mrb[0].mxu0
        %9114 = vmatprep.mubr.f32.mxu0 0.0
        %9115 = vmatmul.mubr.f32.gmra.mrb[0].mxu0 %v6674
        %v9116 = vpop.f32.mrb[0].mxu0
        %v9117 = vadd.f32 0.0, %v9116
        %v9118 = vpop.f32.mrb[0].mxu0
        %9119 = vmatprep.mubr.f32.mxu0 0.0
        %9120 = vmatmul.mubr.f32.gmra.mrb[0].mxu0 %v7870
        %v9121 = vpop.f32.mrb[0].mxu0
        %v9122 = vadd.f32 0.0, %v9121
        %v9123 = vpop.f32.mrb[0].mxu0
        %9124 = vmatprep.mubr.f32.mxu0 0.0
        %9125 = vmatmul.mubr.f32.gmra.mrb[0].mxu0 %v8941
        %v9126 = vpop.f32.mrb[0].mxu0
        %v9127 = vadd.f32 0.0, %v9126
        %v9128 = vpop.f32.mrb[0].mxu0
        %9129 = vmatprep.mubr.f32.mxu0 0.0
        %9130 = vmatmul.mubr.f32.gmra.mrb[0].mxu0 %v6680
        %v9131 = vpop.f32.mrb[0].mxu0
        %v9132 = vadd.f32 0.0, %v9131
        %v9133 = vpop.f32.mrb[0].mxu0
        %9134 = vmatprep.mubr.f32.mxu0 0.0
        %9135 = vmatmul.mubr.f32.gmra.mrb[0].mxu0 %v6682
        %v9136 = vpop.f32.mrb[0].mxu0
        %v9137 = vadd.f32 0.0, %v9136
        %v9138 = vpop.f32.mrb[0].mxu0
        %9139 = vmatprep.mubr.f32.mxu0 0.0
        %9140 = vmatmul.mubr.f32.gmra.mrb[0].mxu0 %v6684
        %v9141 = vpop.f32.mrb[0].mxu0
        %v9142 = vadd.f32 0.0, %v9141
        %v9143 = vpop.f32.mrb[0].mxu0
        %9144 = vmatprep.mubr.f32.mxu0 0.0
        %9145 = vmatmul.mubr.f32.gmra.mrb[0].mxu0 %v6686
        %v9146 = vpop.f32.mrb[0].mxu0
        %v9147 = vadd.f32 0.0, %v9146
        %v9148 = vpop.f32.mrb[0].mxu0
        %9149 = vmatprep.mubr.f32.mxu0 0.0
        %9150 = vmatmul.mubr.f32.gmra.mrb[0].mxu0 %v6688
        %v9151 = vpop.f32.mrb[0].mxu0
        %v9152 = vadd.f32 0.0, %v9151
        %v9153 = vpop.f32.mrb[0].mxu0
        %9154 = vmatprep.mubr.f32.mxu0 0.0
        %9155 = vmatmul.mubr.f32.gmra.mrb[0].mxu0 %v6690
        %v9156 = vpop.f32.mrb[0].mxu0
        %v9157 = vadd.f32 0.0, %v9156
        %v9158 = vpop.f32.mrb[0].mxu0
        %9159 = vmatprep.mubr.f32.mxu0 0.0
        %9160 = vmatmul.mubr.f32.gmra.mrb[0].mxu0 %v7872
        %v9161 = vpop.f32.mrb[0].mxu0
        %v9162 = vadd.f32 0.0, %v9161
        %v9163 = vpop.f32.mrb[0].mxu0
        %9164 = vmatprep.mubr.f32.mxu0 0.0
        %9165 = vmatmul.mubr.f32.gmra.mrb[0].mxu0 %v8943
        %v9166 = vpop.f32.mrb[0].mxu0
        %v9167 = vadd.f32 0.0, %v9166
        %v9168 = vpop.f32.mrb[0].mxu0
        %9169 = vdwg.mxu0
        %v9170 = vadd.f32 %v8821, %v9012
        %v9171 = vadd.f32 %v8822, %v9017
        %v9172 = vadd.f32 %v8823, %v9022
        %v9173 = vadd.f32 %v8824, %v9027
        %v9174 = vadd.f32 %v8825, %v9032
        %v9175 = vadd.f32 %v8826, %v9037
        %v9176 = vadd.f32 %v8827, %v9042
        %v9177 = vadd.f32 %v8828, %v9047
        %v9178 = vadd.f32 %v8829, %v9052
        %v9179 = vadd.f32 %v8830, %v9057
        %v9180 = vadd.f32 %v8831, %v9062
        %v9181 = vadd.f32 %v8832, %v9067
        %v9182 = vadd.f32 %v8833, %v9072
        %v9183 = vadd.f32 %v8834, %v9077
        %v9184 = vadd.f32 %v8835, %v9082
        %v9185 = vadd.f32 %v8836, %v9087
        %v9186 = vadd.f32 %v8837, %v9092
        %v9187 = vadd.f32 %v8838, %v9097
        %v9188 = vadd.f32 %v8839, %v9102
        %v9189 = vadd.f32 %v8840, %v9107
        %v9190 = vadd.f32 %v8841, %v9112
        %v9191 = vadd.f32 %v8842, %v9117
        %v9192 = vadd.f32 %v8843, %v9122
        %v9193 = vadd.f32 %v8844, %v9127
        %v9194 = vadd.f32 %v8845, %v9132
        %v9195 = vadd.f32 %v8846, %v9137
        %v9196 = vadd.f32 %v8847, %v9142
        %v9197 = vadd.f32 %v8848, %v9147
        %v9198 = vadd.f32 %v8849, %v9152
        %v9199 = vadd.f32 %v8850, %v9157
        %v9200 = vadd.f32 %v8851, %v9162
        %v9201 = vadd.f32 %v8852, %v9167
        %v9206 = vrot.slane %v4501, 7
        %v9207 = vrot.slane %v9206, 2
        %v9208 = vrot.slane %v4502, 7
        %v9209 = vsel %vm4834, %v9207, %v9208
        %v9210 = vrot.slane %v9208, 2
        %v9211 = vrot.slane %v4503, 7
        %v9212 = vsel %vm4834, %v9210, %v9211
        %v9213 = vrot.slane %v9211, 2
        %v9214 = vrot.slane %v4504, 7
        %v9215 = vsel %vm4834, %v9213, %v9214
        %v9216 = vrot.slane %v9214, 2
        %v9217 = vrot.slane %v4505, 7
        %v9218 = vsel %vm4834, %v9216, %v9217
        %v9219 = vrot.slane %v4551, 7
        %v9220 = vrot.slane %v9219, 2
        %v9221 = vrot.slane %v4552, 7
        %v9222 = vsel %vm4834, %v9220, %v9221
        %v9223 = vrot.slane %v9221, 2
        %v9224 = vrot.slane %v4553, 7
        %v9225 = vsel %vm4834, %v9223, %v9224
        %v9226 = vrot.slane %v9224, 2
        %v9227 = vrot.slane %v4554, 7
        %v9228 = vsel %vm4834, %v9226, %v9227
        %v9229 = vrot.slane %v9227, 2
        %v9230 = vrot.slane %v4555, 7
        %v9231 = vsel %vm4834, %v9229, %v9230
        %v9232 = vrot.slane %v4601, 7
        %v9233 = vrot.slane %v9232, 2
        %v9234 = vrot.slane %v4602, 7
        %v9235 = vsel %vm4834, %v9233, %v9234
        %v9236 = vrot.slane %v9234, 2
        %v9237 = vrot.slane %v4603, 7
        %v9238 = vsel %vm4834, %v9236, %v9237
        %v9239 = vrot.slane %v9237, 2
        %v9240 = vrot.slane %v4604, 7
        %v9241 = vsel %vm4834, %v9239, %v9240
        %v9242 = vrot.slane %v9240, 2
        %v9243 = vrot.slane %v4605, 7
        %v9244 = vsel %vm4834, %v9242, %v9243
        %v9245 = vrot.slane %v4651, 7
        %v9246 = vrot.slane %v9245, 2
        %v9247 = vrot.slane %v4652, 7
        %v9248 = vsel %vm4834, %v9246, %v9247
        %v9249 = vrot.slane %v9247, 2
        %v9250 = vrot.slane %v4653, 7
        %v9251 = vsel %vm4834, %v9249, %v9250
        %v9252 = vrot.slane %v9250, 2
        %v9253 = vrot.slane %v4654, 7
        %v9254 = vsel %vm4834, %v9252, %v9253
        %v9255 = vrot.slane %v9253, 2
        %v9256 = vrot.slane %v4655, 7
        %v9257 = vsel %vm4834, %v9255, %v9256
        %v9258 = vcombine.low %v9209, %v9212
        %v9259 = vcombine.low %v9215, %v9218
        %v9261 = vunpack.c.l.s4 1983009808
        %v9262 = vunpack.c.0.s8 %v9261
        %v9263 = vlaneseq
        %v9264 = vshrl.u32 %v9263, 7
        %v9265 = vsub.s32 %v9262, %v9264
        %v9266 = vrot.slane %v9258, %v9265
        %v9268 = vunpack.c.l.s4 1983009808
        %v9269 = vunpack.c.0.s8 %v9268
        %v9270 = vlaneseq
        %v9271 = vshrl.u32 %v9270, 7
        %v9272 = vsub.s32 %v9269, %v9271
        %v9273 = vrot.slane %v9259, %v9272
        %v9274 = vcombine.low %v9266, %v9273
        %v9275 = vcombine.low %v9222, %v9225
        %v9276 = vcombine.low %v9228, %v9231
        %v9278 = vunpack.c.l.s4 1983009808
        %v9279 = vunpack.c.0.s8 %v9278
        %v9280 = vlaneseq
        %v9281 = vshrl.u32 %v9280, 7
        %v9282 = vsub.s32 %v9279, %v9281
        %v9283 = vrot.slane %v9275, %v9282
        %v9285 = vunpack.c.l.s4 1983009808
        %v9286 = vunpack.c.0.s8 %v9285
        %v9287 = vlaneseq
        %v9288 = vshrl.u32 %v9287, 7
        %v9289 = vsub.s32 %v9286, %v9288
        %v9290 = vrot.slane %v9276, %v9289
        %v9291 = vcombine.low %v9283, %v9290
        %v9292 = vcombine.low %v9235, %v9238
        %v9293 = vcombine.low %v9241, %v9244
        %v9295 = vunpack.c.l.s4 1983009808
        %v9296 = vunpack.c.0.s8 %v9295
        %v9297 = vlaneseq
        %v9298 = vshrl.u32 %v9297, 7
        %v9299 = vsub.s32 %v9296, %v9298
        %v9300 = vrot.slane %v9292, %v9299
        %v9302 = vunpack.c.l.s4 1983009808
        %v9303 = vunpack.c.0.s8 %v9302
        %v9304 = vlaneseq
        %v9305 = vshrl.u32 %v9304, 7
        %v9306 = vsub.s32 %v9303, %v9305
        %v9307 = vrot.slane %v9293, %v9306
        %v9308 = vcombine.low %v9300, %v9307
        %v9309 = vcombine.low %v9248, %v9251
        %v9310 = vcombine.low %v9254, %v9257
        %v9312 = vunpack.c.l.s4 1983009808
        %v9313 = vunpack.c.0.s8 %v9312
        %v9314 = vlaneseq
        %v9315 = vshrl.u32 %v9314, 7
        %v9316 = vsub.s32 %v9313, %v9315
        %v9317 = vrot.slane %v9309, %v9316
        %v9319 = vunpack.c.l.s4 1983009808
        %v9320 = vunpack.c.0.s8 %v9319
        %v9321 = vlaneseq
        %v9322 = vshrl.u32 %v9321, 7
        %v9323 = vsub.s32 %v9320, %v9322
        %v9324 = vrot.slane %v9310, %v9323
        %v9325 = vcombine.low %v9317, %v9324
        %v9326 = vsel %vm2390, %v9274, 0
        %v9328 = vsel %vm2390, %v9291, 0
        %v9330 = vsel %vm2390, %v9308, 0
        %v9332 = vsel %vm2390, %v9325, 0
        %9334 = vmatprep.subr.mxu0 0.0
        %9335 = vmatpush1.msra.mxu0 %v4663
        %9336 = vmatprep.subr.mxu0 0.0
        %9337 = vmatpush1.msra.mxu0 0.0
        %9338 = vmatprep.subr.mxu0 0.0
        %9339 = vmatpush1.msra.mxu0 0.0
        %9340 = vmatprep.subr.mxu0 0.0
        %9341 = vmatpush1.msra.mxu0 0.0
        %9342 = vmatprep.subr.mxu0 0.0
        %9343 = vmatpush1.msra.mxu0 0.0
        %9344 = vmatprep.subr.mxu0 0.0
        %9345 = vmatpush1.msra.mxu0 0.0
        %9346 = vmatprep.subr.mxu0 0.0
        %9347 = vmatpush1.msra.mxu0 0.0
        %9348 = vmatprep.subr.mxu0 0.0
        %9349 = vmatpush1.msra.mxu0 0.0
        %9350 = vmatprep.subr.mxu0 0.0
        %9351 = vmatpush1.msra.mxu0 0.0
        %9352 = vmatprep.subr.mxu0 0.0
        %9353 = vmatpush1.msra.mxu0 0.0
        %9354 = vmatprep.subr.mxu0 0.0
        %9355 = vmatpush1.msra.mxu0 0.0
        %9356 = vmatprep.subr.mxu0 0.0
        %9357 = vmatpush1.msra.mxu0 0.0
        %9358 = vmatprep.subr.mxu0 0.0
        %9359 = vmatpush1.msra.mxu0 0.0
        %9360 = vmatprep.subr.mxu0 0.0
        %9361 = vmatpush1.msra.mxu0 0.0
        %9362 = vmatprep.subr.mxu0 0.0
        %9363 = vmatpush1.msra.mxu0 0.0
        %9364 = vmatprep.subr.mxu0 0.0
        %9365 = vmatpush1.msra.mxu0 0.0
        %9366 = vmatprep.subr.mxu0 0.0
        %9367 = vmatpush1.msra.mxu0 0.0
        %9368 = vmatprep.subr.mxu0 0.0
        %9369 = vmatpush1.msra.mxu0 0.0
        %9370 = vmatprep.subr.mxu0 0.0
        %9371 = vmatpush1.msra.mxu0 0.0
        %9372 = vmatprep.subr.mxu0 0.0
        %9373 = vmatpush1.msra.mxu0 0.0
        %9374 = vmatprep.subr.mxu0 0.0
        %9375 = vmatpush1.msra.mxu0 0.0
        %9376 = vmatprep.subr.mxu0 0.0
        %9377 = vmatpush1.msra.mxu0 0.0
        %9378 = vmatprep.subr.mxu0 0.0
        %9379 = vmatpush1.msra.mxu0 0.0
        %9380 = vmatprep.subr.mxu0 0.0
        %9381 = vmatpush1.msra.mxu0 0.0
        %9382 = vmatprep.subr.mxu0 0.0
        %9383 = vmatpush1.msra.mxu0 0.0
        %9384 = vmatprep.subr.mxu0 0.0
        %9385 = vmatpush1.msra.mxu0 0.0
        %9386 = vmatprep.subr.mxu0 0.0
        %9387 = vmatpush1.msra.mxu0 0.0
        %9388 = vmatprep.subr.mxu0 0.0
        %9389 = vmatpush1.msra.mxu0 0.0
        %9390 = vmatprep.subr.mxu0 0.0
        %9391 = vmatpush1.msra.mxu0 0.0
        %9392 = vmatprep.subr.mxu0 0.0
        %9393 = vmatpush1.msra.mxu0 0.0
        %9394 = vmatprep.subr.mxu0 0.0
        %9395 = vmatpush1.msra.mxu0 0.0
        %9396 = vmatprep.subr.mxu0 0.0
        %9397 = vmatpush1.msra.mxu0 0.0
        %9398 = vmatprep.mubr.f32.mxu0 0.0
        %9399 = vmatmul.mubr.f32.gmra.mrb[0].mxu0 %v5799
        %v9400 = vpop.f32.mrb[0].mxu0
        %v9401 = vadd.f32 0.0, %v9400
        %v9402 = vpop.f32.mrb[0].mxu0
        %9403 = vmatprep.mubr.f32.mxu0 0.0
        %9404 = vmatmul.mubr.f32.gmra.mrb[0].mxu0 %v5801
        %v9405 = vpop.f32.mrb[0].mxu0
        %v9406 = vadd.f32 0.0, %v9405
        %v9407 = vpop.f32.mrb[0].mxu0
        %9408 = vmatprep.mubr.f32.mxu0 0.0
        %9409 = vmatmul.mubr.f32.gmra.mrb[0].mxu0 %v5803
        %v9410 = vpop.f32.mrb[0].mxu0
        %v9411 = vadd.f32 0.0, %v9410
        %v9412 = vpop.f32.mrb[0].mxu0
        %9413 = vmatprep.mubr.f32.mxu0 0.0
        %9414 = vmatmul.mubr.f32.gmra.mrb[0].mxu0 %v5805
        %v9415 = vpop.f32.mrb[0].mxu0
        %v9416 = vadd.f32 0.0, %v9415
        %v9417 = vpop.f32.mrb[0].mxu0
        %9418 = vmatprep.mubr.f32.mxu0 0.0
        %9419 = vmatmul.mubr.f32.gmra.mrb[0].mxu0 %v5807
        %v9420 = vpop.f32.mrb[0].mxu0
        %v9421 = vadd.f32 0.0, %v9420
        %v9422 = vpop.f32.mrb[0].mxu0
        %9423 = vmatprep.mubr.f32.mxu0 0.0
        %9424 = vmatmul.mubr.f32.gmra.mrb[0].mxu0 %v5809
        %v9425 = vpop.f32.mrb[0].mxu0
        %v9426 = vadd.f32 0.0, %v9425
        %v9427 = vpop.f32.mrb[0].mxu0
        %9428 = vmatprep.mubr.f32.mxu0 0.0
        %9429 = vmatmul.mubr.f32.gmra.mrb[0].mxu0 %v8255
        %v9430 = vpop.f32.mrb[0].mxu0
        %v9431 = vadd.f32 0.0, %v9430
        %v9432 = vpop.f32.mrb[0].mxu0
        %9433 = vmatprep.mubr.f32.mxu0 0.0
        %9434 = vmatmul.mubr.f32.gmra.mrb[0].mxu0 %v9326
        %v9435 = vpop.f32.mrb[0].mxu0
        %v9436 = vadd.f32 0.0, %v9435
        %v9437 = vpop.f32.mrb[0].mxu0
        %9438 = vmatprep.mubr.f32.mxu0 0.0
        %9439 = vmatmul.mubr.f32.gmra.mrb[0].mxu0 %v5815
        %v9440 = vpop.f32.mrb[0].mxu0
        %v9441 = vadd.f32 0.0, %v9440
        %v9442 = vpop.f32.mrb[0].mxu0
        %9443 = vmatprep.mubr.f32.mxu0 0.0
        %9444 = vmatmul.mubr.f32.gmra.mrb[0].mxu0 %v5817
        %v9445 = vpop.f32.mrb[0].mxu0
        %v9446 = vadd.f32 0.0, %v9445
        %v9447 = vpop.f32.mrb[0].mxu0
        %9448 = vmatprep.mubr.f32.mxu0 0.0
        %9449 = vmatmul.mubr.f32.gmra.mrb[0].mxu0 %v5819
        %v9450 = vpop.f32.mrb[0].mxu0
        %v9451 = vadd.f32 0.0, %v9450
        %v9452 = vpop.f32.mrb[0].mxu0
        %9453 = vmatprep.mubr.f32.mxu0 0.0
        %9454 = vmatmul.mubr.f32.gmra.mrb[0].mxu0 %v5821
        %v9455 = vpop.f32.mrb[0].mxu0
        %v9456 = vadd.f32 0.0, %v9455
        %v9457 = vpop.f32.mrb[0].mxu0
        %9458 = vmatprep.mubr.f32.mxu0 0.0
        %9459 = vmatmul.mubr.f32.gmra.mrb[0].mxu0 %v5823
        %v9460 = vpop.f32.mrb[0].mxu0
        %v9461 = vadd.f32 0.0, %v9460
        %v9462 = vpop.f32.mrb[0].mxu0
        %9463 = vmatprep.mubr.f32.mxu0 0.0
        %9464 = vmatmul.mubr.f32.gmra.mrb[0].mxu0 %v5825
        %v9465 = vpop.f32.mrb[0].mxu0
        %v9466 = vadd.f32 0.0, %v9465
        %v9467 = vpop.f32.mrb[0].mxu0
        %9468 = vmatprep.mubr.f32.mxu0 0.0
        %9469 = vmatmul.mubr.f32.gmra.mrb[0].mxu0 %v8257
        %v9470 = vpop.f32.mrb[0].mxu0
        %v9471 = vadd.f32 0.0, %v9470
        %v9472 = vpop.f32.mrb[0].mxu0
        %9473 = vmatprep.mubr.f32.mxu0 0.0
        %9474 = vmatmul.mubr.f32.gmra.mrb[0].mxu0 %v9328
        %v9475 = vpop.f32.mrb[0].mxu0
        %v9476 = vadd.f32 0.0, %v9475
        %v9477 = vpop.f32.mrb[0].mxu0
        %9478 = vmatprep.mubr.f32.mxu0 0.0
        %9479 = vmatmul.mubr.f32.gmra.mrb[0].mxu0 %v5831
        %v9480 = vpop.f32.mrb[0].mxu0
        %v9481 = vadd.f32 0.0, %v9480
        %v9482 = vpop.f32.mrb[0].mxu0
        %9483 = vmatprep.mubr.f32.mxu0 0.0
        %9484 = vmatmul.mubr.f32.gmra.mrb[0].mxu0 %v5833
        %v9485 = vpop.f32.mrb[0].mxu0
        %v9486 = vadd.f32 0.0, %v9485
        %v9487 = vpop.f32.mrb[0].mxu0
        %9488 = vmatprep.mubr.f32.mxu0 0.0
        %9489 = vmatmul.mubr.f32.gmra.mrb[0].mxu0 %v5835
        %v9490 = vpop.f32.mrb[0].mxu0
        %v9491 = vadd.f32 0.0, %v9490
        %v9492 = vpop.f32.mrb[0].mxu0
        %9493 = vmatprep.mubr.f32.mxu0 0.0
        %9494 = vmatmul.mubr.f32.gmra.mrb[0].mxu0 %v5837
        %v9495 = vpop.f32.mrb[0].mxu0
        %v9496 = vadd.f32 0.0, %v9495
        %v9497 = vpop.f32.mrb[0].mxu0
        %9498 = vmatprep.mubr.f32.mxu0 0.0
        %9499 = vmatmul.mubr.f32.gmra.mrb[0].mxu0 %v5839
        %v9500 = vpop.f32.mrb[0].mxu0
        %v9501 = vadd.f32 0.0, %v9500
        %v9502 = vpop.f32.mrb[0].mxu0
        %9503 = vmatprep.mubr.f32.mxu0 0.0
        %9504 = vmatmul.mubr.f32.gmra.mrb[0].mxu0 %v5841
        %v9505 = vpop.f32.mrb[0].mxu0
        %v9506 = vadd.f32 0.0, %v9505
        %v9507 = vpop.f32.mrb[0].mxu0
        %9508 = vmatprep.mubr.f32.mxu0 0.0
        %9509 = vmatmul.mubr.f32.gmra.mrb[0].mxu0 %v8259
        %v9510 = vpop.f32.mrb[0].mxu0
        %v9511 = vadd.f32 0.0, %v9510
        %v9512 = vpop.f32.mrb[0].mxu0
        %9513 = vmatprep.mubr.f32.mxu0 0.0
        %9514 = vmatmul.mubr.f32.gmra.mrb[0].mxu0 %v9330
        %v9515 = vpop.f32.mrb[0].mxu0
        %v9516 = vadd.f32 0.0, %v9515
        %v9517 = vpop.f32.mrb[0].mxu0
        %9518 = vmatprep.mubr.f32.mxu0 0.0
        %9519 = vmatmul.mubr.f32.gmra.mrb[0].mxu0 %v5847
        %v9520 = vpop.f32.mrb[0].mxu0
        %v9521 = vadd.f32 0.0, %v9520
        %v9522 = vpop.f32.mrb[0].mxu0
        %9523 = vmatprep.mubr.f32.mxu0 0.0
        %9524 = vmatmul.mubr.f32.gmra.mrb[0].mxu0 %v5849
        %v9525 = vpop.f32.mrb[0].mxu0
        %v9526 = vadd.f32 0.0, %v9525
        %v9527 = vpop.f32.mrb[0].mxu0
        %9528 = vmatprep.mubr.f32.mxu0 0.0
        %9529 = vmatmul.mubr.f32.gmra.mrb[0].mxu0 %v5851
        %v9530 = vpop.f32.mrb[0].mxu0
        %v9531 = vadd.f32 0.0, %v9530
        %v9532 = vpop.f32.mrb[0].mxu0
        %9533 = vmatprep.mubr.f32.mxu0 0.0
        %9534 = vmatmul.mubr.f32.gmra.mrb[0].mxu0 %v5853
        %v9535 = vpop.f32.mrb[0].mxu0
        %v9536 = vadd.f32 0.0, %v9535
        %v9537 = vpop.f32.mrb[0].mxu0
        %9538 = vmatprep.mubr.f32.mxu0 0.0
        %9539 = vmatmul.mubr.f32.gmra.mrb[0].mxu0 %v5855
        %v9540 = vpop.f32.mrb[0].mxu0
        %v9541 = vadd.f32 0.0, %v9540
        %v9542 = vpop.f32.mrb[0].mxu0
        %9543 = vmatprep.mubr.f32.mxu0 0.0
        %9544 = vmatmul.mubr.f32.gmra.mrb[0].mxu0 %v5857
        %v9545 = vpop.f32.mrb[0].mxu0
        %v9546 = vadd.f32 0.0, %v9545
        %v9547 = vpop.f32.mrb[0].mxu0
        %9548 = vmatprep.mubr.f32.mxu0 0.0
        %9549 = vmatmul.mubr.f32.gmra.mrb[0].mxu0 %v8261
        %v9550 = vpop.f32.mrb[0].mxu0
        %v9551 = vadd.f32 0.0, %v9550
        %v9552 = vpop.f32.mrb[0].mxu0
        %9553 = vmatprep.mubr.f32.mxu0 0.0
        %9554 = vmatmul.mubr.f32.gmra.mrb[0].mxu0 %v9332
        %v9555 = vpop.f32.mrb[0].mxu0
        %v9556 = vadd.f32 0.0, %v9555
        %v9557 = vpop.f32.mrb[0].mxu0
        %9558 = vdwg.mxu0
        %v9559 = vadd.f32 %v9170, %v9401
        %v9560 = vadd.f32 %v9171, %v9406
        %v9561 = vadd.f32 %v9172, %v9411
        %v9562 = vadd.f32 %v9173, %v9416
        %v9563 = vadd.f32 %v9174, %v9421
        %v9564 = vadd.f32 %v9175, %v9426
        %v9565 = vadd.f32 %v9176, %v9431
        %v9566 = vadd.f32 %v9177, %v9436
        %v9567 = vadd.f32 %v9178, %v9441
        %v9568 = vadd.f32 %v9179, %v9446
        %v9569 = vadd.f32 %v9180, %v9451
        %v9570 = vadd.f32 %v9181, %v9456
        %v9571 = vadd.f32 %v9182, %v9461
        %v9572 = vadd.f32 %v9183, %v9466
        %v9573 = vadd.f32 %v9184, %v9471
        %v9574 = vadd.f32 %v9185, %v9476
        %v9575 = vadd.f32 %v9186, %v9481
        %v9576 = vadd.f32 %v9187, %v9486
        %v9577 = vadd.f32 %v9188, %v9491
        %v9578 = vadd.f32 %v9189, %v9496
        %v9579 = vadd.f32 %v9190, %v9501
        %v9580 = vadd.f32 %v9191, %v9506
        %v9581 = vadd.f32 %v9192, %v9511
        %v9582 = vadd.f32 %v9193, %v9516
        %v9583 = vadd.f32 %v9194, %v9521
        %v9584 = vadd.f32 %v9195, %v9526
        %v9585 = vadd.f32 %v9196, %v9531
        %v9586 = vadd.f32 %v9197, %v9536
        %v9587 = vadd.f32 %v9198, %v9541
        %v9588 = vadd.f32 %v9199, %v9546
        %v9589 = vadd.f32 %v9200, %v9551
        %v9590 = vadd.f32 %v9201, %v9556
        %v9591 = vcombine.low %v4502, %v4503
        %v9592 = vcombine.low %v4504, %v4505
        %v9594 = vunpack.c.l.s4 1983009808
        %v9595 = vunpack.c.0.s8 %v9594
        %v9596 = vlaneseq
        %v9597 = vshrl.u32 %v9596, 7
        %v9598 = vsub.s32 %v9595, %v9597
        %v9599 = vrot.slane %v9591, %v9598
        %v9601 = vunpack.c.l.s4 1983009808
        %v9602 = vunpack.c.0.s8 %v9601
        %v9603 = vlaneseq
        %v9604 = vshrl.u32 %v9603, 7
        %v9605 = vsub.s32 %v9602, %v9604
        %v9606 = vrot.slane %v9592, %v9605
        %v9607 = vcombine.low %v9599, %v9606
        %v9608 = vcombine.low %v4552, %v4553
        %v9609 = vcombine.low %v4554, %v4555
        %v9611 = vunpack.c.l.s4 1983009808
        %v9612 = vunpack.c.0.s8 %v9611
        %v9613 = vlaneseq
        %v9614 = vshrl.u32 %v9613, 7
        %v9615 = vsub.s32 %v9612, %v9614
        %v9616 = vrot.slane %v9608, %v9615
        %v9618 = vunpack.c.l.s4 1983009808
        %v9619 = vunpack.c.0.s8 %v9618
        %v9620 = vlaneseq
        %v9621 = vshrl.u32 %v9620, 7
        %v9622 = vsub.s32 %v9619, %v9621
        %v9623 = vrot.slane %v9609, %v9622
        %v9624 = vcombine.low %v9616, %v9623
        %v9625 = vcombine.low %v4602, %v4603
        %v9626 = vcombine.low %v4604, %v4605
        %v9628 = vunpack.c.l.s4 1983009808
        %v9629 = vunpack.c.0.s8 %v9628
        %v9630 = vlaneseq
        %v9631 = vshrl.u32 %v9630, 7
        %v9632 = vsub.s32 %v9629, %v9631
        %v9633 = vrot.slane %v9625, %v9632
        %v9635 = vunpack.c.l.s4 1983009808
        %v9636 = vunpack.c.0.s8 %v9635
        %v9637 = vlaneseq
        %v9638 = vshrl.u32 %v9637, 7
        %v9639 = vsub.s32 %v9636, %v9638
        %v9640 = vrot.slane %v9626, %v9639
        %v9641 = vcombine.low %v9633, %v9640
        %v9642 = vcombine.low %v4652, %v4653
        %v9643 = vcombine.low %v4654, %v4655
        %v9645 = vunpack.c.l.s4 1983009808
        %v9646 = vunpack.c.0.s8 %v9645
        %v9647 = vlaneseq
        %v9648 = vshrl.u32 %v9647, 7
        %v9649 = vsub.s32 %v9646, %v9648
        %v9650 = vrot.slane %v9642, %v9649
        %v9652 = vunpack.c.l.s4 1983009808
        %v9653 = vunpack.c.0.s8 %v9652
        %v9654 = vlaneseq
        %v9655 = vshrl.u32 %v9654, 7
        %v9656 = vsub.s32 %v9653, %v9655
        %v9657 = vrot.slane %v9643, %v9656
        %v9658 = vcombine.low %v9650, %v9657
        %v9659 = vsel %vm2390, %v9607, 0
        %v9661 = vsel %vm2390, %v9624, 0
        %v9663 = vsel %vm2390, %v9641, 0
        %v9665 = vsel %vm2390, %v9658, 0
        %9667 = vmatprep.subr.mxu0 0.0
        %9668 = vmatpush1.msra.mxu0 %v4664
        %9669 = vmatprep.subr.mxu0 0.0
        %9670 = vmatpush1.msra.mxu0 0.0
        %9671 = vmatprep.subr.mxu0 0.0
        %9672 = vmatpush1.msra.mxu0 0.0
        %9673 = vmatprep.subr.mxu0 0.0
        %9674 = vmatpush1.msra.mxu0 0.0
        %9675 = vmatprep.subr.mxu0 0.0
        %9676 = vmatpush1.msra.mxu0 0.0
        %9677 = vmatprep.subr.mxu0 0.0
        %9678 = vmatpush1.msra.mxu0 0.0
        %9679 = vmatprep.subr.mxu0 0.0
        %9680 = vmatpush1.msra.mxu0 0.0
        %9681 = vmatprep.subr.mxu0 0.0
        %9682 = vmatpush1.msra.mxu0 0.0
        %9683 = vmatprep.subr.mxu0 0.0
        %9684 = vmatpush1.msra.mxu0 0.0
        %9685 = vmatprep.subr.mxu0 0.0
        %9686 = vmatpush1.msra.mxu0 0.0
        %9687 = vmatprep.subr.mxu0 0.0
        %9688 = vmatpush1.msra.mxu0 0.0
        %9689 = vmatprep.subr.mxu0 0.0
        %9690 = vmatpush1.msra.mxu0 0.0
        %9691 = vmatprep.subr.mxu0 0.0
        %9692 = vmatpush1.msra.mxu0 0.0
        %9693 = vmatprep.subr.mxu0 0.0
        %9694 = vmatpush1.msra.mxu0 0.0
        %9695 = vmatprep.subr.mxu0 0.0
        %9696 = vmatpush1.msra.mxu0 0.0
        %9697 = vmatprep.subr.mxu0 0.0
        %9698 = vmatpush1.msra.mxu0 0.0
        %9699 = vmatprep.subr.mxu0 0.0
        %9700 = vmatpush1.msra.mxu0 0.0
        %9701 = vmatprep.subr.mxu0 0.0
        %9702 = vmatpush1.msra.mxu0 0.0
        %9703 = vmatprep.subr.mxu0 0.0
        %9704 = vmatpush1.msra.mxu0 0.0
        %9705 = vmatprep.subr.mxu0 0.0
        %9706 = vmatpush1.msra.mxu0 0.0
        %9707 = vmatprep.subr.mxu0 0.0
        %9708 = vmatpush1.msra.mxu0 0.0
        %9709 = vmatprep.subr.mxu0 0.0
        %9710 = vmatpush1.msra.mxu0 0.0
        %9711 = vmatprep.subr.mxu0 0.0
        %9712 = vmatpush1.msra.mxu0 0.0
        %9713 = vmatprep.subr.mxu0 0.0
        %9714 = vmatpush1.msra.mxu0 0.0
        %9715 = vmatprep.subr.mxu0 0.0
        %9716 = vmatpush1.msra.mxu0 0.0
        %9717 = vmatprep.subr.mxu0 0.0
        %9718 = vmatpush1.msra.mxu0 0.0
        %9719 = vmatprep.subr.mxu0 0.0
        %9720 = vmatpush1.msra.mxu0 0.0
        %9721 = vmatprep.subr.mxu0 0.0
        %9722 = vmatpush1.msra.mxu0 0.0
        %9723 = vmatprep.subr.mxu0 0.0
        %9724 = vmatpush1.msra.mxu0 0.0
        %9725 = vmatprep.subr.mxu0 0.0
        %9726 = vmatpush1.msra.mxu0 0.0
        %9727 = vmatprep.subr.mxu0 0.0
        %9728 = vmatpush1.msra.mxu0 0.0
        %9729 = vmatprep.subr.mxu0 0.0
        %9730 = vmatpush1.msra.mxu0 0.0
        %9731 = vmatprep.mubr.f32.mxu0 0.0
        %9732 = vmatmul.mubr.f32.gmra.mrb[0].mxu0 %v7465
        %v9733 = vpop.f32.mrb[0].mxu0
        %v9734 = vadd.f32 0.0, %v9733
        %v9735 = vpop.f32.mrb[0].mxu0
        %9736 = vmatprep.mubr.f32.mxu0 0.0
        %9737 = vmatmul.mubr.f32.gmra.mrb[0].mxu0 %v7467
        %v9738 = vpop.f32.mrb[0].mxu0
        %v9739 = vadd.f32 0.0, %v9738
        %v9740 = vpop.f32.mrb[0].mxu0
        %9741 = vmatprep.mubr.f32.mxu0 0.0
        %9742 = vmatmul.mubr.f32.gmra.mrb[0].mxu0 %v7469
        %v9743 = vpop.f32.mrb[0].mxu0
        %v9744 = vadd.f32 0.0, %v9743
        %v9745 = vpop.f32.mrb[0].mxu0
        %9746 = vmatprep.mubr.f32.mxu0 0.0
        %9747 = vmatmul.mubr.f32.gmra.mrb[0].mxu0 %v7471
        %v9748 = vpop.f32.mrb[0].mxu0
        %v9749 = vadd.f32 0.0, %v9748
        %v9750 = vpop.f32.mrb[0].mxu0
        %9751 = vmatprep.mubr.f32.mxu0 0.0
        %9752 = vmatmul.mubr.f32.gmra.mrb[0].mxu0 %v7473
        %v9753 = vpop.f32.mrb[0].mxu0
        %v9754 = vadd.f32 0.0, %v9753
        %v9755 = vpop.f32.mrb[0].mxu0
        %9756 = vmatprep.mubr.f32.mxu0 0.0
        %9757 = vmatmul.mubr.f32.gmra.mrb[0].mxu0 %v7475
        %v9758 = vpop.f32.mrb[0].mxu0
        %v9759 = vadd.f32 0.0, %v9758
        %v9760 = vpop.f32.mrb[0].mxu0
        %9761 = vmatprep.mubr.f32.mxu0 0.0
        %9762 = vmatmul.mubr.f32.gmra.mrb[0].mxu0 %v8588
        %v9763 = vpop.f32.mrb[0].mxu0
        %v9764 = vadd.f32 0.0, %v9763
        %v9765 = vpop.f32.mrb[0].mxu0
        %9766 = vmatprep.mubr.f32.mxu0 0.0
        %9767 = vmatmul.mubr.f32.gmra.mrb[0].mxu0 %v9659
        %v9768 = vpop.f32.mrb[0].mxu0
        %v9769 = vadd.f32 0.0, %v9768
        %v9770 = vpop.f32.mrb[0].mxu0
        %9771 = vmatprep.mubr.f32.mxu0 0.0
        %9772 = vmatmul.mubr.f32.gmra.mrb[0].mxu0 %v7481
        %v9773 = vpop.f32.mrb[0].mxu0
        %v9774 = vadd.f32 0.0, %v9773
        %v9775 = vpop.f32.mrb[0].mxu0
        %9776 = vmatprep.mubr.f32.mxu0 0.0
        %9777 = vmatmul.mubr.f32.gmra.mrb[0].mxu0 %v7483
        %v9778 = vpop.f32.mrb[0].mxu0
        %v9779 = vadd.f32 0.0, %v9778
        %v9780 = vpop.f32.mrb[0].mxu0
        %9781 = vmatprep.mubr.f32.mxu0 0.0
        %9782 = vmatmul.mubr.f32.gmra.mrb[0].mxu0 %v7485
        %v9783 = vpop.f32.mrb[0].mxu0
        %v9784 = vadd.f32 0.0, %v9783
        %v9785 = vpop.f32.mrb[0].mxu0
        %9786 = vmatprep.mubr.f32.mxu0 0.0
        %9787 = vmatmul.mubr.f32.gmra.mrb[0].mxu0 %v7487
        %v9788 = vpop.f32.mrb[0].mxu0
        %v9789 = vadd.f32 0.0, %v9788
        %v9790 = vpop.f32.mrb[0].mxu0
        %9791 = vmatprep.mubr.f32.mxu0 0.0
        %9792 = vmatmul.mubr.f32.gmra.mrb[0].mxu0 %v7489
        %v9793 = vpop.f32.mrb[0].mxu0
        %v9794 = vadd.f32 0.0, %v9793
        %v9795 = vpop.f32.mrb[0].mxu0
        %9796 = vmatprep.mubr.f32.mxu0 0.0
        %9797 = vmatmul.mubr.f32.gmra.mrb[0].mxu0 %v7491
        %v9798 = vpop.f32.mrb[0].mxu0
        %v9799 = vadd.f32 0.0, %v9798
        %v9800 = vpop.f32.mrb[0].mxu0
        %9801 = vmatprep.mubr.f32.mxu0 0.0
        %9802 = vmatmul.mubr.f32.gmra.mrb[0].mxu0 %v8590
        %v9803 = vpop.f32.mrb[0].mxu0
        %v9804 = vadd.f32 0.0, %v9803
        %v9805 = vpop.f32.mrb[0].mxu0
        %9806 = vmatprep.mubr.f32.mxu0 0.0
        %9807 = vmatmul.mubr.f32.gmra.mrb[0].mxu0 %v9661
        %v9808 = vpop.f32.mrb[0].mxu0
        %v9809 = vadd.f32 0.0, %v9808
        %v9810 = vpop.f32.mrb[0].mxu0
        %9811 = vmatprep.mubr.f32.mxu0 0.0
        %9812 = vmatmul.mubr.f32.gmra.mrb[0].mxu0 %v7497
        %v9813 = vpop.f32.mrb[0].mxu0
        %v9814 = vadd.f32 0.0, %v9813
        %v9815 = vpop.f32.mrb[0].mxu0
        %9816 = vmatprep.mubr.f32.mxu0 0.0
        %9817 = vmatmul.mubr.f32.gmra.mrb[0].mxu0 %v7499
        %v9818 = vpop.f32.mrb[0].mxu0
        %v9819 = vadd.f32 0.0, %v9818
        %v9820 = vpop.f32.mrb[0].mxu0
        %9821 = vmatprep.mubr.f32.mxu0 0.0
        %9822 = vmatmul.mubr.f32.gmra.mrb[0].mxu0 %v7501
        %v9823 = vpop.f32.mrb[0].mxu0
        %v9824 = vadd.f32 0.0, %v9823
        %v9825 = vpop.f32.mrb[0].mxu0
        %9826 = vmatprep.mubr.f32.mxu0 0.0
        %9827 = vmatmul.mubr.f32.gmra.mrb[0].mxu0 %v7503
        %v9828 = vpop.f32.mrb[0].mxu0
        %v9829 = vadd.f32 0.0, %v9828
        %v9830 = vpop.f32.mrb[0].mxu0
        %9831 = vmatprep.mubr.f32.mxu0 0.0
        %9832 = vmatmul.mubr.f32.gmra.mrb[0].mxu0 %v7505
        %v9833 = vpop.f32.mrb[0].mxu0
        %v9834 = vadd.f32 0.0, %v9833
        %v9835 = vpop.f32.mrb[0].mxu0
        %9836 = vmatprep.mubr.f32.mxu0 0.0
        %9837 = vmatmul.mubr.f32.gmra.mrb[0].mxu0 %v7507
        %v9838 = vpop.f32.mrb[0].mxu0
        %v9839 = vadd.f32 0.0, %v9838
        %v9840 = vpop.f32.mrb[0].mxu0
        %9841 = vmatprep.mubr.f32.mxu0 0.0
        %9842 = vmatmul.mubr.f32.gmra.mrb[0].mxu0 %v8592
        %v9843 = vpop.f32.mrb[0].mxu0
        %v9844 = vadd.f32 0.0, %v9843
        %v9845 = vpop.f32.mrb[0].mxu0
        %9846 = vmatprep.mubr.f32.mxu0 0.0
        %9847 = vmatmul.mubr.f32.gmra.mrb[0].mxu0 %v9663
        %v9848 = vpop.f32.mrb[0].mxu0
        %v9849 = vadd.f32 0.0, %v9848
        %v9850 = vpop.f32.mrb[0].mxu0
        %9851 = vmatprep.mubr.f32.mxu0 0.0
        %9852 = vmatmul.mubr.f32.gmra.mrb[0].mxu0 %v7513
        %v9853 = vpop.f32.mrb[0].mxu0
        %v9854 = vadd.f32 0.0, %v9853
        %v9855 = vpop.f32.mrb[0].mxu0
        %9856 = vmatprep.mubr.f32.mxu0 0.0
        %9857 = vmatmul.mubr.f32.gmra.mrb[0].mxu0 %v7515
        %v9858 = vpop.f32.mrb[0].mxu0
        %v9859 = vadd.f32 0.0, %v9858
        %v9860 = vpop.f32.mrb[0].mxu0
        %9861 = vmatprep.mubr.f32.mxu0 0.0
        %9862 = vmatmul.mubr.f32.gmra.mrb[0].mxu0 %v7517
        %v9863 = vpop.f32.mrb[0].mxu0
        %v9864 = vadd.f32 0.0, %v9863
        %v9865 = vpop.f32.mrb[0].mxu0
        %9866 = vmatprep.mubr.f32.mxu0 0.0
        %9867 = vmatmul.mubr.f32.gmra.mrb[0].mxu0 %v7519
        %v9868 = vpop.f32.mrb[0].mxu0
        %v9869 = vadd.f32 0.0, %v9868
        %v9870 = vpop.f32.mrb[0].mxu0
        %9871 = vmatprep.mubr.f32.mxu0 0.0
        %9872 = vmatmul.mubr.f32.gmra.mrb[0].mxu0 %v7521
        %v9873 = vpop.f32.mrb[0].mxu0
        %v9874 = vadd.f32 0.0, %v9873
        %v9875 = vpop.f32.mrb[0].mxu0
        %9876 = vmatprep.mubr.f32.mxu0 0.0
        %9877 = vmatmul.mubr.f32.gmra.mrb[0].mxu0 %v7523
        %v9878 = vpop.f32.mrb[0].mxu0
        %v9879 = vadd.f32 0.0, %v9878
        %v9880 = vpop.f32.mrb[0].mxu0
        %9881 = vmatprep.mubr.f32.mxu0 0.0
        %9882 = vmatmul.mubr.f32.gmra.mrb[0].mxu0 %v8594
        %v9883 = vpop.f32.mrb[0].mxu0
        %v9884 = vadd.f32 0.0, %v9883
        %v9885 = vpop.f32.mrb[0].mxu0
        %9886 = vmatprep.mubr.f32.mxu0 0.0
        %9887 = vmatmul.mubr.f32.gmra.mrb[0].mxu0 %v9665
        %v9888 = vpop.f32.mrb[0].mxu0
        %v9889 = vadd.f32 0.0, %v9888
        %v9890 = vpop.f32.mrb[0].mxu0
        %9891 = vdwg.mxu0
        %v9892 = vadd.f32 %v9559, %v9734
        %v9893 = vadd.f32 %v9560, %v9739
        %v9894 = vadd.f32 %v9561, %v9744
        %v9895 = vadd.f32 %v9562, %v9749
        %v9896 = vadd.f32 %v9563, %v9754
        %v9897 = vadd.f32 %v9564, %v9759
        %v9898 = vadd.f32 %v9565, %v9764
        %v9899 = vadd.f32 %v9566, %v9769
        %v9900 = vadd.f32 %v9567, %v9774
        %v9901 = vadd.f32 %v9568, %v9779
        %v9902 = vadd.f32 %v9569, %v9784
        %v9903 = vadd.f32 %v9570, %v9789
        %v9904 = vadd.f32 %v9571, %v9794
        %v9905 = vadd.f32 %v9572, %v9799
        %v9906 = vadd.f32 %v9573, %v9804
        %v9907 = vadd.f32 %v9574, %v9809
        %v9908 = vadd.f32 %v9575, %v9814
        %v9909 = vadd.f32 %v9576, %v9819
        %v9910 = vadd.f32 %v9577, %v9824
        %v9911 = vadd.f32 %v9578, %v9829
        %v9912 = vadd.f32 %v9579, %v9834
        %v9913 = vadd.f32 %v9580, %v9839
        %v9914 = vadd.f32 %v9581, %v9844
        %v9915 = vadd.f32 %v9582, %v9849
        %v9916 = vadd.f32 %v9583, %v9854
        %v9917 = vadd.f32 %v9584, %v9859
        %v9918 = vadd.f32 %v9585, %v9864
        %v9919 = vadd.f32 %v9586, %v9869
        %v9920 = vadd.f32 %v9587, %v9874
        %v9921 = vadd.f32 %v9588, %v9879
        %v9922 = vadd.f32 %v9589, %v9884
        %v9923 = vadd.f32 %v9590, %v9889
        %v9924 = vld [vmem:[%s5] sm:$0x1]
        %v9926 = vlaneseq
        %v9927 = vshrl.u32 %v9926, 7
        %v9928 = vsub.s32 0, %v9927
        %v9929 = vrot.slane %v9924, %v9928
        %v9931 = vadd.f32 %v9892, %v9929
        %v9932 = vadd.f32 %v9893, %v9929
        %v9933 = vadd.f32 %v9894, %v9929
        %v9934 = vadd.f32 %v9895, %v9929
        %v9935 = vadd.f32 %v9896, %v9929
        %v9936 = vadd.f32 %v9897, %v9929
        %v9937 = vadd.f32 %v9898, %v9929
        %v9938 = vadd.f32 %v9899, %v9929
        %v9939 = vadd.f32 %v9900, %v9929
        %v9940 = vadd.f32 %v9901, %v9929
        %v9941 = vadd.f32 %v9902, %v9929
        %v9942 = vadd.f32 %v9903, %v9929
        %v9943 = vadd.f32 %v9904, %v9929
        %v9944 = vadd.f32 %v9905, %v9929
        %v9945 = vadd.f32 %v9906, %v9929
        %v9946 = vadd.f32 %v9907, %v9929
        %v9947 = vadd.f32 %v9908, %v9929
        %v9948 = vadd.f32 %v9909, %v9929
        %v9949 = vadd.f32 %v9910, %v9929
        %v9950 = vadd.f32 %v9911, %v9929
        %v9951 = vadd.f32 %v9912, %v9929
        %v9952 = vadd.f32 %v9913, %v9929
        %v9953 = vadd.f32 %v9914, %v9929
        %v9954 = vadd.f32 %v9915, %v9929
        %v9955 = vadd.f32 %v9916, %v9929
        %v9956 = vadd.f32 %v9917, %v9929
        %v9957 = vadd.f32 %v9918, %v9929
        %v9958 = vadd.f32 %v9919, %v9929
        %v9959 = vadd.f32 %v9920, %v9929
        %v9960 = vadd.f32 %v9921, %v9929
        %v9961 = vadd.f32 %v9922, %v9929
        %v9962 = vadd.f32 %v9923, %v9929
        %v9963 = vmax.f32 %v9931, 0.0
        %v9964 = vmax.f32 %v9932, 0.0
        %v9965 = vmax.f32 %v9933, 0.0
        %v9966 = vmax.f32 %v9934, 0.0
        %v9967 = vmax.f32 %v9935, 0.0
        %v9968 = vmax.f32 %v9936, 0.0
        %v9969 = vmax.f32 %v9937, 0.0
        %v9970 = vmax.f32 %v9938, 0.0
        %v9971 = vmax.f32 %v9939, 0.0
        %v9972 = vmax.f32 %v9940, 0.0
        %v9973 = vmax.f32 %v9941, 0.0
        %v9974 = vmax.f32 %v9942, 0.0
        %v9975 = vmax.f32 %v9943, 0.0
        %v9976 = vmax.f32 %v9944, 0.0
        %v9977 = vmax.f32 %v9945, 0.0
        %v9978 = vmax.f32 %v9946, 0.0
        %v9979 = vmax.f32 %v9947, 0.0
        %v9980 = vmax.f32 %v9948, 0.0
        %v9981 = vmax.f32 %v9949, 0.0
        %v9982 = vmax.f32 %v9950, 0.0
        %v9983 = vmax.f32 %v9951, 0.0
        %v9984 = vmax.f32 %v9952, 0.0
        %v9985 = vmax.f32 %v9953, 0.0
        %v9986 = vmax.f32 %v9954, 0.0
        %v9987 = vmax.f32 %v9955, 0.0
        %v9988 = vmax.f32 %v9956, 0.0
        %v9989 = vmax.f32 %v9957, 0.0
        %v9990 = vmax.f32 %v9958, 0.0
        %v9991 = vmax.f32 %v9959, 0.0
        %v9992 = vmax.f32 %v9960, 0.0
        %v9993 = vmax.f32 %v9961, 0.0
        %v9994 = vmax.f32 %v9962, 0.0
        %v9996 = vsel %vm2390, %v9963, 0
        %v9999 = vsel %vm2390, %v9964, 0
        %v10002 = vsel %vm2390, %v9965, 0
        %v10005 = vsel %vm2390, %v9966, 0
        %v10008 = vsel %vm2390, %v9967, 0
        %v10011 = vsel %vm2390, %v9968, 0
        %v10014 = vsel %vm2390, %v9969, 0
        %v10017 = vsel %vm2390, %v9970, 0
        %v10020 = vsel %vm2390, %v9971, 0
        %v10023 = vsel %vm2390, %v9972, 0
        %v10026 = vsel %vm2390, %v9973, 0
        %v10029 = vsel %vm2390, %v9974, 0
        %v10032 = vsel %vm2390, %v9975, 0
        %v10035 = vsel %vm2390, %v9976, 0
        %v10038 = vsel %vm2390, %v9977, 0
        %v10041 = vsel %vm2390, %v9978, 0
        %v10044 = vsel %vm2390, %v9979, 0
        %v10047 = vsel %vm2390, %v9980, 0
        %v10050 = vsel %vm2390, %v9981, 0
        %v10053 = vsel %vm2390, %v9982, 0
        %v10056 = vsel %vm2390, %v9983, 0
        %v10059 = vsel %vm2390, %v9984, 0
        %v10062 = vsel %vm2390, %v9985, 0
        %v10065 = vsel %vm2390, %v9986, 0
        %v10068 = vsel %vm2390, %v9987, 0
        %v10071 = vsel %vm2390, %v9988, 0
        %v10074 = vsel %vm2390, %v9989, 0
        %v10077 = vsel %vm2390, %v9990, 0
        %v10080 = vsel %vm2390, %v9991, 0
        %v10083 = vsel %vm2390, %v9992, 0
        %v10086 = vsel %vm2390, %v9993, 0
        %v10089 = vsel %vm2390, %v9994, 0
        %10091 = vmatprep.subr.mxu0 0.0
        %10092 = vmatpush1.msra.mxu0 %v4666
        %10093 = vmatprep.subr.mxu0 0.0
        %10094 = vmatpush1.msra.mxu0 0.0
        %10095 = vmatprep.subr.mxu0 0.0
        %10096 = vmatpush1.msra.mxu0 0.0
        %10097 = vmatprep.subr.mxu0 0.0
        %10098 = vmatpush1.msra.mxu0 0.0
        %10099 = vmatprep.subr.mxu0 0.0
        %10100 = vmatpush1.msra.mxu0 0.0
        %10101 = vmatprep.subr.mxu0 0.0
        %10102 = vmatpush1.msra.mxu0 0.0
        %10103 = vmatprep.subr.mxu0 0.0
        %10104 = vmatpush1.msra.mxu0 0.0
        %10105 = vmatprep.subr.mxu0 0.0
        %10106 = vmatpush1.msra.mxu0 0.0
        %10107 = vmatprep.subr.mxu0 0.0
        %10108 = vmatpush1.msra.mxu0 0.0
        %10109 = vmatprep.subr.mxu0 0.0
        %10110 = vmatpush1.msra.mxu0 0.0
        %10111 = vmatprep.subr.mxu0 0.0
        %10112 = vmatpush1.msra.mxu0 0.0
        %10113 = vmatprep.subr.mxu0 0.0
        %10114 = vmatpush1.msra.mxu0 0.0
        %10115 = vmatprep.subr.mxu0 0.0
        %10116 = vmatpush1.msra.mxu0 0.0
        %10117 = vmatprep.subr.mxu0 0.0
        %10118 = vmatpush1.msra.mxu0 0.0
        %10119 = vmatprep.subr.mxu0 0.0
        %10120 = vmatpush1.msra.mxu0 0.0
        %10121 = vmatprep.subr.mxu0 0.0
        %10122 = vmatpush1.msra.mxu0 0.0
        %10123 = vmatprep.subr.mxu0 0.0
        %10124 = vmatpush1.msra.mxu0 0.0
        %10125 = vmatprep.subr.mxu0 0.0
        %10126 = vmatpush1.msra.mxu0 0.0
        %10127 = vmatprep.subr.mxu0 0.0
        %10128 = vmatpush1.msra.mxu0 0.0
        %10129 = vmatprep.subr.mxu0 0.0
        %10130 = vmatpush1.msra.mxu0 0.0
        %10131 = vmatprep.subr.mxu0 0.0
        %10132 = vmatpush1.msra.mxu0 0.0
        %10133 = vmatprep.subr.mxu0 0.0
        %10134 = vmatpush1.msra.mxu0 0.0
        %10135 = vmatprep.subr.mxu0 0.0
        %10136 = vmatpush1.msra.mxu0 0.0
        %10137 = vmatprep.subr.mxu0 0.0
        %10138 = vmatpush1.msra.mxu0 0.0
        %10139 = vmatprep.subr.mxu0 0.0
        %10140 = vmatpush1.msra.mxu0 0.0
        %10141 = vmatprep.subr.mxu0 0.0
        %10142 = vmatpush1.msra.mxu0 0.0
        %10143 = vmatprep.subr.mxu0 0.0
        %10144 = vmatpush1.msra.mxu0 0.0
        %10145 = vmatprep.subr.mxu0 0.0
        %10146 = vmatpush1.msra.mxu0 0.0
        %10147 = vmatprep.subr.mxu0 0.0
        %10148 = vmatpush1.msra.mxu0 0.0
        %10149 = vmatprep.subr.mxu0 0.0
        %10150 = vmatpush1.msra.mxu0 0.0
        %10151 = vmatprep.subr.mxu0 0.0
        %10152 = vmatpush1.msra.mxu0 0.0
        %10153 = vmatprep.subr.mxu0 0.0
        %10154 = vmatpush1.msra.mxu0 0.0
        %10155 = vmatprep.mubr.f32.mxu0 0.0
        %10156 = vmatmul.mubr.f32.gmra.mrb[0].mxu0 %v9996
        %v10157 = vpop.f32.mrb[0].mxu0
        %v10158 = vadd.f32 0.0, %v10157
        %v10159 = vpop.f32.mrb[0].mxu0
        %10160 = vmatprep.mubr.f32.mxu0 0.0
        %10161 = vmatmul.mubr.f32.gmra.mrb[0].mxu0 %v9999
        %v10162 = vpop.f32.mrb[0].mxu0
        %v10163 = vadd.f32 0.0, %v10162
        %v10164 = vpop.f32.mrb[0].mxu0
        %10165 = vmatprep.mubr.f32.mxu0 0.0
        %10166 = vmatmul.mubr.f32.gmra.mrb[0].mxu0 %v10002
        %v10167 = vpop.f32.mrb[0].mxu0
        %v10168 = vadd.f32 0.0, %v10167
        %v10169 = vpop.f32.mrb[0].mxu0
        %10170 = vmatprep.mubr.f32.mxu0 0.0
        %10171 = vmatmul.mubr.f32.gmra.mrb[0].mxu0 %v10005
        %v10172 = vpop.f32.mrb[0].mxu0
        %v10173 = vadd.f32 0.0, %v10172
        %v10174 = vpop.f32.mrb[0].mxu0
        %10175 = vmatprep.mubr.f32.mxu0 0.0
        %10176 = vmatmul.mubr.f32.gmra.mrb[0].mxu0 %v10008
        %v10177 = vpop.f32.mrb[0].mxu0
        %v10178 = vadd.f32 0.0, %v10177
        %v10179 = vpop.f32.mrb[0].mxu0
        %10180 = vmatprep.mubr.f32.mxu0 0.0
        %10181 = vmatmul.mubr.f32.gmra.mrb[0].mxu0 %v10011
        %v10182 = vpop.f32.mrb[0].mxu0
        %v10183 = vadd.f32 0.0, %v10182
        %v10184 = vpop.f32.mrb[0].mxu0
        %10185 = vmatprep.mubr.f32.mxu0 0.0
        %10186 = vmatmul.mubr.f32.gmra.mrb[0].mxu0 %v10014
        %v10187 = vpop.f32.mrb[0].mxu0
        %v10188 = vadd.f32 0.0, %v10187
        %v10189 = vpop.f32.mrb[0].mxu0
        %10190 = vmatprep.mubr.f32.mxu0 0.0
        %10191 = vmatmul.mubr.f32.gmra.mrb[0].mxu0 %v10017
        %v10192 = vpop.f32.mrb[0].mxu0
        %v10193 = vadd.f32 0.0, %v10192
        %v10194 = vpop.f32.mrb[0].mxu0
        %10195 = vmatprep.mubr.f32.mxu0 0.0
        %10196 = vmatmul.mubr.f32.gmra.mrb[0].mxu0 %v10020
        %v10197 = vpop.f32.mrb[0].mxu0
        %v10198 = vadd.f32 0.0, %v10197
        %v10199 = vpop.f32.mrb[0].mxu0
        %10200 = vmatprep.mubr.f32.mxu0 0.0
        %10201 = vmatmul.mubr.f32.gmra.mrb[0].mxu0 %v10023
        %v10202 = vpop.f32.mrb[0].mxu0
        %v10203 = vadd.f32 0.0, %v10202
        %v10204 = vpop.f32.mrb[0].mxu0
        %10205 = vmatprep.mubr.f32.mxu0 0.0
        %10206 = vmatmul.mubr.f32.gmra.mrb[0].mxu0 %v10026
        %v10207 = vpop.f32.mrb[0].mxu0
        %v10208 = vadd.f32 0.0, %v10207
        %v10209 = vpop.f32.mrb[0].mxu0
        %10210 = vmatprep.mubr.f32.mxu0 0.0
        %10211 = vmatmul.mubr.f32.gmra.mrb[0].mxu0 %v10029
        %v10212 = vpop.f32.mrb[0].mxu0
        %v10213 = vadd.f32 0.0, %v10212
        %v10214 = vpop.f32.mrb[0].mxu0
        %10215 = vmatprep.mubr.f32.mxu0 0.0
        %10216 = vmatmul.mubr.f32.gmra.mrb[0].mxu0 %v10032
        %v10217 = vpop.f32.mrb[0].mxu0
        %v10218 = vadd.f32 0.0, %v10217
        %v10219 = vpop.f32.mrb[0].mxu0
        %10220 = vmatprep.mubr.f32.mxu0 0.0
        %10221 = vmatmul.mubr.f32.gmra.mrb[0].mxu0 %v10035
        %v10222 = vpop.f32.mrb[0].mxu0
        %v10223 = vadd.f32 0.0, %v10222
        %v10224 = vpop.f32.mrb[0].mxu0
        %10225 = vmatprep.mubr.f32.mxu0 0.0
        %10226 = vmatmul.mubr.f32.gmra.mrb[0].mxu0 %v10038
        %v10227 = vpop.f32.mrb[0].mxu0
        %v10228 = vadd.f32 0.0, %v10227
        %v10229 = vpop.f32.mrb[0].mxu0
        %10230 = vmatprep.mubr.f32.mxu0 0.0
        %10231 = vmatmul.mubr.f32.gmra.mrb[0].mxu0 %v10041
        %v10232 = vpop.f32.mrb[0].mxu0
        %v10233 = vadd.f32 0.0, %v10232
        %v10234 = vpop.f32.mrb[0].mxu0
        %10235 = vmatprep.mubr.f32.mxu0 0.0
        %10236 = vmatmul.mubr.f32.gmra.mrb[0].mxu0 %v10044
        %v10237 = vpop.f32.mrb[0].mxu0
        %v10238 = vadd.f32 0.0, %v10237
        %v10239 = vpop.f32.mrb[0].mxu0
        %10240 = vmatprep.mubr.f32.mxu0 0.0
        %10241 = vmatmul.mubr.f32.gmra.mrb[0].mxu0 %v10047
        %v10242 = vpop.f32.mrb[0].mxu0
        %v10243 = vadd.f32 0.0, %v10242
        %v10244 = vpop.f32.mrb[0].mxu0
        %10245 = vmatprep.mubr.f32.mxu0 0.0
        %10246 = vmatmul.mubr.f32.gmra.mrb[0].mxu0 %v10050
        %v10247 = vpop.f32.mrb[0].mxu0
        %v10248 = vadd.f32 0.0, %v10247
        %v10249 = vpop.f32.mrb[0].mxu0
        %10250 = vmatprep.mubr.f32.mxu0 0.0
        %10251 = vmatmul.mubr.f32.gmra.mrb[0].mxu0 %v10053
        %v10252 = vpop.f32.mrb[0].mxu0
        %v10253 = vadd.f32 0.0, %v10252
        %v10254 = vpop.f32.mrb[0].mxu0
        %10255 = vmatprep.mubr.f32.mxu0 0.0
        %10256 = vmatmul.mubr.f32.gmra.mrb[0].mxu0 %v10056
        %v10257 = vpop.f32.mrb[0].mxu0
        %v10258 = vadd.f32 0.0, %v10257
        %v10259 = vpop.f32.mrb[0].mxu0
        %10260 = vmatprep.mubr.f32.mxu0 0.0
        %10261 = vmatmul.mubr.f32.gmra.mrb[0].mxu0 %v10059
        %v10262 = vpop.f32.mrb[0].mxu0
        %v10263 = vadd.f32 0.0, %v10262
        %v10264 = vpop.f32.mrb[0].mxu0
        %10265 = vmatprep.mubr.f32.mxu0 0.0
        %10266 = vmatmul.mubr.f32.gmra.mrb[0].mxu0 %v10062
        %v10267 = vpop.f32.mrb[0].mxu0
        %v10268 = vadd.f32 0.0, %v10267
        %v10269 = vpop.f32.mrb[0].mxu0
        %10270 = vmatprep.mubr.f32.mxu0 0.0
        %10271 = vmatmul.mubr.f32.gmra.mrb[0].mxu0 %v10065
        %v10272 = vpop.f32.mrb[0].mxu0
        %v10273 = vadd.f32 0.0, %v10272
        %v10274 = vpop.f32.mrb[0].mxu0
        %10275 = vmatprep.mubr.f32.mxu0 0.0
        %10276 = vmatmul.mubr.f32.gmra.mrb[0].mxu0 %v10068
        %v10277 = vpop.f32.mrb[0].mxu0
        %v10278 = vadd.f32 0.0, %v10277
        %v10279 = vpop.f32.mrb[0].mxu0
        %10280 = vmatprep.mubr.f32.mxu0 0.0
        %10281 = vmatmul.mubr.f32.gmra.mrb[0].mxu0 %v10071
        %v10282 = vpop.f32.mrb[0].mxu0
        %v10283 = vadd.f32 0.0, %v10282
        %v10284 = vpop.f32.mrb[0].mxu0
        %10285 = vmatprep.mubr.f32.mxu0 0.0
        %10286 = vmatmul.mubr.f32.gmra.mrb[0].mxu0 %v10074
        %v10287 = vpop.f32.mrb[0].mxu0
        %v10288 = vadd.f32 0.0, %v10287
        %v10289 = vpop.f32.mrb[0].mxu0
        %10290 = vmatprep.mubr.f32.mxu0 0.0
        %10291 = vmatmul.mubr.f32.gmra.mrb[0].mxu0 %v10077
        %v10292 = vpop.f32.mrb[0].mxu0
        %v10293 = vadd.f32 0.0, %v10292
        %v10294 = vpop.f32.mrb[0].mxu0
        %10295 = vmatprep.mubr.f32.mxu0 0.0
        %10296 = vmatmul.mubr.f32.gmra.mrb[0].mxu0 %v10080
        %v10297 = vpop.f32.mrb[0].mxu0
        %v10298 = vadd.f32 0.0, %v10297
        %v10299 = vpop.f32.mrb[0].mxu0
        %10300 = vmatprep.mubr.f32.mxu0 0.0
        %10301 = vmatmul.mubr.f32.gmra.mrb[0].mxu0 %v10083
        %v10302 = vpop.f32.mrb[0].mxu0
        %v10303 = vadd.f32 0.0, %v10302
        %v10304 = vpop.f32.mrb[0].mxu0
        %10305 = vmatprep.mubr.f32.mxu0 0.0
        %10306 = vmatmul.mubr.f32.gmra.mrb[0].mxu0 %v10086
        %v10307 = vpop.f32.mrb[0].mxu0
        %v10308 = vadd.f32 0.0, %v10307
        %v10309 = vpop.f32.mrb[0].mxu0
        %10310 = vmatprep.mubr.f32.mxu0 0.0
        %10311 = vmatmul.mubr.f32.gmra.mrb[0].mxu0 %v10089
        %v10312 = vpop.f32.mrb[0].mxu0
        %v10313 = vadd.f32 0.0, %v10312
        %v10314 = vpop.f32.mrb[0].mxu0
        %10315 = vdwg.mxu0
        %v10317 = vsel %vm2390, 0.0, 0
        %10319 = vmatprep.subr.mxu0 0.0
        %10320 = vmatpush1.msra.mxu0 %v4665
        %10321 = vmatprep.subr.mxu0 0.0
        %10322 = vmatpush1.msra.mxu0 0.0
        %10323 = vmatprep.subr.mxu0 0.0
        %10324 = vmatpush1.msra.mxu0 0.0
        %10325 = vmatprep.subr.mxu0 0.0
        %10326 = vmatpush1.msra.mxu0 0.0
        %10327 = vmatprep.subr.mxu0 0.0
        %10328 = vmatpush1.msra.mxu0 0.0
        %10329 = vmatprep.subr.mxu0 0.0
        %10330 = vmatpush1.msra.mxu0 0.0
        %10331 = vmatprep.subr.mxu0 0.0
        %10332 = vmatpush1.msra.mxu0 0.0
        %10333 = vmatprep.subr.mxu0 0.0
        %10334 = vmatpush1.msra.mxu0 0.0
        %10335 = vmatprep.subr.mxu0 0.0
        %10336 = vmatpush1.msra.mxu0 0.0
        %10337 = vmatprep.subr.mxu0 0.0
        %10338 = vmatpush1.msra.mxu0 0.0
        %10339 = vmatprep.subr.mxu0 0.0
        %10340 = vmatpush1.msra.mxu0 0.0
        %10341 = vmatprep.subr.mxu0 0.0
        %10342 = vmatpush1.msra.mxu0 0.0
        %10343 = vmatprep.subr.mxu0 0.0
        %10344 = vmatpush1.msra.mxu0 0.0
        %10345 = vmatprep.subr.mxu0 0.0
        %10346 = vmatpush1.msra.mxu0 0.0
        %10347 = vmatprep.subr.mxu0 0.0
        %10348 = vmatpush1.msra.mxu0 0.0
        %10349 = vmatprep.subr.mxu0 0.0
        %10350 = vmatpush1.msra.mxu0 0.0
        %10351 = vmatprep.subr.mxu0 0.0
        %10352 = vmatpush1.msra.mxu0 0.0
        %10353 = vmatprep.subr.mxu0 0.0
        %10354 = vmatpush1.msra.mxu0 0.0
        %10355 = vmatprep.subr.mxu0 0.0
        %10356 = vmatpush1.msra.mxu0 0.0
        %10357 = vmatprep.subr.mxu0 0.0
        %10358 = vmatpush1.msra.mxu0 0.0
        %10359 = vmatprep.subr.mxu0 0.0
        %10360 = vmatpush1.msra.mxu0 0.0
        %10361 = vmatprep.subr.mxu0 0.0
        %10362 = vmatpush1.msra.mxu0 0.0
        %10363 = vmatprep.subr.mxu0 0.0
        %10364 = vmatpush1.msra.mxu0 0.0
        %10365 = vmatprep.subr.mxu0 0.0
        %10366 = vmatpush1.msra.mxu0 0.0
        %10367 = vmatprep.subr.mxu0 0.0
        %10368 = vmatpush1.msra.mxu0 0.0
        %10369 = vmatprep.subr.mxu0 0.0
        %10370 = vmatpush1.msra.mxu0 0.0
        %10371 = vmatprep.subr.mxu0 0.0
        %10372 = vmatpush1.msra.mxu0 0.0
        %10373 = vmatprep.subr.mxu0 0.0
        %10374 = vmatpush1.msra.mxu0 0.0
        %10375 = vmatprep.subr.mxu0 0.0
        %10376 = vmatpush1.msra.mxu0 0.0
        %10377 = vmatprep.subr.mxu0 0.0
        %10378 = vmatpush1.msra.mxu0 0.0
        %10379 = vmatprep.subr.mxu0 0.0
        %10380 = vmatpush1.msra.mxu0 0.0
        %10381 = vmatprep.subr.mxu0 0.0
        %10382 = vmatpush1.msra.mxu0 0.0
        %10383 = vmatprep.mubr.f32.mxu0 0.0
        %10384 = vmatmul.mubr.f32.gmra.mrb[0].mxu0 %v10317
        %v10385 = vpop.f32.mrb[0].mxu0
        %v10386 = vadd.f32 %v10158, %v10385
        %v10387 = vpop.f32.mrb[0].mxu0
        %10388 = vmatprep.mubr.f32.mxu0 0.0
        %10389 = vmatmul.mubr.f32.gmra.mrb[0].mxu0 %v10317
        %v10390 = vpop.f32.mrb[0].mxu0
        %v10391 = vadd.f32 %v10163, %v10390
        %v10392 = vpop.f32.mrb[0].mxu0
        %10393 = vmatprep.mubr.f32.mxu0 0.0
        %10394 = vmatmul.mubr.f32.gmra.mrb[0].mxu0 %v10317
        %v10395 = vpop.f32.mrb[0].mxu0
        %v10396 = vadd.f32 %v10168, %v10395
        %v10397 = vpop.f32.mrb[0].mxu0
        %10398 = vmatprep.mubr.f32.mxu0 0.0
        %10399 = vmatmul.mubr.f32.gmra.mrb[0].mxu0 %v10317
        %v10400 = vpop.f32.mrb[0].mxu0
        %v10401 = vadd.f32 %v10173, %v10400
        %v10402 = vpop.f32.mrb[0].mxu0
        %10403 = vmatprep.mubr.f32.mxu0 0.0
        %10404 = vmatmul.mubr.f32.gmra.mrb[0].mxu0 %v10317
        %v10405 = vpop.f32.mrb[0].mxu0
        %v10406 = vadd.f32 %v10178, %v10405
        %v10407 = vpop.f32.mrb[0].mxu0
        %10408 = vmatprep.mubr.f32.mxu0 0.0
        %10409 = vmatmul.mubr.f32.gmra.mrb[0].mxu0 %v10317
        %v10410 = vpop.f32.mrb[0].mxu0
        %v10411 = vadd.f32 %v10183, %v10410
        %v10412 = vpop.f32.mrb[0].mxu0
        %10413 = vmatprep.mubr.f32.mxu0 0.0
        %10414 = vmatmul.mubr.f32.gmra.mrb[0].mxu0 %v10317
        %v10415 = vpop.f32.mrb[0].mxu0
        %v10416 = vadd.f32 %v10188, %v10415
        %v10417 = vpop.f32.mrb[0].mxu0
        %10418 = vmatprep.mubr.f32.mxu0 0.0
        %10419 = vmatmul.mubr.f32.gmra.mrb[0].mxu0 %v10317
        %v10420 = vpop.f32.mrb[0].mxu0
        %v10421 = vadd.f32 %v10193, %v10420
        %v10422 = vpop.f32.mrb[0].mxu0
        %10423 = vmatprep.mubr.f32.mxu0 0.0
        %10424 = vmatmul.mubr.f32.gmra.mrb[0].mxu0 %v9996
        %v10425 = vpop.f32.mrb[0].mxu0
        %v10426 = vadd.f32 %v10198, %v10425
        %v10427 = vpop.f32.mrb[0].mxu0
        %10428 = vmatprep.mubr.f32.mxu0 0.0
        %10429 = vmatmul.mubr.f32.gmra.mrb[0].mxu0 %v9999
        %v10430 = vpop.f32.mrb[0].mxu0
        %v10431 = vadd.f32 %v10203, %v10430
        %v10432 = vpop.f32.mrb[0].mxu0
        %10433 = vmatprep.mubr.f32.mxu0 0.0
        %10434 = vmatmul.mubr.f32.gmra.mrb[0].mxu0 %v10002
        %v10435 = vpop.f32.mrb[0].mxu0
        %v10436 = vadd.f32 %v10208, %v10435
        %v10437 = vpop.f32.mrb[0].mxu0
        %10438 = vmatprep.mubr.f32.mxu0 0.0
        %10439 = vmatmul.mubr.f32.gmra.mrb[0].mxu0 %v10005
        %v10440 = vpop.f32.mrb[0].mxu0
        %v10441 = vadd.f32 %v10213, %v10440
        %v10442 = vpop.f32.mrb[0].mxu0
        %10443 = vmatprep.mubr.f32.mxu0 0.0
        %10444 = vmatmul.mubr.f32.gmra.mrb[0].mxu0 %v10008
        %v10445 = vpop.f32.mrb[0].mxu0
        %v10446 = vadd.f32 %v10218, %v10445
        %v10447 = vpop.f32.mrb[0].mxu0
        %10448 = vmatprep.mubr.f32.mxu0 0.0
        %10449 = vmatmul.mubr.f32.gmra.mrb[0].mxu0 %v10011
        %v10450 = vpop.f32.mrb[0].mxu0
        %v10451 = vadd.f32 %v10223, %v10450
        %v10452 = vpop.f32.mrb[0].mxu0
        %10453 = vmatprep.mubr.f32.mxu0 0.0
        %10454 = vmatmul.mubr.f32.gmra.mrb[0].mxu0 %v10014
        %v10455 = vpop.f32.mrb[0].mxu0
        %v10456 = vadd.f32 %v10228, %v10455
        %v10457 = vpop.f32.mrb[0].mxu0
        %10458 = vmatprep.mubr.f32.mxu0 0.0
        %10459 = vmatmul.mubr.f32.gmra.mrb[0].mxu0 %v10017
        %v10460 = vpop.f32.mrb[0].mxu0
        %v10461 = vadd.f32 %v10233, %v10460
        %v10462 = vpop.f32.mrb[0].mxu0
        %10463 = vmatprep.mubr.f32.mxu0 0.0
        %10464 = vmatmul.mubr.f32.gmra.mrb[0].mxu0 %v10020
        %v10465 = vpop.f32.mrb[0].mxu0
        %v10466 = vadd.f32 %v10238, %v10465
        %v10467 = vpop.f32.mrb[0].mxu0
        %10468 = vmatprep.mubr.f32.mxu0 0.0
        %10469 = vmatmul.mubr.f32.gmra.mrb[0].mxu0 %v10023
        %v10470 = vpop.f32.mrb[0].mxu0
        %v10471 = vadd.f32 %v10243, %v10470
        %v10472 = vpop.f32.mrb[0].mxu0
        %10473 = vmatprep.mubr.f32.mxu0 0.0
        %10474 = vmatmul.mubr.f32.gmra.mrb[0].mxu0 %v10026
        %v10475 = vpop.f32.mrb[0].mxu0
        %v10476 = vadd.f32 %v10248, %v10475
        %v10477 = vpop.f32.mrb[0].mxu0
        %10478 = vmatprep.mubr.f32.mxu0 0.0
        %10479 = vmatmul.mubr.f32.gmra.mrb[0].mxu0 %v10029
        %v10480 = vpop.f32.mrb[0].mxu0
        %v10481 = vadd.f32 %v10253, %v10480
        %v10482 = vpop.f32.mrb[0].mxu0
        %10483 = vmatprep.mubr.f32.mxu0 0.0
        %10484 = vmatmul.mubr.f32.gmra.mrb[0].mxu0 %v10032
        %v10485 = vpop.f32.mrb[0].mxu0
        %v10486 = vadd.f32 %v10258, %v10485
        %v10487 = vpop.f32.mrb[0].mxu0
        %10488 = vmatprep.mubr.f32.mxu0 0.0
        %10489 = vmatmul.mubr.f32.gmra.mrb[0].mxu0 %v10035
        %v10490 = vpop.f32.mrb[0].mxu0
        %v10491 = vadd.f32 %v10263, %v10490
        %v10492 = vpop.f32.mrb[0].mxu0
        %10493 = vmatprep.mubr.f32.mxu0 0.0
        %10494 = vmatmul.mubr.f32.gmra.mrb[0].mxu0 %v10038
        %v10495 = vpop.f32.mrb[0].mxu0
        %v10496 = vadd.f32 %v10268, %v10495
        %v10497 = vpop.f32.mrb[0].mxu0
        %10498 = vmatprep.mubr.f32.mxu0 0.0
        %10499 = vmatmul.mubr.f32.gmra.mrb[0].mxu0 %v10041
        %v10500 = vpop.f32.mrb[0].mxu0
        %v10501 = vadd.f32 %v10273, %v10500
        %v10502 = vpop.f32.mrb[0].mxu0
        %10503 = vmatprep.mubr.f32.mxu0 0.0
        %10504 = vmatmul.mubr.f32.gmra.mrb[0].mxu0 %v10044
        %v10505 = vpop.f32.mrb[0].mxu0
        %v10506 = vadd.f32 %v10278, %v10505
        %v10507 = vpop.f32.mrb[0].mxu0
        %10508 = vmatprep.mubr.f32.mxu0 0.0
        %10509 = vmatmul.mubr.f32.gmra.mrb[0].mxu0 %v10047
        %v10510 = vpop.f32.mrb[0].mxu0
        %v10511 = vadd.f32 %v10283, %v10510
        %v10512 = vpop.f32.mrb[0].mxu0
        %10513 = vmatprep.mubr.f32.mxu0 0.0
        %10514 = vmatmul.mubr.f32.gmra.mrb[0].mxu0 %v10050
        %v10515 = vpop.f32.mrb[0].mxu0
        %v10516 = vadd.f32 %v10288, %v10515
        %v10517 = vpop.f32.mrb[0].mxu0
        %10518 = vmatprep.mubr.f32.mxu0 0.0
        %10519 = vmatmul.mubr.f32.gmra.mrb[0].mxu0 %v10053
        %v10520 = vpop.f32.mrb[0].mxu0
        %v10521 = vadd.f32 %v10293, %v10520
        %v10522 = vpop.f32.mrb[0].mxu0
        %10523 = vmatprep.mubr.f32.mxu0 0.0
        %10524 = vmatmul.mubr.f32.gmra.mrb[0].mxu0 %v10056
        %v10525 = vpop.f32.mrb[0].mxu0
        %v10526 = vadd.f32 %v10298, %v10525
        %v10527 = vpop.f32.mrb[0].mxu0
        %10528 = vmatprep.mubr.f32.mxu0 0.0
        %10529 = vmatmul.mubr.f32.gmra.mrb[0].mxu0 %v10059
        %v10530 = vpop.f32.mrb[0].mxu0
        %v10531 = vadd.f32 %v10303, %v10530
        %v10532 = vpop.f32.mrb[0].mxu0
        %10533 = vmatprep.mubr.f32.mxu0 0.0
        %10534 = vmatmul.mubr.f32.gmra.mrb[0].mxu0 %v10062
        %v10535 = vpop.f32.mrb[0].mxu0
        %v10536 = vadd.f32 %v10308, %v10535
        %v10537 = vpop.f32.mrb[0].mxu0
        %10538 = vmatprep.mubr.f32.mxu0 0.0
        %10539 = vmatmul.mubr.f32.gmra.mrb[0].mxu0 %v10065
        %v10540 = vpop.f32.mrb[0].mxu0
        %v10541 = vadd.f32 %v10313, %v10540
        %v10542 = vpop.f32.mrb[0].mxu0
        %10543 = vdwg.mxu0
        %10544 = vmatprep.subr.mxu0 0.0
        %10545 = vmatpush1.msra.mxu0 %v4667
        %10546 = vmatprep.subr.mxu0 0.0
        %10547 = vmatpush1.msra.mxu0 0.0
        %10548 = vmatprep.subr.mxu0 0.0
        %10549 = vmatpush1.msra.mxu0 0.0
        %10550 = vmatprep.subr.mxu0 0.0
        %10551 = vmatpush1.msra.mxu0 0.0
        %10552 = vmatprep.subr.mxu0 0.0
        %10553 = vmatpush1.msra.mxu0 0.0
        %10554 = vmatprep.subr.mxu0 0.0
        %10555 = vmatpush1.msra.mxu0 0.0
        %10556 = vmatprep.subr.mxu0 0.0
        %10557 = vmatpush1.msra.mxu0 0.0
        %10558 = vmatprep.subr.mxu0 0.0
        %10559 = vmatpush1.msra.mxu0 0.0
        %10560 = vmatprep.subr.mxu0 0.0
        %10561 = vmatpush1.msra.mxu0 0.0
        %10562 = vmatprep.subr.mxu0 0.0
        %10563 = vmatpush1.msra.mxu0 0.0
        %10564 = vmatprep.subr.mxu0 0.0
        %10565 = vmatpush1.msra.mxu0 0.0
        %10566 = vmatprep.subr.mxu0 0.0
        %10567 = vmatpush1.msra.mxu0 0.0
        %10568 = vmatprep.subr.mxu0 0.0
        %10569 = vmatpush1.msra.mxu0 0.0
        %10570 = vmatprep.subr.mxu0 0.0
        %10571 = vmatpush1.msra.mxu0 0.0
        %10572 = vmatprep.subr.mxu0 0.0
        %10573 = vmatpush1.msra.mxu0 0.0
        %10574 = vmatprep.subr.mxu0 0.0
        %10575 = vmatpush1.msra.mxu0 0.0
        %10576 = vmatprep.subr.mxu0 0.0
        %10577 = vmatpush1.msra.mxu0 0.0
        %10578 = vmatprep.subr.mxu0 0.0
        %10579 = vmatpush1.msra.mxu0 0.0
        %10580 = vmatprep.subr.mxu0 0.0
        %10581 = vmatpush1.msra.mxu0 0.0
        %10582 = vmatprep.subr.mxu0 0.0
        %10583 = vmatpush1.msra.mxu0 0.0
        %10584 = vmatprep.subr.mxu0 0.0
        %10585 = vmatpush1.msra.mxu0 0.0
        %10586 = vmatprep.subr.mxu0 0.0
        %10587 = vmatpush1.msra.mxu0 0.0
        %10588 = vmatprep.subr.mxu0 0.0
        %10589 = vmatpush1.msra.mxu0 0.0
        %10590 = vmatprep.subr.mxu0 0.0
        %10591 = vmatpush1.msra.mxu0 0.0
        %10592 = vmatprep.subr.mxu0 0.0
        %10593 = vmatpush1.msra.mxu0 0.0
        %10594 = vmatprep.subr.mxu0 0.0
        %10595 = vmatpush1.msra.mxu0 0.0
        %10596 = vmatprep.subr.mxu0 0.0
        %10597 = vmatpush1.msra.mxu0 0.0
        %10598 = vmatprep.subr.mxu0 0.0
        %10599 = vmatpush1.msra.mxu0 0.0
        %10600 = vmatprep.subr.mxu0 0.0
        %10601 = vmatpush1.msra.mxu0 0.0
        %10602 = vmatprep.subr.mxu0 0.0
        %10603 = vmatpush1.msra.mxu0 0.0
        %10604 = vmatprep.subr.mxu0 0.0
        %10605 = vmatpush1.msra.mxu0 0.0
        %10606 = vmatprep.subr.mxu0 0.0
        %10607 = vmatpush1.msra.mxu0 0.0
        %10608 = vmatprep.mubr.f32.mxu0 0.0
        %10609 = vmatmul.mubr.f32.gmra.mrb[0].mxu0 %v10020
        %v10610 = vpop.f32.mrb[0].mxu0
        %v10611 = vadd.f32 0.0, %v10610
        %v10612 = vpop.f32.mrb[0].mxu0
        %10613 = vmatprep.mubr.f32.mxu0 0.0
        %10614 = vmatmul.mubr.f32.gmra.mrb[0].mxu0 %v10023
        %v10615 = vpop.f32.mrb[0].mxu0
        %v10616 = vadd.f32 0.0, %v10615
        %v10617 = vpop.f32.mrb[0].mxu0
        %10618 = vmatprep.mubr.f32.mxu0 0.0
        %10619 = vmatmul.mubr.f32.gmra.mrb[0].mxu0 %v10026
        %v10620 = vpop.f32.mrb[0].mxu0
        %v10621 = vadd.f32 0.0, %v10620
        %v10622 = vpop.f32.mrb[0].mxu0
        %10623 = vmatprep.mubr.f32.mxu0 0.0
        %10624 = vmatmul.mubr.f32.gmra.mrb[0].mxu0 %v10029
        %v10625 = vpop.f32.mrb[0].mxu0
        %v10626 = vadd.f32 0.0, %v10625
        %v10627 = vpop.f32.mrb[0].mxu0
        %10628 = vmatprep.mubr.f32.mxu0 0.0
        %10629 = vmatmul.mubr.f32.gmra.mrb[0].mxu0 %v10032
        %v10630 = vpop.f32.mrb[0].mxu0
        %v10631 = vadd.f32 0.0, %v10630
        %v10632 = vpop.f32.mrb[0].mxu0
        %10633 = vmatprep.mubr.f32.mxu0 0.0
        %10634 = vmatmul.mubr.f32.gmra.mrb[0].mxu0 %v10035
        %v10635 = vpop.f32.mrb[0].mxu0
        %v10636 = vadd.f32 0.0, %v10635
        %v10637 = vpop.f32.mrb[0].mxu0
        %10638 = vmatprep.mubr.f32.mxu0 0.0
        %10639 = vmatmul.mubr.f32.gmra.mrb[0].mxu0 %v10038
        %v10640 = vpop.f32.mrb[0].mxu0
        %v10641 = vadd.f32 0.0, %v10640
        %v10642 = vpop.f32.mrb[0].mxu0
        %10643 = vmatprep.mubr.f32.mxu0 0.0
        %10644 = vmatmul.mubr.f32.gmra.mrb[0].mxu0 %v10041
        %v10645 = vpop.f32.mrb[0].mxu0
        %v10646 = vadd.f32 0.0, %v10645
        %v10647 = vpop.f32.mrb[0].mxu0
        %10648 = vmatprep.mubr.f32.mxu0 0.0
        %10649 = vmatmul.mubr.f32.gmra.mrb[0].mxu0 %v10044
        %v10650 = vpop.f32.mrb[0].mxu0
        %v10651 = vadd.f32 0.0, %v10650
        %v10652 = vpop.f32.mrb[0].mxu0
        %10653 = vmatprep.mubr.f32.mxu0 0.0
        %10654 = vmatmul.mubr.f32.gmra.mrb[0].mxu0 %v10047
        %v10655 = vpop.f32.mrb[0].mxu0
        %v10656 = vadd.f32 0.0, %v10655
        %v10657 = vpop.f32.mrb[0].mxu0
        %10658 = vmatprep.mubr.f32.mxu0 0.0
        %10659 = vmatmul.mubr.f32.gmra.mrb[0].mxu0 %v10050
        %v10660 = vpop.f32.mrb[0].mxu0
        %v10661 = vadd.f32 0.0, %v10660
        %v10662 = vpop.f32.mrb[0].mxu0
        %10663 = vmatprep.mubr.f32.mxu0 0.0
        %10664 = vmatmul.mubr.f32.gmra.mrb[0].mxu0 %v10053
        %v10665 = vpop.f32.mrb[0].mxu0
        %v10666 = vadd.f32 0.0, %v10665
        %v10667 = vpop.f32.mrb[0].mxu0
        %10668 = vmatprep.mubr.f32.mxu0 0.0
        %10669 = vmatmul.mubr.f32.gmra.mrb[0].mxu0 %v10056
        %v10670 = vpop.f32.mrb[0].mxu0
        %v10671 = vadd.f32 0.0, %v10670
        %v10672 = vpop.f32.mrb[0].mxu0
        %10673 = vmatprep.mubr.f32.mxu0 0.0
        %10674 = vmatmul.mubr.f32.gmra.mrb[0].mxu0 %v10059
        %v10675 = vpop.f32.mrb[0].mxu0
        %v10676 = vadd.f32 0.0, %v10675
        %v10677 = vpop.f32.mrb[0].mxu0
        %10678 = vmatprep.mubr.f32.mxu0 0.0
        %10679 = vmatmul.mubr.f32.gmra.mrb[0].mxu0 %v10062
        %v10680 = vpop.f32.mrb[0].mxu0
        %v10681 = vadd.f32 0.0, %v10680
        %v10682 = vpop.f32.mrb[0].mxu0
        %10683 = vmatprep.mubr.f32.mxu0 0.0
        %10684 = vmatmul.mubr.f32.gmra.mrb[0].mxu0 %v10065
        %v10685 = vpop.f32.mrb[0].mxu0
        %v10686 = vadd.f32 0.0, %v10685
        %v10687 = vpop.f32.mrb[0].mxu0
        %10688 = vmatprep.mubr.f32.mxu0 0.0
        %10689 = vmatmul.mubr.f32.gmra.mrb[0].mxu0 %v10068
        %v10690 = vpop.f32.mrb[0].mxu0
        %v10691 = vadd.f32 0.0, %v10690
        %v10692 = vpop.f32.mrb[0].mxu0
        %10693 = vmatprep.mubr.f32.mxu0 0.0
        %10694 = vmatmul.mubr.f32.gmra.mrb[0].mxu0 %v10071
        %v10695 = vpop.f32.mrb[0].mxu0
        %v10696 = vadd.f32 0.0, %v10695
        %v10697 = vpop.f32.mrb[0].mxu0
        %10698 = vmatprep.mubr.f32.mxu0 0.0
        %10699 = vmatmul.mubr.f32.gmra.mrb[0].mxu0 %v10074
        %v10700 = vpop.f32.mrb[0].mxu0
        %v10701 = vadd.f32 0.0, %v10700
        %v10702 = vpop.f32.mrb[0].mxu0
        %10703 = vmatprep.mubr.f32.mxu0 0.0
        %10704 = vmatmul.mubr.f32.gmra.mrb[0].mxu0 %v10077
        %v10705 = vpop.f32.mrb[0].mxu0
        %v10706 = vadd.f32 0.0, %v10705
        %v10707 = vpop.f32.mrb[0].mxu0
        %10708 = vmatprep.mubr.f32.mxu0 0.0
        %10709 = vmatmul.mubr.f32.gmra.mrb[0].mxu0 %v10080
        %v10710 = vpop.f32.mrb[0].mxu0
        %v10711 = vadd.f32 0.0, %v10710
        %v10712 = vpop.f32.mrb[0].mxu0
        %10713 = vmatprep.mubr.f32.mxu0 0.0
        %10714 = vmatmul.mubr.f32.gmra.mrb[0].mxu0 %v10083
        %v10715 = vpop.f32.mrb[0].mxu0
        %v10716 = vadd.f32 0.0, %v10715
        %v10717 = vpop.f32.mrb[0].mxu0
        %10718 = vmatprep.mubr.f32.mxu0 0.0
        %10719 = vmatmul.mubr.f32.gmra.mrb[0].mxu0 %v10086
        %v10720 = vpop.f32.mrb[0].mxu0
        %v10721 = vadd.f32 0.0, %v10720
        %v10722 = vpop.f32.mrb[0].mxu0
        %10723 = vmatprep.mubr.f32.mxu0 0.0
        %10724 = vmatmul.mubr.f32.gmra.mrb[0].mxu0 %v10089
        %v10725 = vpop.f32.mrb[0].mxu0
        %v10726 = vadd.f32 0.0, %v10725
        %v10727 = vpop.f32.mrb[0].mxu0
        %10728 = vmatprep.mubr.f32.mxu0 0.0
        %10729 = vmatmul.mubr.f32.gmra.mrb[0].mxu0 %v10317
        %v10730 = vpop.f32.mrb[0].mxu0
        %v10731 = vadd.f32 0.0, %v10730
        %v10732 = vpop.f32.mrb[0].mxu0
        %10733 = vmatprep.mubr.f32.mxu0 0.0
        %10734 = vmatmul.mubr.f32.gmra.mrb[0].mxu0 %v10317
        %v10735 = vpop.f32.mrb[0].mxu0
        %v10736 = vadd.f32 0.0, %v10735
        %v10737 = vpop.f32.mrb[0].mxu0
        %10738 = vmatprep.mubr.f32.mxu0 0.0
        %10739 = vmatmul.mubr.f32.gmra.mrb[0].mxu0 %v10317
        %v10740 = vpop.f32.mrb[0].mxu0
        %v10741 = vadd.f32 0.0, %v10740
        %v10742 = vpop.f32.mrb[0].mxu0
        %10743 = vmatprep.mubr.f32.mxu0 0.0
        %10744 = vmatmul.mubr.f32.gmra.mrb[0].mxu0 %v10317
        %v10745 = vpop.f32.mrb[0].mxu0
        %v10746 = vadd.f32 0.0, %v10745
        %v10747 = vpop.f32.mrb[0].mxu0
        %10748 = vmatprep.mubr.f32.mxu0 0.0
        %10749 = vmatmul.mubr.f32.gmra.mrb[0].mxu0 %v10317
        %v10750 = vpop.f32.mrb[0].mxu0
        %v10751 = vadd.f32 0.0, %v10750
        %v10752 = vpop.f32.mrb[0].mxu0
        %10753 = vmatprep.mubr.f32.mxu0 0.0
        %10754 = vmatmul.mubr.f32.gmra.mrb[0].mxu0 %v10317
        %v10755 = vpop.f32.mrb[0].mxu0
        %v10756 = vadd.f32 0.0, %v10755
        %v10757 = vpop.f32.mrb[0].mxu0
        %10758 = vmatprep.mubr.f32.mxu0 0.0
        %10759 = vmatmul.mubr.f32.gmra.mrb[0].mxu0 %v10317
        %v10760 = vpop.f32.mrb[0].mxu0
        %v10761 = vadd.f32 0.0, %v10760
        %v10762 = vpop.f32.mrb[0].mxu0
        %10763 = vmatprep.mubr.f32.mxu0 0.0
        %10764 = vmatmul.mubr.f32.gmra.mrb[0].mxu0 %v10317
        %v10765 = vpop.f32.mrb[0].mxu0
        %v10766 = vadd.f32 0.0, %v10765
        %v10767 = vpop.f32.mrb[0].mxu0
        %10768 = vdwg.mxu0
        %v10769 = vadd.f32 %v10386, %v10611
        %v10770 = vadd.f32 %v10391, %v10616
        %v10771 = vadd.f32 %v10396, %v10621
        %v10772 = vadd.f32 %v10401, %v10626
        %v10773 = vadd.f32 %v10406, %v10631
        %v10774 = vadd.f32 %v10411, %v10636
        %v10775 = vadd.f32 %v10416, %v10641
        %v10776 = vadd.f32 %v10421, %v10646
        %v10777 = vadd.f32 %v10426, %v10651
        %v10778 = vadd.f32 %v10431, %v10656
        %v10779 = vadd.f32 %v10436, %v10661
        %v10780 = vadd.f32 %v10441, %v10666
        %v10781 = vadd.f32 %v10446, %v10671
        %v10782 = vadd.f32 %v10451, %v10676
        %v10783 = vadd.f32 %v10456, %v10681
        %v10784 = vadd.f32 %v10461, %v10686
        %v10785 = vadd.f32 %v10466, %v10691
        %v10786 = vadd.f32 %v10471, %v10696
        %v10787 = vadd.f32 %v10476, %v10701
        %v10788 = vadd.f32 %v10481, %v10706
        %v10789 = vadd.f32 %v10486, %v10711
        %v10790 = vadd.f32 %v10491, %v10716
        %v10791 = vadd.f32 %v10496, %v10721
        %v10792 = vadd.f32 %v10501, %v10726
        %v10793 = vadd.f32 %v10506, %v10731
        %v10794 = vadd.f32 %v10511, %v10736
        %v10795 = vadd.f32 %v10516, %v10741
        %v10796 = vadd.f32 %v10521, %v10746
        %v10797 = vadd.f32 %v10526, %v10751
        %v10798 = vadd.f32 %v10531, %v10756
        %v10799 = vadd.f32 %v10536, %v10761
        %v10800 = vadd.f32 %v10541, %v10766
        %v10801 = vld [vmem:[%s7] sm:$0x1]
        %v10803 = vlaneseq
        %v10804 = vshrl.u32 %v10803, 7
        %v10805 = vsub.s32 0, %v10804
        %v10806 = vrot.slane %v10801, %v10805
        %v10808 = vadd.f32 %v10769, %v10806
        %v10809 = vadd.f32 %v10770, %v10806
        %v10810 = vadd.f32 %v10771, %v10806
        %v10811 = vadd.f32 %v10772, %v10806
        %v10812 = vadd.f32 %v10773, %v10806
        %v10813 = vadd.f32 %v10774, %v10806
        %v10814 = vadd.f32 %v10775, %v10806
        %v10815 = vadd.f32 %v10776, %v10806
        %v10816 = vadd.f32 %v10777, %v10806
        %v10817 = vadd.f32 %v10778, %v10806
        %v10818 = vadd.f32 %v10779, %v10806
        %v10819 = vadd.f32 %v10780, %v10806
        %v10820 = vadd.f32 %v10781, %v10806
        %v10821 = vadd.f32 %v10782, %v10806
        %v10822 = vadd.f32 %v10783, %v10806
        %v10823 = vadd.f32 %v10784, %v10806
        %v10824 = vadd.f32 %v10785, %v10806
        %v10825 = vadd.f32 %v10786, %v10806
        %v10826 = vadd.f32 %v10787, %v10806
        %v10827 = vadd.f32 %v10788, %v10806
        %v10828 = vadd.f32 %v10789, %v10806
        %v10829 = vadd.f32 %v10790, %v10806
        %v10830 = vadd.f32 %v10791, %v10806
        %v10831 = vadd.f32 %v10792, %v10806
        %v10832 = vadd.f32 %v10793, %v10806
        %v10833 = vadd.f32 %v10794, %v10806
        %v10834 = vadd.f32 %v10795, %v10806
        %v10835 = vadd.f32 %v10796, %v10806
        %v10836 = vadd.f32 %v10797, %v10806
        %v10837 = vadd.f32 %v10798, %v10806
        %v10838 = vadd.f32 %v10799, %v10806
        %v10839 = vadd.f32 %v10800, %v10806
        %v10840 = vmax.f32 %v10808, 0.0
        %v10841 = vmax.f32 %v10809, 0.0
        %v10842 = vmax.f32 %v10810, 0.0
        %v10843 = vmax.f32 %v10811, 0.0
        %v10844 = vmax.f32 %v10812, 0.0
        %v10845 = vmax.f32 %v10813, 0.0
        %v10846 = vmax.f32 %v10814, 0.0
        %v10847 = vmax.f32 %v10815, 0.0
        %v10848 = vmax.f32 %v10816, 0.0
        %v10849 = vmax.f32 %v10817, 0.0
        %v10850 = vmax.f32 %v10818, 0.0
        %v10851 = vmax.f32 %v10819, 0.0
        %v10852 = vmax.f32 %v10820, 0.0
        %v10853 = vmax.f32 %v10821, 0.0
        %v10854 = vmax.f32 %v10822, 0.0
        %v10855 = vmax.f32 %v10823, 0.0
        %v10856 = vmax.f32 %v10824, 0.0
        %v10857 = vmax.f32 %v10825, 0.0
        %v10858 = vmax.f32 %v10826, 0.0
        %v10859 = vmax.f32 %v10827, 0.0
        %v10860 = vmax.f32 %v10828, 0.0
        %v10861 = vmax.f32 %v10829, 0.0
        %v10862 = vmax.f32 %v10830, 0.0
        %v10863 = vmax.f32 %v10831, 0.0
        %v10864 = vmax.f32 %v10832, 0.0
        %v10865 = vmax.f32 %v10833, 0.0
        %v10866 = vmax.f32 %v10834, 0.0
        %v10867 = vmax.f32 %v10835, 0.0
        %v10868 = vmax.f32 %v10836, 0.0
        %v10869 = vmax.f32 %v10837, 0.0
        %v10870 = vmax.f32 %v10838, 0.0
        %v10871 = vmax.f32 %v10839, 0.0
        %v10872 = vld [vmem:[%s8] sm:$0xff]
        %v10873 = vld [vmem:[%s9] sm:$0x1]
        %v10875 = vlaneseq
        %v10876 = vshrl.u32 %v10875, 7
        %v10877 = vsub.s32 0, %v10876
        %v10878 = vrot.slane %v10873, %v10877
        %v10881 = vsel %vm2390, %v10840, 0
        %v10884 = vsel %vm2390, %v10841, 0
        %v10887 = vsel %vm2390, %v10842, 0
        %v10890 = vsel %vm2390, %v10843, 0
        %v10893 = vsel %vm2390, %v10844, 0
        %v10896 = vsel %vm2390, %v10845, 0
        %v10899 = vsel %vm2390, %v10846, 0
        %v10902 = vsel %vm2390, %v10847, 0
        %v10905 = vsel %vm2390, %v10848, 0
        %v10908 = vsel %vm2390, %v10849, 0
        %v10911 = vsel %vm2390, %v10850, 0
        %v10914 = vsel %vm2390, %v10851, 0
        %v10917 = vsel %vm2390, %v10852, 0
        %v10920 = vsel %vm2390, %v10853, 0
        %v10923 = vsel %vm2390, %v10854, 0
        %v10926 = vsel %vm2390, %v10855, 0
        %v10929 = vsel %vm2390, %v10856, 0
        %v10932 = vsel %vm2390, %v10857, 0
        %v10935 = vsel %vm2390, %v10858, 0
        %v10938 = vsel %vm2390, %v10859, 0
        %v10941 = vsel %vm2390, %v10860, 0
        %v10944 = vsel %vm2390, %v10861, 0
        %v10947 = vsel %vm2390, %v10862, 0
        %v10950 = vsel %vm2390, %v10863, 0
        %v10953 = vsel %vm2390, %v10864, 0
        %v10956 = vsel %vm2390, %v10865, 0
        %v10959 = vsel %vm2390, %v10866, 0
        %v10962 = vsel %vm2390, %v10867, 0
        %v10965 = vsel %vm2390, %v10868, 0
        %v10968 = vsel %vm2390, %v10869, 0
        %v10971 = vsel %vm2390, %v10870, 0
        %v10974 = vsel %vm2390, %v10871, 0
        %10976 = vmatprep.subr.mxu0 0.0
        %10977 = vmatpush1.msra.mxu0 %v10872
        %10978 = vmatprep.subr.mxu0 0.0
        %10979 = vmatpush1.msra.mxu0 0.0
        %10980 = vmatprep.subr.mxu0 0.0
        %10981 = vmatpush1.msra.mxu0 0.0
        %10982 = vmatprep.subr.mxu0 0.0
        %10983 = vmatpush1.msra.mxu0 0.0
        %10984 = vmatprep.subr.mxu0 0.0
        %10985 = vmatpush1.msra.mxu0 0.0
        %10986 = vmatprep.subr.mxu0 0.0
        %10987 = vmatpush1.msra.mxu0 0.0
        %10988 = vmatprep.subr.mxu0 0.0
        %10989 = vmatpush1.msra.mxu0 0.0
        %10990 = vmatprep.subr.mxu0 0.0
        %10991 = vmatpush1.msra.mxu0 0.0
        %10992 = vmatprep.subr.mxu0 0.0
        %10993 = vmatpush1.msra.mxu0 0.0
        %10994 = vmatprep.subr.mxu0 0.0
        %10995 = vmatpush1.msra.mxu0 0.0
        %10996 = vmatprep.subr.mxu0 0.0
        %10997 = vmatpush1.msra.mxu0 0.0
        %10998 = vmatprep.subr.mxu0 0.0
        %10999 = vmatpush1.msra.mxu0 0.0
        %11000 = vmatprep.subr.mxu0 0.0
        %11001 = vmatpush1.msra.mxu0 0.0
        %11002 = vmatprep.subr.mxu0 0.0
        %11003 = vmatpush1.msra.mxu0 0.0
        %11004 = vmatprep.subr.mxu0 0.0
        %11005 = vmatpush1.msra.mxu0 0.0
        %11006 = vmatprep.subr.mxu0 0.0
        %11007 = vmatpush1.msra.mxu0 0.0
        %11008 = vmatprep.subr.mxu0 0.0
        %11009 = vmatpush1.msra.mxu0 0.0
        %11010 = vmatprep.subr.mxu0 0.0
        %11011 = vmatpush1.msra.mxu0 0.0
        %11012 = vmatprep.subr.mxu0 0.0
        %11013 = vmatpush1.msra.mxu0 0.0
        %11014 = vmatprep.subr.mxu0 0.0
        %11015 = vmatpush1.msra.mxu0 0.0
        %11016 = vmatprep.subr.mxu0 0.0
        %11017 = vmatpush1.msra.mxu0 0.0
        %11018 = vmatprep.subr.mxu0 0.0
        %11019 = vmatpush1.msra.mxu0 0.0
        %11020 = vmatprep.subr.mxu0 0.0
        %11021 = vmatpush1.msra.mxu0 0.0
        %11022 = vmatprep.subr.mxu0 0.0
        %11023 = vmatpush1.msra.mxu0 0.0
        %11024 = vmatprep.subr.mxu0 0.0
        %11025 = vmatpush1.msra.mxu0 0.0
        %11026 = vmatprep.subr.mxu0 0.0
        %11027 = vmatpush1.msra.mxu0 0.0
        %11028 = vmatprep.subr.mxu0 0.0
        %11029 = vmatpush1.msra.mxu0 0.0
        %11030 = vmatprep.subr.mxu0 0.0
        %11031 = vmatpush1.msra.mxu0 0.0
        %11032 = vmatprep.subr.mxu0 0.0
        %11033 = vmatpush1.msra.mxu0 0.0
        %11034 = vmatprep.subr.mxu0 0.0
        %11035 = vmatpush1.msra.mxu0 0.0
        %11036 = vmatprep.subr.mxu0 0.0
        %11037 = vmatpush1.msra.mxu0 0.0
        %11038 = vmatprep.subr.mxu0 0.0
        %11039 = vmatpush1.msra.mxu0 0.0
        %11040 = vmatprep.mubr.f32.mxu0 0.0
        %11041 = vmatmul.mubr.f32.gmra.mrb[0].mxu0 %v10881
        %v11042 = vpop.f32.mrb[0].mxu0
        %v11043 = vadd.f32 %v10878, %v11042
        %v11044 = vpop.f32.mrb[0].mxu0
        %11045 = vmatprep.mubr.f32.mxu0 0.0
        %11046 = vmatmul.mubr.f32.gmra.mrb[0].mxu0 %v10884
        %v11047 = vpop.f32.mrb[0].mxu0
        %v11048 = vadd.f32 %v10878, %v11047
        %v11049 = vpop.f32.mrb[0].mxu0
        %11050 = vmatprep.mubr.f32.mxu0 0.0
        %11051 = vmatmul.mubr.f32.gmra.mrb[0].mxu0 %v10887
        %v11052 = vpop.f32.mrb[0].mxu0
        %v11053 = vadd.f32 %v10878, %v11052
        %v11054 = vpop.f32.mrb[0].mxu0
        %11055 = vmatprep.mubr.f32.mxu0 0.0
        %11056 = vmatmul.mubr.f32.gmra.mrb[0].mxu0 %v10890
        %v11057 = vpop.f32.mrb[0].mxu0
        %v11058 = vadd.f32 %v10878, %v11057
        %v11059 = vpop.f32.mrb[0].mxu0
        %11060 = vmatprep.mubr.f32.mxu0 0.0
        %11061 = vmatmul.mubr.f32.gmra.mrb[0].mxu0 %v10893
        %v11062 = vpop.f32.mrb[0].mxu0
        %v11063 = vadd.f32 %v10878, %v11062
        %v11064 = vpop.f32.mrb[0].mxu0
        %11065 = vmatprep.mubr.f32.mxu0 0.0
        %11066 = vmatmul.mubr.f32.gmra.mrb[0].mxu0 %v10896
        %v11067 = vpop.f32.mrb[0].mxu0
        %v11068 = vadd.f32 %v10878, %v11067
        %v11069 = vpop.f32.mrb[0].mxu0
        %11070 = vmatprep.mubr.f32.mxu0 0.0
        %11071 = vmatmul.mubr.f32.gmra.mrb[0].mxu0 %v10899
        %v11072 = vpop.f32.mrb[0].mxu0
        %v11073 = vadd.f32 %v10878, %v11072
        %v11074 = vpop.f32.mrb[0].mxu0
        %11075 = vmatprep.mubr.f32.mxu0 0.0
        %11076 = vmatmul.mubr.f32.gmra.mrb[0].mxu0 %v10902
        %v11077 = vpop.f32.mrb[0].mxu0
        %v11078 = vadd.f32 %v10878, %v11077
        %v11079 = vpop.f32.mrb[0].mxu0
        %11080 = vmatprep.mubr.f32.mxu0 0.0
        %11081 = vmatmul.mubr.f32.gmra.mrb[0].mxu0 %v10905
        %v11082 = vpop.f32.mrb[0].mxu0
        %v11083 = vadd.f32 %v10878, %v11082
        %v11084 = vpop.f32.mrb[0].mxu0
        %11085 = vmatprep.mubr.f32.mxu0 0.0
        %11086 = vmatmul.mubr.f32.gmra.mrb[0].mxu0 %v10908
        %v11087 = vpop.f32.mrb[0].mxu0
        %v11088 = vadd.f32 %v10878, %v11087
        %v11089 = vpop.f32.mrb[0].mxu0
        %11090 = vmatprep.mubr.f32.mxu0 0.0
        %11091 = vmatmul.mubr.f32.gmra.mrb[0].mxu0 %v10911
        %v11092 = vpop.f32.mrb[0].mxu0
        %v11093 = vadd.f32 %v10878, %v11092
        %v11094 = vpop.f32.mrb[0].mxu0
        %11095 = vmatprep.mubr.f32.mxu0 0.0
        %11096 = vmatmul.mubr.f32.gmra.mrb[0].mxu0 %v10914
        %v11097 = vpop.f32.mrb[0].mxu0
        %v11098 = vadd.f32 %v10878, %v11097
        %v11099 = vpop.f32.mrb[0].mxu0
        %11100 = vmatprep.mubr.f32.mxu0 0.0
        %11101 = vmatmul.mubr.f32.gmra.mrb[0].mxu0 %v10917
        %v11102 = vpop.f32.mrb[0].mxu0
        %v11103 = vadd.f32 %v10878, %v11102
        %v11104 = vpop.f32.mrb[0].mxu0
        %11105 = vmatprep.mubr.f32.mxu0 0.0
        %11106 = vmatmul.mubr.f32.gmra.mrb[0].mxu0 %v10920
        %v11107 = vpop.f32.mrb[0].mxu0
        %v11108 = vadd.f32 %v10878, %v11107
        %v11109 = vpop.f32.mrb[0].mxu0
        %11110 = vmatprep.mubr.f32.mxu0 0.0
        %11111 = vmatmul.mubr.f32.gmra.mrb[0].mxu0 %v10923
        %v11112 = vpop.f32.mrb[0].mxu0
        %v11113 = vadd.f32 %v10878, %v11112
        %v11114 = vpop.f32.mrb[0].mxu0
        %11115 = vmatprep.mubr.f32.mxu0 0.0
        %11116 = vmatmul.mubr.f32.gmra.mrb[0].mxu0 %v10926
        %v11117 = vpop.f32.mrb[0].mxu0
        %v11118 = vadd.f32 %v10878, %v11117
        %v11119 = vpop.f32.mrb[0].mxu0
        %11120 = vmatprep.mubr.f32.mxu0 0.0
        %11121 = vmatmul.mubr.f32.gmra.mrb[0].mxu0 %v10929
        %v11122 = vpop.f32.mrb[0].mxu0
        %v11123 = vadd.f32 %v10878, %v11122
        %v11124 = vpop.f32.mrb[0].mxu0
        %11125 = vmatprep.mubr.f32.mxu0 0.0
        %11126 = vmatmul.mubr.f32.gmra.mrb[0].mxu0 %v10932
        %v11127 = vpop.f32.mrb[0].mxu0
        %v11128 = vadd.f32 %v10878, %v11127
        %v11129 = vpop.f32.mrb[0].mxu0
        %11130 = vmatprep.mubr.f32.mxu0 0.0
        %11131 = vmatmul.mubr.f32.gmra.mrb[0].mxu0 %v10935
        %v11132 = vpop.f32.mrb[0].mxu0
        %v11133 = vadd.f32 %v10878, %v11132
        %v11134 = vpop.f32.mrb[0].mxu0
        %11135 = vmatprep.mubr.f32.mxu0 0.0
        %11136 = vmatmul.mubr.f32.gmra.mrb[0].mxu0 %v10938
        %v11137 = vpop.f32.mrb[0].mxu0
        %v11138 = vadd.f32 %v10878, %v11137
        %v11139 = vpop.f32.mrb[0].mxu0
        %11140 = vmatprep.mubr.f32.mxu0 0.0
        %11141 = vmatmul.mubr.f32.gmra.mrb[0].mxu0 %v10941
        %v11142 = vpop.f32.mrb[0].mxu0
        %v11143 = vadd.f32 %v10878, %v11142
        %v11144 = vpop.f32.mrb[0].mxu0
        %11145 = vmatprep.mubr.f32.mxu0 0.0
        %11146 = vmatmul.mubr.f32.gmra.mrb[0].mxu0 %v10944
        %v11147 = vpop.f32.mrb[0].mxu0
        %v11148 = vadd.f32 %v10878, %v11147
        %v11149 = vpop.f32.mrb[0].mxu0
        %11150 = vmatprep.mubr.f32.mxu0 0.0
        %11151 = vmatmul.mubr.f32.gmra.mrb[0].mxu0 %v10947
        %v11152 = vpop.f32.mrb[0].mxu0
        %v11153 = vadd.f32 %v10878, %v11152
        %v11154 = vpop.f32.mrb[0].mxu0
        %11155 = vmatprep.mubr.f32.mxu0 0.0
        %11156 = vmatmul.mubr.f32.gmra.mrb[0].mxu0 %v10950
        %v11157 = vpop.f32.mrb[0].mxu0
        %v11158 = vadd.f32 %v10878, %v11157
        %v11159 = vpop.f32.mrb[0].mxu0
        %11160 = vmatprep.mubr.f32.mxu0 0.0
        %11161 = vmatmul.mubr.f32.gmra.mrb[0].mxu0 %v10953
        %v11162 = vpop.f32.mrb[0].mxu0
        %v11163 = vadd.f32 %v10878, %v11162
        %v11164 = vpop.f32.mrb[0].mxu0
        %11165 = vmatprep.mubr.f32.mxu0 0.0
        %11166 = vmatmul.mubr.f32.gmra.mrb[0].mxu0 %v10956
        %v11167 = vpop.f32.mrb[0].mxu0
        %v11168 = vadd.f32 %v10878, %v11167
        %v11169 = vpop.f32.mrb[0].mxu0
        %11170 = vmatprep.mubr.f32.mxu0 0.0
        %11171 = vmatmul.mubr.f32.gmra.mrb[0].mxu0 %v10959
        %v11172 = vpop.f32.mrb[0].mxu0
        %v11173 = vadd.f32 %v10878, %v11172
        %v11174 = vpop.f32.mrb[0].mxu0
        %11175 = vmatprep.mubr.f32.mxu0 0.0
        %11176 = vmatmul.mubr.f32.gmra.mrb[0].mxu0 %v10962
        %v11177 = vpop.f32.mrb[0].mxu0
        %v11178 = vadd.f32 %v10878, %v11177
        %v11179 = vpop.f32.mrb[0].mxu0
        %11180 = vmatprep.mubr.f32.mxu0 0.0
        %11181 = vmatmul.mubr.f32.gmra.mrb[0].mxu0 %v10965
        %v11182 = vpop.f32.mrb[0].mxu0
        %v11183 = vadd.f32 %v10878, %v11182
        %v11184 = vpop.f32.mrb[0].mxu0
        %11185 = vmatprep.mubr.f32.mxu0 0.0
        %11186 = vmatmul.mubr.f32.gmra.mrb[0].mxu0 %v10968
        %v11187 = vpop.f32.mrb[0].mxu0
        %v11188 = vadd.f32 %v10878, %v11187
        %v11189 = vpop.f32.mrb[0].mxu0
        %11190 = vmatprep.mubr.f32.mxu0 0.0
        %11191 = vmatmul.mubr.f32.gmra.mrb[0].mxu0 %v10971
        %v11192 = vpop.f32.mrb[0].mxu0
        %v11193 = vadd.f32 %v10878, %v11192
        %v11194 = vpop.f32.mrb[0].mxu0
        %11195 = vmatprep.mubr.f32.mxu0 0.0
        %11196 = vmatmul.mubr.f32.gmra.mrb[0].mxu0 %v10974
        %v11197 = vpop.f32.mrb[0].mxu0
        %v11198 = vadd.f32 %v10878, %v11197
        %v11199 = vpop.f32.mrb[0].mxu0
        %11200 = vdwg.mxu0
        %vm11201 = vcmask 1046528
        %v11202 = vrot.slane %v414, 1
        %v11203 = vrot.slane %v415, 1
        %v11204 = vsel %vm11201, %v11202, %v11203
        %v11205 = vrot.slane %v416, 1
        %v11206 = vrot.slane %v417, 1
        %v11207 = vsel %vm11201, %v11205, %v11206
        %v11208 = vrot.slane %v418, 1
        %v11209 = vrot.slane %v419, 1
        %v11210 = vsel %vm11201, %v11208, %v11209
        %v11211 = vrot.slane %v420, 1
        %v11212 = vrot.slane %v421, 1
        %v11213 = vsel %vm11201, %v11211, %v11212
        %v11214 = vrot.slane %v422, 1
        %v11215 = vrot.slane %v423, 1
        %v11216 = vsel %vm11201, %v11214, %v11215
        %v11217 = vrot.slane %v424, 1
        %v11218 = vrot.slane %v425, 1
        %v11219 = vsel %vm11201, %v11217, %v11218
        %v11220 = vrot.slane %v426, 1
        %v11221 = vrot.slane %v427, 1
        %v11222 = vsel %vm11201, %v11220, %v11221
        %v11223 = vrot.slane %v428, 1
        %v11224 = vrot.slane %v429, 1
        %v11225 = vsel %vm11201, %v11223, %v11224
        %v11226 = vrot.slane %v434, 1
        %v11227 = vrot.slane %v435, 1
        %v11228 = vsel %vm11201, %v11226, %v11227
        %v11229 = vrot.slane %v436, 1
        %v11230 = vrot.slane %v437, 1
        %v11231 = vsel %vm11201, %v11229, %v11230
        %v11232 = vrot.slane %v438, 1
        %v11233 = vrot.slane %v439, 1
        %v11234 = vsel %vm11201, %v11232, %v11233
        %v11235 = vrot.slane %v440, 1
        %v11236 = vrot.slane %v441, 1
        %v11237 = vsel %vm11201, %v11235, %v11236
        %v11238 = vrot.slane %v442, 1
        %v11239 = vrot.slane %v443, 1
        %v11240 = vsel %vm11201, %v11238, %v11239
        %v11241 = vrot.slane %v444, 1
        %v11242 = vrot.slane %v445, 1
        %v11243 = vsel %vm11201, %v11241, %v11242
        %v11244 = vrot.slane %v446, 1
        %v11245 = vrot.slane %v447, 1
        %v11246 = vsel %vm11201, %v11244, %v11245
        %v11247 = vrot.slane %v448, 1
        %v11248 = vrot.slane %v449, 1
        %v11249 = vsel %vm11201, %v11247, %v11248
        %v11250 = vrot.slane %v454, 1
        %v11251 = vrot.slane %v455, 1
        %v11252 = vsel %vm11201, %v11250, %v11251
        %v11253 = vrot.slane %v456, 1
        %v11254 = vrot.slane %v457, 1
        %v11255 = vsel %vm11201, %v11253, %v11254
        %v11256 = vrot.slane %v458, 1
        %v11257 = vrot.slane %v459, 1
        %v11258 = vsel %vm11201, %v11256, %v11257
        %v11259 = vrot.slane %v460, 1
        %v11260 = vrot.slane %v461, 1
        %v11261 = vsel %vm11201, %v11259, %v11260
        %v11262 = vrot.slane %v462, 1
        %v11263 = vrot.slane %v463, 1
        %v11264 = vsel %vm11201, %v11262, %v11263
        %v11265 = vrot.slane %v464, 1
        %v11266 = vrot.slane %v465, 1
        %v11267 = vsel %vm11201, %v11265, %v11266
        %v11268 = vrot.slane %v466, 1
        %v11269 = vrot.slane %v467, 1
        %v11270 = vsel %vm11201, %v11268, %v11269
        %v11271 = vrot.slane %v468, 1
        %v11272 = vrot.slane %v469, 1
        %v11273 = vsel %vm11201, %v11271, %v11272
        %v11274 = vrot.slane %v474, 1
        %v11275 = vrot.slane %v475, 1
        %v11276 = vsel %vm11201, %v11274, %v11275
        %v11277 = vrot.slane %v476, 1
        %v11278 = vrot.slane %v477, 1
        %v11279 = vsel %vm11201, %v11277, %v11278
        %v11280 = vrot.slane %v478, 1
        %v11281 = vrot.slane %v479, 1
        %v11282 = vsel %vm11201, %v11280, %v11281
        %v11283 = vrot.slane %v480, 1
        %v11284 = vrot.slane %v481, 1
        %v11285 = vsel %vm11201, %v11283, %v11284
        %v11286 = vrot.slane %v482, 1
        %v11287 = vrot.slane %v483, 1
        %v11288 = vsel %vm11201, %v11286, %v11287
        %v11289 = vrot.slane %v484, 1
        %v11290 = vrot.slane %v485, 1
        %v11291 = vsel %vm11201, %v11289, %v11290
        %v11292 = vrot.slane %v486, 1
        %v11293 = vrot.slane %v487, 1
        %v11294 = vsel %vm11201, %v11292, %v11293
        %v11295 = vrot.slane %v488, 1
        %v11296 = vrot.slane %v489, 1
        %v11297 = vsel %vm11201, %v11295, %v11296
        %v11298 = vld [vmem:[%s10] sm:$0xff]
        %v11299 = vld [vmem:[%s11] sm:$0x1]
        %v11301 = vlaneseq
        %v11302 = vshrl.u32 %v11301, 7
        %v11303 = vsub.s32 0, %v11302
        %v11304 = vrot.slane %v11299, %v11303
        %v11306 = vsel %vm2390, %v11204, 0
        %v11308 = vsel %vm2390, %v11207, 0
        %v11310 = vsel %vm2390, %v11210, 0
        %v11312 = vsel %vm2390, %v11213, 0
        %v11314 = vsel %vm2390, %v11216, 0
        %v11316 = vsel %vm2390, %v11219, 0
        %v11318 = vsel %vm2390, %v11222, 0
        %v11320 = vsel %vm2390, %v11225, 0
        %v11322 = vsel %vm2390, %v11228, 0
        %v11324 = vsel %vm2390, %v11231, 0
        %v11326 = vsel %vm2390, %v11234, 0
        %v11328 = vsel %vm2390, %v11237, 0
        %v11330 = vsel %vm2390, %v11240, 0
        %v11332 = vsel %vm2390, %v11243, 0
        %v11334 = vsel %vm2390, %v11246, 0
        %v11336 = vsel %vm2390, %v11249, 0
        %v11338 = vsel %vm2390, %v11252, 0
        %v11340 = vsel %vm2390, %v11255, 0
        %v11342 = vsel %vm2390, %v11258, 0
        %v11344 = vsel %vm2390, %v11261, 0
        %v11346 = vsel %vm2390, %v11264, 0
        %v11348 = vsel %vm2390, %v11267, 0
        %v11350 = vsel %vm2390, %v11270, 0
        %v11352 = vsel %vm2390, %v11273, 0
        %v11354 = vsel %vm2390, %v11276, 0
        %v11356 = vsel %vm2390, %v11279, 0
        %v11358 = vsel %vm2390, %v11282, 0
        %v11360 = vsel %vm2390, %v11285, 0
        %v11362 = vsel %vm2390, %v11288, 0
        %v11364 = vsel %vm2390, %v11291, 0
        %v11366 = vsel %vm2390, %v11294, 0
        %v11368 = vsel %vm2390, %v11297, 0
        %11370 = vmatprep.subr.mxu0 0.0
        %11371 = vmatpush1.msra.mxu0 %v11298
        %11372 = vmatprep.subr.mxu0 0.0
        %11373 = vmatpush1.msra.mxu0 0.0
        %11374 = vmatprep.subr.mxu0 0.0
        %11375 = vmatpush1.msra.mxu0 0.0
        %11376 = vmatprep.subr.mxu0 0.0
        %11377 = vmatpush1.msra.mxu0 0.0
        %11378 = vmatprep.subr.mxu0 0.0
        %11379 = vmatpush1.msra.mxu0 0.0
        %11380 = vmatprep.subr.mxu0 0.0
        %11381 = vmatpush1.msra.mxu0 0.0
        %11382 = vmatprep.subr.mxu0 0.0
        %11383 = vmatpush1.msra.mxu0 0.0
        %11384 = vmatprep.subr.mxu0 0.0
        %11385 = vmatpush1.msra.mxu0 0.0
        %11386 = vmatprep.subr.mxu0 0.0
        %11387 = vmatpush1.msra.mxu0 0.0
        %11388 = vmatprep.subr.mxu0 0.0
        %11389 = vmatpush1.msra.mxu0 0.0
        %11390 = vmatprep.subr.mxu0 0.0
        %11391 = vmatpush1.msra.mxu0 0.0
        %11392 = vmatprep.subr.mxu0 0.0
        %11393 = vmatpush1.msra.mxu0 0.0
        %11394 = vmatprep.subr.mxu0 0.0
        %11395 = vmatpush1.msra.mxu0 0.0
        %11396 = vmatprep.subr.mxu0 0.0
        %11397 = vmatpush1.msra.mxu0 0.0
        %11398 = vmatprep.subr.mxu0 0.0
        %11399 = vmatpush1.msra.mxu0 0.0
        %11400 = vmatprep.subr.mxu0 0.0
        %11401 = vmatpush1.msra.mxu0 0.0
        %11402 = vmatprep.subr.mxu0 0.0
        %11403 = vmatpush1.msra.mxu0 0.0
        %11404 = vmatprep.subr.mxu0 0.0
        %11405 = vmatpush1.msra.mxu0 0.0
        %11406 = vmatprep.subr.mxu0 0.0
        %11407 = vmatpush1.msra.mxu0 0.0
        %11408 = vmatprep.subr.mxu0 0.0
        %11409 = vmatpush1.msra.mxu0 0.0
        %11410 = vmatprep.subr.mxu0 0.0
        %11411 = vmatpush1.msra.mxu0 0.0
        %11412 = vmatprep.subr.mxu0 0.0
        %11413 = vmatpush1.msra.mxu0 0.0
        %11414 = vmatprep.subr.mxu0 0.0
        %11415 = vmatpush1.msra.mxu0 0.0
        %11416 = vmatprep.subr.mxu0 0.0
        %11417 = vmatpush1.msra.mxu0 0.0
        %11418 = vmatprep.subr.mxu0 0.0
        %11419 = vmatpush1.msra.mxu0 0.0
        %11420 = vmatprep.subr.mxu0 0.0
        %11421 = vmatpush1.msra.mxu0 0.0
        %11422 = vmatprep.subr.mxu0 0.0
        %11423 = vmatpush1.msra.mxu0 0.0
        %11424 = vmatprep.subr.mxu0 0.0
        %11425 = vmatpush1.msra.mxu0 0.0
        %11426 = vmatprep.subr.mxu0 0.0
        %11427 = vmatpush1.msra.mxu0 0.0
        %11428 = vmatprep.subr.mxu0 0.0
        %11429 = vmatpush1.msra.mxu0 0.0
        %11430 = vmatprep.subr.mxu0 0.0
        %11431 = vmatpush1.msra.mxu0 0.0
        %11432 = vmatprep.subr.mxu0 0.0
        %11433 = vmatpush1.msra.mxu0 0.0
        %11434 = vmatprep.mubr.f32.mxu0 0.0
        %11435 = vmatmul.mubr.f32.gmra.mrb[0].mxu0 %v11306
        %v11436 = vpop.f32.mrb[0].mxu0
        %v11437 = vadd.f32 %v11304, %v11436
        %v11438 = vpop.f32.mrb[0].mxu0
        %11439 = vmatprep.mubr.f32.mxu0 0.0
        %11440 = vmatmul.mubr.f32.gmra.mrb[0].mxu0 %v11308
        %v11441 = vpop.f32.mrb[0].mxu0
        %v11442 = vadd.f32 %v11304, %v11441
        %v11443 = vpop.f32.mrb[0].mxu0
        %11444 = vmatprep.mubr.f32.mxu0 0.0
        %11445 = vmatmul.mubr.f32.gmra.mrb[0].mxu0 %v11310
        %v11446 = vpop.f32.mrb[0].mxu0
        %v11447 = vadd.f32 %v11304, %v11446
        %v11448 = vpop.f32.mrb[0].mxu0
        %11449 = vmatprep.mubr.f32.mxu0 0.0
        %11450 = vmatmul.mubr.f32.gmra.mrb[0].mxu0 %v11312
        %v11451 = vpop.f32.mrb[0].mxu0
        %v11452 = vadd.f32 %v11304, %v11451
        %v11453 = vpop.f32.mrb[0].mxu0
        %11454 = vmatprep.mubr.f32.mxu0 0.0
        %11455 = vmatmul.mubr.f32.gmra.mrb[0].mxu0 %v11314
        %v11456 = vpop.f32.mrb[0].mxu0
        %v11457 = vadd.f32 %v11304, %v11456
        %v11458 = vpop.f32.mrb[0].mxu0
        %11459 = vmatprep.mubr.f32.mxu0 0.0
        %11460 = vmatmul.mubr.f32.gmra.mrb[0].mxu0 %v11316
        %v11461 = vpop.f32.mrb[0].mxu0
        %v11462 = vadd.f32 %v11304, %v11461
        %v11463 = vpop.f32.mrb[0].mxu0
        %11464 = vmatprep.mubr.f32.mxu0 0.0
        %11465 = vmatmul.mubr.f32.gmra.mrb[0].mxu0 %v11318
        %v11466 = vpop.f32.mrb[0].mxu0
        %v11467 = vadd.f32 %v11304, %v11466
        %v11468 = vpop.f32.mrb[0].mxu0
        %11469 = vmatprep.mubr.f32.mxu0 0.0
        %11470 = vmatmul.mubr.f32.gmra.mrb[0].mxu0 %v11320
        %v11471 = vpop.f32.mrb[0].mxu0
        %v11472 = vadd.f32 %v11304, %v11471
        %v11473 = vpop.f32.mrb[0].mxu0
        %11474 = vmatprep.mubr.f32.mxu0 0.0
        %11475 = vmatmul.mubr.f32.gmra.mrb[0].mxu0 %v11322
        %v11476 = vpop.f32.mrb[0].mxu0
        %v11477 = vadd.f32 %v11304, %v11476
        %v11478 = vpop.f32.mrb[0].mxu0
        %11479 = vmatprep.mubr.f32.mxu0 0.0
        %11480 = vmatmul.mubr.f32.gmra.mrb[0].mxu0 %v11324
        %v11481 = vpop.f32.mrb[0].mxu0
        %v11482 = vadd.f32 %v11304, %v11481
        %v11483 = vpop.f32.mrb[0].mxu0
        %11484 = vmatprep.mubr.f32.mxu0 0.0
        %11485 = vmatmul.mubr.f32.gmra.mrb[0].mxu0 %v11326
        %v11486 = vpop.f32.mrb[0].mxu0
        %v11487 = vadd.f32 %v11304, %v11486
        %v11488 = vpop.f32.mrb[0].mxu0
        %11489 = vmatprep.mubr.f32.mxu0 0.0
        %11490 = vmatmul.mubr.f32.gmra.mrb[0].mxu0 %v11328
        %v11491 = vpop.f32.mrb[0].mxu0
        %v11492 = vadd.f32 %v11304, %v11491
        %v11493 = vpop.f32.mrb[0].mxu0
        %11494 = vmatprep.mubr.f32.mxu0 0.0
        %11495 = vmatmul.mubr.f32.gmra.mrb[0].mxu0 %v11330
        %v11496 = vpop.f32.mrb[0].mxu0
        %v11497 = vadd.f32 %v11304, %v11496
        %v11498 = vpop.f32.mrb[0].mxu0
        %11499 = vmatprep.mubr.f32.mxu0 0.0
        %11500 = vmatmul.mubr.f32.gmra.mrb[0].mxu0 %v11332
        %v11501 = vpop.f32.mrb[0].mxu0
        %v11502 = vadd.f32 %v11304, %v11501
        %v11503 = vpop.f32.mrb[0].mxu0
        %11504 = vmatprep.mubr.f32.mxu0 0.0
        %11505 = vmatmul.mubr.f32.gmra.mrb[0].mxu0 %v11334
        %v11506 = vpop.f32.mrb[0].mxu0
        %v11507 = vadd.f32 %v11304, %v11506
        %v11508 = vpop.f32.mrb[0].mxu0
        %11509 = vmatprep.mubr.f32.mxu0 0.0
        %11510 = vmatmul.mubr.f32.gmra.mrb[0].mxu0 %v11336
        %v11511 = vpop.f32.mrb[0].mxu0
        %v11512 = vadd.f32 %v11304, %v11511
        %v11513 = vpop.f32.mrb[0].mxu0
        %11514 = vmatprep.mubr.f32.mxu0 0.0
        %11515 = vmatmul.mubr.f32.gmra.mrb[0].mxu0 %v11338
        %v11516 = vpop.f32.mrb[0].mxu0
        %v11517 = vadd.f32 %v11304, %v11516
        %v11518 = vpop.f32.mrb[0].mxu0
        %11519 = vmatprep.mubr.f32.mxu0 0.0
        %11520 = vmatmul.mubr.f32.gmra.mrb[0].mxu0 %v11340
        %v11521 = vpop.f32.mrb[0].mxu0
        %v11522 = vadd.f32 %v11304, %v11521
        %v11523 = vpop.f32.mrb[0].mxu0
        %11524 = vmatprep.mubr.f32.mxu0 0.0
        %11525 = vmatmul.mubr.f32.gmra.mrb[0].mxu0 %v11342
        %v11526 = vpop.f32.mrb[0].mxu0
        %v11527 = vadd.f32 %v11304, %v11526
        %v11528 = vpop.f32.mrb[0].mxu0
        %11529 = vmatprep.mubr.f32.mxu0 0.0
        %11530 = vmatmul.mubr.f32.gmra.mrb[0].mxu0 %v11344
        %v11531 = vpop.f32.mrb[0].mxu0
        %v11532 = vadd.f32 %v11304, %v11531
        %v11533 = vpop.f32.mrb[0].mxu0
        %11534 = vmatprep.mubr.f32.mxu0 0.0
        %11535 = vmatmul.mubr.f32.gmra.mrb[0].mxu0 %v11346
        %v11536 = vpop.f32.mrb[0].mxu0
        %v11537 = vadd.f32 %v11304, %v11536
        %v11538 = vpop.f32.mrb[0].mxu0
        %11539 = vmatprep.mubr.f32.mxu0 0.0
        %11540 = vmatmul.mubr.f32.gmra.mrb[0].mxu0 %v11348
        %v11541 = vpop.f32.mrb[0].mxu0
        %v11542 = vadd.f32 %v11304, %v11541
        %v11543 = vpop.f32.mrb[0].mxu0
        %11544 = vmatprep.mubr.f32.mxu0 0.0
        %11545 = vmatmul.mubr.f32.gmra.mrb[0].mxu0 %v11350
        %v11546 = vpop.f32.mrb[0].mxu0
        %v11547 = vadd.f32 %v11304, %v11546
        %v11548 = vpop.f32.mrb[0].mxu0
        %11549 = vmatprep.mubr.f32.mxu0 0.0
        %11550 = vmatmul.mubr.f32.gmra.mrb[0].mxu0 %v11352
        %v11551 = vpop.f32.mrb[0].mxu0
        %v11552 = vadd.f32 %v11304, %v11551
        %v11553 = vpop.f32.mrb[0].mxu0
        %11554 = vmatprep.mubr.f32.mxu0 0.0
        %11555 = vmatmul.mubr.f32.gmra.mrb[0].mxu0 %v11354
        %v11556 = vpop.f32.mrb[0].mxu0
        %v11557 = vadd.f32 %v11304, %v11556
        %v11558 = vpop.f32.mrb[0].mxu0
        %11559 = vmatprep.mubr.f32.mxu0 0.0
        %11560 = vmatmul.mubr.f32.gmra.mrb[0].mxu0 %v11356
        %v11561 = vpop.f32.mrb[0].mxu0
        %v11562 = vadd.f32 %v11304, %v11561
        %v11563 = vpop.f32.mrb[0].mxu0
        %11564 = vmatprep.mubr.f32.mxu0 0.0
        %11565 = vmatmul.mubr.f32.gmra.mrb[0].mxu0 %v11358
        %v11566 = vpop.f32.mrb[0].mxu0
        %v11567 = vadd.f32 %v11304, %v11566
        %v11568 = vpop.f32.mrb[0].mxu0
        %11569 = vmatprep.mubr.f32.mxu0 0.0
        %11570 = vmatmul.mubr.f32.gmra.mrb[0].mxu0 %v11360
        %v11571 = vpop.f32.mrb[0].mxu0
        %v11572 = vadd.f32 %v11304, %v11571
        %v11573 = vpop.f32.mrb[0].mxu0
        %11574 = vmatprep.mubr.f32.mxu0 0.0
        %11575 = vmatmul.mubr.f32.gmra.mrb[0].mxu0 %v11362
        %v11576 = vpop.f32.mrb[0].mxu0
        %v11577 = vadd.f32 %v11304, %v11576
        %v11578 = vpop.f32.mrb[0].mxu0
        %11579 = vmatprep.mubr.f32.mxu0 0.0
        %11580 = vmatmul.mubr.f32.gmra.mrb[0].mxu0 %v11364
        %v11581 = vpop.f32.mrb[0].mxu0
        %v11582 = vadd.f32 %v11304, %v11581
        %v11583 = vpop.f32.mrb[0].mxu0
        %11584 = vmatprep.mubr.f32.mxu0 0.0
        %11585 = vmatmul.mubr.f32.gmra.mrb[0].mxu0 %v11366
        %v11586 = vpop.f32.mrb[0].mxu0
        %v11587 = vadd.f32 %v11304, %v11586
        %v11588 = vpop.f32.mrb[0].mxu0
        %11589 = vmatprep.mubr.f32.mxu0 0.0
        %11590 = vmatmul.mubr.f32.gmra.mrb[0].mxu0 %v11368
        %v11591 = vpop.f32.mrb[0].mxu0
        %v11592 = vadd.f32 %v11304, %v11591
        %v11593 = vpop.f32.mrb[0].mxu0
        %11594 = vdwg.mxu0
        %v11595 = vadd.f32 %v11043, %v11437
        %v11596 = vadd.f32 %v11048, %v11442
        %v11597 = vadd.f32 %v11053, %v11447
        %v11598 = vadd.f32 %v11058, %v11452
        %v11599 = vadd.f32 %v11063, %v11457
        %v11600 = vadd.f32 %v11068, %v11462
        %v11601 = vadd.f32 %v11073, %v11467
        %v11602 = vadd.f32 %v11078, %v11472
        %v11603 = vadd.f32 %v11083, %v11477
        %v11604 = vadd.f32 %v11088, %v11482
        %v11605 = vadd.f32 %v11093, %v11487
        %v11606 = vadd.f32 %v11098, %v11492
        %v11607 = vadd.f32 %v11103, %v11497
        %v11608 = vadd.f32 %v11108, %v11502
        %v11609 = vadd.f32 %v11113, %v11507
        %v11610 = vadd.f32 %v11118, %v11512
        %v11611 = vadd.f32 %v11123, %v11517
        %v11612 = vadd.f32 %v11128, %v11522
        %v11613 = vadd.f32 %v11133, %v11527
        %v11614 = vadd.f32 %v11138, %v11532
        %v11615 = vadd.f32 %v11143, %v11537
        %v11616 = vadd.f32 %v11148, %v11542
        %v11617 = vadd.f32 %v11153, %v11547
        %v11618 = vadd.f32 %v11158, %v11552
        %v11619 = vadd.f32 %v11163, %v11557
        %v11620 = vadd.f32 %v11168, %v11562
        %v11621 = vadd.f32 %v11173, %v11567
        %v11622 = vadd.f32 %v11178, %v11572
        %v11623 = vadd.f32 %v11183, %v11577
        %v11624 = vadd.f32 %v11188, %v11582
        %v11625 = vadd.f32 %v11193, %v11587
        %v11626 = vadd.f32 %v11198, %v11592
        %v11627 = vmax.f32 %v11595, 0.0
        %v11628 = vmax.f32 %v11596, 0.0
        %v11629 = vmax.f32 %v11597, 0.0
        %v11630 = vmax.f32 %v11598, 0.0
        %v11631 = vmax.f32 %v11599, 0.0
        %v11632 = vmax.f32 %v11600, 0.0
        %v11633 = vmax.f32 %v11601, 0.0
        %v11634 = vmax.f32 %v11602, 0.0
        %v11635 = vmax.f32 %v11603, 0.0
        %v11636 = vmax.f32 %v11604, 0.0
        %v11637 = vmax.f32 %v11605, 0.0
        %v11638 = vmax.f32 %v11606, 0.0
        %v11639 = vmax.f32 %v11607, 0.0
        %v11640 = vmax.f32 %v11608, 0.0
        %v11641 = vmax.f32 %v11609, 0.0
        %v11642 = vmax.f32 %v11610, 0.0
        %v11643 = vmax.f32 %v11611, 0.0
        %v11644 = vmax.f32 %v11612, 0.0
        %v11645 = vmax.f32 %v11613, 0.0
        %v11646 = vmax.f32 %v11614, 0.0
        %v11647 = vmax.f32 %v11615, 0.0
        %v11648 = vmax.f32 %v11616, 0.0
        %v11649 = vmax.f32 %v11617, 0.0
        %v11650 = vmax.f32 %v11618, 0.0
        %v11651 = vmax.f32 %v11619, 0.0
        %v11652 = vmax.f32 %v11620, 0.0
        %v11653 = vmax.f32 %v11621, 0.0
        %v11654 = vmax.f32 %v11622, 0.0
        %v11655 = vmax.f32 %v11623, 0.0
        %v11656 = vmax.f32 %v11624, 0.0
        %v11657 = vmax.f32 %v11625, 0.0
        %v11658 = vmax.f32 %v11626, 0.0
        %vm11659 = vcmask 130048
        %11660 = vst.msk [vmem:[%s406] sm:$0xff] %vm11659, %v11627
        %11661 = vst.msk [vmem:[%s406 + $0x8] sm:$0xff] %vm11659, %v11628
        %11662 = vst.msk [vmem:[%s406 + $0x10] sm:$0xff] %vm11659, %v11629
        %11663 = vst.msk [vmem:[%s406 + $0x18] sm:$0xff] %vm11659, %v11630
        %11664 = vst.msk [vmem:[%s406 + $0x20] sm:$0xff] %vm11659, %v11631
        %11665 = vst.msk [vmem:[%s406 + $0x28] sm:$0xff] %vm11659, %v11632
        %11666 = vst.msk [vmem:[%s406 + $0x30] sm:$0xff] %vm11659, %v11633
        %11667 = vst.msk [vmem:[%s406 + $0x38] sm:$0xff] %vm11659, %v11634
        %11668 = vst.msk [vmem:[%s406 + $0x40] sm:$0xff] %vm11659, %v11635
        %11669 = vst.msk [vmem:[%s406 + $0x48] sm:$0xff] %vm11659, %v11636
        %11670 = vst.msk [vmem:[%s406 + $0x50] sm:$0xff] %vm11659, %v11637
        %11671 = vst.msk [vmem:[%s406 + $0x58] sm:$0xff] %vm11659, %v11638
        %11672 = vst.msk [vmem:[%s406 + $0x60] sm:$0xff] %vm11659, %v11639
        %11673 = vst.msk [vmem:[%s406 + $0x68] sm:$0xff] %vm11659, %v11640
        %11674 = vst.msk [vmem:[%s406 + $0x70] sm:$0xff] %vm11659, %v11641
        %11675 = vst.msk [vmem:[%s406 + $0x78] sm:$0xff] %vm11659, %v11642
        %11676 = vst.msk [vmem:[%s406 + $0x80] sm:$0xff] %vm11659, %v11643
        %11677 = vst.msk [vmem:[%s406 + $0x88] sm:$0xff] %vm11659, %v11644
        %11678 = vst.msk [vmem:[%s406 + $0x90] sm:$0xff] %vm11659, %v11645
        %11679 = vst.msk [vmem:[%s406 + $0x98] sm:$0xff] %vm11659, %v11646
        %11680 = vst.msk [vmem:[%s406 + $0xa0] sm:$0xff] %vm11659, %v11647
        %11681 = vst.msk [vmem:[%s406 + $0xa8] sm:$0xff] %vm11659, %v11648
        %11682 = vst.msk [vmem:[%s406 + $0xb0] sm:$0xff] %vm11659, %v11649
        %11683 = vst.msk [vmem:[%s406 + $0xb8] sm:$0xff] %vm11659, %v11650
        %11684 = vst.msk [vmem:[%s406 + $0xc0] sm:$0xff] %vm11659, %v11651
        %11685 = vst.msk [vmem:[%s406 + $0xc8] sm:$0xff] %vm11659, %v11652
        %11686 = vst.msk [vmem:[%s406 + $0xd0] sm:$0xff] %vm11659, %v11653
        %11687 = vst.msk [vmem:[%s406 + $0xd8] sm:$0xff] %vm11659, %v11654
        %11688 = vst.msk [vmem:[%s406 + $0xe0] sm:$0xff] %vm11659, %v11655
        %11689 = vst.msk [vmem:[%s406 + $0xe8] sm:$0xff] %vm11659, %v11656
        %11690 = vst.msk [vmem:[%s406 + $0xf0] sm:$0xff] %vm11659, %v11657
        %11691 = vst.msk [vmem:[%s406 + $0xf8] sm:$0xff] %vm11659, %v11658
        %s11692 = sand.u32 %s291, 1
        %s11693 = scalar_lea.sflag [#allocation3], %s11692
        %s11694 = sand.u32 %s291, 1
        %s11695 = smul.addr %s11694, 256
        %s11696 = scalar_lea.vmem [#allocation2], %s11695
        // Predicated region
        $region69: #{bottleneck_forward_pallas.1} parent=67 // pred_check
          %p11697 = pneg %p301
        $region70: #{bottleneck_forward_pallas.1} parent=67 // pred_check_branch
          %11699 = sbr.rel (%p11697) target = $region72
        $region71: #{bottleneck_forward_pallas.1} parent=67 // pred_region
          %s11701 = ssub.s32 4096, 4096
          %11702 = vsyncadd %s11693, %s11701
          %s11703 = smul.addr %s26, 32
          %s11704 = smul.addr %s11703, 128
          %s11705 = scalar_lea.hbm %s12, %s11704
          %s11706 = sshll.u32 %s11696, 4
          %s11707 = int_to_ptr.vmem [resolvable:$true] %s11706
          %11712 = dma.vmem_to_hbm [thread:$0]  %s11707, 4096, %s11705, %s11693, 128, 128, 8
        $region72: #{bottleneck_forward_pallas.1} parent=67 // pred_fallthru
          _
      $region68: #{bottleneck_forward_pallas.1} parent=5 // pred_fallthru
        _
      %p11713 = scmp.le.s32.totalorder 2, %s21
      // Predicated region
      $region73: #{bottleneck_forward_pallas.1} parent=5 // pred_check
        %p11714 = pneg %p11713
      $region74: #{bottleneck_forward_pallas.1} parent=5 // pred_check_branch
        %11716 = sbr.rel (%p11714) target = $region76
      $region75: #{bottleneck_forward_pallas.1} parent=5 // pred_region
        %s11717 = ssub.s32 %s21, 2
        // Predicated region
        $region77: #{bottleneck_forward_pallas.1} parent=75 // pred_check
          %p11718 = pneg %p307
        $region78: #{bottleneck_forward_pallas.1} parent=75 // pred_check_branch
          %11720 = sbr.rel (%p11718) target = $region80
        $region79: #{bottleneck_forward_pallas.1} parent=75 // pred_region
          %s11721 = sand.u32 %s292, 1
          %s11722 = scalar_lea.sflag [#allocation3], %s11721
          %s11723 = sand.u32 %s292, 1
          %s11724 = smul.addr %s11723, 256
          %s11725 = scalar_lea.vmem [#allocation2], %s11724
          %11726 = dma.done %s11722, 4096
        $region80: #{bottleneck_forward_pallas.1} parent=75 // pred_fallthru
          _
      $region76: #{bottleneck_forward_pallas.1} parent=5 // pred_fallthru
        _
    $region6: #{bottleneck_forward_pallas.1} parent=1 // loop_footer
      %s25 = sadd.s32 1, %s21
    $region7: #{bottleneck_forward_pallas.1} parent=1 // loop_footer_branch
      %20 = sbr.rel target = $region3
    $region8: #{bottleneck_forward_pallas.1} parent=1 // loop_exit
      _
    %11727 = vsyncpa [#allocation3], 1
    %s11728 = scalar_lea.sflag [#allocation3], 1
    %11729 = vsyncpa %s11728, 1

</llo_original>
